<compile_context>
chip_gen: v5e
topology: v5e:2x2
jax: 0.10.0
libtpu: 0.0.40
codegen_flags: <defaults>
</compile_context>

<pallas_src>
import functools
import math

import jax
import jax.numpy as jnp
from jax.experimental import pallas as pl
from jax.experimental.pallas import tpu as pltpu


def _round_up(v, m):
    return ((v + m - 1) // m) * m


def _matmul_kernel(a_ref, b_ref, o_ref, acc_ref, *, apply_relu):
    """o = [relu](a @ b) with f32 accumulation across the k grid axis."""
    @pl.when(pl.program_id(2) == 0)
    def _():
        acc_ref[...] = jnp.zeros_like(acc_ref)

    acc_ref[...] += jnp.dot(
        a_ref[...], b_ref[...], preferred_element_type=jnp.float32
    )

    @pl.when(pl.program_id(2) == pl.num_programs(2) - 1)
    def _():
        r = acc_ref[...]
        if apply_relu:
            r = jnp.maximum(r, 0.0)
        o_ref[...] = r.astype(o_ref.dtype)


def gcn_matmul(a, b, *, apply_relu=False, out_dtype=None,
               tile_m=256, tile_n=256, tile_k=512):
    """y = [relu](a @ b) as a tiled Pallas matmul (bf16 in, f32 accumulate).

    Pads operands to tile multiples (lane-dense, >=128-wide output blocks) and
    slices the result back to the logical shape.
    """
    m, k = a.shape
    k2, n = b.shape
    assert k == k2
    out_dtype = out_dtype if out_dtype is not None else a.dtype

    # Tile sizes: sublane dim multiple of 16 (bf16-safe), lane dims multiple of 128.
    tm = min(tile_m, _round_up(m, 16))
    tn = min(tile_n, _round_up(n, 128))
    tk = min(tile_k, _round_up(k, 128))

    mp = _round_up(m, tm)
    kp = _round_up(k, tk)
    np_ = _round_up(n, tn)

    if (mp, kp) != (m, k):
        a = jnp.pad(a, ((0, mp - m), (0, kp - k)))
    if (kp, np_) != (k, n):
        b = jnp.pad(b, ((0, kp - k), (0, np_ - n)))

    kernel = functools.partial(_matmul_kernel, apply_relu=apply_relu)

    out = pl.pallas_call(
        kernel,
        out_shape=jax.ShapeDtypeStruct((mp, np_), out_dtype),
        grid_spec=pltpu.PrefetchScalarGridSpec(
            num_scalar_prefetch=0,
            grid=(mp // tm, np_ // tn, kp // tk),
            in_specs=[
                pl.BlockSpec((tm, tk), lambda i, j, kk: (i, kk)),
                pl.BlockSpec((tk, tn), lambda i, j, kk: (kk, j)),
            ],
            out_specs=pl.BlockSpec((tm, tn), lambda i, j, kk: (i, j)),
            scratch_shapes=[pltpu.VMEM((tm, tn), jnp.float32)],
        ),
        compiler_params=pltpu.CompilerParams(
            # Output block is resident across the reduction axis -> it must be
            # last and "arbitrary"; row/col axes are parallel (megacore on v7x).
            dimension_semantics=("parallel", "parallel", "arbitrary"),
        ),
    )(a, b)

    if (mp, np_) != (m, n):
        out = out[:m, :n]
    return out


def init_gnn_mix_params(key, num_feature, num_class):
    """Deterministic weights matching GraphConvolution.reset_parameters:
    W ~ U(-stdv, stdv) with stdv = 1/sqrt(out_features)."""
    dims = [(num_feature, 1000), (1000, 500), (500, 100), (100, num_class)]
    weights = []
    for (fin, fout) in dims:
        key, sub = jax.random.split(key)
        stdv = 1.0 / math.sqrt(fout)
        w = jax.random.uniform(
            sub, (fin, fout), dtype=jnp.float32, minval=-stdv, maxval=stdv
        )
        weights.append(w)
    return weights


@jax.jit
def gnn_mix_forward(x, adj, w1, w2, w3, w4):
    """Eval-mode, no-mixup branch of GNN_mix.forward (dropout == identity).

    adj / activations / weights run in bf16 with f32 accumulation; the final
    layer output is returned in f32.
    """
    adj_b = adj.astype(jnp.bfloat16)
    h = x.astype(jnp.bfloat16)
    weights = (w1, w2, w3, w4)
    for li, w in enumerate(weights):
        last = li == len(weights) - 1
        # feature transform: h @ W
        t = gcn_matmul(h, w.astype(jnp.bfloat16),
                       apply_relu=False, out_dtype=jnp.bfloat16)
        # neighborhood aggregation: adj @ t (+ ReLU except last layer)
        h = gcn_matmul(adj_b, t, apply_relu=not last,
                       out_dtype=jnp.float32 if last else jnp.bfloat16)
    return h


def _reference_forward(x, adj, weights):
    """Pure-JAX reference with the same bf16-in / f32-accumulate precision."""
    adj_b = adj.astype(jnp.bfloat16)
    h = x.astype(jnp.bfloat16)
    n_layers = len(weights)
    for li, w in enumerate(weights):
        wb = w.astype(jnp.bfloat16)
        t = jnp.dot(h, wb, preferred_element_type=jnp.float32).astype(jnp.bfloat16)
        y = jnp.dot(adj_b, t, preferred_element_type=jnp.float32)
        if li < n_layers - 1:
            h = jnp.maximum(y, 0.0).astype(jnp.bfloat16)
        else:
            h = y
    return h


if __name__ == "__main__":
    key = jax.random.PRNGKey(0)

    # Small graph: 128 nodes, 64 input features, 16 classes.
    N, NUM_FEATURE, NUM_CLASS = 128, 64, 16

    k_x, k_adj, k_w = jax.random.split(key, 3)

    x = jax.random.normal(k_x, (N, NUM_FEATURE), dtype=jnp.float32)

    # Deterministic dense symmetric normalized adjacency with self loops
    # (stands in for the precomputed normalized adj the module is given).
    a = (jax.random.uniform(k_adj, (N, N)) < 0.05).astype(jnp.float32)
    a = jnp.maximum(a, a.T) + jnp.eye(N, dtype=jnp.float32)
    deg = jnp.sum(a, axis=1)
    d_inv_sqrt = 1.0 / jnp.sqrt(deg)
    adj = a * d_inv_sqrt[:, None] * d_inv_sqrt[None, :]

    w1, w2, w3, w4 = init_gnn_mix_params(k_w, NUM_FEATURE, NUM_CLASS)

    out = gnn_mix_forward(x, adj, w1, w2, w3, w4)
    out = jax.block_until_ready(out)

    ref = _reference_forward(x, adj, [w1, w2, w3, w4])
    assert out.shape == (N, NUM_CLASS)
    assert jnp.allclose(out, ref, atol=5e-3, rtol=5e-2), "mismatch vs reference"

    print("KERNEL_OK")
</pallas_src>

<mosaic_0001>
module attributes {stable_mosaic.version = 11 : i64} {
  func.func @_matmul_kernel(%arg0: i32, %arg1: i32, %arg2: i32, %arg3: memref<128x128xbf16, #tpu.memory_space<vmem>>, %arg4: memref<128x256xbf16, #tpu.memory_space<vmem>>, %arg5: memref<128x256xbf16, #tpu.memory_space<vmem>>, %arg6: memref<128x256xf32, #tpu.memory_space<vmem>>) attributes {dimension_semantics = [#tpu.dimension_semantics<parallel>, #tpu.dimension_semantics<parallel>, #tpu.dimension_semantics<arbitrary>], iteration_bounds = array<i64: 1, 4, 1>, scalar_prefetch = 0 : i64, scratch_operands = 1 : i64, tpu.core_type = #tpu.core_type<tc>, window_params = [{transform_indices = @transform_0, window_bounds = array<i64: 128, 128>}, {transform_indices = @transform_1, window_bounds = array<i64: 128, 256>}, {transform_indices = @transform_2, window_bounds = array<i64: 128, 256>}]} {
    %c0_i32 = arith.constant 0 : i32
    %0 = arith.cmpi eq, %arg2, %c0_i32 : i32
    %1 = arith.extui %0 : i1 to i32
    %c0_i32_0 = arith.constant 0 : i32
    %2 = arith.cmpi ne, %1, %c0_i32_0 : i32
    scf.if %2 {
      %cst_10 = arith.constant 0.000000e+00 : f32
      %12 = vector.broadcast %cst_10 : f32 to vector<128x256xf32>
      %c0_11 = arith.constant 0 : index
      %c0_12 = arith.constant 0 : index
      %13 = vector.load %arg6[%c0_11, %c0_12] : memref<128x256xf32, #tpu.memory_space<vmem>>, vector<128x256xf32>
      tpu.vector_store %arg6[%c0_11, %c0_12], %12 {strides = array<i32>} : memref<128x256xf32, #tpu.memory_space<vmem>>, vector<128x256xf32>,
    } else {
    }
    %c0 = arith.constant 0 : index
    %c0_1 = arith.constant 0 : index
    %3 = vector.load %arg6[%c0, %c0_1] : memref<128x256xf32, #tpu.memory_space<vmem>>, vector<128x256xf32>
    %c0_2 = arith.constant 0 : index
    %c0_3 = arith.constant 0 : index
    %4 = vector.load %arg3[%c0_2, %c0_3] : memref<128x128xbf16, #tpu.memory_space<vmem>>, vector<128x128xbf16>
    %c0_4 = arith.constant 0 : index
    %c0_5 = arith.constant 0 : index
    %5 = vector.load %arg4[%c0_4, %c0_5] : memref<128x256xbf16, #tpu.memory_space<vmem>>, vector<128x256xbf16>
    %cst = arith.constant dense<0.000000e+00> : vector<128x256xf32>
    %6 = tpu.matmul %4, %5, %cst {dimension_numbers = #tpu.dot_dimension_numbers<[1], [0], [0], [1], [0, 0, 1, 1], [], []>} : vector<128x128xbf16>, vector<128x256xbf16>, vector<128x256xf32> -> vector<128x256xf32>
    %7 = arith.addf %3, %6 : vector<128x256xf32>
    %c0_6 = arith.constant 0 : index
    %c0_7 = arith.constant 0 : index
    %8 = vector.load %arg6[%c0_6, %c0_7] : memref<128x256xf32, #tpu.memory_space<vmem>>, vector<128x256xf32>
    tpu.vector_store %arg6[%c0_6, %c0_7], %7 {strides = array<i32>} : memref<128x256xf32, #tpu.memory_space<vmem>>, vector<128x256xf32>,
    %c0_i32_8 = arith.constant 0 : i32
    %9 = arith.cmpi eq, %arg2, %c0_i32_8 : i32
    %10 = arith.extui %9 : i1 to i32
    %c0_i32_9 = arith.constant 0 : i32
    %11 = arith.cmpi ne, %10, %c0_i32_9 : i32
    scf.if %11 {
      %c0_10 = arith.constant 0 : index
      %c0_11 = arith.constant 0 : index
      %12 = vector.load %arg6[%c0_10, %c0_11] : memref<128x256xf32, #tpu.memory_space<vmem>>, vector<128x256xf32>
      %cst_12 = arith.constant 0.000000e+00 : f32
      %13 = vector.broadcast %cst_12 : f32 to vector<128x256xf32>
      %14 = arith.maximumf %12, %13 : vector<128x256xf32>
      %15 = arith.truncf %14 : vector<128x256xf32> to vector<128x256xbf16>
      %c0_13 = arith.constant 0 : index
      %c0_14 = arith.constant 0 : index
      %16 = vector.load %arg5[%c0_13, %c0_14] : memref<128x256xbf16, #tpu.memory_space<vmem>>, vector<128x256xbf16>
      tpu.vector_store %arg5[%c0_13, %c0_14], %15 {strides = array<i32>} : memref<128x256xbf16, #tpu.memory_space<vmem>>, vector<128x256xbf16>,
    } else {
    }
    return
  }
  func.func @transform_0(%arg0: i32, %arg1: i32, %arg2: i32) -> (i32, i32) {
    %c0_i32 = arith.constant 0 : i32
    return %arg0, %arg2 : i32, i32
  }
  func.func @transform_1(%arg0: i32, %arg1: i32, %arg2: i32) -> (i32, i32) {
    %c0_i32 = arith.constant 0 : i32
    return %arg2, %arg1 : i32, i32
  }
  func.func @transform_2(%arg0: i32, %arg1: i32, %arg2: i32) -> (i32, i32) {
    %c0_i32 = arith.constant 0 : i32
    return %arg0, %arg1 : i32, i32
  }
}

module attributes {stable_mosaic.version = 11 : i64} {
  func.func @_matmul_kernel(%arg0: i32, %arg1: i32, %arg2: i32, %arg3: memref<128x128xbf16, #tpu.memory_space<vmem>>, %arg4: memref<128x256xbf16, #tpu.memory_space<vmem>>, %arg5: memref<128x256xbf16, #tpu.memory_space<vmem>>, %arg6: memref<128x256xf32, #tpu.memory_space<vmem>>) attributes {dimension_semantics = [#tpu.dimension_semantics<parallel>, #tpu.dimension_semantics<parallel>, #tpu.dimension_semantics<arbitrary>], iteration_bounds = array<i64: 1, 4, 1>, scalar_prefetch = 0 : i64, scratch_operands = 1 : i64, tpu.core_type = #tpu.core_type<tc>, window_params = [{transform_indices = @transform_0, window_bounds = array<i64: 128, 128>}, {transform_indices = @transform_1, window_bounds = array<i64: 128, 256>}, {transform_indices = @transform_2, window_bounds = array<i64: 128, 256>}]} {
    %c0_i32 = arith.constant 0 : i32
    %0 = arith.cmpi eq, %arg2, %c0_i32 : i32
    %1 = arith.extui %0 : i1 to i32
    %c0_i32_0 = arith.constant 0 : i32
    %2 = arith.cmpi ne, %1, %c0_i32_0 : i32
    scf.if %2 {
      %cst_10 = arith.constant 0.000000e+00 : f32
      %12 = vector.broadcast %cst_10 : f32 to vector<128x256xf32>
      %c0_11 = arith.constant 0 : index
      %c0_12 = arith.constant 0 : index
      %13 = vector.load %arg6[%c0_11, %c0_12] : memref<128x256xf32, #tpu.memory_space<vmem>>, vector<128x256xf32>
      tpu.vector_store %arg6[%c0_11, %c0_12], %12 {strides = array<i32>} : memref<128x256xf32, #tpu.memory_space<vmem>>, vector<128x256xf32>,
    } else {
    }
    %c0 = arith.constant 0 : index
    %c0_1 = arith.constant 0 : index
    %3 = vector.load %arg6[%c0, %c0_1] : memref<128x256xf32, #tpu.memory_space<vmem>>, vector<128x256xf32>
    %c0_2 = arith.constant 0 : index
    %c0_3 = arith.constant 0 : index
    %4 = vector.load %arg3[%c0_2, %c0_3] : memref<128x128xbf16, #tpu.memory_space<vmem>>, vector<128x128xbf16>
    %c0_4 = arith.constant 0 : index
    %c0_5 = arith.constant 0 : index
    %5 = vector.load %arg4[%c0_4, %c0_5] : memref<128x256xbf16, #tpu.memory_space<vmem>>, vector<128x256xbf16>
    %cst = arith.constant dense<0.000000e+00> : vector<128x256xf32>
    %6 = tpu.matmul %4, %5, %cst {dimension_numbers = #tpu.dot_dimension_numbers<[1], [0], [0], [1], [0, 0, 1, 1], [], []>} : vector<128x128xbf16>, vector<128x256xbf16>, vector<128x256xf32> -> vector<128x256xf32>
    %7 = arith.addf %3, %6 : vector<128x256xf32>
    %c0_6 = arith.constant 0 : index
    %c0_7 = arith.constant 0 : index
    %8 = vector.load %arg6[%c0_6, %c0_7] : memref<128x256xf32, #tpu.memory_space<vmem>>, vector<128x256xf32>
    tpu.vector_store %arg6[%c0_6, %c0_7], %7 {strides = array<i32>} : memref<128x256xf32, #tpu.memory_space<vmem>>, vector<128x256xf32>,
    %c0_i32_8 = arith.constant 0 : i32
    %9 = arith.cmpi eq, %arg2, %c0_i32_8 : i32
    %10 = arith.extui %9 : i1 to i32
    %c0_i32_9 = arith.constant 0 : i32
    %11 = arith.cmpi ne, %10, %c0_i32_9 : i32
    scf.if %11 {
      %c0_10 = arith.constant 0 : index
      %c0_11 = arith.constant 0 : index
      %12 = vector.load %arg6[%c0_10, %c0_11] : memref<128x256xf32, #tpu.memory_space<vmem>>, vector<128x256xf32>
      %13 = arith.truncf %12 : vector<128x256xf32> to vector<128x256xbf16>
      %c0_12 = arith.constant 0 : index
      %c0_13 = arith.constant 0 : index
      %14 = vector.load %arg5[%c0_12, %c0_13] : memref<128x256xbf16, #tpu.memory_space<vmem>>, vector<128x256xbf16>
      tpu.vector_store %arg5[%c0_12, %c0_13], %13 {strides = array<i32>} : memref<128x256xbf16, #tpu.memory_space<vmem>>, vector<128x256xbf16>,
    } else {
    }
    return
  }
  func.func @transform_0(%arg0: i32, %arg1: i32, %arg2: i32) -> (i32, i32) {
    %c0_i32 = arith.constant 0 : i32
    return %arg0, %arg2 : i32, i32
  }
  func.func @transform_1(%arg0: i32, %arg1: i32, %arg2: i32) -> (i32, i32) {
    %c0_i32 = arith.constant 0 : i32
    return %arg2, %arg1 : i32, i32
  }
  func.func @transform_2(%arg0: i32, %arg1: i32, %arg2: i32) -> (i32, i32) {
    %c0_i32 = arith.constant 0 : i32
    return %arg0, %arg1 : i32, i32
  }
}

module attributes {stable_mosaic.version = 11 : i64} {
  func.func @_matmul_kernel(%arg0: i32, %arg1: i32, %arg2: i32, %arg3: memref<128x512xbf16, #tpu.memory_space<vmem>>, %arg4: memref<512x256xbf16, #tpu.memory_space<vmem>>, %arg5: memref<128x256xbf16, #tpu.memory_space<vmem>>, %arg6: memref<128x256xf32, #tpu.memory_space<vmem>>) attributes {dimension_semantics = [#tpu.dimension_semantics<parallel>, #tpu.dimension_semantics<parallel>, #tpu.dimension_semantics<arbitrary>], iteration_bounds = array<i64: 1, 2, 2>, scalar_prefetch = 0 : i64, scratch_operands = 1 : i64, tpu.core_type = #tpu.core_type<tc>, window_params = [{transform_indices = @transform_0, window_bounds = array<i64: 128, 512>}, {transform_indices = @transform_1, window_bounds = array<i64: 512, 256>}, {transform_indices = @transform_2, window_bounds = array<i64: 128, 256>}]} {
    %c0_i32 = arith.constant 0 : i32
    %0 = arith.cmpi eq, %arg2, %c0_i32 : i32
    %1 = arith.extui %0 : i1 to i32
    %c0_i32_0 = arith.constant 0 : i32
    %2 = arith.cmpi ne, %1, %c0_i32_0 : i32
    scf.if %2 {
      %cst_9 = arith.constant 0.000000e+00 : f32
      %12 = vector.broadcast %cst_9 : f32 to vector<128x256xf32>
      %c0_10 = arith.constant 0 : index
      %c0_11 = arith.constant 0 : index
      %13 = vector.load %arg6[%c0_10, %c0_11] : memref<128x256xf32, #tpu.memory_space<vmem>>, vector<128x256xf32>
      tpu.vector_store %arg6[%c0_10, %c0_11], %12 {strides = array<i32>} : memref<128x256xf32, #tpu.memory_space<vmem>>, vector<128x256xf32>,
    } else {
    }
    %c0 = arith.constant 0 : index
    %c0_1 = arith.constant 0 : index
    %3 = vector.load %arg6[%c0, %c0_1] : memref<128x256xf32, #tpu.memory_space<vmem>>, vector<128x256xf32>
    %c0_2 = arith.constant 0 : index
    %c0_3 = arith.constant 0 : index
    %4 = vector.load %arg3[%c0_2, %c0_3] : memref<128x512xbf16, #tpu.memory_space<vmem>>, vector<128x512xbf16>
    %c0_4 = arith.constant 0 : index
    %c0_5 = arith.constant 0 : index
    %5 = vector.load %arg4[%c0_4, %c0_5] : memref<512x256xbf16, #tpu.memory_space<vmem>>, vector<512x256xbf16>
    %cst = arith.constant dense<0.000000e+00> : vector<128x256xf32>
    %6 = tpu.matmul %4, %5, %cst {dimension_numbers = #tpu.dot_dimension_numbers<[1], [0], [0], [1], [0, 0, 1, 1], [], []>} : vector<128x512xbf16>, vector<512x256xbf16>, vector<128x256xf32> -> vector<128x256xf32>
    %7 = arith.addf %3, %6 : vector<128x256xf32>
    %c0_6 = arith.constant 0 : index
    %c0_7 = arith.constant 0 : index
    %8 = vector.load %arg6[%c0_6, %c0_7] : memref<128x256xf32, #tpu.memory_space<vmem>>, vector<128x256xf32>
    tpu.vector_store %arg6[%c0_6, %c0_7], %7 {strides = array<i32>} : memref<128x256xf32, #tpu.memory_space<vmem>>, vector<128x256xf32>,
    %c1_i32 = arith.constant 1 : i32
    %9 = arith.cmpi eq, %arg2, %c1_i32 : i32
    %10 = arith.extui %9 : i1 to i32
    %c0_i32_8 = arith.constant 0 : i32
    %11 = arith.cmpi ne, %10, %c0_i32_8 : i32
    scf.if %11 {
      %c0_9 = arith.constant 0 : index
      %c0_10 = arith.constant 0 : index
      %12 = vector.load %arg6[%c0_9, %c0_10] : memref<128x256xf32, #tpu.memory_space<vmem>>, vector<128x256xf32>
      %13 = arith.truncf %12 : vector<128x256xf32> to vector<128x256xbf16>
      %c0_11 = arith.constant 0 : index
      %c0_12 = arith.constant 0 : index
      %14 = vector.load %arg5[%c0_11, %c0_12] : memref<128x256xbf16, #tpu.memory_space<vmem>>, vector<128x256xbf16>
      tpu.vector_store %arg5[%c0_11, %c0_12], %13 {strides = array<i32>} : memref<128x256xbf16, #tpu.memory_space<vmem>>, vector<128x256xbf16>,
    } else {
    }
    return
  }
  func.func @transform_0(%arg0: i32, %arg1: i32, %arg2: i32) -> (i32, i32) {
    %c0_i32 = arith.constant 0 : i32
    return %arg0, %arg2 : i32, i32
  }
  func.func @transform_1(%arg0: i32, %arg1: i32, %arg2: i32) -> (i32, i32) {
    %c0_i32 = arith.constant 0 : i32
    return %arg2, %arg1 : i32, i32
  }
  func.func @transform_2(%arg0: i32, %arg1: i32, %arg2: i32) -> (i32, i32) {
    %c0_i32 = arith.constant 0 : i32
    return %arg0, %arg1 : i32, i32
  }
}

module attributes {stable_mosaic.version = 11 : i64} {
  func.func @_matmul_kernel(%arg0: i32, %arg1: i32, %arg2: i32, %arg3: memref<128x128xbf16, #tpu.memory_space<vmem>>, %arg4: memref<128x256xbf16, #tpu.memory_space<vmem>>, %arg5: memref<128x256xbf16, #tpu.memory_space<vmem>>, %arg6: memref<128x256xf32, #tpu.memory_space<vmem>>) attributes {dimension_semantics = [#tpu.dimension_semantics<parallel>, #tpu.dimension_semantics<parallel>, #tpu.dimension_semantics<arbitrary>], iteration_bounds = array<i64: 1, 2, 1>, scalar_prefetch = 0 : i64, scratch_operands = 1 : i64, tpu.core_type = #tpu.core_type<tc>, window_params = [{transform_indices = @transform_0, window_bounds = array<i64: 128, 128>}, {transform_indices = @transform_1, window_bounds = array<i64: 128, 256>}, {transform_indices = @transform_2, window_bounds = array<i64: 128, 256>}]} {
    %c0_i32 = arith.constant 0 : i32
    %0 = arith.cmpi eq, %arg2, %c0_i32 : i32
    %1 = arith.extui %0 : i1 to i32
    %c0_i32_0 = arith.constant 0 : i32
    %2 = arith.cmpi ne, %1, %c0_i32_0 : i32
    scf.if %2 {
      %cst_10 = arith.constant 0.000000e+00 : f32
      %12 = vector.broadcast %cst_10 : f32 to vector<128x256xf32>
      %c0_11 = arith.constant 0 : index
      %c0_12 = arith.constant 0 : index
      %13 = vector.load %arg6[%c0_11, %c0_12] : memref<128x256xf32, #tpu.memory_space<vmem>>, vector<128x256xf32>
      tpu.vector_store %arg6[%c0_11, %c0_12], %12 {strides = array<i32>} : memref<128x256xf32, #tpu.memory_space<vmem>>, vector<128x256xf32>,
    } else {
    }
    %c0 = arith.constant 0 : index
    %c0_1 = arith.constant 0 : index
    %3 = vector.load %arg6[%c0, %c0_1] : memref<128x256xf32, #tpu.memory_space<vmem>>, vector<128x256xf32>
    %c0_2 = arith.constant 0 : index
    %c0_3 = arith.constant 0 : index
    %4 = vector.load %arg3[%c0_2, %c0_3] : memref<128x128xbf16, #tpu.memory_space<vmem>>, vector<128x128xbf16>
    %c0_4 = arith.constant 0 : index
    %c0_5 = arith.constant 0 : index
    %5 = vector.load %arg4[%c0_4, %c0_5] : memref<128x256xbf16, #tpu.memory_space<vmem>>, vector<128x256xbf16>
    %cst = arith.constant dense<0.000000e+00> : vector<128x256xf32>
    %6 = tpu.matmul %4, %5, %cst {dimension_numbers = #tpu.dot_dimension_numbers<[1], [0], [0], [1], [0, 0, 1, 1], [], []>} : vector<128x128xbf16>, vector<128x256xbf16>, vector<128x256xf32> -> vector<128x256xf32>
    %7 = arith.addf %3, %6 : vector<128x256xf32>
    %c0_6 = arith.constant 0 : index
    %c0_7 = arith.constant 0 : index
    %8 = vector.load %arg6[%c0_6, %c0_7] : memref<128x256xf32, #tpu.memory_space<vmem>>, vector<128x256xf32>
    tpu.vector_store %arg6[%c0_6, %c0_7], %7 {strides = array<i32>} : memref<128x256xf32, #tpu.memory_space<vmem>>, vector<128x256xf32>,
    %c0_i32_8 = arith.constant 0 : i32
    %9 = arith.cmpi eq, %arg2, %c0_i32_8 : i32
    %10 = arith.extui %9 : i1 to i32
    %c0_i32_9 = arith.constant 0 : i32
    %11 = arith.cmpi ne, %10, %c0_i32_9 : i32
    scf.if %11 {
      %c0_10 = arith.constant 0 : index
      %c0_11 = arith.constant 0 : index
      %12 = vector.load %arg6[%c0_10, %c0_11] : memref<128x256xf32, #tpu.memory_space<vmem>>, vector<128x256xf32>
      %cst_12 = arith.constant 0.000000e+00 : f32
      %13 = vector.broadcast %cst_12 : f32 to vector<128x256xf32>
      %14 = arith.maximumf %12, %13 : vector<128x256xf32>
      %15 = arith.truncf %14 : vector<128x256xf32> to vector<128x256xbf16>
      %c0_13 = arith.constant 0 : index
      %c0_14 = arith.constant 0 : index
      %16 = vector.load %arg5[%c0_13, %c0_14] : memref<128x256xbf16, #tpu.memory_space<vmem>>, vector<128x256xbf16>
      tpu.vector_store %arg5[%c0_13, %c0_14], %15 {strides = array<i32>} : memref<128x256xbf16, #tpu.memory_space<vmem>>, vector<128x256xbf16>,
    } else {
    }
    return
  }
  func.func @transform_0(%arg0: i32, %arg1: i32, %arg2: i32) -> (i32, i32) {
    %c0_i32 = arith.constant 0 : i32
    return %arg0, %arg2 : i32, i32
  }
  func.func @transform_1(%arg0: i32, %arg1: i32, %arg2: i32) -> (i32, i32) {
    %c0_i32 = arith.constant 0 : i32
    return %arg2, %arg1 : i32, i32
  }
  func.func @transform_2(%arg0: i32, %arg1: i32, %arg2: i32) -> (i32, i32) {
    %c0_i32 = arith.constant 0 : i32
    return %arg0, %arg1 : i32, i32
  }
}

module attributes {stable_mosaic.version = 11 : i64} {
  func.func @_matmul_kernel(%arg0: i32, %arg1: i32, %arg2: i32, %arg3: memref<128x512xbf16, #tpu.memory_space<vmem>>, %arg4: memref<512x128xbf16, #tpu.memory_space<vmem>>, %arg5: memref<128x128xbf16, #tpu.memory_space<vmem>>, %arg6: memref<128x128xf32, #tpu.memory_space<vmem>>) attributes {dimension_semantics = [#tpu.dimension_semantics<parallel>, #tpu.dimension_semantics<parallel>, #tpu.dimension_semantics<arbitrary>], iteration_bounds = array<i64: 1, 1, 1>, scalar_prefetch = 0 : i64, scratch_operands = 1 : i64, tpu.core_type = #tpu.core_type<tc>, window_params = [{transform_indices = @transform_0, window_bounds = array<i64: 128, 512>}, {transform_indices = @transform_1, window_bounds = array<i64: 512, 128>}, {transform_indices = @transform_2, window_bounds = array<i64: 128, 128>}]} {
    %c0_i32 = arith.constant 0 : i32
    %0 = arith.cmpi eq, %arg2, %c0_i32 : i32
    %1 = arith.extui %0 : i1 to i32
    %c0_i32_0 = arith.constant 0 : i32
    %2 = arith.cmpi ne, %1, %c0_i32_0 : i32
    scf.if %2 {
      %cst_10 = arith.constant 0.000000e+00 : f32
      %12 = vector.broadcast %cst_10 : f32 to vector<128x128xf32>
      %c0_11 = arith.constant 0 : index
      %c0_12 = arith.constant 0 : index
      %13 = vector.load %arg6[%c0_11, %c0_12] : memref<128x128xf32, #tpu.memory_space<vmem>>, vector<128x128xf32>
      tpu.vector_store %arg6[%c0_11, %c0_12], %12 {strides = array<i32>} : memref<128x128xf32, #tpu.memory_space<vmem>>, vector<128x128xf32>,
    } else {
    }
    %c0 = arith.constant 0 : index
    %c0_1 = arith.constant 0 : index
    %3 = vector.load %arg6[%c0, %c0_1] : memref<128x128xf32, #tpu.memory_space<vmem>>, vector<128x128xf32>
    %c0_2 = arith.constant 0 : index
    %c0_3 = arith.constant 0 : index
    %4 = vector.load %arg3[%c0_2, %c0_3] : memref<128x512xbf16, #tpu.memory_space<vmem>>, vector<128x512xbf16>
    %c0_4 = arith.constant 0 : index
    %c0_5 = arith.constant 0 : index
    %5 = vector.load %arg4[%c0_4, %c0_5] : memref<512x128xbf16, #tpu.memory_space<vmem>>, vector<512x128xbf16>
    %cst = arith.constant dense<0.000000e+00> : vector<128x128xf32>
    %6 = tpu.matmul %4, %5, %cst {dimension_numbers = #tpu.dot_dimension_numbers<[1], [0], [0], [1], [0, 0, 1, 1], [], []>} : vector<128x512xbf16>, vector<512x128xbf16>, vector<128x128xf32> -> vector<128x128xf32>
    %7 = arith.addf %3, %6 : vector<128x128xf32>
    %c0_6 = arith.constant 0 : index
    %c0_7 = arith.constant 0 : index
    %8 = vector.load %arg6[%c0_6, %c0_7] : memref<128x128xf32, #tpu.memory_space<vmem>>, vector<128x128xf32>
    tpu.vector_store %arg6[%c0_6, %c0_7], %7 {strides = array<i32>} : memref<128x128xf32, #tpu.memory_space<vmem>>, vector<128x128xf32>,
    %c0_i32_8 = arith.constant 0 : i32
    %9 = arith.cmpi eq, %arg2, %c0_i32_8 : i32
    %10 = arith.extui %9 : i1 to i32
    %c0_i32_9 = arith.constant 0 : i32
    %11 = arith.cmpi ne, %10, %c0_i32_9 : i32
    scf.if %11 {
      %c0_10 = arith.constant 0 : index
      %c0_11 = arith.constant 0 : index
      %12 = vector.load %arg6[%c0_10, %c0_11] : memref<128x128xf32, #tpu.memory_space<vmem>>, vector<128x128xf32>
      %13 = arith.truncf %12 : vector<128x128xf32> to vector<128x128xbf16>
      %c0_12 = arith.constant 0 : index
      %c0_13 = arith.constant 0 : index
      %14 = vector.load %arg5[%c0_12, %c0_13] : memref<128x128xbf16, #tpu.memory_space<vmem>>, vector<128x128xbf16>
      tpu.vector_store %arg5[%c0_12, %c0_13], %13 {strides = array<i32>} : memref<128x128xbf16, #tpu.memory_space<vmem>>, vector<128x128xbf16>,
    } else {
    }
    return
  }
  func.func @transform_0(%arg0: i32, %arg1: i32, %arg2: i32) -> (i32, i32) {
    %c0_i32 = arith.constant 0 : i32
    return %arg0, %arg2 : i32, i32
  }
  func.func @transform_1(%arg0: i32, %arg1: i32, %arg2: i32) -> (i32, i32) {
    %c0_i32 = arith.constant 0 : i32
    return %arg2, %arg1 : i32, i32
  }
  func.func @transform_2(%arg0: i32, %arg1: i32, %arg2: i32) -> (i32, i32) {
    %c0_i32 = arith.constant 0 : i32
    return %arg0, %arg1 : i32, i32
  }
}

module attributes {stable_mosaic.version = 11 : i64} {
  func.func @_matmul_kernel(%arg0: i32, %arg1: i32, %arg2: i32, %arg3: memref<128x128xbf16, #tpu.memory_space<vmem>>, %arg4: memref<128x128xbf16, #tpu.memory_space<vmem>>, %arg5: memref<128x128xbf16, #tpu.memory_space<vmem>>, %arg6: memref<128x128xf32, #tpu.memory_space<vmem>>) attributes {dimension_semantics = [#tpu.dimension_semantics<parallel>, #tpu.dimension_semantics<parallel>, #tpu.dimension_semantics<arbitrary>], iteration_bounds = array<i64: 1, 1, 1>, scalar_prefetch = 0 : i64, scratch_operands = 1 : i64, tpu.core_type = #tpu.core_type<tc>, window_params = [{transform_indices = @transform_0, window_bounds = array<i64: 128, 128>}, {transform_indices = @transform_1, window_bounds = array<i64: 128, 128>}, {transform_indices = @transform_2, window_bounds = array<i64: 128, 128>}]} {
    %c0_i32 = arith.constant 0 : i32
    %0 = arith.cmpi eq, %arg2, %c0_i32 : i32
    %1 = arith.extui %0 : i1 to i32
    %c0_i32_0 = arith.constant 0 : i32
    %2 = arith.cmpi ne, %1, %c0_i32_0 : i32
    scf.if %2 {
      %cst_10 = arith.constant 0.000000e+00 : f32
      %12 = vector.broadcast %cst_10 : f32 to vector<128x128xf32>
      %c0_11 = arith.constant 0 : index
      %c0_12 = arith.constant 0 : index
      %13 = vector.load %arg6[%c0_11, %c0_12] : memref<128x128xf32, #tpu.memory_space<vmem>>, vector<128x128xf32>
      tpu.vector_store %arg6[%c0_11, %c0_12], %12 {strides = array<i32>} : memref<128x128xf32, #tpu.memory_space<vmem>>, vector<128x128xf32>,
    } else {
    }
    %c0 = arith.constant 0 : index
    %c0_1 = arith.constant 0 : index
    %3 = vector.load %arg6[%c0, %c0_1] : memref<128x128xf32, #tpu.memory_space<vmem>>, vector<128x128xf32>
    %c0_2 = arith.constant 0 : index
    %c0_3 = arith.constant 0 : index
    %4 = vector.load %arg3[%c0_2, %c0_3] : memref<128x128xbf16, #tpu.memory_space<vmem>>, vector<128x128xbf16>
    %c0_4 = arith.constant 0 : index
    %c0_5 = arith.constant 0 : index
    %5 = vector.load %arg4[%c0_4, %c0_5] : memref<128x128xbf16, #tpu.memory_space<vmem>>, vector<128x128xbf16>
    %cst = arith.constant dense<0.000000e+00> : vector<128x128xf32>
    %6 = tpu.matmul %4, %5, %cst {dimension_numbers = #tpu.dot_dimension_numbers<[1], [0], [0], [1], [0, 0, 1, 1], [], []>} : vector<128x128xbf16>, vector<128x128xbf16>, vector<128x128xf32> -> vector<128x128xf32>
    %7 = arith.addf %3, %6 : vector<128x128xf32>
    %c0_6 = arith.constant 0 : index
    %c0_7 = arith.constant 0 : index
    %8 = vector.load %arg6[%c0_6, %c0_7] : memref<128x128xf32, #tpu.memory_space<vmem>>, vector<128x128xf32>
    tpu.vector_store %arg6[%c0_6, %c0_7], %7 {strides = array<i32>} : memref<128x128xf32, #tpu.memory_space<vmem>>, vector<128x128xf32>,
    %c0_i32_8 = arith.constant 0 : i32
    %9 = arith.cmpi eq, %arg2, %c0_i32_8 : i32
    %10 = arith.extui %9 : i1 to i32
    %c0_i32_9 = arith.constant 0 : i32
    %11 = arith.cmpi ne, %10, %c0_i32_9 : i32
    scf.if %11 {
      %c0_10 = arith.constant 0 : index
      %c0_11 = arith.constant 0 : index
      %12 = vector.load %arg6[%c0_10, %c0_11] : memref<128x128xf32, #tpu.memory_space<vmem>>, vector<128x128xf32>
      %cst_12 = arith.constant 0.000000e+00 : f32
      %13 = vector.broadcast %cst_12 : f32 to vector<128x128xf32>
      %14 = arith.maximumf %12, %13 : vector<128x128xf32>
      %15 = arith.truncf %14 : vector<128x128xf32> to vector<128x128xbf16>
      %c0_13 = arith.constant 0 : index
      %c0_14 = arith.constant 0 : index
      %16 = vector.load %arg5[%c0_13, %c0_14] : memref<128x128xbf16, #tpu.memory_space<vmem>>, vector<128x128xbf16>
      tpu.vector_store %arg5[%c0_13, %c0_14], %15 {strides = array<i32>} : memref<128x128xbf16, #tpu.memory_space<vmem>>, vector<128x128xbf16>,
    } else {
    }
    return
  }
  func.func @transform_0(%arg0: i32, %arg1: i32, %arg2: i32) -> (i32, i32) {
    %c0_i32 = arith.constant 0 : i32
    return %arg0, %arg2 : i32, i32
  }
  func.func @transform_1(%arg0: i32, %arg1: i32, %arg2: i32) -> (i32, i32) {
    %c0_i32 = arith.constant 0 : i32
    return %arg2, %arg1 : i32, i32
  }
  func.func @transform_2(%arg0: i32, %arg1: i32, %arg2: i32) -> (i32, i32) {
    %c0_i32 = arith.constant 0 : i32
    return %arg0, %arg1 : i32, i32
  }
}

module attributes {stable_mosaic.version = 11 : i64} {
  func.func @_matmul_kernel(%arg0: i32, %arg1: i32, %arg2: i32, %arg3: memref<128x128xbf16, #tpu.memory_space<vmem>>, %arg4: memref<128x128xbf16, #tpu.memory_space<vmem>>, %arg5: memref<128x128xbf16, #tpu.memory_space<vmem>>, %arg6: memref<128x128xf32, #tpu.memory_space<vmem>>) attributes {dimension_semantics = [#tpu.dimension_semantics<parallel>, #tpu.dimension_semantics<parallel>, #tpu.dimension_semantics<arbitrary>], iteration_bounds = array<i64: 1, 1, 1>, scalar_prefetch = 0 : i64, scratch_operands = 1 : i64, tpu.core_type = #tpu.core_type<tc>, window_params = [{transform_indices = @transform_0, window_bounds = array<i64: 128, 128>}, {transform_indices = @transform_1, window_bounds = array<i64: 128, 128>}, {transform_indices = @transform_2, window_bounds = array<i64: 128, 128>}]} {
    %c0_i32 = arith.constant 0 : i32
    %0 = arith.cmpi eq, %arg2, %c0_i32 : i32
    %1 = arith.extui %0 : i1 to i32
    %c0_i32_0 = arith.constant 0 : i32
    %2 = arith.cmpi ne, %1, %c0_i32_0 : i32
    scf.if %2 {
      %cst_10 = arith.constant 0.000000e+00 : f32
      %12 = vector.broadcast %cst_10 : f32 to vector<128x128xf32>
      %c0_11 = arith.constant 0 : index
      %c0_12 = arith.constant 0 : index
      %13 = vector.load %arg6[%c0_11, %c0_12] : memref<128x128xf32, #tpu.memory_space<vmem>>, vector<128x128xf32>
      tpu.vector_store %arg6[%c0_11, %c0_12], %12 {strides = array<i32>} : memref<128x128xf32, #tpu.memory_space<vmem>>, vector<128x128xf32>,
    } else {
    }
    %c0 = arith.constant 0 : index
    %c0_1 = arith.constant 0 : index
    %3 = vector.load %arg6[%c0, %c0_1] : memref<128x128xf32, #tpu.memory_space<vmem>>, vector<128x128xf32>
    %c0_2 = arith.constant 0 : index
    %c0_3 = arith.constant 0 : index
    %4 = vector.load %arg3[%c0_2, %c0_3] : memref<128x128xbf16, #tpu.memory_space<vmem>>, vector<128x128xbf16>
    %c0_4 = arith.constant 0 : index
    %c0_5 = arith.constant 0 : index
    %5 = vector.load %arg4[%c0_4, %c0_5] : memref<128x128xbf16, #tpu.memory_space<vmem>>, vector<128x128xbf16>
    %cst = arith.constant dense<0.000000e+00> : vector<128x128xf32>
    %6 = tpu.matmul %4, %5, %cst {dimension_numbers = #tpu.dot_dimension_numbers<[1], [0], [0], [1], [0, 0, 1, 1], [], []>} : vector<128x128xbf16>, vector<128x128xbf16>, vector<128x128xf32> -> vector<128x128xf32>
    %7 = arith.addf %3, %6 : vector<128x128xf32>
    %c0_6 = arith.constant 0 : index
    %c0_7 = arith.constant 0 : index
    %8 = vector.load %arg6[%c0_6, %c0_7] : memref<128x128xf32, #tpu.memory_space<vmem>>, vector<128x128xf32>
    tpu.vector_store %arg6[%c0_6, %c0_7], %7 {strides = array<i32>} : memref<128x128xf32, #tpu.memory_space<vmem>>, vector<128x128xf32>,
    %c0_i32_8 = arith.constant 0 : i32
    %9 = arith.cmpi eq, %arg2, %c0_i32_8 : i32
    %10 = arith.extui %9 : i1 to i32
    %c0_i32_9 = arith.constant 0 : i32
    %11 = arith.cmpi ne, %10, %c0_i32_9 : i32
    scf.if %11 {
      %c0_10 = arith.constant 0 : index
      %c0_11 = arith.constant 0 : index
      %12 = vector.load %arg6[%c0_10, %c0_11] : memref<128x128xf32, #tpu.memory_space<vmem>>, vector<128x128xf32>
      %13 = arith.truncf %12 : vector<128x128xf32> to vector<128x128xbf16>
      %c0_12 = arith.constant 0 : index
      %c0_13 = arith.constant 0 : index
      %14 = vector.load %arg5[%c0_12, %c0_13] : memref<128x128xbf16, #tpu.memory_space<vmem>>, vector<128x128xbf16>
      tpu.vector_store %arg5[%c0_12, %c0_13], %13 {strides = array<i32>} : memref<128x128xbf16, #tpu.memory_space<vmem>>, vector<128x128xbf16>,
    } else {
    }
    return
  }
  func.func @transform_0(%arg0: i32, %arg1: i32, %arg2: i32) -> (i32, i32) {
    %c0_i32 = arith.constant 0 : i32
    return %arg0, %arg2 : i32, i32
  }
  func.func @transform_1(%arg0: i32, %arg1: i32, %arg2: i32) -> (i32, i32) {
    %c0_i32 = arith.constant 0 : i32
    return %arg2, %arg1 : i32, i32
  }
  func.func @transform_2(%arg0: i32, %arg1: i32, %arg2: i32) -> (i32, i32) {
    %c0_i32 = arith.constant 0 : i32
    return %arg0, %arg1 : i32, i32
  }
}

module attributes {stable_mosaic.version = 11 : i64} {
  func.func @_matmul_kernel(%arg0: i32, %arg1: i32, %arg2: i32, %arg3: memref<128x128xbf16, #tpu.memory_space<vmem>>, %arg4: memref<128x128xbf16, #tpu.memory_space<vmem>>, %arg5: memref<128x128xf32, #tpu.memory_space<vmem>>, %arg6: memref<128x128xf32, #tpu.memory_space<vmem>>) attributes {dimension_semantics = [#tpu.dimension_semantics<parallel>, #tpu.dimension_semantics<parallel>, #tpu.dimension_semantics<arbitrary>], iteration_bounds = array<i64: 1, 1, 1>, scalar_prefetch = 0 : i64, scratch_operands = 1 : i64, tpu.core_type = #tpu.core_type<tc>, window_params = [{transform_indices = @transform_0, window_bounds = array<i64: 128, 128>}, {transform_indices = @transform_1, window_bounds = array<i64: 128, 128>}, {transform_indices = @transform_2, window_bounds = array<i64: 128, 128>}]} {
    %c0_i32 = arith.constant 0 : i32
    %0 = arith.cmpi eq, %arg2, %c0_i32 : i32
    %1 = arith.extui %0 : i1 to i32
    %c0_i32_0 = arith.constant 0 : i32
    %2 = arith.cmpi ne, %1, %c0_i32_0 : i32
    scf.if %2 {
      %cst_10 = arith.constant 0.000000e+00 : f32
      %12 = vector.broadcast %cst_10 : f32 to vector<128x128xf32>
      %c0_11 = arith.constant 0 : index
      %c0_12 = arith.constant 0 : index
      %13 = vector.load %arg6[%c0_11, %c0_12] : memref<128x128xf32, #tpu.memory_space<vmem>>, vector<128x128xf32>
      tpu.vector_store %arg6[%c0_11, %c0_12], %12 {strides = array<i32>} : memref<128x128xf32, #tpu.memory_space<vmem>>, vector<128x128xf32>,
    } else {
    }
    %c0 = arith.constant 0 : index
    %c0_1 = arith.constant 0 : index
    %3 = vector.load %arg6[%c0, %c0_1] : memref<128x128xf32, #tpu.memory_space<vmem>>, vector<128x128xf32>
    %c0_2 = arith.constant 0 : index
    %c0_3 = arith.constant 0 : index
    %4 = vector.load %arg3[%c0_2, %c0_3] : memref<128x128xbf16, #tpu.memory_space<vmem>>, vector<128x128xbf16>
    %c0_4 = arith.constant 0 : index
    %c0_5 = arith.constant 0 : index
    %5 = vector.load %arg4[%c0_4, %c0_5] : memref<128x128xbf16, #tpu.memory_space<vmem>>, vector<128x128xbf16>
    %cst = arith.constant dense<0.000000e+00> : vector<128x128xf32>
    %6 = tpu.matmul %4, %5, %cst {dimension_numbers = #tpu.dot_dimension_numbers<[1], [0], [0], [1], [0, 0, 1, 1], [], []>} : vector<128x128xbf16>, vector<128x128xbf16>, vector<128x128xf32> -> vector<128x128xf32>
    %7 = arith.addf %3, %6 : vector<128x128xf32>
    %c0_6 = arith.constant 0 : index
    %c0_7 = arith.constant 0 : index
    %8 = vector.load %arg6[%c0_6, %c0_7] : memref<128x128xf32, #tpu.memory_space<vmem>>, vector<128x128xf32>
    tpu.vector_store %arg6[%c0_6, %c0_7], %7 {strides = array<i32>} : memref<128x128xf32, #tpu.memory_space<vmem>>, vector<128x128xf32>,
    %c0_i32_8 = arith.constant 0 : i32
    %9 = arith.cmpi eq, %arg2, %c0_i32_8 : i32
    %10 = arith.extui %9 : i1 to i32
    %c0_i32_9 = arith.constant 0 : i32
    %11 = arith.cmpi ne, %10, %c0_i32_9 : i32
    scf.if %11 {
      %c0_10 = arith.constant 0 : index
      %c0_11 = arith.constant 0 : index
      %12 = vector.load %arg6[%c0_10, %c0_11] : memref<128x128xf32, #tpu.memory_space<vmem>>, vector<128x128xf32>
      %c0_12 = arith.constant 0 : index
      %c0_13 = arith.constant 0 : index
      %13 = vector.load %arg5[%c0_12, %c0_13] : memref<128x128xf32, #tpu.memory_space<vmem>>, vector<128x128xf32>
      tpu.vector_store %arg5[%c0_12, %c0_13], %12 {strides = array<i32>} : memref<128x128xf32, #tpu.memory_space<vmem>>, vector<128x128xf32>,
    } else {
    }
    return
  }
  func.func @transform_0(%arg0: i32, %arg1: i32, %arg2: i32) -> (i32, i32) {
    %c0_i32 = arith.constant 0 : i32
    return %arg0, %arg2 : i32, i32
  }
  func.func @transform_1(%arg0: i32, %arg1: i32, %arg2: i32) -> (i32, i32) {
    %c0_i32 = arith.constant 0 : i32
    return %arg2, %arg1 : i32, i32
  }
  func.func @transform_2(%arg0: i32, %arg1: i32, %arg2: i32) -> (i32, i32) {
    %c0_i32 = arith.constant 0 : i32
    return %arg0, %arg1 : i32, i32
  }
}

</mosaic_0001>

<llo_original>
// kernel: gnn_mix_forward.9
$region0: #{gnn_mix_forward.9}
  #allocation0 [shape = 'u32[]', space=smem, size = 0x4, offset = 0x4, fixed_abs, tag = 'smem constant byte address 0x4 - core index']
  #allocation1 [shape = 'u32[72,128]{1,0:T(1,128)}', space=vmem, size = 0x9000, scoped, tag = 'internal scratch']
  #allocation2 [shape = 'f32[128,256]{1,0:T(8,128)}', space=vmem, size = 0x20000, scoped, tag = 'scratch operand']
  %s0 = inlined_call_operand.vmem [shape: bf16[128,128], index: 0, kind: input, shape index: {}]
  %s1 = inlined_call_operand.vmem [shape: bf16[128,1024], index: 1, kind: input, shape index: {}]
  %s2 = inlined_call_operand.vmem [shape: bf16[128,1024], index: 2, kind: output, shape index: {}]
  %s3 = sld [smem:[#allocation0]]
  $region121: #{gnn_mix_forward.9} parent=0
    _
  %s5 = ssub.s32 1, %s3
  %s6 = scalar_select 0, %s5, %s3
  $region1: #{gnn_mix_forward.9} parent=0
    #allocation3 [shape = 'u8[131072]{0}', space=vmem, size = 0x20000, scoped, tag = 'input window, operand 1']
    #allocation4 [shape = 'u8[131072]{0}', space=vmem, size = 0x20000, scoped, tag = 'output window, operand 0']
    loop: start=0, step=1, limit=6
    $region2: #{gnn_mix_forward.9} parent=1 // loop_pre_header
      _
    $region3: #{gnn_mix_forward.9} parent=1 // loop_header
      %s8 = sphi 0, %s12
      %p9 = scmp.ge.s32.totalorder %s8, 6
      %s15 = sphi 0, %s34
      %s16 = sphi 0, %s30
      %s17 = sphi 0, %s26
      %s18 = sphi 0, %s15
      %s19 = sphi 0, %s16
      %s20 = sphi 0, %s17
      %s21 = sphi 0, %s18
      %s22 = sphi 0, %s19
      %s23 = sphi 0, %s20
      %s39 = sphi 0, %s41
      %s42 = sphi 0, %s39
      %s43 = sphi 0, %s42
      %s59 = sphi 0, %s43
      %s67 = sphi 0, %s69
      %s70 = sphi 0, %s67
      %s71 = sphi 0, %s70
      %s87 = sphi 0, %s71
      %s95 = sphi 0, %s97
      %s98 = sphi 0, %s95
      %s99 = sphi 0, %s98
      %s115 = sphi 0, %s99
    $region4: #{gnn_mix_forward.9} parent=1 // loop_header_branch
      %11 = sbr.rel (%p9) target = $region8
    $region5: #{gnn_mix_forward.9} parent=1 // loop_body
      %s13 = ssub.s32 %s8, 1
      %s14 = ssub.s32 %s8, 2
      %s24 = sadd.s32 1, %s17
      %p25 = scmp.ge.s32.totalorder %s24, 1
      %s26 = scalar_select %p25, 0, %s24
      %s27 = sadd.s32 1, %s16
      %s28 = scalar_select %p25, %s27, %s16
      %p29 = scmp.ge.s32.totalorder %s28, 4
      %s30 = scalar_select %p29, 0, %s28
      %s31 = sadd.s32 1, %s15
      %s32 = scalar_select %p29, %s31, %s15
      %p33 = scmp.ge.s32.totalorder %s32, 1
      %s34 = scalar_select %p33, 0, %s32
      %s35 = ssub.s32 %s15, %s34
      %s36 = ssub.s32 %s17, %s26
      %s37 = sor.u32 %s35, %s36
      %p38 = scmp.eq.s32.totalorder %s37, 0
      %s40 = sadd.s32 %s39, 1
      %s41 = scalar_select %p38, %s39, %s40
      %p44 = pneg %p38
      %p45 = scmp.eq.s32.totalorder %s8, 3
      %p46 = por %p44, %p45
      %p47 = scmp.ne.s32.totalorder %s39, %s42
      %p48 = scmp.eq.s32.totalorder %s8, 0
      %p49 = por %p47, %p48
      %p50 = scmp.ne.s32.totalorder %s39, %s42
      %p51 = scmp.eq.s32.totalorder %s13, 3
      %p52 = por %p50, %p51
      %p53 = scmp.ne.s32.totalorder %s42, %s43
      %p54 = scmp.eq.s32.totalorder %s13, 0
      %p55 = por %p53, %p54
      %p56 = scmp.ne.s32.totalorder %s42, %s43
      %p57 = scmp.eq.s32.totalorder %s14, 3
      %p58 = por %p56, %p57
      %p60 = scmp.ne.s32.totalorder %s43, %s59
      %p61 = scmp.eq.s32.totalorder %s14, 0
      %p62 = por %p60, %p61
      %s63 = ssub.s32 %s17, %s26
      %s64 = ssub.s32 %s16, %s30
      %s65 = sor.u32 %s63, %s64
      %p66 = scmp.eq.s32.totalorder %s65, 0
      %s68 = sadd.s32 %s67, 1
      %s69 = scalar_select %p66, %s67, %s68
      %p72 = pneg %p66
      %p73 = scmp.eq.s32.totalorder %s8, 3
      %p74 = por %p72, %p73
      %p75 = scmp.ne.s32.totalorder %s67, %s70
      %p76 = scmp.eq.s32.totalorder %s8, 0
      %p77 = por %p75, %p76
      %p78 = scmp.ne.s32.totalorder %s67, %s70
      %p79 = scmp.eq.s32.totalorder %s13, 3
      %p80 = por %p78, %p79
      %p81 = scmp.ne.s32.totalorder %s70, %s71
      %p82 = scmp.eq.s32.totalorder %s13, 0
      %p83 = por %p81, %p82
      %p84 = scmp.ne.s32.totalorder %s70, %s71
      %p85 = scmp.eq.s32.totalorder %s14, 3
      %p86 = por %p84, %p85
      %p88 = scmp.ne.s32.totalorder %s71, %s87
      %p89 = scmp.eq.s32.totalorder %s14, 0
      %p90 = por %p88, %p89
      %s91 = ssub.s32 %s15, %s34
      %s92 = ssub.s32 %s16, %s30
      %s93 = sor.u32 %s91, %s92
      %p94 = scmp.eq.s32.totalorder %s93, 0
      %s96 = sadd.s32 %s95, 1
      %s97 = scalar_select %p94, %s95, %s96
      %p100 = pneg %p94
      %p101 = scmp.eq.s32.totalorder %s8, 3
      %p102 = por %p100, %p101
      %p103 = scmp.ne.s32.totalorder %s95, %s98
      %p104 = scmp.eq.s32.totalorder %s8, 0
      %p105 = por %p103, %p104
      %p106 = scmp.ne.s32.totalorder %s95, %s98
      %p107 = scmp.eq.s32.totalorder %s13, 3
      %p108 = por %p106, %p107
      %p109 = scmp.ne.s32.totalorder %s98, %s99
      %p110 = scmp.eq.s32.totalorder %s13, 0
      %p111 = por %p109, %p110
      %p112 = scmp.ne.s32.totalorder %s98, %s99
      %p113 = scmp.eq.s32.totalorder %s14, 3
      %p114 = por %p112, %p113
      %p116 = scmp.ne.s32.totalorder %s99, %s115
      %p117 = scmp.eq.s32.totalorder %s14, 0
      %p118 = por %p116, %p117
      %p119 = scmp.le.s32.totalorder 1, %s8
      %p120 = scmp.lt.s32.totalorder %s8, 5
      %p121 = pnand %p119, %p120
      %p122 = pneg %p121
      // Predicated region
      $region9: #{gnn_mix_forward.9} parent=5 // pred_check
        _
      $region10: #{gnn_mix_forward.9} parent=5 // pred_check_branch
        %124 = sbr.rel (%p121) target = $region12
      $region11: #{gnn_mix_forward.9} parent=5 // pred_region
        %s125 = ssub.s32 %s8, 1
        // Predicated region
        $region13: #{gnn_mix_forward.9} parent=11 // pred_check
          %p126 = pneg %p55
        $region14: #{gnn_mix_forward.9} parent=11 // pred_check_branch
          %128 = sbr.rel (%p126) target = $region16
        $region15: #{gnn_mix_forward.9} parent=11 // pred_region
          %s129 = smul.u32 16, %s18
          %p130 = scmp.lt.s32.totalorder %s129, 15
          %s131 = scalar_select %p130, %s129, 15
          %p132 = scmp.lt.s32.totalorder %s20, 0
          %s133 = scalar_select %p132, %s20, 0
          %s134 = sadd.s32 %s133, %s131
          %s135 = smul.addr %s134, 4
          %s136 = scalar_lea.vmem %s0, %s135
          %s137 = smul.u32 16, %s18
        $region16: #{gnn_mix_forward.9} parent=11 // pred_fallthru
          _
      $region12: #{gnn_mix_forward.9} parent=5 // pred_fallthru
        _
      %p138 = scmp.lt.s32.totalorder %s8, 4
      // Predicated region
      $region17: #{gnn_mix_forward.9} parent=5 // pred_check
        %p139 = pneg %p138
      $region18: #{gnn_mix_forward.9} parent=5 // pred_check_branch
        %141 = sbr.rel (%p139) target = $region20
      $region19: #{gnn_mix_forward.9} parent=5 // pred_region
        // Predicated region
        $region21: #{gnn_mix_forward.9} parent=19 // pred_check
          %p142 = pneg %p77
        $region22: #{gnn_mix_forward.9} parent=19 // pred_check_branch
          %144 = sbr.rel (%p142) target = $region24
        $region23: #{gnn_mix_forward.9} parent=19 // pred_region
          %s145 = sand.u32 %s67, 1
          %s146 = sand.u32 %s67, 1
          %s147 = smul.addr %s146, 128
          %s148 = scalar_lea.vmem [#allocation3], %s147
          %s149 = smul.u32 16, %s17
          %s150 = smul.u32 2, %s16
          %s151 = smul.addr %s149, 8
          %s152 = sadd.s32 %s150, %s151
          %s153 = smul.addr %s152, 4
          %s154 = scalar_lea.vmem %s1, %s153
          // Predicated region
          $region25: #{gnn_mix_forward.9} parent=23 // pred_check
            _
          $region26: #{gnn_mix_forward.9} parent=23 // pred_check_branch
            %156 = sbr.rel (0) target = $region28
          $region27: #{gnn_mix_forward.9} parent=23 // pred_region
            // Predicated region
            $region29: #{gnn_mix_forward.9} parent=27 // pred_check
              _
            $region30: #{gnn_mix_forward.9} parent=27 // pred_check_branch
              %158 = sbr.rel (0) target = $region32
            $region31: #{gnn_mix_forward.9} parent=27 // pred_region
              // Predicated region
              $region44: #{gnn_mix_forward.9} parent=31 // pred_check
                _
              $region45: #{gnn_mix_forward.9} parent=31 // pred_check_branch
                %204 = sbr.rel (0) target = $region47
              $region46: #{gnn_mix_forward.9} parent=31 // pred_region
                loop: start=0, step=1, limit=1
                $region48: #{gnn_mix_forward.9} parent=46 // loop_pre_header
                  _
                $region49: #{gnn_mix_forward.9} parent=46 // loop_header
                  %s206 = sphi 0, %s210
                  %p207 = scmp.ge.s32.totalorder %s206, 1
                  %s211 = sphi %s154, %s154
                  %s212 = sphi %s148, %s148
                $region50: #{gnn_mix_forward.9} parent=46 // loop_header_branch
                  %209 = sbr.rel (%p207) target = $region54
                $region51: #{gnn_mix_forward.9} parent=46 // loop_body
                  %v213 = vld [vmem:[%s211] sm:$0xff]
                  %214 = vst [vmem:[%s212] sm:$0xff] %v213
                  %v215 = vld [vmem:[%s211 + $0x20] sm:$0xff]
                  %216 = vst [vmem:[%s212 + $0x8] sm:$0xff] %v215
                  %v217 = vld [vmem:[%s211 + $0x40] sm:$0xff]
                  %218 = vst [vmem:[%s212 + $0x10] sm:$0xff] %v217
                  %v219 = vld [vmem:[%s211 + $0x60] sm:$0xff]
                  %220 = vst [vmem:[%s212 + $0x18] sm:$0xff] %v219
                  %v221 = vld [vmem:[%s211 + $0x80] sm:$0xff]
                  %222 = vst [vmem:[%s212 + $0x20] sm:$0xff] %v221
                  %v223 = vld [vmem:[%s211 + $0xa0] sm:$0xff]
                  %224 = vst [vmem:[%s212 + $0x28] sm:$0xff] %v223
                  %v225 = vld [vmem:[%s211 + $0xc0] sm:$0xff]
                  %226 = vst [vmem:[%s212 + $0x30] sm:$0xff] %v225
                  %v227 = vld [vmem:[%s211 + $0xe0] sm:$0xff]
                  %228 = vst [vmem:[%s212 + $0x38] sm:$0xff] %v227
                  %v229 = vld [vmem:[%s211 + $0x100] sm:$0xff]
                  %230 = vst [vmem:[%s212 + $0x40] sm:$0xff] %v229
                  %v231 = vld [vmem:[%s211 + $0x120] sm:$0xff]
                  %232 = vst [vmem:[%s212 + $0x48] sm:$0xff] %v231
                  %v233 = vld [vmem:[%s211 + $0x140] sm:$0xff]
                  %234 = vst [vmem:[%s212 + $0x50] sm:$0xff] %v233
                  %v235 = vld [vmem:[%s211 + $0x160] sm:$0xff]
                  %236 = vst [vmem:[%s212 + $0x58] sm:$0xff] %v235
                  %v237 = vld [vmem:[%s211 + $0x180] sm:$0xff]
                  %238 = vst [vmem:[%s212 + $0x60] sm:$0xff] %v237
                  %v239 = vld [vmem:[%s211 + $0x1a0] sm:$0xff]
                  %240 = vst [vmem:[%s212 + $0x68] sm:$0xff] %v239
                  %v241 = vld [vmem:[%s211 + $0x1c0] sm:$0xff]
                  %242 = vst [vmem:[%s212 + $0x70] sm:$0xff] %v241
                  %v243 = vld [vmem:[%s211 + $0x1e0] sm:$0xff]
                  %244 = vst [vmem:[%s212 + $0x78] sm:$0xff] %v243
                $region52: #{gnn_mix_forward.9} parent=46 // loop_footer
                  %s210 = sadd.s32 1, %s206
                $region53: #{gnn_mix_forward.9} parent=46 // loop_footer_branch
                  %205 = sbr.rel target = $region49
                $region54: #{gnn_mix_forward.9} parent=46 // loop_exit
                  _
              $region47: #{gnn_mix_forward.9} parent=31 // pred_fallthru
                _
              // Predicated region
              $region55: #{gnn_mix_forward.9} parent=31 // pred_check
                _
              $region56: #{gnn_mix_forward.9} parent=31 // pred_check_branch
                %246 = sbr.rel target = $region58
              $region57: #{gnn_mix_forward.9} parent=31 // pred_region
                _
              $region58: #{gnn_mix_forward.9} parent=31 // pred_fallthru
                _
            $region32: #{gnn_mix_forward.9} parent=27 // pred_fallthru
              _
            // Predicated region
            $region33: #{gnn_mix_forward.9} parent=27 // pred_check
              _
            $region34: #{gnn_mix_forward.9} parent=27 // pred_check_branch
              %160 = sbr.rel target = $region36
            $region35: #{gnn_mix_forward.9} parent=27 // pred_region
              %s162 = ssub.s32 256, 1
              loop: start=0, step=1, limit=1
              $region37: #{gnn_mix_forward.9} parent=35 // loop_pre_header
                _
              $region38: #{gnn_mix_forward.9} parent=35 // loop_header
                %s164 = sphi 0, %s168
                %p165 = scmp.ge.s32.totalorder %s164, 1
                %s169 = sphi %s154, %s154
                %s170 = sphi %s148, %s148
              $region39: #{gnn_mix_forward.9} parent=35 // loop_header_branch
                %167 = sbr.rel (%p165) target = $region43
              $region40: #{gnn_mix_forward.9} parent=35 // loop_body
                %v171 = vld [vmem:[%s169] sm:%s162]
                %172 = vst [vmem:[%s170] sm:%s162] %v171
                %v173 = vld [vmem:[%s169 + $0x20] sm:%s162]
                %174 = vst [vmem:[%s170 + $0x8] sm:%s162] %v173
                %v175 = vld [vmem:[%s169 + $0x40] sm:%s162]
                %176 = vst [vmem:[%s170 + $0x10] sm:%s162] %v175
                %v177 = vld [vmem:[%s169 + $0x60] sm:%s162]
                %178 = vst [vmem:[%s170 + $0x18] sm:%s162] %v177
                %v179 = vld [vmem:[%s169 + $0x80] sm:%s162]
                %180 = vst [vmem:[%s170 + $0x20] sm:%s162] %v179
                %v181 = vld [vmem:[%s169 + $0xa0] sm:%s162]
                %182 = vst [vmem:[%s170 + $0x28] sm:%s162] %v181
                %v183 = vld [vmem:[%s169 + $0xc0] sm:%s162]
                %184 = vst [vmem:[%s170 + $0x30] sm:%s162] %v183
                %v185 = vld [vmem:[%s169 + $0xe0] sm:%s162]
                %186 = vst [vmem:[%s170 + $0x38] sm:%s162] %v185
                %v187 = vld [vmem:[%s169 + $0x100] sm:%s162]
                %188 = vst [vmem:[%s170 + $0x40] sm:%s162] %v187
                %v189 = vld [vmem:[%s169 + $0x120] sm:%s162]
                %190 = vst [vmem:[%s170 + $0x48] sm:%s162] %v189
                %v191 = vld [vmem:[%s169 + $0x140] sm:%s162]
                %192 = vst [vmem:[%s170 + $0x50] sm:%s162] %v191
                %v193 = vld [vmem:[%s169 + $0x160] sm:%s162]
                %194 = vst [vmem:[%s170 + $0x58] sm:%s162] %v193
                %v195 = vld [vmem:[%s169 + $0x180] sm:%s162]
                %196 = vst [vmem:[%s170 + $0x60] sm:%s162] %v195
                %v197 = vld [vmem:[%s169 + $0x1a0] sm:%s162]
                %198 = vst [vmem:[%s170 + $0x68] sm:%s162] %v197
                %v199 = vld [vmem:[%s169 + $0x1c0] sm:%s162]
                %200 = vst [vmem:[%s170 + $0x70] sm:%s162] %v199
                %v201 = vld [vmem:[%s169 + $0x1e0] sm:%s162]
                %202 = vst [vmem:[%s170 + $0x78] sm:%s162] %v201
              $region41: #{gnn_mix_forward.9} parent=35 // loop_footer
                %s168 = sadd.s32 1, %s164
              $region42: #{gnn_mix_forward.9} parent=35 // loop_footer_branch
                %163 = sbr.rel target = $region38
              $region43: #{gnn_mix_forward.9} parent=35 // loop_exit
                _
            $region36: #{gnn_mix_forward.9} parent=27 // pred_fallthru
              _
          $region28: #{gnn_mix_forward.9} parent=23 // pred_fallthru
            _
          %247 = vnop
        $region24: #{gnn_mix_forward.9} parent=19 // pred_fallthru
          _
      $region20: #{gnn_mix_forward.9} parent=5 // pred_fallthru
        _
      %p248 = scmp.le.s32.totalorder 1, %s8
      %p249 = scmp.lt.s32.totalorder %s8, 5
      %p250 = pnand %p248, %p249
      %p251 = pneg %p250
      // Predicated region
      $region59: #{gnn_mix_forward.9} parent=5 // pred_check
        _
      $region60: #{gnn_mix_forward.9} parent=5 // pred_check_branch
        %253 = sbr.rel (%p250) target = $region62
      $region61: #{gnn_mix_forward.9} parent=5 // pred_region
        %s254 = ssub.s32 %s8, 1
        %s255 = sand.u32 %s70, 1
        %s256 = sand.u32 %s70, 1
        %s257 = smul.addr %s256, 128
        %s258 = scalar_lea.vmem [#allocation3], %s257
        // Predicated region
        $region63: #{gnn_mix_forward.9} parent=61 // pred_check
          %p259 = pneg %p83
        $region64: #{gnn_mix_forward.9} parent=61 // pred_check_branch
          %261 = sbr.rel (%p259) target = $region66
        $region65: #{gnn_mix_forward.9} parent=61 // pred_region
          _
        $region66: #{gnn_mix_forward.9} parent=61 // pred_fallthru
          _
        %s262 = smul.u32 16, %s18
        %p263 = scmp.lt.s32.totalorder %s262, 15
        %s264 = scalar_select %p263, %s262, 15
        %p265 = scmp.lt.s32.totalorder %s20, 0
        %s266 = scalar_select %p265, %s20, 0
        %s267 = sadd.s32 %s266, %s264
        %s268 = smul.addr %s267, 4
        %s269 = scalar_lea.vmem %s0, %s268
        %p270 = pneg %p55
        %p271 = pneg %p52
        %s272 = sand.u32 %s70, 1
        %s273 = sand.u32 %s70, 1
        %s274 = smul.addr %s273, 128
        %s275 = scalar_lea.vmem [#allocation3], %s274
        %p276 = pneg %p83
        %p277 = pneg %p80
        %p278 = pneg %p111
        %p279 = pneg %p108
        %s280 = sand.u32 %s98, 1
        %s281 = sand.u32 %s98, 1
        %s282 = smul.addr %s281, 128
        %s283 = scalar_lea.vmem [#allocation4], %s282
        %s284 = smul.u32 16, %s18
        %p285 = scmp.lt.s32.totalorder %s284, 15
        %s286 = scalar_select %p285, %s284, 15
        %p287 = scmp.lt.s32.totalorder %s20, 0
        %s288 = scalar_select %p287, %s20, 0
        %s289 = sadd.s32 %s288, %s286
        %s290 = smul.addr %s289, 4
        %s291 = scalar_lea.vmem %s0, %s290
        %s292 = smul.u32 16, %s18
        %s293 = smul.u32 16, %s20
        %s294 = smul.u32 2, %s19
        %s295 = smul.u32 16, %s18
        %s296 = smul.u32 2, %s19
        %p297 = scmp.eq.s32.totalorder %s20, 0
        // Predicated region
        $region67: #{gnn_mix_forward.9} parent=61 // pred_check
          %p298 = pneg %p297
        $region68: #{gnn_mix_forward.9} parent=61 // pred_check_branch
          %300 = sbr.rel (%p298) target = $region70
        $region69: #{gnn_mix_forward.9} parent=61 // pred_region
          %301 = vst [vmem:[#allocation2] sm:$0xff] 0.0
          %302 = vst [vmem:[#allocation2 + $0x8] sm:$0xff] 0.0
          %303 = vst [vmem:[#allocation2 + $0x10] sm:$0xff] 0.0
          %304 = vst [vmem:[#allocation2 + $0x18] sm:$0xff] 0.0
          %305 = vst [vmem:[#allocation2 + $0x20] sm:$0xff] 0.0
          %306 = vst [vmem:[#allocation2 + $0x28] sm:$0xff] 0.0
          %307 = vst [vmem:[#allocation2 + $0x30] sm:$0xff] 0.0
          %308 = vst [vmem:[#allocation2 + $0x38] sm:$0xff] 0.0
          %309 = vst [vmem:[#allocation2 + $0x40] sm:$0xff] 0.0
          %310 = vst [vmem:[#allocation2 + $0x48] sm:$0xff] 0.0
          %311 = vst [vmem:[#allocation2 + $0x50] sm:$0xff] 0.0
          %312 = vst [vmem:[#allocation2 + $0x58] sm:$0xff] 0.0
          %313 = vst [vmem:[#allocation2 + $0x60] sm:$0xff] 0.0
          %314 = vst [vmem:[#allocation2 + $0x68] sm:$0xff] 0.0
          %315 = vst [vmem:[#allocation2 + $0x70] sm:$0xff] 0.0
          %316 = vst [vmem:[#allocation2 + $0x78] sm:$0xff] 0.0
          %317 = vst [vmem:[#allocation2 + $0x80] sm:$0xff] 0.0
          %318 = vst [vmem:[#allocation2 + $0x88] sm:$0xff] 0.0
          %319 = vst [vmem:[#allocation2 + $0x90] sm:$0xff] 0.0
          %320 = vst [vmem:[#allocation2 + $0x98] sm:$0xff] 0.0
          %321 = vst [vmem:[#allocation2 + $0xa0] sm:$0xff] 0.0
          %322 = vst [vmem:[#allocation2 + $0xa8] sm:$0xff] 0.0
          %323 = vst [vmem:[#allocation2 + $0xb0] sm:$0xff] 0.0
          %324 = vst [vmem:[#allocation2 + $0xb8] sm:$0xff] 0.0
          %325 = vst [vmem:[#allocation2 + $0xc0] sm:$0xff] 0.0
          %326 = vst [vmem:[#allocation2 + $0xc8] sm:$0xff] 0.0
          %327 = vst [vmem:[#allocation2 + $0xd0] sm:$0xff] 0.0
          %328 = vst [vmem:[#allocation2 + $0xd8] sm:$0xff] 0.0
          %329 = vst [vmem:[#allocation2 + $0xe0] sm:$0xff] 0.0
          %330 = vst [vmem:[#allocation2 + $0xe8] sm:$0xff] 0.0
          %331 = vst [vmem:[#allocation2 + $0xf0] sm:$0xff] 0.0
          %332 = vst [vmem:[#allocation2 + $0xf8] sm:$0xff] 0.0
        $region70: #{gnn_mix_forward.9} parent=61 // pred_fallthru
          _
        %v333 = vld [vmem:[#allocation2] sm:$0xff]
        %v334 = vld [vmem:[#allocation2 + $0x8] sm:$0xff]
        %v335 = vld [vmem:[#allocation2 + $0x10] sm:$0xff]
        %v336 = vld [vmem:[#allocation2 + $0x18] sm:$0xff]
        %v337 = vld [vmem:[#allocation2 + $0x20] sm:$0xff]
        %v338 = vld [vmem:[#allocation2 + $0x28] sm:$0xff]
        %v339 = vld [vmem:[#allocation2 + $0x30] sm:$0xff]
        %v340 = vld [vmem:[#allocation2 + $0x38] sm:$0xff]
        %v341 = vld [vmem:[#allocation2 + $0x40] sm:$0xff]
        %v342 = vld [vmem:[#allocation2 + $0x48] sm:$0xff]
        %v343 = vld [vmem:[#allocation2 + $0x50] sm:$0xff]
        %v344 = vld [vmem:[#allocation2 + $0x58] sm:$0xff]
        %v345 = vld [vmem:[#allocation2 + $0x60] sm:$0xff]
        %v346 = vld [vmem:[#allocation2 + $0x68] sm:$0xff]
        %v347 = vld [vmem:[#allocation2 + $0x70] sm:$0xff]
        %v348 = vld [vmem:[#allocation2 + $0x78] sm:$0xff]
        %v349 = vld [vmem:[#allocation2 + $0x80] sm:$0xff]
        %v350 = vld [vmem:[#allocation2 + $0x88] sm:$0xff]
        %v351 = vld [vmem:[#allocation2 + $0x90] sm:$0xff]
        %v352 = vld [vmem:[#allocation2 + $0x98] sm:$0xff]
        %v353 = vld [vmem:[#allocation2 + $0xa0] sm:$0xff]
        %v354 = vld [vmem:[#allocation2 + $0xa8] sm:$0xff]
        %v355 = vld [vmem:[#allocation2 + $0xb0] sm:$0xff]
        %v356 = vld [vmem:[#allocation2 + $0xb8] sm:$0xff]
        %v357 = vld [vmem:[#allocation2 + $0xc0] sm:$0xff]
        %v358 = vld [vmem:[#allocation2 + $0xc8] sm:$0xff]
        %v359 = vld [vmem:[#allocation2 + $0xd0] sm:$0xff]
        %v360 = vld [vmem:[#allocation2 + $0xd8] sm:$0xff]
        %v361 = vld [vmem:[#allocation2 + $0xe0] sm:$0xff]
        %v362 = vld [vmem:[#allocation2 + $0xe8] sm:$0xff]
        %v363 = vld [vmem:[#allocation2 + $0xf0] sm:$0xff]
        %v364 = vld [vmem:[#allocation2 + $0xf8] sm:$0xff]
        %v365 = vld [vmem:[%s291] sm:$0xf]
        %v366 = vld [vmem:[%s291 + $0x4] sm:$0xf]
        %v367 = vld [vmem:[%s291 + $0x8] sm:$0xf]
        %v368 = vld [vmem:[%s291 + $0xc] sm:$0xf]
        %v369 = vld [vmem:[%s291 + $0x10] sm:$0xf]
        %v370 = vld [vmem:[%s291 + $0x14] sm:$0xf]
        %v371 = vld [vmem:[%s291 + $0x18] sm:$0xf]
        %v372 = vld [vmem:[%s291 + $0x1c] sm:$0xf]
        %v373 = vld [vmem:[%s291 + $0x20] sm:$0xf]
        %v374 = vld [vmem:[%s291 + $0x24] sm:$0xf]
        %v375 = vld [vmem:[%s291 + $0x28] sm:$0xf]
        %v376 = vld [vmem:[%s291 + $0x2c] sm:$0xf]
        %v377 = vld [vmem:[%s291 + $0x30] sm:$0xf]
        %v378 = vld [vmem:[%s291 + $0x34] sm:$0xf]
        %v379 = vld [vmem:[%s291 + $0x38] sm:$0xf]
        %v380 = vld [vmem:[%s291 + $0x3c] sm:$0xf]
        %v381 = vld [vmem:[%s258] sm:$0xff]
        %v382 = vld [vmem:[%s258 + $0x8] sm:$0xff]
        %v383 = vld [vmem:[%s258 + $0x10] sm:$0xff]
        %v384 = vld [vmem:[%s258 + $0x18] sm:$0xff]
        %v385 = vld [vmem:[%s258 + $0x20] sm:$0xff]
        %v386 = vld [vmem:[%s258 + $0x28] sm:$0xff]
        %v387 = vld [vmem:[%s258 + $0x30] sm:$0xff]
        %v388 = vld [vmem:[%s258 + $0x38] sm:$0xff]
        %v389 = vld [vmem:[%s258 + $0x40] sm:$0xff]
        %v390 = vld [vmem:[%s258 + $0x48] sm:$0xff]
        %v391 = vld [vmem:[%s258 + $0x50] sm:$0xff]
        %v392 = vld [vmem:[%s258 + $0x58] sm:$0xff]
        %v393 = vld [vmem:[%s258 + $0x60] sm:$0xff]
        %v394 = vld [vmem:[%s258 + $0x68] sm:$0xff]
        %v395 = vld [vmem:[%s258 + $0x70] sm:$0xff]
        %v396 = vld [vmem:[%s258 + $0x78] sm:$0xff]
        %v413 = vunpack.c.l.b16 %v365
        %v414 = vunpack.c.l.b16 %v366
        %v415 = vunpack.c.l.b16 %v367
        %v416 = vunpack.c.l.b16 %v368
        %v417 = vunpack.c.l.b16 %v369
        %v418 = vunpack.c.l.b16 %v370
        %v419 = vunpack.c.l.b16 %v371
        %v420 = vunpack.c.l.b16 %v372
        %v421 = vunpack.c.l.b16 %v373
        %v422 = vunpack.c.l.b16 %v374
        %v423 = vunpack.c.l.b16 %v375
        %v424 = vunpack.c.l.b16 %v376
        %v425 = vunpack.c.l.b16 %v377
        %v426 = vunpack.c.l.b16 %v378
        %v427 = vunpack.c.l.b16 %v379
        %v428 = vunpack.c.l.b16 %v380
        %v429 = vpack.c.b16 %v414, %v413
        %v430 = vpack.c.b16 %v416, %v415
        %v431 = vpack.c.b16 %v418, %v417
        %v432 = vpack.c.b16 %v420, %v419
        %v433 = vpack.c.b16 %v422, %v421
        %v434 = vpack.c.b16 %v424, %v423
        %v435 = vpack.c.b16 %v426, %v425
        %v436 = vpack.c.b16 %v428, %v427
        %v461 = vunpack.c.l.b16 %v381
        %v462 = vunpack.c.h.b16 %v381
        %v463 = vunpack.c.l.b16 %v382
        %v464 = vunpack.c.h.b16 %v382
        %v465 = vunpack.c.l.b16 %v383
        %v466 = vunpack.c.h.b16 %v383
        %v467 = vunpack.c.l.b16 %v384
        %v468 = vunpack.c.h.b16 %v384
        %v469 = vunpack.c.l.b16 %v385
        %v470 = vunpack.c.h.b16 %v385
        %v471 = vunpack.c.l.b16 %v386
        %v472 = vunpack.c.h.b16 %v386
        %v473 = vunpack.c.l.b16 %v387
        %v474 = vunpack.c.h.b16 %v387
        %v475 = vunpack.c.l.b16 %v388
        %v476 = vunpack.c.h.b16 %v388
        %v477 = vunpack.c.l.b16 %v389
        %v478 = vunpack.c.h.b16 %v389
        %v479 = vunpack.c.l.b16 %v390
        %v480 = vunpack.c.h.b16 %v390
        %v481 = vunpack.c.l.b16 %v391
        %v482 = vunpack.c.h.b16 %v391
        %v483 = vunpack.c.l.b16 %v392
        %v484 = vunpack.c.h.b16 %v392
        %v485 = vunpack.c.l.b16 %v393
        %v486 = vunpack.c.h.b16 %v393
        %v487 = vunpack.c.l.b16 %v394
        %v488 = vunpack.c.h.b16 %v394
        %v489 = vunpack.c.l.b16 %v395
        %v490 = vunpack.c.h.b16 %v395
        %v491 = vunpack.c.l.b16 %v396
        %v492 = vunpack.c.h.b16 %v396
        %v493 = vpack.c.b16 %v463, %v461
        %v494 = vpack.c.b16 %v464, %v462
        %v495 = vpack.c.b16 %v467, %v465
        %v496 = vpack.c.b16 %v468, %v466
        %v497 = vpack.c.b16 %v471, %v469
        %v498 = vpack.c.b16 %v472, %v470
        %v499 = vpack.c.b16 %v475, %v473
        %v500 = vpack.c.b16 %v476, %v474
        %v501 = vpack.c.b16 %v479, %v477
        %v502 = vpack.c.b16 %v480, %v478
        %v503 = vpack.c.b16 %v483, %v481
        %v504 = vpack.c.b16 %v484, %v482
        %v505 = vpack.c.b16 %v487, %v485
        %v506 = vpack.c.b16 %v488, %v486
        %v507 = vpack.c.b16 %v491, %v489
        %v508 = vpack.c.b16 %v492, %v490
        %525 = vmatpush.bf16.msra.mxu0 %v507
        %526 = vmatpush.bf16.msra.mxu0 %v505
        %527 = vmatpush.bf16.msra.mxu0 %v503
        %528 = vmatpush.bf16.msra.mxu0 %v501
        %529 = vmatpush.bf16.msra.mxu0 %v499
        %530 = vmatpush.bf16.msra.mxu0 %v497
        %531 = vmatpush.bf16.msra.mxu0 %v495
        %532 = vmatpush.bf16.msra.mxu0 %v493
        %533 = vmatmul.bf16.gmra.mxu0 %v429
        %v534 = vpop.f32.mrf.mxu0
        %v535 = vadd.f32 0.0, %v534
        %v536 = vpop.f32.mrf.mxu0
        %v537 = vadd.f32 0.0, %v536
        %538 = vmatmul.bf16.gmra.mxu0 %v430
        %v539 = vpop.f32.mrf.mxu0
        %v540 = vadd.f32 0.0, %v539
        %v541 = vpop.f32.mrf.mxu0
        %v542 = vadd.f32 0.0, %v541
        %543 = vmatmul.bf16.gmra.mxu0 %v431
        %v544 = vpop.f32.mrf.mxu0
        %v545 = vadd.f32 0.0, %v544
        %v546 = vpop.f32.mrf.mxu0
        %v547 = vadd.f32 0.0, %v546
        %548 = vmatmul.bf16.gmra.mxu0 %v432
        %v549 = vpop.f32.mrf.mxu0
        %v550 = vadd.f32 0.0, %v549
        %v551 = vpop.f32.mrf.mxu0
        %v552 = vadd.f32 0.0, %v551
        %553 = vmatmul.bf16.gmra.mxu0 %v433
        %v554 = vpop.f32.mrf.mxu0
        %v555 = vadd.f32 0.0, %v554
        %v556 = vpop.f32.mrf.mxu0
        %v557 = vadd.f32 0.0, %v556
        %558 = vmatmul.bf16.gmra.mxu0 %v434
        %v559 = vpop.f32.mrf.mxu0
        %v560 = vadd.f32 0.0, %v559
        %v561 = vpop.f32.mrf.mxu0
        %v562 = vadd.f32 0.0, %v561
        %563 = vmatmul.bf16.gmra.mxu0 %v435
        %v564 = vpop.f32.mrf.mxu0
        %v565 = vadd.f32 0.0, %v564
        %v566 = vpop.f32.mrf.mxu0
        %v567 = vadd.f32 0.0, %v566
        %568 = vmatmul.bf16.gmra.mxu0 %v436
        %v569 = vpop.f32.mrf.mxu0
        %v570 = vadd.f32 0.0, %v569
        %v571 = vpop.f32.mrf.mxu0
        %v572 = vadd.f32 0.0, %v571
        %573 = vdwg.mxu0
        %574 = vmatpush.bf16.msra.mxu0 %v508
        %575 = vmatpush.bf16.msra.mxu0 %v506
        %576 = vmatpush.bf16.msra.mxu0 %v504
        %577 = vmatpush.bf16.msra.mxu0 %v502
        %578 = vmatpush.bf16.msra.mxu0 %v500
        %579 = vmatpush.bf16.msra.mxu0 %v498
        %580 = vmatpush.bf16.msra.mxu0 %v496
        %581 = vmatpush.bf16.msra.mxu0 %v494
        %582 = vmatmul.bf16.gmra.mxu0 %v429
        %v583 = vpop.f32.mrf.mxu0
        %v584 = vadd.f32 0.0, %v583
        %v585 = vpop.f32.mrf.mxu0
        %v586 = vadd.f32 0.0, %v585
        %587 = vmatmul.bf16.gmra.mxu0 %v430
        %v588 = vpop.f32.mrf.mxu0
        %v589 = vadd.f32 0.0, %v588
        %v590 = vpop.f32.mrf.mxu0
        %v591 = vadd.f32 0.0, %v590
        %592 = vmatmul.bf16.gmra.mxu0 %v431
        %v593 = vpop.f32.mrf.mxu0
        %v594 = vadd.f32 0.0, %v593
        %v595 = vpop.f32.mrf.mxu0
        %v596 = vadd.f32 0.0, %v595
        %597 = vmatmul.bf16.gmra.mxu0 %v432
        %v598 = vpop.f32.mrf.mxu0
        %v599 = vadd.f32 0.0, %v598
        %v600 = vpop.f32.mrf.mxu0
        %v601 = vadd.f32 0.0, %v600
        %602 = vmatmul.bf16.gmra.mxu0 %v433
        %v603 = vpop.f32.mrf.mxu0
        %v604 = vadd.f32 0.0, %v603
        %v605 = vpop.f32.mrf.mxu0
        %v606 = vadd.f32 0.0, %v605
        %607 = vmatmul.bf16.gmra.mxu0 %v434
        %v608 = vpop.f32.mrf.mxu0
        %v609 = vadd.f32 0.0, %v608
        %v610 = vpop.f32.mrf.mxu0
        %v611 = vadd.f32 0.0, %v610
        %612 = vmatmul.bf16.gmra.mxu0 %v435
        %v613 = vpop.f32.mrf.mxu0
        %v614 = vadd.f32 0.0, %v613
        %v615 = vpop.f32.mrf.mxu0
        %v616 = vadd.f32 0.0, %v615
        %617 = vmatmul.bf16.gmra.mxu0 %v436
        %v618 = vpop.f32.mrf.mxu0
        %v619 = vadd.f32 0.0, %v618
        %v620 = vpop.f32.mrf.mxu0
        %v621 = vadd.f32 0.0, %v620
        %622 = vdwg.mxu0
        %v623 = vadd.f32 %v333, %v535
        %v624 = vadd.f32 %v334, %v584
        %v625 = vadd.f32 %v335, %v537
        %v626 = vadd.f32 %v336, %v586
        %v627 = vadd.f32 %v337, %v540
        %v628 = vadd.f32 %v338, %v589
        %v629 = vadd.f32 %v339, %v542
        %v630 = vadd.f32 %v340, %v591
        %v631 = vadd.f32 %v341, %v545
        %v632 = vadd.f32 %v342, %v594
        %v633 = vadd.f32 %v343, %v547
        %v634 = vadd.f32 %v344, %v596
        %v635 = vadd.f32 %v345, %v550
        %v636 = vadd.f32 %v346, %v599
        %v637 = vadd.f32 %v347, %v552
        %v638 = vadd.f32 %v348, %v601
        %v639 = vadd.f32 %v349, %v555
        %v640 = vadd.f32 %v350, %v604
        %v641 = vadd.f32 %v351, %v557
        %v642 = vadd.f32 %v352, %v606
        %v643 = vadd.f32 %v353, %v560
        %v644 = vadd.f32 %v354, %v609
        %v645 = vadd.f32 %v355, %v562
        %v646 = vadd.f32 %v356, %v611
        %v647 = vadd.f32 %v357, %v565
        %v648 = vadd.f32 %v358, %v614
        %v649 = vadd.f32 %v359, %v567
        %v650 = vadd.f32 %v360, %v616
        %v651 = vadd.f32 %v361, %v570
        %v652 = vadd.f32 %v362, %v619
        %v653 = vadd.f32 %v363, %v572
        %v654 = vadd.f32 %v364, %v621
        %655 = vst [vmem:[#allocation2] sm:$0xff] %v623
        %656 = vst [vmem:[#allocation2 + $0x8] sm:$0xff] %v624
        %657 = vst [vmem:[#allocation2 + $0x10] sm:$0xff] %v625
        %658 = vst [vmem:[#allocation2 + $0x18] sm:$0xff] %v626
        %659 = vst [vmem:[#allocation2 + $0x20] sm:$0xff] %v627
        %660 = vst [vmem:[#allocation2 + $0x28] sm:$0xff] %v628
        %661 = vst [vmem:[#allocation2 + $0x30] sm:$0xff] %v629
        %662 = vst [vmem:[#allocation2 + $0x38] sm:$0xff] %v630
        %663 = vst [vmem:[#allocation2 + $0x40] sm:$0xff] %v631
        %664 = vst [vmem:[#allocation2 + $0x48] sm:$0xff] %v632
        %665 = vst [vmem:[#allocation2 + $0x50] sm:$0xff] %v633
        %666 = vst [vmem:[#allocation2 + $0x58] sm:$0xff] %v634
        %667 = vst [vmem:[#allocation2 + $0x60] sm:$0xff] %v635
        %668 = vst [vmem:[#allocation2 + $0x68] sm:$0xff] %v636
        %669 = vst [vmem:[#allocation2 + $0x70] sm:$0xff] %v637
        %670 = vst [vmem:[#allocation2 + $0x78] sm:$0xff] %v638
        %671 = vst [vmem:[#allocation2 + $0x80] sm:$0xff] %v639
        %672 = vst [vmem:[#allocation2 + $0x88] sm:$0xff] %v640
        %673 = vst [vmem:[#allocation2 + $0x90] sm:$0xff] %v641
        %674 = vst [vmem:[#allocation2 + $0x98] sm:$0xff] %v642
        %675 = vst [vmem:[#allocation2 + $0xa0] sm:$0xff] %v643
        %676 = vst [vmem:[#allocation2 + $0xa8] sm:$0xff] %v644
        %677 = vst [vmem:[#allocation2 + $0xb0] sm:$0xff] %v645
        %678 = vst [vmem:[#allocation2 + $0xb8] sm:$0xff] %v646
        %679 = vst [vmem:[#allocation2 + $0xc0] sm:$0xff] %v647
        %680 = vst [vmem:[#allocation2 + $0xc8] sm:$0xff] %v648
        %681 = vst [vmem:[#allocation2 + $0xd0] sm:$0xff] %v649
        %682 = vst [vmem:[#allocation2 + $0xd8] sm:$0xff] %v650
        %683 = vst [vmem:[#allocation2 + $0xe0] sm:$0xff] %v651
        %684 = vst [vmem:[#allocation2 + $0xe8] sm:$0xff] %v652
        %685 = vst [vmem:[#allocation2 + $0xf0] sm:$0xff] %v653
        %686 = vst [vmem:[#allocation2 + $0xf8] sm:$0xff] %v654
        // Predicated region
        $region71: #{gnn_mix_forward.9} parent=61 // pred_check
          %p687 = pneg %p297
        $region72: #{gnn_mix_forward.9} parent=61 // pred_check_branch
          %689 = sbr.rel (%p687) target = $region74
        $region73: #{gnn_mix_forward.9} parent=61 // pred_region
          %v690 = vld [vmem:[#allocation2] sm:$0xff]
          %v691 = vld [vmem:[#allocation2 + $0x8] sm:$0xff]
          %v692 = vld [vmem:[#allocation2 + $0x10] sm:$0xff]
          %v693 = vld [vmem:[#allocation2 + $0x18] sm:$0xff]
          %v694 = vld [vmem:[#allocation2 + $0x20] sm:$0xff]
          %v695 = vld [vmem:[#allocation2 + $0x28] sm:$0xff]
          %v696 = vld [vmem:[#allocation2 + $0x30] sm:$0xff]
          %v697 = vld [vmem:[#allocation2 + $0x38] sm:$0xff]
          %v698 = vld [vmem:[#allocation2 + $0x40] sm:$0xff]
          %v699 = vld [vmem:[#allocation2 + $0x48] sm:$0xff]
          %v700 = vld [vmem:[#allocation2 + $0x50] sm:$0xff]
          %v701 = vld [vmem:[#allocation2 + $0x58] sm:$0xff]
          %v702 = vld [vmem:[#allocation2 + $0x60] sm:$0xff]
          %v703 = vld [vmem:[#allocation2 + $0x68] sm:$0xff]
          %v704 = vld [vmem:[#allocation2 + $0x70] sm:$0xff]
          %v705 = vld [vmem:[#allocation2 + $0x78] sm:$0xff]
          %v706 = vld [vmem:[#allocation2 + $0x80] sm:$0xff]
          %v707 = vld [vmem:[#allocation2 + $0x88] sm:$0xff]
          %v708 = vld [vmem:[#allocation2 + $0x90] sm:$0xff]
          %v709 = vld [vmem:[#allocation2 + $0x98] sm:$0xff]
          %v710 = vld [vmem:[#allocation2 + $0xa0] sm:$0xff]
          %v711 = vld [vmem:[#allocation2 + $0xa8] sm:$0xff]
          %v712 = vld [vmem:[#allocation2 + $0xb0] sm:$0xff]
          %v713 = vld [vmem:[#allocation2 + $0xb8] sm:$0xff]
          %v714 = vld [vmem:[#allocation2 + $0xc0] sm:$0xff]
          %v715 = vld [vmem:[#allocation2 + $0xc8] sm:$0xff]
          %v716 = vld [vmem:[#allocation2 + $0xd0] sm:$0xff]
          %v717 = vld [vmem:[#allocation2 + $0xd8] sm:$0xff]
          %v718 = vld [vmem:[#allocation2 + $0xe0] sm:$0xff]
          %v719 = vld [vmem:[#allocation2 + $0xe8] sm:$0xff]
          %v720 = vld [vmem:[#allocation2 + $0xf0] sm:$0xff]
          %v721 = vld [vmem:[#allocation2 + $0xf8] sm:$0xff]
          %v722 = vmax.f32 %v690, 0.0
          %v723 = vmax.f32 %v691, 0.0
          %v724 = vmax.f32 %v692, 0.0
          %v725 = vmax.f32 %v693, 0.0
          %v726 = vmax.f32 %v694, 0.0
          %v727 = vmax.f32 %v695, 0.0
          %v728 = vmax.f32 %v696, 0.0
          %v729 = vmax.f32 %v697, 0.0
          %v730 = vmax.f32 %v698, 0.0
          %v731 = vmax.f32 %v699, 0.0
          %v732 = vmax.f32 %v700, 0.0
          %v733 = vmax.f32 %v701, 0.0
          %v734 = vmax.f32 %v702, 0.0
          %v735 = vmax.f32 %v703, 0.0
          %v736 = vmax.f32 %v704, 0.0
          %v737 = vmax.f32 %v705, 0.0
          %v738 = vmax.f32 %v706, 0.0
          %v739 = vmax.f32 %v707, 0.0
          %v740 = vmax.f32 %v708, 0.0
          %v741 = vmax.f32 %v709, 0.0
          %v742 = vmax.f32 %v710, 0.0
          %v743 = vmax.f32 %v711, 0.0
          %v744 = vmax.f32 %v712, 0.0
          %v745 = vmax.f32 %v713, 0.0
          %v746 = vmax.f32 %v714, 0.0
          %v747 = vmax.f32 %v715, 0.0
          %v748 = vmax.f32 %v716, 0.0
          %v749 = vmax.f32 %v717, 0.0
          %v750 = vmax.f32 %v718, 0.0
          %v751 = vmax.f32 %v719, 0.0
          %v752 = vmax.f32 %v720, 0.0
          %v753 = vmax.f32 %v721, 0.0
          %v754 = vpack.c.bf16 %v723, %v722
          %v755 = vpack.c.bf16 %v725, %v724
          %v756 = vpack.c.bf16 %v727, %v726
          %v757 = vpack.c.bf16 %v729, %v728
          %v758 = vpack.c.bf16 %v731, %v730
          %v759 = vpack.c.bf16 %v733, %v732
          %v760 = vpack.c.bf16 %v735, %v734
          %v761 = vpack.c.bf16 %v737, %v736
          %v762 = vpack.c.bf16 %v739, %v738
          %v763 = vpack.c.bf16 %v741, %v740
          %v764 = vpack.c.bf16 %v743, %v742
          %v765 = vpack.c.bf16 %v745, %v744
          %v766 = vpack.c.bf16 %v747, %v746
          %v767 = vpack.c.bf16 %v749, %v748
          %v768 = vpack.c.bf16 %v751, %v750
          %v769 = vpack.c.bf16 %v753, %v752
          %770 = vst [vmem:[%s283] sm:$0xff] %v754
          %771 = vst [vmem:[%s283 + $0x8] sm:$0xff] %v755
          %772 = vst [vmem:[%s283 + $0x10] sm:$0xff] %v756
          %773 = vst [vmem:[%s283 + $0x18] sm:$0xff] %v757
          %774 = vst [vmem:[%s283 + $0x20] sm:$0xff] %v758
          %775 = vst [vmem:[%s283 + $0x28] sm:$0xff] %v759
          %776 = vst [vmem:[%s283 + $0x30] sm:$0xff] %v760
          %777 = vst [vmem:[%s283 + $0x38] sm:$0xff] %v761
          %778 = vst [vmem:[%s283 + $0x40] sm:$0xff] %v762
          %779 = vst [vmem:[%s283 + $0x48] sm:$0xff] %v763
          %780 = vst [vmem:[%s283 + $0x50] sm:$0xff] %v764
          %781 = vst [vmem:[%s283 + $0x58] sm:$0xff] %v765
          %782 = vst [vmem:[%s283 + $0x60] sm:$0xff] %v766
          %783 = vst [vmem:[%s283 + $0x68] sm:$0xff] %v767
          %784 = vst [vmem:[%s283 + $0x70] sm:$0xff] %v768
          %785 = vst [vmem:[%s283 + $0x78] sm:$0xff] %v769
        $region74: #{gnn_mix_forward.9} parent=61 // pred_fallthru
          _
        %s786 = sand.u32 %s98, 1
        %s787 = sand.u32 %s98, 1
        %s788 = smul.addr %s787, 128
        %s789 = scalar_lea.vmem [#allocation4], %s788
        // Predicated region
        $region75: #{gnn_mix_forward.9} parent=61 // pred_check
          %p790 = pneg %p108
        $region76: #{gnn_mix_forward.9} parent=61 // pred_check_branch
          %792 = sbr.rel (%p790) target = $region78
        $region77: #{gnn_mix_forward.9} parent=61 // pred_region
          %s793 = smul.u32 16, %s18
          %s794 = smul.u32 2, %s19
          %s795 = smul.addr %s793, 8
          %s796 = sadd.s32 %s794, %s795
          %s797 = smul.addr %s796, 4
          %s798 = scalar_lea.vmem %s2, %s797
          // Predicated region
          $region79: #{gnn_mix_forward.9} parent=77 // pred_check
            _
          $region80: #{gnn_mix_forward.9} parent=77 // pred_check_branch
            %800 = sbr.rel (0) target = $region82
          $region81: #{gnn_mix_forward.9} parent=77 // pred_region
            // Predicated region
            $region83: #{gnn_mix_forward.9} parent=81 // pred_check
              _
            $region84: #{gnn_mix_forward.9} parent=81 // pred_check_branch
              %802 = sbr.rel (0) target = $region86
            $region85: #{gnn_mix_forward.9} parent=81 // pred_region
              // Predicated region
              $region98: #{gnn_mix_forward.9} parent=85 // pred_check
                _
              $region99: #{gnn_mix_forward.9} parent=85 // pred_check_branch
                %848 = sbr.rel (0) target = $region101
              $region100: #{gnn_mix_forward.9} parent=85 // pred_region
                loop: start=0, step=1, limit=1
                $region102: #{gnn_mix_forward.9} parent=100 // loop_pre_header
                  _
                $region103: #{gnn_mix_forward.9} parent=100 // loop_header
                  %s850 = sphi 0, %s854
                  %p851 = scmp.ge.s32.totalorder %s850, 1
                  %s855 = sphi %s789, %s789
                  %s856 = sphi %s798, %s798
                $region104: #{gnn_mix_forward.9} parent=100 // loop_header_branch
                  %853 = sbr.rel (%p851) target = $region108
                $region105: #{gnn_mix_forward.9} parent=100 // loop_body
                  %v857 = vld [vmem:[%s855] sm:$0xff]
                  %858 = vst [vmem:[%s856] sm:$0xff] %v857
                  %v859 = vld [vmem:[%s855 + $0x8] sm:$0xff]
                  %860 = vst [vmem:[%s856 + $0x20] sm:$0xff] %v859
                  %v861 = vld [vmem:[%s855 + $0x10] sm:$0xff]
                  %862 = vst [vmem:[%s856 + $0x40] sm:$0xff] %v861
                  %v863 = vld [vmem:[%s855 + $0x18] sm:$0xff]
                  %864 = vst [vmem:[%s856 + $0x60] sm:$0xff] %v863
                  %v865 = vld [vmem:[%s855 + $0x20] sm:$0xff]
                  %866 = vst [vmem:[%s856 + $0x80] sm:$0xff] %v865
                  %v867 = vld [vmem:[%s855 + $0x28] sm:$0xff]
                  %868 = vst [vmem:[%s856 + $0xa0] sm:$0xff] %v867
                  %v869 = vld [vmem:[%s855 + $0x30] sm:$0xff]
                  %870 = vst [vmem:[%s856 + $0xc0] sm:$0xff] %v869
                  %v871 = vld [vmem:[%s855 + $0x38] sm:$0xff]
                  %872 = vst [vmem:[%s856 + $0xe0] sm:$0xff] %v871
                  %v873 = vld [vmem:[%s855 + $0x40] sm:$0xff]
                  %874 = vst [vmem:[%s856 + $0x100] sm:$0xff] %v873
                  %v875 = vld [vmem:[%s855 + $0x48] sm:$0xff]
                  %876 = vst [vmem:[%s856 + $0x120] sm:$0xff] %v875
                  %v877 = vld [vmem:[%s855 + $0x50] sm:$0xff]
                  %878 = vst [vmem:[%s856 + $0x140] sm:$0xff] %v877
                  %v879 = vld [vmem:[%s855 + $0x58] sm:$0xff]
                  %880 = vst [vmem:[%s856 + $0x160] sm:$0xff] %v879
                  %v881 = vld [vmem:[%s855 + $0x60] sm:$0xff]
                  %882 = vst [vmem:[%s856 + $0x180] sm:$0xff] %v881
                  %v883 = vld [vmem:[%s855 + $0x68] sm:$0xff]
                  %884 = vst [vmem:[%s856 + $0x1a0] sm:$0xff] %v883
                  %v885 = vld [vmem:[%s855 + $0x70] sm:$0xff]
                  %886 = vst [vmem:[%s856 + $0x1c0] sm:$0xff] %v885
                  %v887 = vld [vmem:[%s855 + $0x78] sm:$0xff]
                  %888 = vst [vmem:[%s856 + $0x1e0] sm:$0xff] %v887
                $region106: #{gnn_mix_forward.9} parent=100 // loop_footer
                  %s854 = sadd.s32 1, %s850
                $region107: #{gnn_mix_forward.9} parent=100 // loop_footer_branch
                  %849 = sbr.rel target = $region103
                $region108: #{gnn_mix_forward.9} parent=100 // loop_exit
                  _
              $region101: #{gnn_mix_forward.9} parent=85 // pred_fallthru
                _
              // Predicated region
              $region109: #{gnn_mix_forward.9} parent=85 // pred_check
                _
              $region110: #{gnn_mix_forward.9} parent=85 // pred_check_branch
                %890 = sbr.rel target = $region112
              $region111: #{gnn_mix_forward.9} parent=85 // pred_region
                _
              $region112: #{gnn_mix_forward.9} parent=85 // pred_fallthru
                _
            $region86: #{gnn_mix_forward.9} parent=81 // pred_fallthru
              _
            // Predicated region
            $region87: #{gnn_mix_forward.9} parent=81 // pred_check
              _
            $region88: #{gnn_mix_forward.9} parent=81 // pred_check_branch
              %804 = sbr.rel target = $region90
            $region89: #{gnn_mix_forward.9} parent=81 // pred_region
              %s806 = ssub.s32 256, 1
              loop: start=0, step=1, limit=1
              $region91: #{gnn_mix_forward.9} parent=89 // loop_pre_header
                _
              $region92: #{gnn_mix_forward.9} parent=89 // loop_header
                %s808 = sphi 0, %s812
                %p809 = scmp.ge.s32.totalorder %s808, 1
                %s813 = sphi %s789, %s789
                %s814 = sphi %s798, %s798
              $region93: #{gnn_mix_forward.9} parent=89 // loop_header_branch
                %811 = sbr.rel (%p809) target = $region97
              $region94: #{gnn_mix_forward.9} parent=89 // loop_body
                %v815 = vld [vmem:[%s813] sm:%s806]
                %816 = vst [vmem:[%s814] sm:%s806] %v815
                %v817 = vld [vmem:[%s813 + $0x8] sm:%s806]
                %818 = vst [vmem:[%s814 + $0x20] sm:%s806] %v817
                %v819 = vld [vmem:[%s813 + $0x10] sm:%s806]
                %820 = vst [vmem:[%s814 + $0x40] sm:%s806] %v819
                %v821 = vld [vmem:[%s813 + $0x18] sm:%s806]
                %822 = vst [vmem:[%s814 + $0x60] sm:%s806] %v821
                %v823 = vld [vmem:[%s813 + $0x20] sm:%s806]
                %824 = vst [vmem:[%s814 + $0x80] sm:%s806] %v823
                %v825 = vld [vmem:[%s813 + $0x28] sm:%s806]
                %826 = vst [vmem:[%s814 + $0xa0] sm:%s806] %v825
                %v827 = vld [vmem:[%s813 + $0x30] sm:%s806]
                %828 = vst [vmem:[%s814 + $0xc0] sm:%s806] %v827
                %v829 = vld [vmem:[%s813 + $0x38] sm:%s806]
                %830 = vst [vmem:[%s814 + $0xe0] sm:%s806] %v829
                %v831 = vld [vmem:[%s813 + $0x40] sm:%s806]
                %832 = vst [vmem:[%s814 + $0x100] sm:%s806] %v831
                %v833 = vld [vmem:[%s813 + $0x48] sm:%s806]
                %834 = vst [vmem:[%s814 + $0x120] sm:%s806] %v833
                %v835 = vld [vmem:[%s813 + $0x50] sm:%s806]
                %836 = vst [vmem:[%s814 + $0x140] sm:%s806] %v835
                %v837 = vld [vmem:[%s813 + $0x58] sm:%s806]
                %838 = vst [vmem:[%s814 + $0x160] sm:%s806] %v837
                %v839 = vld [vmem:[%s813 + $0x60] sm:%s806]
                %840 = vst [vmem:[%s814 + $0x180] sm:%s806] %v839
                %v841 = vld [vmem:[%s813 + $0x68] sm:%s806]
                %842 = vst [vmem:[%s814 + $0x1a0] sm:%s806] %v841
                %v843 = vld [vmem:[%s813 + $0x70] sm:%s806]
                %844 = vst [vmem:[%s814 + $0x1c0] sm:%s806] %v843
                %v845 = vld [vmem:[%s813 + $0x78] sm:%s806]
                %846 = vst [vmem:[%s814 + $0x1e0] sm:%s806] %v845
              $region95: #{gnn_mix_forward.9} parent=89 // loop_footer
                %s812 = sadd.s32 1, %s808
              $region96: #{gnn_mix_forward.9} parent=89 // loop_footer_branch
                %807 = sbr.rel target = $region92
              $region97: #{gnn_mix_forward.9} parent=89 // loop_exit
                _
            $region90: #{gnn_mix_forward.9} parent=81 // pred_fallthru
              _
          $region82: #{gnn_mix_forward.9} parent=77 // pred_fallthru
            _
          %891 = vnop
        $region78: #{gnn_mix_forward.9} parent=61 // pred_fallthru
          _
      $region62: #{gnn_mix_forward.9} parent=5 // pred_fallthru
        _
      %p892 = scmp.le.s32.totalorder 2, %s8
      // Predicated region
      $region113: #{gnn_mix_forward.9} parent=5 // pred_check
        %p893 = pneg %p892
      $region114: #{gnn_mix_forward.9} parent=5 // pred_check_branch
        %895 = sbr.rel (%p893) target = $region116
      $region115: #{gnn_mix_forward.9} parent=5 // pred_region
        %s896 = ssub.s32 %s8, 2
        // Predicated region
        $region117: #{gnn_mix_forward.9} parent=115 // pred_check
          %p897 = pneg %p114
        $region118: #{gnn_mix_forward.9} parent=115 // pred_check_branch
          %899 = sbr.rel (%p897) target = $region120
        $region119: #{gnn_mix_forward.9} parent=115 // pred_region
          %s900 = sand.u32 %s99, 1
          %s901 = sand.u32 %s99, 1
          %s902 = smul.addr %s901, 128
          %s903 = scalar_lea.vmem [#allocation4], %s902
        $region120: #{gnn_mix_forward.9} parent=115 // pred_fallthru
          _
      $region116: #{gnn_mix_forward.9} parent=5 // pred_fallthru
        _
    $region6: #{gnn_mix_forward.9} parent=1 // loop_footer
      %s12 = sadd.s32 1, %s8
    $region7: #{gnn_mix_forward.9} parent=1 // loop_footer_branch
      %7 = sbr.rel target = $region3
    $region8: #{gnn_mix_forward.9} parent=1 // loop_exit
      _

// kernel: gnn_mix_forward.8
$region0: #{gnn_mix_forward.8}
  #allocation0 [shape = 'u32[]', space=smem, size = 0x4, offset = 0x4, fixed_abs, tag = 'smem constant byte address 0x4 - core index']
  #allocation1 [shape = 'u32[72,128]{1,0:T(1,128)}', space=vmem, size = 0x9000, scoped, tag = 'internal scratch']
  #allocation2 [shape = 'f32[128,256]{1,0:T(8,128)}', space=vmem, size = 0x20000, scoped, tag = 'scratch operand']
  %s0 = inlined_call_operand.vmem [shape: bf16[128,128], index: 0, kind: input, shape index: {}]
  %s1 = inlined_call_operand.vmem [shape: bf16[128,1024], index: 1, kind: input, shape index: {}]
  %s2 = inlined_call_operand.vmem [shape: bf16[128,1024], index: 2, kind: output, shape index: {}]
  %s3 = sld [smem:[#allocation0]]
  $region121: #{gnn_mix_forward.8} parent=0
    _
  %s5 = ssub.s32 1, %s3
  %s6 = scalar_select 0, %s5, %s3
  $region1: #{gnn_mix_forward.8} parent=0
    #allocation3 [shape = 'u8[131072]{0}', space=vmem, size = 0x20000, scoped, tag = 'input window, operand 1']
    #allocation4 [shape = 'u8[131072]{0}', space=vmem, size = 0x20000, scoped, tag = 'output window, operand 0']
    loop: start=0, step=1, limit=6
    $region2: #{gnn_mix_forward.8} parent=1 // loop_pre_header
      _
    $region3: #{gnn_mix_forward.8} parent=1 // loop_header
      %s8 = sphi 0, %s12
      %p9 = scmp.ge.s32.totalorder %s8, 6
      %s15 = sphi 0, %s34
      %s16 = sphi 0, %s30
      %s17 = sphi 0, %s26
      %s18 = sphi 0, %s15
      %s19 = sphi 0, %s16
      %s20 = sphi 0, %s17
      %s21 = sphi 0, %s18
      %s22 = sphi 0, %s19
      %s23 = sphi 0, %s20
      %s39 = sphi 0, %s41
      %s42 = sphi 0, %s39
      %s43 = sphi 0, %s42
      %s59 = sphi 0, %s43
      %s67 = sphi 0, %s69
      %s70 = sphi 0, %s67
      %s71 = sphi 0, %s70
      %s87 = sphi 0, %s71
      %s95 = sphi 0, %s97
      %s98 = sphi 0, %s95
      %s99 = sphi 0, %s98
      %s115 = sphi 0, %s99
    $region4: #{gnn_mix_forward.8} parent=1 // loop_header_branch
      %11 = sbr.rel (%p9) target = $region8
    $region5: #{gnn_mix_forward.8} parent=1 // loop_body
      %s13 = ssub.s32 %s8, 1
      %s14 = ssub.s32 %s8, 2
      %s24 = sadd.s32 1, %s17
      %p25 = scmp.ge.s32.totalorder %s24, 1
      %s26 = scalar_select %p25, 0, %s24
      %s27 = sadd.s32 1, %s16
      %s28 = scalar_select %p25, %s27, %s16
      %p29 = scmp.ge.s32.totalorder %s28, 4
      %s30 = scalar_select %p29, 0, %s28
      %s31 = sadd.s32 1, %s15
      %s32 = scalar_select %p29, %s31, %s15
      %p33 = scmp.ge.s32.totalorder %s32, 1
      %s34 = scalar_select %p33, 0, %s32
      %s35 = ssub.s32 %s15, %s34
      %s36 = ssub.s32 %s17, %s26
      %s37 = sor.u32 %s35, %s36
      %p38 = scmp.eq.s32.totalorder %s37, 0
      %s40 = sadd.s32 %s39, 1
      %s41 = scalar_select %p38, %s39, %s40
      %p44 = pneg %p38
      %p45 = scmp.eq.s32.totalorder %s8, 3
      %p46 = por %p44, %p45
      %p47 = scmp.ne.s32.totalorder %s39, %s42
      %p48 = scmp.eq.s32.totalorder %s8, 0
      %p49 = por %p47, %p48
      %p50 = scmp.ne.s32.totalorder %s39, %s42
      %p51 = scmp.eq.s32.totalorder %s13, 3
      %p52 = por %p50, %p51
      %p53 = scmp.ne.s32.totalorder %s42, %s43
      %p54 = scmp.eq.s32.totalorder %s13, 0
      %p55 = por %p53, %p54
      %p56 = scmp.ne.s32.totalorder %s42, %s43
      %p57 = scmp.eq.s32.totalorder %s14, 3
      %p58 = por %p56, %p57
      %p60 = scmp.ne.s32.totalorder %s43, %s59
      %p61 = scmp.eq.s32.totalorder %s14, 0
      %p62 = por %p60, %p61
      %s63 = ssub.s32 %s17, %s26
      %s64 = ssub.s32 %s16, %s30
      %s65 = sor.u32 %s63, %s64
      %p66 = scmp.eq.s32.totalorder %s65, 0
      %s68 = sadd.s32 %s67, 1
      %s69 = scalar_select %p66, %s67, %s68
      %p72 = pneg %p66
      %p73 = scmp.eq.s32.totalorder %s8, 3
      %p74 = por %p72, %p73
      %p75 = scmp.ne.s32.totalorder %s67, %s70
      %p76 = scmp.eq.s32.totalorder %s8, 0
      %p77 = por %p75, %p76
      %p78 = scmp.ne.s32.totalorder %s67, %s70
      %p79 = scmp.eq.s32.totalorder %s13, 3
      %p80 = por %p78, %p79
      %p81 = scmp.ne.s32.totalorder %s70, %s71
      %p82 = scmp.eq.s32.totalorder %s13, 0
      %p83 = por %p81, %p82
      %p84 = scmp.ne.s32.totalorder %s70, %s71
      %p85 = scmp.eq.s32.totalorder %s14, 3
      %p86 = por %p84, %p85
      %p88 = scmp.ne.s32.totalorder %s71, %s87
      %p89 = scmp.eq.s32.totalorder %s14, 0
      %p90 = por %p88, %p89
      %s91 = ssub.s32 %s15, %s34
      %s92 = ssub.s32 %s16, %s30
      %s93 = sor.u32 %s91, %s92
      %p94 = scmp.eq.s32.totalorder %s93, 0
      %s96 = sadd.s32 %s95, 1
      %s97 = scalar_select %p94, %s95, %s96
      %p100 = pneg %p94
      %p101 = scmp.eq.s32.totalorder %s8, 3
      %p102 = por %p100, %p101
      %p103 = scmp.ne.s32.totalorder %s95, %s98
      %p104 = scmp.eq.s32.totalorder %s8, 0
      %p105 = por %p103, %p104
      %p106 = scmp.ne.s32.totalorder %s95, %s98
      %p107 = scmp.eq.s32.totalorder %s13, 3
      %p108 = por %p106, %p107
      %p109 = scmp.ne.s32.totalorder %s98, %s99
      %p110 = scmp.eq.s32.totalorder %s13, 0
      %p111 = por %p109, %p110
      %p112 = scmp.ne.s32.totalorder %s98, %s99
      %p113 = scmp.eq.s32.totalorder %s14, 3
      %p114 = por %p112, %p113
      %p116 = scmp.ne.s32.totalorder %s99, %s115
      %p117 = scmp.eq.s32.totalorder %s14, 0
      %p118 = por %p116, %p117
      %p119 = scmp.le.s32.totalorder 1, %s8
      %p120 = scmp.lt.s32.totalorder %s8, 5
      %p121 = pnand %p119, %p120
      %p122 = pneg %p121
      // Predicated region
      $region9: #{gnn_mix_forward.8} parent=5 // pred_check
        _
      $region10: #{gnn_mix_forward.8} parent=5 // pred_check_branch
        %124 = sbr.rel (%p121) target = $region12
      $region11: #{gnn_mix_forward.8} parent=5 // pred_region
        %s125 = ssub.s32 %s8, 1
        // Predicated region
        $region13: #{gnn_mix_forward.8} parent=11 // pred_check
          %p126 = pneg %p55
        $region14: #{gnn_mix_forward.8} parent=11 // pred_check_branch
          %128 = sbr.rel (%p126) target = $region16
        $region15: #{gnn_mix_forward.8} parent=11 // pred_region
          %s129 = smul.u32 16, %s18
          %p130 = scmp.lt.s32.totalorder %s129, 15
          %s131 = scalar_select %p130, %s129, 15
          %p132 = scmp.lt.s32.totalorder %s20, 0
          %s133 = scalar_select %p132, %s20, 0
          %s134 = sadd.s32 %s133, %s131
          %s135 = smul.addr %s134, 4
          %s136 = scalar_lea.vmem %s0, %s135
          %s137 = smul.u32 16, %s18
        $region16: #{gnn_mix_forward.8} parent=11 // pred_fallthru
          _
      $region12: #{gnn_mix_forward.8} parent=5 // pred_fallthru
        _
      %p138 = scmp.lt.s32.totalorder %s8, 4
      // Predicated region
      $region17: #{gnn_mix_forward.8} parent=5 // pred_check
        %p139 = pneg %p138
      $region18: #{gnn_mix_forward.8} parent=5 // pred_check_branch
        %141 = sbr.rel (%p139) target = $region20
      $region19: #{gnn_mix_forward.8} parent=5 // pred_region
        // Predicated region
        $region21: #{gnn_mix_forward.8} parent=19 // pred_check
          %p142 = pneg %p77
        $region22: #{gnn_mix_forward.8} parent=19 // pred_check_branch
          %144 = sbr.rel (%p142) target = $region24
        $region23: #{gnn_mix_forward.8} parent=19 // pred_region
          %s145 = sand.u32 %s67, 1
          %s146 = sand.u32 %s67, 1
          %s147 = smul.addr %s146, 128
          %s148 = scalar_lea.vmem [#allocation3], %s147
          %s149 = smul.u32 16, %s17
          %s150 = smul.u32 2, %s16
          %s151 = smul.addr %s149, 8
          %s152 = sadd.s32 %s150, %s151
          %s153 = smul.addr %s152, 4
          %s154 = scalar_lea.vmem %s1, %s153
          // Predicated region
          $region25: #{gnn_mix_forward.8} parent=23 // pred_check
            _
          $region26: #{gnn_mix_forward.8} parent=23 // pred_check_branch
            %156 = sbr.rel (0) target = $region28
          $region27: #{gnn_mix_forward.8} parent=23 // pred_region
            // Predicated region
            $region29: #{gnn_mix_forward.8} parent=27 // pred_check
              _
            $region30: #{gnn_mix_forward.8} parent=27 // pred_check_branch
              %158 = sbr.rel (0) target = $region32
            $region31: #{gnn_mix_forward.8} parent=27 // pred_region
              // Predicated region
              $region44: #{gnn_mix_forward.8} parent=31 // pred_check
                _
              $region45: #{gnn_mix_forward.8} parent=31 // pred_check_branch
                %204 = sbr.rel (0) target = $region47
              $region46: #{gnn_mix_forward.8} parent=31 // pred_region
                loop: start=0, step=1, limit=1
                $region48: #{gnn_mix_forward.8} parent=46 // loop_pre_header
                  _
                $region49: #{gnn_mix_forward.8} parent=46 // loop_header
                  %s206 = sphi 0, %s210
                  %p207 = scmp.ge.s32.totalorder %s206, 1
                  %s211 = sphi %s154, %s154
                  %s212 = sphi %s148, %s148
                $region50: #{gnn_mix_forward.8} parent=46 // loop_header_branch
                  %209 = sbr.rel (%p207) target = $region54
                $region51: #{gnn_mix_forward.8} parent=46 // loop_body
                  %v213 = vld [vmem:[%s211] sm:$0xff]
                  %214 = vst [vmem:[%s212] sm:$0xff] %v213
                  %v215 = vld [vmem:[%s211 + $0x20] sm:$0xff]
                  %216 = vst [vmem:[%s212 + $0x8] sm:$0xff] %v215
                  %v217 = vld [vmem:[%s211 + $0x40] sm:$0xff]
                  %218 = vst [vmem:[%s212 + $0x10] sm:$0xff] %v217
                  %v219 = vld [vmem:[%s211 + $0x60] sm:$0xff]
                  %220 = vst [vmem:[%s212 + $0x18] sm:$0xff] %v219
                  %v221 = vld [vmem:[%s211 + $0x80] sm:$0xff]
                  %222 = vst [vmem:[%s212 + $0x20] sm:$0xff] %v221
                  %v223 = vld [vmem:[%s211 + $0xa0] sm:$0xff]
                  %224 = vst [vmem:[%s212 + $0x28] sm:$0xff] %v223
                  %v225 = vld [vmem:[%s211 + $0xc0] sm:$0xff]
                  %226 = vst [vmem:[%s212 + $0x30] sm:$0xff] %v225
                  %v227 = vld [vmem:[%s211 + $0xe0] sm:$0xff]
                  %228 = vst [vmem:[%s212 + $0x38] sm:$0xff] %v227
                  %v229 = vld [vmem:[%s211 + $0x100] sm:$0xff]
                  %230 = vst [vmem:[%s212 + $0x40] sm:$0xff] %v229
                  %v231 = vld [vmem:[%s211 + $0x120] sm:$0xff]
                  %232 = vst [vmem:[%s212 + $0x48] sm:$0xff] %v231
                  %v233 = vld [vmem:[%s211 + $0x140] sm:$0xff]
                  %234 = vst [vmem:[%s212 + $0x50] sm:$0xff] %v233
                  %v235 = vld [vmem:[%s211 + $0x160] sm:$0xff]
                  %236 = vst [vmem:[%s212 + $0x58] sm:$0xff] %v235
                  %v237 = vld [vmem:[%s211 + $0x180] sm:$0xff]
                  %238 = vst [vmem:[%s212 + $0x60] sm:$0xff] %v237
                  %v239 = vld [vmem:[%s211 + $0x1a0] sm:$0xff]
                  %240 = vst [vmem:[%s212 + $0x68] sm:$0xff] %v239
                  %v241 = vld [vmem:[%s211 + $0x1c0] sm:$0xff]
                  %242 = vst [vmem:[%s212 + $0x70] sm:$0xff] %v241
                  %v243 = vld [vmem:[%s211 + $0x1e0] sm:$0xff]
                  %244 = vst [vmem:[%s212 + $0x78] sm:$0xff] %v243
                $region52: #{gnn_mix_forward.8} parent=46 // loop_footer
                  %s210 = sadd.s32 1, %s206
                $region53: #{gnn_mix_forward.8} parent=46 // loop_footer_branch
                  %205 = sbr.rel target = $region49
                $region54: #{gnn_mix_forward.8} parent=46 // loop_exit
                  _
              $region47: #{gnn_mix_forward.8} parent=31 // pred_fallthru
                _
              // Predicated region
              $region55: #{gnn_mix_forward.8} parent=31 // pred_check
                _
              $region56: #{gnn_mix_forward.8} parent=31 // pred_check_branch
                %246 = sbr.rel target = $region58
              $region57: #{gnn_mix_forward.8} parent=31 // pred_region
                _
              $region58: #{gnn_mix_forward.8} parent=31 // pred_fallthru
                _
            $region32: #{gnn_mix_forward.8} parent=27 // pred_fallthru
              _
            // Predicated region
            $region33: #{gnn_mix_forward.8} parent=27 // pred_check
              _
            $region34: #{gnn_mix_forward.8} parent=27 // pred_check_branch
              %160 = sbr.rel target = $region36
            $region35: #{gnn_mix_forward.8} parent=27 // pred_region
              %s162 = ssub.s32 256, 1
              loop: start=0, step=1, limit=1
              $region37: #{gnn_mix_forward.8} parent=35 // loop_pre_header
                _
              $region38: #{gnn_mix_forward.8} parent=35 // loop_header
                %s164 = sphi 0, %s168
                %p165 = scmp.ge.s32.totalorder %s164, 1
                %s169 = sphi %s154, %s154
                %s170 = sphi %s148, %s148
              $region39: #{gnn_mix_forward.8} parent=35 // loop_header_branch
                %167 = sbr.rel (%p165) target = $region43
              $region40: #{gnn_mix_forward.8} parent=35 // loop_body
                %v171 = vld [vmem:[%s169] sm:%s162]
                %172 = vst [vmem:[%s170] sm:%s162] %v171
                %v173 = vld [vmem:[%s169 + $0x20] sm:%s162]
                %174 = vst [vmem:[%s170 + $0x8] sm:%s162] %v173
                %v175 = vld [vmem:[%s169 + $0x40] sm:%s162]
                %176 = vst [vmem:[%s170 + $0x10] sm:%s162] %v175
                %v177 = vld [vmem:[%s169 + $0x60] sm:%s162]
                %178 = vst [vmem:[%s170 + $0x18] sm:%s162] %v177
                %v179 = vld [vmem:[%s169 + $0x80] sm:%s162]
                %180 = vst [vmem:[%s170 + $0x20] sm:%s162] %v179
                %v181 = vld [vmem:[%s169 + $0xa0] sm:%s162]
                %182 = vst [vmem:[%s170 + $0x28] sm:%s162] %v181
                %v183 = vld [vmem:[%s169 + $0xc0] sm:%s162]
                %184 = vst [vmem:[%s170 + $0x30] sm:%s162] %v183
                %v185 = vld [vmem:[%s169 + $0xe0] sm:%s162]
                %186 = vst [vmem:[%s170 + $0x38] sm:%s162] %v185
                %v187 = vld [vmem:[%s169 + $0x100] sm:%s162]
                %188 = vst [vmem:[%s170 + $0x40] sm:%s162] %v187
                %v189 = vld [vmem:[%s169 + $0x120] sm:%s162]
                %190 = vst [vmem:[%s170 + $0x48] sm:%s162] %v189
                %v191 = vld [vmem:[%s169 + $0x140] sm:%s162]
                %192 = vst [vmem:[%s170 + $0x50] sm:%s162] %v191
                %v193 = vld [vmem:[%s169 + $0x160] sm:%s162]
                %194 = vst [vmem:[%s170 + $0x58] sm:%s162] %v193
                %v195 = vld [vmem:[%s169 + $0x180] sm:%s162]
                %196 = vst [vmem:[%s170 + $0x60] sm:%s162] %v195
                %v197 = vld [vmem:[%s169 + $0x1a0] sm:%s162]
                %198 = vst [vmem:[%s170 + $0x68] sm:%s162] %v197
                %v199 = vld [vmem:[%s169 + $0x1c0] sm:%s162]
                %200 = vst [vmem:[%s170 + $0x70] sm:%s162] %v199
                %v201 = vld [vmem:[%s169 + $0x1e0] sm:%s162]
                %202 = vst [vmem:[%s170 + $0x78] sm:%s162] %v201
              $region41: #{gnn_mix_forward.8} parent=35 // loop_footer
                %s168 = sadd.s32 1, %s164
              $region42: #{gnn_mix_forward.8} parent=35 // loop_footer_branch
                %163 = sbr.rel target = $region38
              $region43: #{gnn_mix_forward.8} parent=35 // loop_exit
                _
            $region36: #{gnn_mix_forward.8} parent=27 // pred_fallthru
              _
          $region28: #{gnn_mix_forward.8} parent=23 // pred_fallthru
            _
          %247 = vnop
        $region24: #{gnn_mix_forward.8} parent=19 // pred_fallthru
          _
      $region20: #{gnn_mix_forward.8} parent=5 // pred_fallthru
        _
      %p248 = scmp.le.s32.totalorder 1, %s8
      %p249 = scmp.lt.s32.totalorder %s8, 5
      %p250 = pnand %p248, %p249
      %p251 = pneg %p250
      // Predicated region
      $region59: #{gnn_mix_forward.8} parent=5 // pred_check
        _
      $region60: #{gnn_mix_forward.8} parent=5 // pred_check_branch
        %253 = sbr.rel (%p250) target = $region62
      $region61: #{gnn_mix_forward.8} parent=5 // pred_region
        %s254 = ssub.s32 %s8, 1
        %s255 = sand.u32 %s70, 1
        %s256 = sand.u32 %s70, 1
        %s257 = smul.addr %s256, 128
        %s258 = scalar_lea.vmem [#allocation3], %s257
        // Predicated region
        $region63: #{gnn_mix_forward.8} parent=61 // pred_check
          %p259 = pneg %p83
        $region64: #{gnn_mix_forward.8} parent=61 // pred_check_branch
          %261 = sbr.rel (%p259) target = $region66
        $region65: #{gnn_mix_forward.8} parent=61 // pred_region
          _
        $region66: #{gnn_mix_forward.8} parent=61 // pred_fallthru
          _
        %s262 = smul.u32 16, %s18
        %p263 = scmp.lt.s32.totalorder %s262, 15
        %s264 = scalar_select %p263, %s262, 15
        %p265 = scmp.lt.s32.totalorder %s20, 0
        %s266 = scalar_select %p265, %s20, 0
        %s267 = sadd.s32 %s266, %s264
        %s268 = smul.addr %s267, 4
        %s269 = scalar_lea.vmem %s0, %s268
        %p270 = pneg %p55
        %p271 = pneg %p52
        %s272 = sand.u32 %s70, 1
        %s273 = sand.u32 %s70, 1
        %s274 = smul.addr %s273, 128
        %s275 = scalar_lea.vmem [#allocation3], %s274
        %p276 = pneg %p83
        %p277 = pneg %p80
        %p278 = pneg %p111
        %p279 = pneg %p108
        %s280 = sand.u32 %s98, 1
        %s281 = sand.u32 %s98, 1
        %s282 = smul.addr %s281, 128
        %s283 = scalar_lea.vmem [#allocation4], %s282
        %s284 = smul.u32 16, %s18
        %p285 = scmp.lt.s32.totalorder %s284, 15
        %s286 = scalar_select %p285, %s284, 15
        %p287 = scmp.lt.s32.totalorder %s20, 0
        %s288 = scalar_select %p287, %s20, 0
        %s289 = sadd.s32 %s288, %s286
        %s290 = smul.addr %s289, 4
        %s291 = scalar_lea.vmem %s0, %s290
        %s292 = smul.u32 16, %s18
        %s293 = smul.u32 16, %s20
        %s294 = smul.u32 2, %s19
        %s295 = smul.u32 16, %s18
        %s296 = smul.u32 2, %s19
        %p297 = scmp.eq.s32.totalorder %s20, 0
        // Predicated region
        $region67: #{gnn_mix_forward.8} parent=61 // pred_check
          %p298 = pneg %p297
        $region68: #{gnn_mix_forward.8} parent=61 // pred_check_branch
          %300 = sbr.rel (%p298) target = $region70
        $region69: #{gnn_mix_forward.8} parent=61 // pred_region
          %301 = vst [vmem:[#allocation2] sm:$0xff] 0.0
          %302 = vst [vmem:[#allocation2 + $0x8] sm:$0xff] 0.0
          %303 = vst [vmem:[#allocation2 + $0x10] sm:$0xff] 0.0
          %304 = vst [vmem:[#allocation2 + $0x18] sm:$0xff] 0.0
          %305 = vst [vmem:[#allocation2 + $0x20] sm:$0xff] 0.0
          %306 = vst [vmem:[#allocation2 + $0x28] sm:$0xff] 0.0
          %307 = vst [vmem:[#allocation2 + $0x30] sm:$0xff] 0.0
          %308 = vst [vmem:[#allocation2 + $0x38] sm:$0xff] 0.0
          %309 = vst [vmem:[#allocation2 + $0x40] sm:$0xff] 0.0
          %310 = vst [vmem:[#allocation2 + $0x48] sm:$0xff] 0.0
          %311 = vst [vmem:[#allocation2 + $0x50] sm:$0xff] 0.0
          %312 = vst [vmem:[#allocation2 + $0x58] sm:$0xff] 0.0
          %313 = vst [vmem:[#allocation2 + $0x60] sm:$0xff] 0.0
          %314 = vst [vmem:[#allocation2 + $0x68] sm:$0xff] 0.0
          %315 = vst [vmem:[#allocation2 + $0x70] sm:$0xff] 0.0
          %316 = vst [vmem:[#allocation2 + $0x78] sm:$0xff] 0.0
          %317 = vst [vmem:[#allocation2 + $0x80] sm:$0xff] 0.0
          %318 = vst [vmem:[#allocation2 + $0x88] sm:$0xff] 0.0
          %319 = vst [vmem:[#allocation2 + $0x90] sm:$0xff] 0.0
          %320 = vst [vmem:[#allocation2 + $0x98] sm:$0xff] 0.0
          %321 = vst [vmem:[#allocation2 + $0xa0] sm:$0xff] 0.0
          %322 = vst [vmem:[#allocation2 + $0xa8] sm:$0xff] 0.0
          %323 = vst [vmem:[#allocation2 + $0xb0] sm:$0xff] 0.0
          %324 = vst [vmem:[#allocation2 + $0xb8] sm:$0xff] 0.0
          %325 = vst [vmem:[#allocation2 + $0xc0] sm:$0xff] 0.0
          %326 = vst [vmem:[#allocation2 + $0xc8] sm:$0xff] 0.0
          %327 = vst [vmem:[#allocation2 + $0xd0] sm:$0xff] 0.0
          %328 = vst [vmem:[#allocation2 + $0xd8] sm:$0xff] 0.0
          %329 = vst [vmem:[#allocation2 + $0xe0] sm:$0xff] 0.0
          %330 = vst [vmem:[#allocation2 + $0xe8] sm:$0xff] 0.0
          %331 = vst [vmem:[#allocation2 + $0xf0] sm:$0xff] 0.0
          %332 = vst [vmem:[#allocation2 + $0xf8] sm:$0xff] 0.0
        $region70: #{gnn_mix_forward.8} parent=61 // pred_fallthru
          _
        %v333 = vld [vmem:[#allocation2] sm:$0xff]
        %v334 = vld [vmem:[#allocation2 + $0x8] sm:$0xff]
        %v335 = vld [vmem:[#allocation2 + $0x10] sm:$0xff]
        %v336 = vld [vmem:[#allocation2 + $0x18] sm:$0xff]
        %v337 = vld [vmem:[#allocation2 + $0x20] sm:$0xff]
        %v338 = vld [vmem:[#allocation2 + $0x28] sm:$0xff]
        %v339 = vld [vmem:[#allocation2 + $0x30] sm:$0xff]
        %v340 = vld [vmem:[#allocation2 + $0x38] sm:$0xff]
        %v341 = vld [vmem:[#allocation2 + $0x40] sm:$0xff]
        %v342 = vld [vmem:[#allocation2 + $0x48] sm:$0xff]
        %v343 = vld [vmem:[#allocation2 + $0x50] sm:$0xff]
        %v344 = vld [vmem:[#allocation2 + $0x58] sm:$0xff]
        %v345 = vld [vmem:[#allocation2 + $0x60] sm:$0xff]
        %v346 = vld [vmem:[#allocation2 + $0x68] sm:$0xff]
        %v347 = vld [vmem:[#allocation2 + $0x70] sm:$0xff]
        %v348 = vld [vmem:[#allocation2 + $0x78] sm:$0xff]
        %v349 = vld [vmem:[#allocation2 + $0x80] sm:$0xff]
        %v350 = vld [vmem:[#allocation2 + $0x88] sm:$0xff]
        %v351 = vld [vmem:[#allocation2 + $0x90] sm:$0xff]
        %v352 = vld [vmem:[#allocation2 + $0x98] sm:$0xff]
        %v353 = vld [vmem:[#allocation2 + $0xa0] sm:$0xff]
        %v354 = vld [vmem:[#allocation2 + $0xa8] sm:$0xff]
        %v355 = vld [vmem:[#allocation2 + $0xb0] sm:$0xff]
        %v356 = vld [vmem:[#allocation2 + $0xb8] sm:$0xff]
        %v357 = vld [vmem:[#allocation2 + $0xc0] sm:$0xff]
        %v358 = vld [vmem:[#allocation2 + $0xc8] sm:$0xff]
        %v359 = vld [vmem:[#allocation2 + $0xd0] sm:$0xff]
        %v360 = vld [vmem:[#allocation2 + $0xd8] sm:$0xff]
        %v361 = vld [vmem:[#allocation2 + $0xe0] sm:$0xff]
        %v362 = vld [vmem:[#allocation2 + $0xe8] sm:$0xff]
        %v363 = vld [vmem:[#allocation2 + $0xf0] sm:$0xff]
        %v364 = vld [vmem:[#allocation2 + $0xf8] sm:$0xff]
        %v365 = vld [vmem:[%s291] sm:$0xf]
        %v366 = vld [vmem:[%s291 + $0x4] sm:$0xf]
        %v367 = vld [vmem:[%s291 + $0x8] sm:$0xf]
        %v368 = vld [vmem:[%s291 + $0xc] sm:$0xf]
        %v369 = vld [vmem:[%s291 + $0x10] sm:$0xf]
        %v370 = vld [vmem:[%s291 + $0x14] sm:$0xf]
        %v371 = vld [vmem:[%s291 + $0x18] sm:$0xf]
        %v372 = vld [vmem:[%s291 + $0x1c] sm:$0xf]
        %v373 = vld [vmem:[%s291 + $0x20] sm:$0xf]
        %v374 = vld [vmem:[%s291 + $0x24] sm:$0xf]
        %v375 = vld [vmem:[%s291 + $0x28] sm:$0xf]
        %v376 = vld [vmem:[%s291 + $0x2c] sm:$0xf]
        %v377 = vld [vmem:[%s291 + $0x30] sm:$0xf]
        %v378 = vld [vmem:[%s291 + $0x34] sm:$0xf]
        %v379 = vld [vmem:[%s291 + $0x38] sm:$0xf]
        %v380 = vld [vmem:[%s291 + $0x3c] sm:$0xf]
        %v381 = vld [vmem:[%s258] sm:$0xff]
        %v382 = vld [vmem:[%s258 + $0x8] sm:$0xff]
        %v383 = vld [vmem:[%s258 + $0x10] sm:$0xff]
        %v384 = vld [vmem:[%s258 + $0x18] sm:$0xff]
        %v385 = vld [vmem:[%s258 + $0x20] sm:$0xff]
        %v386 = vld [vmem:[%s258 + $0x28] sm:$0xff]
        %v387 = vld [vmem:[%s258 + $0x30] sm:$0xff]
        %v388 = vld [vmem:[%s258 + $0x38] sm:$0xff]
        %v389 = vld [vmem:[%s258 + $0x40] sm:$0xff]
        %v390 = vld [vmem:[%s258 + $0x48] sm:$0xff]
        %v391 = vld [vmem:[%s258 + $0x50] sm:$0xff]
        %v392 = vld [vmem:[%s258 + $0x58] sm:$0xff]
        %v393 = vld [vmem:[%s258 + $0x60] sm:$0xff]
        %v394 = vld [vmem:[%s258 + $0x68] sm:$0xff]
        %v395 = vld [vmem:[%s258 + $0x70] sm:$0xff]
        %v396 = vld [vmem:[%s258 + $0x78] sm:$0xff]
        %v413 = vunpack.c.l.b16 %v365
        %v414 = vunpack.c.l.b16 %v366
        %v415 = vunpack.c.l.b16 %v367
        %v416 = vunpack.c.l.b16 %v368
        %v417 = vunpack.c.l.b16 %v369
        %v418 = vunpack.c.l.b16 %v370
        %v419 = vunpack.c.l.b16 %v371
        %v420 = vunpack.c.l.b16 %v372
        %v421 = vunpack.c.l.b16 %v373
        %v422 = vunpack.c.l.b16 %v374
        %v423 = vunpack.c.l.b16 %v375
        %v424 = vunpack.c.l.b16 %v376
        %v425 = vunpack.c.l.b16 %v377
        %v426 = vunpack.c.l.b16 %v378
        %v427 = vunpack.c.l.b16 %v379
        %v428 = vunpack.c.l.b16 %v380
        %v429 = vpack.c.b16 %v414, %v413
        %v430 = vpack.c.b16 %v416, %v415
        %v431 = vpack.c.b16 %v418, %v417
        %v432 = vpack.c.b16 %v420, %v419
        %v433 = vpack.c.b16 %v422, %v421
        %v434 = vpack.c.b16 %v424, %v423
        %v435 = vpack.c.b16 %v426, %v425
        %v436 = vpack.c.b16 %v428, %v427
        %v461 = vunpack.c.l.b16 %v381
        %v462 = vunpack.c.h.b16 %v381
        %v463 = vunpack.c.l.b16 %v382
        %v464 = vunpack.c.h.b16 %v382
        %v465 = vunpack.c.l.b16 %v383
        %v466 = vunpack.c.h.b16 %v383
        %v467 = vunpack.c.l.b16 %v384
        %v468 = vunpack.c.h.b16 %v384
        %v469 = vunpack.c.l.b16 %v385
        %v470 = vunpack.c.h.b16 %v385
        %v471 = vunpack.c.l.b16 %v386
        %v472 = vunpack.c.h.b16 %v386
        %v473 = vunpack.c.l.b16 %v387
        %v474 = vunpack.c.h.b16 %v387
        %v475 = vunpack.c.l.b16 %v388
        %v476 = vunpack.c.h.b16 %v388
        %v477 = vunpack.c.l.b16 %v389
        %v478 = vunpack.c.h.b16 %v389
        %v479 = vunpack.c.l.b16 %v390
        %v480 = vunpack.c.h.b16 %v390
        %v481 = vunpack.c.l.b16 %v391
        %v482 = vunpack.c.h.b16 %v391
        %v483 = vunpack.c.l.b16 %v392
        %v484 = vunpack.c.h.b16 %v392
        %v485 = vunpack.c.l.b16 %v393
        %v486 = vunpack.c.h.b16 %v393
        %v487 = vunpack.c.l.b16 %v394
        %v488 = vunpack.c.h.b16 %v394
        %v489 = vunpack.c.l.b16 %v395
        %v490 = vunpack.c.h.b16 %v395
        %v491 = vunpack.c.l.b16 %v396
        %v492 = vunpack.c.h.b16 %v396
        %v493 = vpack.c.b16 %v463, %v461
        %v494 = vpack.c.b16 %v464, %v462
        %v495 = vpack.c.b16 %v467, %v465
        %v496 = vpack.c.b16 %v468, %v466
        %v497 = vpack.c.b16 %v471, %v469
        %v498 = vpack.c.b16 %v472, %v470
        %v499 = vpack.c.b16 %v475, %v473
        %v500 = vpack.c.b16 %v476, %v474
        %v501 = vpack.c.b16 %v479, %v477
        %v502 = vpack.c.b16 %v480, %v478
        %v503 = vpack.c.b16 %v483, %v481
        %v504 = vpack.c.b16 %v484, %v482
        %v505 = vpack.c.b16 %v487, %v485
        %v506 = vpack.c.b16 %v488, %v486
        %v507 = vpack.c.b16 %v491, %v489
        %v508 = vpack.c.b16 %v492, %v490
        %525 = vmatpush.bf16.msra.mxu0 %v507
        %526 = vmatpush.bf16.msra.mxu0 %v505
        %527 = vmatpush.bf16.msra.mxu0 %v503
        %528 = vmatpush.bf16.msra.mxu0 %v501
        %529 = vmatpush.bf16.msra.mxu0 %v499
        %530 = vmatpush.bf16.msra.mxu0 %v497
        %531 = vmatpush.bf16.msra.mxu0 %v495
        %532 = vmatpush.bf16.msra.mxu0 %v493
        %533 = vmatmul.bf16.gmra.mxu0 %v429
        %v534 = vpop.f32.mrf.mxu0
        %v535 = vadd.f32 0.0, %v534
        %v536 = vpop.f32.mrf.mxu0
        %v537 = vadd.f32 0.0, %v536
        %538 = vmatmul.bf16.gmra.mxu0 %v430
        %v539 = vpop.f32.mrf.mxu0
        %v540 = vadd.f32 0.0, %v539
        %v541 = vpop.f32.mrf.mxu0
        %v542 = vadd.f32 0.0, %v541
        %543 = vmatmul.bf16.gmra.mxu0 %v431
        %v544 = vpop.f32.mrf.mxu0
        %v545 = vadd.f32 0.0, %v544
        %v546 = vpop.f32.mrf.mxu0
        %v547 = vadd.f32 0.0, %v546
        %548 = vmatmul.bf16.gmra.mxu0 %v432
        %v549 = vpop.f32.mrf.mxu0
        %v550 = vadd.f32 0.0, %v549
        %v551 = vpop.f32.mrf.mxu0
        %v552 = vadd.f32 0.0, %v551
        %553 = vmatmul.bf16.gmra.mxu0 %v433
        %v554 = vpop.f32.mrf.mxu0
        %v555 = vadd.f32 0.0, %v554
        %v556 = vpop.f32.mrf.mxu0
        %v557 = vadd.f32 0.0, %v556
        %558 = vmatmul.bf16.gmra.mxu0 %v434
        %v559 = vpop.f32.mrf.mxu0
        %v560 = vadd.f32 0.0, %v559
        %v561 = vpop.f32.mrf.mxu0
        %v562 = vadd.f32 0.0, %v561
        %563 = vmatmul.bf16.gmra.mxu0 %v435
        %v564 = vpop.f32.mrf.mxu0
        %v565 = vadd.f32 0.0, %v564
        %v566 = vpop.f32.mrf.mxu0
        %v567 = vadd.f32 0.0, %v566
        %568 = vmatmul.bf16.gmra.mxu0 %v436
        %v569 = vpop.f32.mrf.mxu0
        %v570 = vadd.f32 0.0, %v569
        %v571 = vpop.f32.mrf.mxu0
        %v572 = vadd.f32 0.0, %v571
        %573 = vdwg.mxu0
        %574 = vmatpush.bf16.msra.mxu0 %v508
        %575 = vmatpush.bf16.msra.mxu0 %v506
        %576 = vmatpush.bf16.msra.mxu0 %v504
        %577 = vmatpush.bf16.msra.mxu0 %v502
        %578 = vmatpush.bf16.msra.mxu0 %v500
        %579 = vmatpush.bf16.msra.mxu0 %v498
        %580 = vmatpush.bf16.msra.mxu0 %v496
        %581 = vmatpush.bf16.msra.mxu0 %v494
        %582 = vmatmul.bf16.gmra.mxu0 %v429
        %v583 = vpop.f32.mrf.mxu0
        %v584 = vadd.f32 0.0, %v583
        %v585 = vpop.f32.mrf.mxu0
        %v586 = vadd.f32 0.0, %v585
        %587 = vmatmul.bf16.gmra.mxu0 %v430
        %v588 = vpop.f32.mrf.mxu0
        %v589 = vadd.f32 0.0, %v588
        %v590 = vpop.f32.mrf.mxu0
        %v591 = vadd.f32 0.0, %v590
        %592 = vmatmul.bf16.gmra.mxu0 %v431
        %v593 = vpop.f32.mrf.mxu0
        %v594 = vadd.f32 0.0, %v593
        %v595 = vpop.f32.mrf.mxu0
        %v596 = vadd.f32 0.0, %v595
        %597 = vmatmul.bf16.gmra.mxu0 %v432
        %v598 = vpop.f32.mrf.mxu0
        %v599 = vadd.f32 0.0, %v598
        %v600 = vpop.f32.mrf.mxu0
        %v601 = vadd.f32 0.0, %v600
        %602 = vmatmul.bf16.gmra.mxu0 %v433
        %v603 = vpop.f32.mrf.mxu0
        %v604 = vadd.f32 0.0, %v603
        %v605 = vpop.f32.mrf.mxu0
        %v606 = vadd.f32 0.0, %v605
        %607 = vmatmul.bf16.gmra.mxu0 %v434
        %v608 = vpop.f32.mrf.mxu0
        %v609 = vadd.f32 0.0, %v608
        %v610 = vpop.f32.mrf.mxu0
        %v611 = vadd.f32 0.0, %v610
        %612 = vmatmul.bf16.gmra.mxu0 %v435
        %v613 = vpop.f32.mrf.mxu0
        %v614 = vadd.f32 0.0, %v613
        %v615 = vpop.f32.mrf.mxu0
        %v616 = vadd.f32 0.0, %v615
        %617 = vmatmul.bf16.gmra.mxu0 %v436
        %v618 = vpop.f32.mrf.mxu0
        %v619 = vadd.f32 0.0, %v618
        %v620 = vpop.f32.mrf.mxu0
        %v621 = vadd.f32 0.0, %v620
        %622 = vdwg.mxu0
        %v623 = vadd.f32 %v333, %v535
        %v624 = vadd.f32 %v334, %v584
        %v625 = vadd.f32 %v335, %v537
        %v626 = vadd.f32 %v336, %v586
        %v627 = vadd.f32 %v337, %v540
        %v628 = vadd.f32 %v338, %v589
        %v629 = vadd.f32 %v339, %v542
        %v630 = vadd.f32 %v340, %v591
        %v631 = vadd.f32 %v341, %v545
        %v632 = vadd.f32 %v342, %v594
        %v633 = vadd.f32 %v343, %v547
        %v634 = vadd.f32 %v344, %v596
        %v635 = vadd.f32 %v345, %v550
        %v636 = vadd.f32 %v346, %v599
        %v637 = vadd.f32 %v347, %v552
        %v638 = vadd.f32 %v348, %v601
        %v639 = vadd.f32 %v349, %v555
        %v640 = vadd.f32 %v350, %v604
        %v641 = vadd.f32 %v351, %v557
        %v642 = vadd.f32 %v352, %v606
        %v643 = vadd.f32 %v353, %v560
        %v644 = vadd.f32 %v354, %v609
        %v645 = vadd.f32 %v355, %v562
        %v646 = vadd.f32 %v356, %v611
        %v647 = vadd.f32 %v357, %v565
        %v648 = vadd.f32 %v358, %v614
        %v649 = vadd.f32 %v359, %v567
        %v650 = vadd.f32 %v360, %v616
        %v651 = vadd.f32 %v361, %v570
        %v652 = vadd.f32 %v362, %v619
        %v653 = vadd.f32 %v363, %v572
        %v654 = vadd.f32 %v364, %v621
        %655 = vst [vmem:[#allocation2] sm:$0xff] %v623
        %656 = vst [vmem:[#allocation2 + $0x8] sm:$0xff] %v624
        %657 = vst [vmem:[#allocation2 + $0x10] sm:$0xff] %v625
        %658 = vst [vmem:[#allocation2 + $0x18] sm:$0xff] %v626
        %659 = vst [vmem:[#allocation2 + $0x20] sm:$0xff] %v627
        %660 = vst [vmem:[#allocation2 + $0x28] sm:$0xff] %v628
        %661 = vst [vmem:[#allocation2 + $0x30] sm:$0xff] %v629
        %662 = vst [vmem:[#allocation2 + $0x38] sm:$0xff] %v630
        %663 = vst [vmem:[#allocation2 + $0x40] sm:$0xff] %v631
        %664 = vst [vmem:[#allocation2 + $0x48] sm:$0xff] %v632
        %665 = vst [vmem:[#allocation2 + $0x50] sm:$0xff] %v633
        %666 = vst [vmem:[#allocation2 + $0x58] sm:$0xff] %v634
        %667 = vst [vmem:[#allocation2 + $0x60] sm:$0xff] %v635
        %668 = vst [vmem:[#allocation2 + $0x68] sm:$0xff] %v636
        %669 = vst [vmem:[#allocation2 + $0x70] sm:$0xff] %v637
        %670 = vst [vmem:[#allocation2 + $0x78] sm:$0xff] %v638
        %671 = vst [vmem:[#allocation2 + $0x80] sm:$0xff] %v639
        %672 = vst [vmem:[#allocation2 + $0x88] sm:$0xff] %v640
        %673 = vst [vmem:[#allocation2 + $0x90] sm:$0xff] %v641
        %674 = vst [vmem:[#allocation2 + $0x98] sm:$0xff] %v642
        %675 = vst [vmem:[#allocation2 + $0xa0] sm:$0xff] %v643
        %676 = vst [vmem:[#allocation2 + $0xa8] sm:$0xff] %v644
        %677 = vst [vmem:[#allocation2 + $0xb0] sm:$0xff] %v645
        %678 = vst [vmem:[#allocation2 + $0xb8] sm:$0xff] %v646
        %679 = vst [vmem:[#allocation2 + $0xc0] sm:$0xff] %v647
        %680 = vst [vmem:[#allocation2 + $0xc8] sm:$0xff] %v648
        %681 = vst [vmem:[#allocation2 + $0xd0] sm:$0xff] %v649
        %682 = vst [vmem:[#allocation2 + $0xd8] sm:$0xff] %v650
        %683 = vst [vmem:[#allocation2 + $0xe0] sm:$0xff] %v651
        %684 = vst [vmem:[#allocation2 + $0xe8] sm:$0xff] %v652
        %685 = vst [vmem:[#allocation2 + $0xf0] sm:$0xff] %v653
        %686 = vst [vmem:[#allocation2 + $0xf8] sm:$0xff] %v654
        // Predicated region
        $region71: #{gnn_mix_forward.8} parent=61 // pred_check
          %p687 = pneg %p297
        $region72: #{gnn_mix_forward.8} parent=61 // pred_check_branch
          %689 = sbr.rel (%p687) target = $region74
        $region73: #{gnn_mix_forward.8} parent=61 // pred_region
          %v690 = vld [vmem:[#allocation2] sm:$0xff]
          %v691 = vld [vmem:[#allocation2 + $0x8] sm:$0xff]
          %v692 = vld [vmem:[#allocation2 + $0x10] sm:$0xff]
          %v693 = vld [vmem:[#allocation2 + $0x18] sm:$0xff]
          %v694 = vld [vmem:[#allocation2 + $0x20] sm:$0xff]
          %v695 = vld [vmem:[#allocation2 + $0x28] sm:$0xff]
          %v696 = vld [vmem:[#allocation2 + $0x30] sm:$0xff]
          %v697 = vld [vmem:[#allocation2 + $0x38] sm:$0xff]
          %v698 = vld [vmem:[#allocation2 + $0x40] sm:$0xff]
          %v699 = vld [vmem:[#allocation2 + $0x48] sm:$0xff]
          %v700 = vld [vmem:[#allocation2 + $0x50] sm:$0xff]
          %v701 = vld [vmem:[#allocation2 + $0x58] sm:$0xff]
          %v702 = vld [vmem:[#allocation2 + $0x60] sm:$0xff]
          %v703 = vld [vmem:[#allocation2 + $0x68] sm:$0xff]
          %v704 = vld [vmem:[#allocation2 + $0x70] sm:$0xff]
          %v705 = vld [vmem:[#allocation2 + $0x78] sm:$0xff]
          %v706 = vld [vmem:[#allocation2 + $0x80] sm:$0xff]
          %v707 = vld [vmem:[#allocation2 + $0x88] sm:$0xff]
          %v708 = vld [vmem:[#allocation2 + $0x90] sm:$0xff]
          %v709 = vld [vmem:[#allocation2 + $0x98] sm:$0xff]
          %v710 = vld [vmem:[#allocation2 + $0xa0] sm:$0xff]
          %v711 = vld [vmem:[#allocation2 + $0xa8] sm:$0xff]
          %v712 = vld [vmem:[#allocation2 + $0xb0] sm:$0xff]
          %v713 = vld [vmem:[#allocation2 + $0xb8] sm:$0xff]
          %v714 = vld [vmem:[#allocation2 + $0xc0] sm:$0xff]
          %v715 = vld [vmem:[#allocation2 + $0xc8] sm:$0xff]
          %v716 = vld [vmem:[#allocation2 + $0xd0] sm:$0xff]
          %v717 = vld [vmem:[#allocation2 + $0xd8] sm:$0xff]
          %v718 = vld [vmem:[#allocation2 + $0xe0] sm:$0xff]
          %v719 = vld [vmem:[#allocation2 + $0xe8] sm:$0xff]
          %v720 = vld [vmem:[#allocation2 + $0xf0] sm:$0xff]
          %v721 = vld [vmem:[#allocation2 + $0xf8] sm:$0xff]
          %v722 = vpack.c.bf16 %v691, %v690
          %v723 = vpack.c.bf16 %v693, %v692
          %v724 = vpack.c.bf16 %v695, %v694
          %v725 = vpack.c.bf16 %v697, %v696
          %v726 = vpack.c.bf16 %v699, %v698
          %v727 = vpack.c.bf16 %v701, %v700
          %v728 = vpack.c.bf16 %v703, %v702
          %v729 = vpack.c.bf16 %v705, %v704
          %v730 = vpack.c.bf16 %v707, %v706
          %v731 = vpack.c.bf16 %v709, %v708
          %v732 = vpack.c.bf16 %v711, %v710
          %v733 = vpack.c.bf16 %v713, %v712
          %v734 = vpack.c.bf16 %v715, %v714
          %v735 = vpack.c.bf16 %v717, %v716
          %v736 = vpack.c.bf16 %v719, %v718
          %v737 = vpack.c.bf16 %v721, %v720
          %738 = vst [vmem:[%s283] sm:$0xff] %v722
          %739 = vst [vmem:[%s283 + $0x8] sm:$0xff] %v723
          %740 = vst [vmem:[%s283 + $0x10] sm:$0xff] %v724
          %741 = vst [vmem:[%s283 + $0x18] sm:$0xff] %v725
          %742 = vst [vmem:[%s283 + $0x20] sm:$0xff] %v726
          %743 = vst [vmem:[%s283 + $0x28] sm:$0xff] %v727
          %744 = vst [vmem:[%s283 + $0x30] sm:$0xff] %v728
          %745 = vst [vmem:[%s283 + $0x38] sm:$0xff] %v729
          %746 = vst [vmem:[%s283 + $0x40] sm:$0xff] %v730
          %747 = vst [vmem:[%s283 + $0x48] sm:$0xff] %v731
          %748 = vst [vmem:[%s283 + $0x50] sm:$0xff] %v732
          %749 = vst [vmem:[%s283 + $0x58] sm:$0xff] %v733
          %750 = vst [vmem:[%s283 + $0x60] sm:$0xff] %v734
          %751 = vst [vmem:[%s283 + $0x68] sm:$0xff] %v735
          %752 = vst [vmem:[%s283 + $0x70] sm:$0xff] %v736
          %753 = vst [vmem:[%s283 + $0x78] sm:$0xff] %v737
        $region74: #{gnn_mix_forward.8} parent=61 // pred_fallthru
          _
        %s754 = sand.u32 %s98, 1
        %s755 = sand.u32 %s98, 1
        %s756 = smul.addr %s755, 128
        %s757 = scalar_lea.vmem [#allocation4], %s756
        // Predicated region
        $region75: #{gnn_mix_forward.8} parent=61 // pred_check
          %p758 = pneg %p108
        $region76: #{gnn_mix_forward.8} parent=61 // pred_check_branch
          %760 = sbr.rel (%p758) target = $region78
        $region77: #{gnn_mix_forward.8} parent=61 // pred_region
          %s761 = smul.u32 16, %s18
          %s762 = smul.u32 2, %s19
          %s763 = smul.addr %s761, 8
          %s764 = sadd.s32 %s762, %s763
          %s765 = smul.addr %s764, 4
          %s766 = scalar_lea.vmem %s2, %s765
          // Predicated region
          $region79: #{gnn_mix_forward.8} parent=77 // pred_check
            _
          $region80: #{gnn_mix_forward.8} parent=77 // pred_check_branch
            %768 = sbr.rel (0) target = $region82
          $region81: #{gnn_mix_forward.8} parent=77 // pred_region
            // Predicated region
            $region83: #{gnn_mix_forward.8} parent=81 // pred_check
              _
            $region84: #{gnn_mix_forward.8} parent=81 // pred_check_branch
              %770 = sbr.rel (0) target = $region86
            $region85: #{gnn_mix_forward.8} parent=81 // pred_region
              // Predicated region
              $region98: #{gnn_mix_forward.8} parent=85 // pred_check
                _
              $region99: #{gnn_mix_forward.8} parent=85 // pred_check_branch
                %816 = sbr.rel (0) target = $region101
              $region100: #{gnn_mix_forward.8} parent=85 // pred_region
                loop: start=0, step=1, limit=1
                $region102: #{gnn_mix_forward.8} parent=100 // loop_pre_header
                  _
                $region103: #{gnn_mix_forward.8} parent=100 // loop_header
                  %s818 = sphi 0, %s822
                  %p819 = scmp.ge.s32.totalorder %s818, 1
                  %s823 = sphi %s757, %s757
                  %s824 = sphi %s766, %s766
                $region104: #{gnn_mix_forward.8} parent=100 // loop_header_branch
                  %821 = sbr.rel (%p819) target = $region108
                $region105: #{gnn_mix_forward.8} parent=100 // loop_body
                  %v825 = vld [vmem:[%s823] sm:$0xff]
                  %826 = vst [vmem:[%s824] sm:$0xff] %v825
                  %v827 = vld [vmem:[%s823 + $0x8] sm:$0xff]
                  %828 = vst [vmem:[%s824 + $0x20] sm:$0xff] %v827
                  %v829 = vld [vmem:[%s823 + $0x10] sm:$0xff]
                  %830 = vst [vmem:[%s824 + $0x40] sm:$0xff] %v829
                  %v831 = vld [vmem:[%s823 + $0x18] sm:$0xff]
                  %832 = vst [vmem:[%s824 + $0x60] sm:$0xff] %v831
                  %v833 = vld [vmem:[%s823 + $0x20] sm:$0xff]
                  %834 = vst [vmem:[%s824 + $0x80] sm:$0xff] %v833
                  %v835 = vld [vmem:[%s823 + $0x28] sm:$0xff]
                  %836 = vst [vmem:[%s824 + $0xa0] sm:$0xff] %v835
                  %v837 = vld [vmem:[%s823 + $0x30] sm:$0xff]
                  %838 = vst [vmem:[%s824 + $0xc0] sm:$0xff] %v837
                  %v839 = vld [vmem:[%s823 + $0x38] sm:$0xff]
                  %840 = vst [vmem:[%s824 + $0xe0] sm:$0xff] %v839
                  %v841 = vld [vmem:[%s823 + $0x40] sm:$0xff]
                  %842 = vst [vmem:[%s824 + $0x100] sm:$0xff] %v841
                  %v843 = vld [vmem:[%s823 + $0x48] sm:$0xff]
                  %844 = vst [vmem:[%s824 + $0x120] sm:$0xff] %v843
                  %v845 = vld [vmem:[%s823 + $0x50] sm:$0xff]
                  %846 = vst [vmem:[%s824 + $0x140] sm:$0xff] %v845
                  %v847 = vld [vmem:[%s823 + $0x58] sm:$0xff]
                  %848 = vst [vmem:[%s824 + $0x160] sm:$0xff] %v847
                  %v849 = vld [vmem:[%s823 + $0x60] sm:$0xff]
                  %850 = vst [vmem:[%s824 + $0x180] sm:$0xff] %v849
                  %v851 = vld [vmem:[%s823 + $0x68] sm:$0xff]
                  %852 = vst [vmem:[%s824 + $0x1a0] sm:$0xff] %v851
                  %v853 = vld [vmem:[%s823 + $0x70] sm:$0xff]
                  %854 = vst [vmem:[%s824 + $0x1c0] sm:$0xff] %v853
                  %v855 = vld [vmem:[%s823 + $0x78] sm:$0xff]
                  %856 = vst [vmem:[%s824 + $0x1e0] sm:$0xff] %v855
                $region106: #{gnn_mix_forward.8} parent=100 // loop_footer
                  %s822 = sadd.s32 1, %s818
                $region107: #{gnn_mix_forward.8} parent=100 // loop_footer_branch
                  %817 = sbr.rel target = $region103
                $region108: #{gnn_mix_forward.8} parent=100 // loop_exit
                  _
              $region101: #{gnn_mix_forward.8} parent=85 // pred_fallthru
                _
              // Predicated region
              $region109: #{gnn_mix_forward.8} parent=85 // pred_check
                _
              $region110: #{gnn_mix_forward.8} parent=85 // pred_check_branch
                %858 = sbr.rel target = $region112
              $region111: #{gnn_mix_forward.8} parent=85 // pred_region
                _
              $region112: #{gnn_mix_forward.8} parent=85 // pred_fallthru
                _
            $region86: #{gnn_mix_forward.8} parent=81 // pred_fallthru
              _
            // Predicated region
            $region87: #{gnn_mix_forward.8} parent=81 // pred_check
              _
            $region88: #{gnn_mix_forward.8} parent=81 // pred_check_branch
              %772 = sbr.rel target = $region90
            $region89: #{gnn_mix_forward.8} parent=81 // pred_region
              %s774 = ssub.s32 256, 1
              loop: start=0, step=1, limit=1
              $region91: #{gnn_mix_forward.8} parent=89 // loop_pre_header
                _
              $region92: #{gnn_mix_forward.8} parent=89 // loop_header
                %s776 = sphi 0, %s780
                %p777 = scmp.ge.s32.totalorder %s776, 1
                %s781 = sphi %s757, %s757
                %s782 = sphi %s766, %s766
              $region93: #{gnn_mix_forward.8} parent=89 // loop_header_branch
                %779 = sbr.rel (%p777) target = $region97
              $region94: #{gnn_mix_forward.8} parent=89 // loop_body
                %v783 = vld [vmem:[%s781] sm:%s774]
                %784 = vst [vmem:[%s782] sm:%s774] %v783
                %v785 = vld [vmem:[%s781 + $0x8] sm:%s774]
                %786 = vst [vmem:[%s782 + $0x20] sm:%s774] %v785
                %v787 = vld [vmem:[%s781 + $0x10] sm:%s774]
                %788 = vst [vmem:[%s782 + $0x40] sm:%s774] %v787
                %v789 = vld [vmem:[%s781 + $0x18] sm:%s774]
                %790 = vst [vmem:[%s782 + $0x60] sm:%s774] %v789
                %v791 = vld [vmem:[%s781 + $0x20] sm:%s774]
                %792 = vst [vmem:[%s782 + $0x80] sm:%s774] %v791
                %v793 = vld [vmem:[%s781 + $0x28] sm:%s774]
                %794 = vst [vmem:[%s782 + $0xa0] sm:%s774] %v793
                %v795 = vld [vmem:[%s781 + $0x30] sm:%s774]
                %796 = vst [vmem:[%s782 + $0xc0] sm:%s774] %v795
                %v797 = vld [vmem:[%s781 + $0x38] sm:%s774]
                %798 = vst [vmem:[%s782 + $0xe0] sm:%s774] %v797
                %v799 = vld [vmem:[%s781 + $0x40] sm:%s774]
                %800 = vst [vmem:[%s782 + $0x100] sm:%s774] %v799
                %v801 = vld [vmem:[%s781 + $0x48] sm:%s774]
                %802 = vst [vmem:[%s782 + $0x120] sm:%s774] %v801
                %v803 = vld [vmem:[%s781 + $0x50] sm:%s774]
                %804 = vst [vmem:[%s782 + $0x140] sm:%s774] %v803
                %v805 = vld [vmem:[%s781 + $0x58] sm:%s774]
                %806 = vst [vmem:[%s782 + $0x160] sm:%s774] %v805
                %v807 = vld [vmem:[%s781 + $0x60] sm:%s774]
                %808 = vst [vmem:[%s782 + $0x180] sm:%s774] %v807
                %v809 = vld [vmem:[%s781 + $0x68] sm:%s774]
                %810 = vst [vmem:[%s782 + $0x1a0] sm:%s774] %v809
                %v811 = vld [vmem:[%s781 + $0x70] sm:%s774]
                %812 = vst [vmem:[%s782 + $0x1c0] sm:%s774] %v811
                %v813 = vld [vmem:[%s781 + $0x78] sm:%s774]
                %814 = vst [vmem:[%s782 + $0x1e0] sm:%s774] %v813
              $region95: #{gnn_mix_forward.8} parent=89 // loop_footer
                %s780 = sadd.s32 1, %s776
              $region96: #{gnn_mix_forward.8} parent=89 // loop_footer_branch
                %775 = sbr.rel target = $region92
              $region97: #{gnn_mix_forward.8} parent=89 // loop_exit
                _
            $region90: #{gnn_mix_forward.8} parent=81 // pred_fallthru
              _
          $region82: #{gnn_mix_forward.8} parent=77 // pred_fallthru
            _
          %859 = vnop
        $region78: #{gnn_mix_forward.8} parent=61 // pred_fallthru
          _
      $region62: #{gnn_mix_forward.8} parent=5 // pred_fallthru
        _
      %p860 = scmp.le.s32.totalorder 2, %s8
      // Predicated region
      $region113: #{gnn_mix_forward.8} parent=5 // pred_check
        %p861 = pneg %p860
      $region114: #{gnn_mix_forward.8} parent=5 // pred_check_branch
        %863 = sbr.rel (%p861) target = $region116
      $region115: #{gnn_mix_forward.8} parent=5 // pred_region
        %s864 = ssub.s32 %s8, 2
        // Predicated region
        $region117: #{gnn_mix_forward.8} parent=115 // pred_check
          %p865 = pneg %p114
        $region118: #{gnn_mix_forward.8} parent=115 // pred_check_branch
          %867 = sbr.rel (%p865) target = $region120
        $region119: #{gnn_mix_forward.8} parent=115 // pred_region
          %s868 = sand.u32 %s99, 1
          %s869 = sand.u32 %s99, 1
          %s870 = smul.addr %s869, 128
          %s871 = scalar_lea.vmem [#allocation4], %s870
        $region120: #{gnn_mix_forward.8} parent=115 // pred_fallthru
          _
      $region116: #{gnn_mix_forward.8} parent=5 // pred_fallthru
        _
    $region6: #{gnn_mix_forward.8} parent=1 // loop_footer
      %s12 = sadd.s32 1, %s8
    $region7: #{gnn_mix_forward.8} parent=1 // loop_footer_branch
      %7 = sbr.rel target = $region3
    $region8: #{gnn_mix_forward.8} parent=1 // loop_exit
      _

// kernel: gnn_mix_forward.10
$region0: #{gnn_mix_forward.10}
  #allocation0 [shape = 'u32[]', space=smem, size = 0x4, offset = 0x4, fixed_abs, tag = 'smem constant byte address 0x4 - core index']
  #allocation1 [shape = 'u32[72,128]{1,0:T(1,128)}', space=vmem, size = 0x9000, scoped, tag = 'internal scratch']
  #allocation2 [shape = 'f32[128,256]{1,0:T(8,128)}', space=vmem, size = 0x20000, scoped, tag = 'scratch operand']
  %s0 = inlined_call_operand.vmem [shape: bf16[128,1024], index: 0, kind: input, shape index: {}]
  %s1 = inlined_call_operand.vmem [shape: bf16[1024,512], index: 1, kind: input, shape index: {}]
  %s2 = inlined_call_operand.vmem [shape: bf16[128,512], index: 2, kind: output, shape index: {}]
  %s3 = sld [smem:[#allocation0]]
  $region144: #{gnn_mix_forward.10} parent=0
    _
  %s5 = ssub.s32 1, %s3
  %s6 = scalar_select 0, %s5, %s3
  $region1: #{gnn_mix_forward.10} parent=0
    #allocation3 [shape = 'u8[262144]{0}', space=vmem, size = 0x40000, scoped, tag = 'input window, operand 0']
    #allocation4 [shape = 'u8[524288]{0}', space=vmem, size = 0x80000, scoped, tag = 'input window, operand 1']
    #allocation5 [shape = 'u8[131072]{0}', space=vmem, size = 0x20000, scoped, tag = 'output window, operand 0']
    loop: start=0, step=1, limit=6
    $region2: #{gnn_mix_forward.10} parent=1 // loop_pre_header
      _
    $region3: #{gnn_mix_forward.10} parent=1 // loop_header
      %s8 = sphi 0, %s12
      %p9 = scmp.ge.s32.totalorder %s8, 6
      %s15 = sphi 0, %s34
      %s16 = sphi 0, %s30
      %s17 = sphi 0, %s26
      %s18 = sphi 0, %s15
      %s19 = sphi 0, %s16
      %s20 = sphi 0, %s17
      %s21 = sphi 0, %s18
      %s22 = sphi 0, %s19
      %s23 = sphi 0, %s20
      %s39 = sphi 0, %s41
      %s42 = sphi 0, %s39
      %s43 = sphi 0, %s42
      %s59 = sphi 0, %s43
      %s67 = sphi 0, %s69
      %s70 = sphi 0, %s67
      %s71 = sphi 0, %s70
      %s87 = sphi 0, %s71
      %s95 = sphi 0, %s97
      %s98 = sphi 0, %s95
      %s99 = sphi 0, %s98
      %s115 = sphi 0, %s99
    $region4: #{gnn_mix_forward.10} parent=1 // loop_header_branch
      %11 = sbr.rel (%p9) target = $region8
    $region5: #{gnn_mix_forward.10} parent=1 // loop_body
      %s13 = ssub.s32 %s8, 1
      %s14 = ssub.s32 %s8, 2
      %s24 = sadd.s32 1, %s17
      %p25 = scmp.ge.s32.totalorder %s24, 2
      %s26 = scalar_select %p25, 0, %s24
      %s27 = sadd.s32 1, %s16
      %s28 = scalar_select %p25, %s27, %s16
      %p29 = scmp.ge.s32.totalorder %s28, 2
      %s30 = scalar_select %p29, 0, %s28
      %s31 = sadd.s32 1, %s15
      %s32 = scalar_select %p29, %s31, %s15
      %p33 = scmp.ge.s32.totalorder %s32, 1
      %s34 = scalar_select %p33, 0, %s32
      %s35 = ssub.s32 %s15, %s34
      %s36 = ssub.s32 %s17, %s26
      %s37 = sor.u32 %s35, %s36
      %p38 = scmp.eq.s32.totalorder %s37, 0
      %s40 = sadd.s32 %s39, 1
      %s41 = scalar_select %p38, %s39, %s40
      %p44 = pneg %p38
      %p45 = scmp.eq.s32.totalorder %s8, 3
      %p46 = por %p44, %p45
      %p47 = scmp.ne.s32.totalorder %s39, %s42
      %p48 = scmp.eq.s32.totalorder %s8, 0
      %p49 = por %p47, %p48
      %p50 = scmp.ne.s32.totalorder %s39, %s42
      %p51 = scmp.eq.s32.totalorder %s13, 3
      %p52 = por %p50, %p51
      %p53 = scmp.ne.s32.totalorder %s42, %s43
      %p54 = scmp.eq.s32.totalorder %s13, 0
      %p55 = por %p53, %p54
      %p56 = scmp.ne.s32.totalorder %s42, %s43
      %p57 = scmp.eq.s32.totalorder %s14, 3
      %p58 = por %p56, %p57
      %p60 = scmp.ne.s32.totalorder %s43, %s59
      %p61 = scmp.eq.s32.totalorder %s14, 0
      %p62 = por %p60, %p61
      %s63 = ssub.s32 %s17, %s26
      %s64 = ssub.s32 %s16, %s30
      %s65 = sor.u32 %s63, %s64
      %p66 = scmp.eq.s32.totalorder %s65, 0
      %s68 = sadd.s32 %s67, 1
      %s69 = scalar_select %p66, %s67, %s68
      %p72 = pneg %p66
      %p73 = scmp.eq.s32.totalorder %s8, 3
      %p74 = por %p72, %p73
      %p75 = scmp.ne.s32.totalorder %s67, %s70
      %p76 = scmp.eq.s32.totalorder %s8, 0
      %p77 = por %p75, %p76
      %p78 = scmp.ne.s32.totalorder %s67, %s70
      %p79 = scmp.eq.s32.totalorder %s13, 3
      %p80 = por %p78, %p79
      %p81 = scmp.ne.s32.totalorder %s70, %s71
      %p82 = scmp.eq.s32.totalorder %s13, 0
      %p83 = por %p81, %p82
      %p84 = scmp.ne.s32.totalorder %s70, %s71
      %p85 = scmp.eq.s32.totalorder %s14, 3
      %p86 = por %p84, %p85
      %p88 = scmp.ne.s32.totalorder %s71, %s87
      %p89 = scmp.eq.s32.totalorder %s14, 0
      %p90 = por %p88, %p89
      %s91 = ssub.s32 %s15, %s34
      %s92 = ssub.s32 %s16, %s30
      %s93 = sor.u32 %s91, %s92
      %p94 = scmp.eq.s32.totalorder %s93, 0
      %s96 = sadd.s32 %s95, 1
      %s97 = scalar_select %p94, %s95, %s96
      %p100 = pneg %p94
      %p101 = scmp.eq.s32.totalorder %s8, 3
      %p102 = por %p100, %p101
      %p103 = scmp.ne.s32.totalorder %s95, %s98
      %p104 = scmp.eq.s32.totalorder %s8, 0
      %p105 = por %p103, %p104
      %p106 = scmp.ne.s32.totalorder %s95, %s98
      %p107 = scmp.eq.s32.totalorder %s13, 3
      %p108 = por %p106, %p107
      %p109 = scmp.ne.s32.totalorder %s98, %s99
      %p110 = scmp.eq.s32.totalorder %s13, 0
      %p111 = por %p109, %p110
      %p112 = scmp.ne.s32.totalorder %s98, %s99
      %p113 = scmp.eq.s32.totalorder %s14, 3
      %p114 = por %p112, %p113
      %p116 = scmp.ne.s32.totalorder %s99, %s115
      %p117 = scmp.eq.s32.totalorder %s14, 0
      %p118 = por %p116, %p117
      %p119 = scmp.le.s32.totalorder 1, %s8
      %p120 = scmp.lt.s32.totalorder %s8, 5
      %p121 = pnand %p119, %p120
      %p122 = pneg %p121
      // Predicated region
      $region9: #{gnn_mix_forward.10} parent=5 // pred_check
        _
      $region10: #{gnn_mix_forward.10} parent=5 // pred_check_branch
        %124 = sbr.rel (%p121) target = $region12
      $region11: #{gnn_mix_forward.10} parent=5 // pred_region
        %s125 = ssub.s32 %s8, 1
      $region12: #{gnn_mix_forward.10} parent=5 // pred_fallthru
        _
      %p126 = scmp.lt.s32.totalorder %s8, 4
      // Predicated region
      $region13: #{gnn_mix_forward.10} parent=5 // pred_check
        %p127 = pneg %p126
      $region14: #{gnn_mix_forward.10} parent=5 // pred_check_branch
        %129 = sbr.rel (%p127) target = $region16
      $region15: #{gnn_mix_forward.10} parent=5 // pred_region
        // Predicated region
        $region17: #{gnn_mix_forward.10} parent=15 // pred_check
          %p130 = pneg %p49
        $region18: #{gnn_mix_forward.10} parent=15 // pred_check_branch
          %132 = sbr.rel (%p130) target = $region20
        $region19: #{gnn_mix_forward.10} parent=15 // pred_region
          %s133 = sand.u32 %s39, 1
          %s134 = sand.u32 %s39, 1
          %s135 = smul.addr %s134, 256
          %s136 = scalar_lea.vmem [#allocation3], %s135
          %s137 = smul.u32 16, %s15
          %s138 = smul.u32 4, %s17
          %s139 = smul.addr %s137, 8
          %s140 = sadd.s32 %s138, %s139
          %s141 = smul.addr %s140, 4
          %s142 = scalar_lea.vmem %s0, %s141
          // Predicated region
          $region21: #{gnn_mix_forward.10} parent=19 // pred_check
            _
          $region22: #{gnn_mix_forward.10} parent=19 // pred_check_branch
            %144 = sbr.rel (0) target = $region24
          $region23: #{gnn_mix_forward.10} parent=19 // pred_region
            // Predicated region
            $region25: #{gnn_mix_forward.10} parent=23 // pred_check
              _
            $region26: #{gnn_mix_forward.10} parent=23 // pred_check_branch
              %146 = sbr.rel (0) target = $region28
            $region27: #{gnn_mix_forward.10} parent=23 // pred_region
              loop: start=0, step=1, limit=1
              $region29: #{gnn_mix_forward.10} parent=27 // loop_pre_header
                _
              $region30: #{gnn_mix_forward.10} parent=27 // loop_header
                %s148 = sphi 0, %s152
                %p149 = scmp.ge.s32.totalorder %s148, 1
                %s153 = sphi %s142, %s142
                %s154 = sphi %s136, %s136
              $region31: #{gnn_mix_forward.10} parent=27 // loop_header_branch
                %151 = sbr.rel (%p149) target = $region35
              $region32: #{gnn_mix_forward.10} parent=27 // loop_body
                %v155 = vld [vmem:[%s153] sm:$0xff]
                %156 = vst [vmem:[%s154] sm:$0xff] %v155
                %v157 = vld [vmem:[%s153 + $0x8] sm:$0xff]
                %158 = vst [vmem:[%s154 + $0x8] sm:$0xff] %v157
                %v159 = vld [vmem:[%s153 + $0x20] sm:$0xff]
                %160 = vst [vmem:[%s154 + $0x10] sm:$0xff] %v159
                %v161 = vld [vmem:[%s153 + $0x28] sm:$0xff]
                %162 = vst [vmem:[%s154 + $0x18] sm:$0xff] %v161
                %v163 = vld [vmem:[%s153 + $0x40] sm:$0xff]
                %164 = vst [vmem:[%s154 + $0x20] sm:$0xff] %v163
                %v165 = vld [vmem:[%s153 + $0x48] sm:$0xff]
                %166 = vst [vmem:[%s154 + $0x28] sm:$0xff] %v165
                %v167 = vld [vmem:[%s153 + $0x60] sm:$0xff]
                %168 = vst [vmem:[%s154 + $0x30] sm:$0xff] %v167
                %v169 = vld [vmem:[%s153 + $0x68] sm:$0xff]
                %170 = vst [vmem:[%s154 + $0x38] sm:$0xff] %v169
                %v171 = vld [vmem:[%s153 + $0x80] sm:$0xff]
                %172 = vst [vmem:[%s154 + $0x40] sm:$0xff] %v171
                %v173 = vld [vmem:[%s153 + $0x88] sm:$0xff]
                %174 = vst [vmem:[%s154 + $0x48] sm:$0xff] %v173
                %v175 = vld [vmem:[%s153 + $0xa0] sm:$0xff]
                %176 = vst [vmem:[%s154 + $0x50] sm:$0xff] %v175
                %v177 = vld [vmem:[%s153 + $0xa8] sm:$0xff]
                %178 = vst [vmem:[%s154 + $0x58] sm:$0xff] %v177
                %v179 = vld [vmem:[%s153 + $0xc0] sm:$0xff]
                %180 = vst [vmem:[%s154 + $0x60] sm:$0xff] %v179
                %v181 = vld [vmem:[%s153 + $0xc8] sm:$0xff]
                %182 = vst [vmem:[%s154 + $0x68] sm:$0xff] %v181
                %v183 = vld [vmem:[%s153 + $0xe0] sm:$0xff]
                %184 = vst [vmem:[%s154 + $0x70] sm:$0xff] %v183
                %v185 = vld [vmem:[%s153 + $0xe8] sm:$0xff]
                %186 = vst [vmem:[%s154 + $0x78] sm:$0xff] %v185
                %v187 = vld [vmem:[%s153 + $0x100] sm:$0xff]
                %188 = vst [vmem:[%s154 + $0x80] sm:$0xff] %v187
                %v189 = vld [vmem:[%s153 + $0x108] sm:$0xff]
                %190 = vst [vmem:[%s154 + $0x88] sm:$0xff] %v189
                %v191 = vld [vmem:[%s153 + $0x120] sm:$0xff]
                %192 = vst [vmem:[%s154 + $0x90] sm:$0xff] %v191
                %v193 = vld [vmem:[%s153 + $0x128] sm:$0xff]
                %194 = vst [vmem:[%s154 + $0x98] sm:$0xff] %v193
                %v195 = vld [vmem:[%s153 + $0x140] sm:$0xff]
                %196 = vst [vmem:[%s154 + $0xa0] sm:$0xff] %v195
                %v197 = vld [vmem:[%s153 + $0x148] sm:$0xff]
                %198 = vst [vmem:[%s154 + $0xa8] sm:$0xff] %v197
                %v199 = vld [vmem:[%s153 + $0x160] sm:$0xff]
                %200 = vst [vmem:[%s154 + $0xb0] sm:$0xff] %v199
                %v201 = vld [vmem:[%s153 + $0x168] sm:$0xff]
                %202 = vst [vmem:[%s154 + $0xb8] sm:$0xff] %v201
                %v203 = vld [vmem:[%s153 + $0x180] sm:$0xff]
                %204 = vst [vmem:[%s154 + $0xc0] sm:$0xff] %v203
                %v205 = vld [vmem:[%s153 + $0x188] sm:$0xff]
                %206 = vst [vmem:[%s154 + $0xc8] sm:$0xff] %v205
                %v207 = vld [vmem:[%s153 + $0x1a0] sm:$0xff]
                %208 = vst [vmem:[%s154 + $0xd0] sm:$0xff] %v207
                %v209 = vld [vmem:[%s153 + $0x1a8] sm:$0xff]
                %210 = vst [vmem:[%s154 + $0xd8] sm:$0xff] %v209
                %v211 = vld [vmem:[%s153 + $0x1c0] sm:$0xff]
                %212 = vst [vmem:[%s154 + $0xe0] sm:$0xff] %v211
                %v213 = vld [vmem:[%s153 + $0x1c8] sm:$0xff]
                %214 = vst [vmem:[%s154 + $0xe8] sm:$0xff] %v213
                %v215 = vld [vmem:[%s153 + $0x1e0] sm:$0xff]
                %216 = vst [vmem:[%s154 + $0xf0] sm:$0xff] %v215
                %v217 = vld [vmem:[%s153 + $0x1e8] sm:$0xff]
                %218 = vst [vmem:[%s154 + $0xf8] sm:$0xff] %v217
              $region33: #{gnn_mix_forward.10} parent=27 // loop_footer
                %s152 = sadd.s32 1, %s148
              $region34: #{gnn_mix_forward.10} parent=27 // loop_footer_branch
                %147 = sbr.rel target = $region30
              $region35: #{gnn_mix_forward.10} parent=27 // loop_exit
                _
            $region28: #{gnn_mix_forward.10} parent=23 // pred_fallthru
              _
            // Predicated region
            $region36: #{gnn_mix_forward.10} parent=23 // pred_check
              _
            $region37: #{gnn_mix_forward.10} parent=23 // pred_check_branch
              %220 = sbr.rel target = $region39
            $region38: #{gnn_mix_forward.10} parent=23 // pred_region
              _
            $region39: #{gnn_mix_forward.10} parent=23 // pred_fallthru
              _
          $region24: #{gnn_mix_forward.10} parent=19 // pred_fallthru
            _
          %221 = vnop
        $region20: #{gnn_mix_forward.10} parent=15 // pred_fallthru
          _
        // Predicated region
        $region40: #{gnn_mix_forward.10} parent=15 // pred_check
          %p222 = pneg %p77
        $region41: #{gnn_mix_forward.10} parent=15 // pred_check_branch
          %224 = sbr.rel (%p222) target = $region43
        $region42: #{gnn_mix_forward.10} parent=15 // pred_region
          %s225 = sand.u32 %s67, 1
          %s226 = sand.u32 %s67, 1
          %s227 = smul.addr %s226, 512
          %s228 = scalar_lea.vmem [#allocation4], %s227
          %s229 = smul.u32 64, %s17
          %s230 = smul.u32 2, %s16
          %s231 = smul.addr %s229, 4
          %s232 = sadd.s32 %s230, %s231
          %s233 = smul.addr %s232, 4
          %s234 = scalar_lea.vmem %s1, %s233
          // Predicated region
          $region44: #{gnn_mix_forward.10} parent=42 // pred_check
            _
          $region45: #{gnn_mix_forward.10} parent=42 // pred_check_branch
            %236 = sbr.rel (0) target = $region47
          $region46: #{gnn_mix_forward.10} parent=42 // pred_region
            // Predicated region
            $region48: #{gnn_mix_forward.10} parent=46 // pred_check
              _
            $region49: #{gnn_mix_forward.10} parent=46 // pred_check_branch
              %238 = sbr.rel (0) target = $region51
            $region50: #{gnn_mix_forward.10} parent=46 // pred_region
              // Predicated region
              $region63: #{gnn_mix_forward.10} parent=50 // pred_check
                _
              $region64: #{gnn_mix_forward.10} parent=50 // pred_check_branch
                %380 = sbr.rel (0) target = $region66
              $region65: #{gnn_mix_forward.10} parent=50 // pred_region
                loop: start=0, step=1, limit=1
                $region67: #{gnn_mix_forward.10} parent=65 // loop_pre_header
                  _
                $region68: #{gnn_mix_forward.10} parent=65 // loop_header
                  %s382 = sphi 0, %s386
                  %p383 = scmp.ge.s32.totalorder %s382, 1
                  %s387 = sphi %s234, %s234
                  %s388 = sphi %s228, %s228
                $region69: #{gnn_mix_forward.10} parent=65 // loop_header_branch
                  %385 = sbr.rel (%p383) target = $region73
                $region70: #{gnn_mix_forward.10} parent=65 // loop_body
                  %v389 = vld [vmem:[%s387] sm:$0xff]
                  %390 = vst [vmem:[%s388] sm:$0xff] %v389
                  %v391 = vld [vmem:[%s387 + $0x10] sm:$0xff]
                  %392 = vst [vmem:[%s388 + $0x8] sm:$0xff] %v391
                  %v393 = vld [vmem:[%s387 + $0x20] sm:$0xff]
                  %394 = vst [vmem:[%s388 + $0x10] sm:$0xff] %v393
                  %v395 = vld [vmem:[%s387 + $0x30] sm:$0xff]
                  %396 = vst [vmem:[%s388 + $0x18] sm:$0xff] %v395
                  %v397 = vld [vmem:[%s387 + $0x40] sm:$0xff]
                  %398 = vst [vmem:[%s388 + $0x20] sm:$0xff] %v397
                  %v399 = vld [vmem:[%s387 + $0x50] sm:$0xff]
                  %400 = vst [vmem:[%s388 + $0x28] sm:$0xff] %v399
                  %v401 = vld [vmem:[%s387 + $0x60] sm:$0xff]
                  %402 = vst [vmem:[%s388 + $0x30] sm:$0xff] %v401
                  %v403 = vld [vmem:[%s387 + $0x70] sm:$0xff]
                  %404 = vst [vmem:[%s388 + $0x38] sm:$0xff] %v403
                  %v405 = vld [vmem:[%s387 + $0x80] sm:$0xff]
                  %406 = vst [vmem:[%s388 + $0x40] sm:$0xff] %v405
                  %v407 = vld [vmem:[%s387 + $0x90] sm:$0xff]
                  %408 = vst [vmem:[%s388 + $0x48] sm:$0xff] %v407
                  %v409 = vld [vmem:[%s387 + $0xa0] sm:$0xff]
                  %410 = vst [vmem:[%s388 + $0x50] sm:$0xff] %v409
                  %v411 = vld [vmem:[%s387 + $0xb0] sm:$0xff]
                  %412 = vst [vmem:[%s388 + $0x58] sm:$0xff] %v411
                  %v413 = vld [vmem:[%s387 + $0xc0] sm:$0xff]
                  %414 = vst [vmem:[%s388 + $0x60] sm:$0xff] %v413
                  %v415 = vld [vmem:[%s387 + $0xd0] sm:$0xff]
                  %416 = vst [vmem:[%s388 + $0x68] sm:$0xff] %v415
                  %v417 = vld [vmem:[%s387 + $0xe0] sm:$0xff]
                  %418 = vst [vmem:[%s388 + $0x70] sm:$0xff] %v417
                  %v419 = vld [vmem:[%s387 + $0xf0] sm:$0xff]
                  %420 = vst [vmem:[%s388 + $0x78] sm:$0xff] %v419
                  %v421 = vld [vmem:[%s387 + $0x100] sm:$0xff]
                  %422 = vst [vmem:[%s388 + $0x80] sm:$0xff] %v421
                  %v423 = vld [vmem:[%s387 + $0x110] sm:$0xff]
                  %424 = vst [vmem:[%s388 + $0x88] sm:$0xff] %v423
                  %v425 = vld [vmem:[%s387 + $0x120] sm:$0xff]
                  %426 = vst [vmem:[%s388 + $0x90] sm:$0xff] %v425
                  %v427 = vld [vmem:[%s387 + $0x130] sm:$0xff]
                  %428 = vst [vmem:[%s388 + $0x98] sm:$0xff] %v427
                  %v429 = vld [vmem:[%s387 + $0x140] sm:$0xff]
                  %430 = vst [vmem:[%s388 + $0xa0] sm:$0xff] %v429
                  %v431 = vld [vmem:[%s387 + $0x150] sm:$0xff]
                  %432 = vst [vmem:[%s388 + $0xa8] sm:$0xff] %v431
                  %v433 = vld [vmem:[%s387 + $0x160] sm:$0xff]
                  %434 = vst [vmem:[%s388 + $0xb0] sm:$0xff] %v433
                  %v435 = vld [vmem:[%s387 + $0x170] sm:$0xff]
                  %436 = vst [vmem:[%s388 + $0xb8] sm:$0xff] %v435
                  %v437 = vld [vmem:[%s387 + $0x180] sm:$0xff]
                  %438 = vst [vmem:[%s388 + $0xc0] sm:$0xff] %v437
                  %v439 = vld [vmem:[%s387 + $0x190] sm:$0xff]
                  %440 = vst [vmem:[%s388 + $0xc8] sm:$0xff] %v439
                  %v441 = vld [vmem:[%s387 + $0x1a0] sm:$0xff]
                  %442 = vst [vmem:[%s388 + $0xd0] sm:$0xff] %v441
                  %v443 = vld [vmem:[%s387 + $0x1b0] sm:$0xff]
                  %444 = vst [vmem:[%s388 + $0xd8] sm:$0xff] %v443
                  %v445 = vld [vmem:[%s387 + $0x1c0] sm:$0xff]
                  %446 = vst [vmem:[%s388 + $0xe0] sm:$0xff] %v445
                  %v447 = vld [vmem:[%s387 + $0x1d0] sm:$0xff]
                  %448 = vst [vmem:[%s388 + $0xe8] sm:$0xff] %v447
                  %v449 = vld [vmem:[%s387 + $0x1e0] sm:$0xff]
                  %450 = vst [vmem:[%s388 + $0xf0] sm:$0xff] %v449
                  %v451 = vld [vmem:[%s387 + $0x1f0] sm:$0xff]
                  %452 = vst [vmem:[%s388 + $0xf8] sm:$0xff] %v451
                  %v453 = vld [vmem:[%s387 + $0x200] sm:$0xff]
                  %454 = vst [vmem:[%s388 + $0x100] sm:$0xff] %v453
                  %v455 = vld [vmem:[%s387 + $0x210] sm:$0xff]
                  %456 = vst [vmem:[%s388 + $0x108] sm:$0xff] %v455
                  %v457 = vld [vmem:[%s387 + $0x220] sm:$0xff]
                  %458 = vst [vmem:[%s388 + $0x110] sm:$0xff] %v457
                  %v459 = vld [vmem:[%s387 + $0x230] sm:$0xff]
                  %460 = vst [vmem:[%s388 + $0x118] sm:$0xff] %v459
                  %v461 = vld [vmem:[%s387 + $0x240] sm:$0xff]
                  %462 = vst [vmem:[%s388 + $0x120] sm:$0xff] %v461
                  %v463 = vld [vmem:[%s387 + $0x250] sm:$0xff]
                  %464 = vst [vmem:[%s388 + $0x128] sm:$0xff] %v463
                  %v465 = vld [vmem:[%s387 + $0x260] sm:$0xff]
                  %466 = vst [vmem:[%s388 + $0x130] sm:$0xff] %v465
                  %v467 = vld [vmem:[%s387 + $0x270] sm:$0xff]
                  %468 = vst [vmem:[%s388 + $0x138] sm:$0xff] %v467
                  %v469 = vld [vmem:[%s387 + $0x280] sm:$0xff]
                  %470 = vst [vmem:[%s388 + $0x140] sm:$0xff] %v469
                  %v471 = vld [vmem:[%s387 + $0x290] sm:$0xff]
                  %472 = vst [vmem:[%s388 + $0x148] sm:$0xff] %v471
                  %v473 = vld [vmem:[%s387 + $0x2a0] sm:$0xff]
                  %474 = vst [vmem:[%s388 + $0x150] sm:$0xff] %v473
                  %v475 = vld [vmem:[%s387 + $0x2b0] sm:$0xff]
                  %476 = vst [vmem:[%s388 + $0x158] sm:$0xff] %v475
                  %v477 = vld [vmem:[%s387 + $0x2c0] sm:$0xff]
                  %478 = vst [vmem:[%s388 + $0x160] sm:$0xff] %v477
                  %v479 = vld [vmem:[%s387 + $0x2d0] sm:$0xff]
                  %480 = vst [vmem:[%s388 + $0x168] sm:$0xff] %v479
                  %v481 = vld [vmem:[%s387 + $0x2e0] sm:$0xff]
                  %482 = vst [vmem:[%s388 + $0x170] sm:$0xff] %v481
                  %v483 = vld [vmem:[%s387 + $0x2f0] sm:$0xff]
                  %484 = vst [vmem:[%s388 + $0x178] sm:$0xff] %v483
                  %v485 = vld [vmem:[%s387 + $0x300] sm:$0xff]
                  %486 = vst [vmem:[%s388 + $0x180] sm:$0xff] %v485
                  %v487 = vld [vmem:[%s387 + $0x310] sm:$0xff]
                  %488 = vst [vmem:[%s388 + $0x188] sm:$0xff] %v487
                  %v489 = vld [vmem:[%s387 + $0x320] sm:$0xff]
                  %490 = vst [vmem:[%s388 + $0x190] sm:$0xff] %v489
                  %v491 = vld [vmem:[%s387 + $0x330] sm:$0xff]
                  %492 = vst [vmem:[%s388 + $0x198] sm:$0xff] %v491
                  %v493 = vld [vmem:[%s387 + $0x340] sm:$0xff]
                  %494 = vst [vmem:[%s388 + $0x1a0] sm:$0xff] %v493
                  %v495 = vld [vmem:[%s387 + $0x350] sm:$0xff]
                  %496 = vst [vmem:[%s388 + $0x1a8] sm:$0xff] %v495
                  %v497 = vld [vmem:[%s387 + $0x360] sm:$0xff]
                  %498 = vst [vmem:[%s388 + $0x1b0] sm:$0xff] %v497
                  %v499 = vld [vmem:[%s387 + $0x370] sm:$0xff]
                  %500 = vst [vmem:[%s388 + $0x1b8] sm:$0xff] %v499
                  %v501 = vld [vmem:[%s387 + $0x380] sm:$0xff]
                  %502 = vst [vmem:[%s388 + $0x1c0] sm:$0xff] %v501
                  %v503 = vld [vmem:[%s387 + $0x390] sm:$0xff]
                  %504 = vst [vmem:[%s388 + $0x1c8] sm:$0xff] %v503
                  %v505 = vld [vmem:[%s387 + $0x3a0] sm:$0xff]
                  %506 = vst [vmem:[%s388 + $0x1d0] sm:$0xff] %v505
                  %v507 = vld [vmem:[%s387 + $0x3b0] sm:$0xff]
                  %508 = vst [vmem:[%s388 + $0x1d8] sm:$0xff] %v507
                  %v509 = vld [vmem:[%s387 + $0x3c0] sm:$0xff]
                  %510 = vst [vmem:[%s388 + $0x1e0] sm:$0xff] %v509
                  %v511 = vld [vmem:[%s387 + $0x3d0] sm:$0xff]
                  %512 = vst [vmem:[%s388 + $0x1e8] sm:$0xff] %v511
                  %v513 = vld [vmem:[%s387 + $0x3e0] sm:$0xff]
                  %514 = vst [vmem:[%s388 + $0x1f0] sm:$0xff] %v513
                  %v515 = vld [vmem:[%s387 + $0x3f0] sm:$0xff]
                  %516 = vst [vmem:[%s388 + $0x1f8] sm:$0xff] %v515
                $region71: #{gnn_mix_forward.10} parent=65 // loop_footer
                  %s386 = sadd.s32 1, %s382
                $region72: #{gnn_mix_forward.10} parent=65 // loop_footer_branch
                  %381 = sbr.rel target = $region68
                $region73: #{gnn_mix_forward.10} parent=65 // loop_exit
                  _
              $region66: #{gnn_mix_forward.10} parent=50 // pred_fallthru
                _
              // Predicated region
              $region74: #{gnn_mix_forward.10} parent=50 // pred_check
                _
              $region75: #{gnn_mix_forward.10} parent=50 // pred_check_branch
                %518 = sbr.rel target = $region77
              $region76: #{gnn_mix_forward.10} parent=50 // pred_region
                _
              $region77: #{gnn_mix_forward.10} parent=50 // pred_fallthru
                _
            $region51: #{gnn_mix_forward.10} parent=46 // pred_fallthru
              _
            // Predicated region
            $region52: #{gnn_mix_forward.10} parent=46 // pred_check
              _
            $region53: #{gnn_mix_forward.10} parent=46 // pred_check_branch
              %240 = sbr.rel target = $region55
            $region54: #{gnn_mix_forward.10} parent=46 // pred_region
              %s242 = ssub.s32 256, 1
              loop: start=0, step=1, limit=1
              $region56: #{gnn_mix_forward.10} parent=54 // loop_pre_header
                _
              $region57: #{gnn_mix_forward.10} parent=54 // loop_header
                %s244 = sphi 0, %s248
                %p245 = scmp.ge.s32.totalorder %s244, 1
                %s249 = sphi %s234, %s234
                %s250 = sphi %s228, %s228
              $region58: #{gnn_mix_forward.10} parent=54 // loop_header_branch
                %247 = sbr.rel (%p245) target = $region62
              $region59: #{gnn_mix_forward.10} parent=54 // loop_body
                %v251 = vld [vmem:[%s249] sm:%s242]
                %252 = vst [vmem:[%s250] sm:%s242] %v251
                %v253 = vld [vmem:[%s249 + $0x10] sm:%s242]
                %254 = vst [vmem:[%s250 + $0x8] sm:%s242] %v253
                %v255 = vld [vmem:[%s249 + $0x20] sm:%s242]
                %256 = vst [vmem:[%s250 + $0x10] sm:%s242] %v255
                %v257 = vld [vmem:[%s249 + $0x30] sm:%s242]
                %258 = vst [vmem:[%s250 + $0x18] sm:%s242] %v257
                %v259 = vld [vmem:[%s249 + $0x40] sm:%s242]
                %260 = vst [vmem:[%s250 + $0x20] sm:%s242] %v259
                %v261 = vld [vmem:[%s249 + $0x50] sm:%s242]
                %262 = vst [vmem:[%s250 + $0x28] sm:%s242] %v261
                %v263 = vld [vmem:[%s249 + $0x60] sm:%s242]
                %264 = vst [vmem:[%s250 + $0x30] sm:%s242] %v263
                %v265 = vld [vmem:[%s249 + $0x70] sm:%s242]
                %266 = vst [vmem:[%s250 + $0x38] sm:%s242] %v265
                %v267 = vld [vmem:[%s249 + $0x80] sm:%s242]
                %268 = vst [vmem:[%s250 + $0x40] sm:%s242] %v267
                %v269 = vld [vmem:[%s249 + $0x90] sm:%s242]
                %270 = vst [vmem:[%s250 + $0x48] sm:%s242] %v269
                %v271 = vld [vmem:[%s249 + $0xa0] sm:%s242]
                %272 = vst [vmem:[%s250 + $0x50] sm:%s242] %v271
                %v273 = vld [vmem:[%s249 + $0xb0] sm:%s242]
                %274 = vst [vmem:[%s250 + $0x58] sm:%s242] %v273
                %v275 = vld [vmem:[%s249 + $0xc0] sm:%s242]
                %276 = vst [vmem:[%s250 + $0x60] sm:%s242] %v275
                %v277 = vld [vmem:[%s249 + $0xd0] sm:%s242]
                %278 = vst [vmem:[%s250 + $0x68] sm:%s242] %v277
                %v279 = vld [vmem:[%s249 + $0xe0] sm:%s242]
                %280 = vst [vmem:[%s250 + $0x70] sm:%s242] %v279
                %v281 = vld [vmem:[%s249 + $0xf0] sm:%s242]
                %282 = vst [vmem:[%s250 + $0x78] sm:%s242] %v281
                %v283 = vld [vmem:[%s249 + $0x100] sm:%s242]
                %284 = vst [vmem:[%s250 + $0x80] sm:%s242] %v283
                %v285 = vld [vmem:[%s249 + $0x110] sm:%s242]
                %286 = vst [vmem:[%s250 + $0x88] sm:%s242] %v285
                %v287 = vld [vmem:[%s249 + $0x120] sm:%s242]
                %288 = vst [vmem:[%s250 + $0x90] sm:%s242] %v287
                %v289 = vld [vmem:[%s249 + $0x130] sm:%s242]
                %290 = vst [vmem:[%s250 + $0x98] sm:%s242] %v289
                %v291 = vld [vmem:[%s249 + $0x140] sm:%s242]
                %292 = vst [vmem:[%s250 + $0xa0] sm:%s242] %v291
                %v293 = vld [vmem:[%s249 + $0x150] sm:%s242]
                %294 = vst [vmem:[%s250 + $0xa8] sm:%s242] %v293
                %v295 = vld [vmem:[%s249 + $0x160] sm:%s242]
                %296 = vst [vmem:[%s250 + $0xb0] sm:%s242] %v295
                %v297 = vld [vmem:[%s249 + $0x170] sm:%s242]
                %298 = vst [vmem:[%s250 + $0xb8] sm:%s242] %v297
                %v299 = vld [vmem:[%s249 + $0x180] sm:%s242]
                %300 = vst [vmem:[%s250 + $0xc0] sm:%s242] %v299
                %v301 = vld [vmem:[%s249 + $0x190] sm:%s242]
                %302 = vst [vmem:[%s250 + $0xc8] sm:%s242] %v301
                %v303 = vld [vmem:[%s249 + $0x1a0] sm:%s242]
                %304 = vst [vmem:[%s250 + $0xd0] sm:%s242] %v303
                %v305 = vld [vmem:[%s249 + $0x1b0] sm:%s242]
                %306 = vst [vmem:[%s250 + $0xd8] sm:%s242] %v305
                %v307 = vld [vmem:[%s249 + $0x1c0] sm:%s242]
                %308 = vst [vmem:[%s250 + $0xe0] sm:%s242] %v307
                %v309 = vld [vmem:[%s249 + $0x1d0] sm:%s242]
                %310 = vst [vmem:[%s250 + $0xe8] sm:%s242] %v309
                %v311 = vld [vmem:[%s249 + $0x1e0] sm:%s242]
                %312 = vst [vmem:[%s250 + $0xf0] sm:%s242] %v311
                %v313 = vld [vmem:[%s249 + $0x1f0] sm:%s242]
                %314 = vst [vmem:[%s250 + $0xf8] sm:%s242] %v313
                %v315 = vld [vmem:[%s249 + $0x200] sm:%s242]
                %316 = vst [vmem:[%s250 + $0x100] sm:%s242] %v315
                %v317 = vld [vmem:[%s249 + $0x210] sm:%s242]
                %318 = vst [vmem:[%s250 + $0x108] sm:%s242] %v317
                %v319 = vld [vmem:[%s249 + $0x220] sm:%s242]
                %320 = vst [vmem:[%s250 + $0x110] sm:%s242] %v319
                %v321 = vld [vmem:[%s249 + $0x230] sm:%s242]
                %322 = vst [vmem:[%s250 + $0x118] sm:%s242] %v321
                %v323 = vld [vmem:[%s249 + $0x240] sm:%s242]
                %324 = vst [vmem:[%s250 + $0x120] sm:%s242] %v323
                %v325 = vld [vmem:[%s249 + $0x250] sm:%s242]
                %326 = vst [vmem:[%s250 + $0x128] sm:%s242] %v325
                %v327 = vld [vmem:[%s249 + $0x260] sm:%s242]
                %328 = vst [vmem:[%s250 + $0x130] sm:%s242] %v327
                %v329 = vld [vmem:[%s249 + $0x270] sm:%s242]
                %330 = vst [vmem:[%s250 + $0x138] sm:%s242] %v329
                %v331 = vld [vmem:[%s249 + $0x280] sm:%s242]
                %332 = vst [vmem:[%s250 + $0x140] sm:%s242] %v331
                %v333 = vld [vmem:[%s249 + $0x290] sm:%s242]
                %334 = vst [vmem:[%s250 + $0x148] sm:%s242] %v333
                %v335 = vld [vmem:[%s249 + $0x2a0] sm:%s242]
                %336 = vst [vmem:[%s250 + $0x150] sm:%s242] %v335
                %v337 = vld [vmem:[%s249 + $0x2b0] sm:%s242]
                %338 = vst [vmem:[%s250 + $0x158] sm:%s242] %v337
                %v339 = vld [vmem:[%s249 + $0x2c0] sm:%s242]
                %340 = vst [vmem:[%s250 + $0x160] sm:%s242] %v339
                %v341 = vld [vmem:[%s249 + $0x2d0] sm:%s242]
                %342 = vst [vmem:[%s250 + $0x168] sm:%s242] %v341
                %v343 = vld [vmem:[%s249 + $0x2e0] sm:%s242]
                %344 = vst [vmem:[%s250 + $0x170] sm:%s242] %v343
                %v345 = vld [vmem:[%s249 + $0x2f0] sm:%s242]
                %346 = vst [vmem:[%s250 + $0x178] sm:%s242] %v345
                %v347 = vld [vmem:[%s249 + $0x300] sm:%s242]
                %348 = vst [vmem:[%s250 + $0x180] sm:%s242] %v347
                %v349 = vld [vmem:[%s249 + $0x310] sm:%s242]
                %350 = vst [vmem:[%s250 + $0x188] sm:%s242] %v349
                %v351 = vld [vmem:[%s249 + $0x320] sm:%s242]
                %352 = vst [vmem:[%s250 + $0x190] sm:%s242] %v351
                %v353 = vld [vmem:[%s249 + $0x330] sm:%s242]
                %354 = vst [vmem:[%s250 + $0x198] sm:%s242] %v353
                %v355 = vld [vmem:[%s249 + $0x340] sm:%s242]
                %356 = vst [vmem:[%s250 + $0x1a0] sm:%s242] %v355
                %v357 = vld [vmem:[%s249 + $0x350] sm:%s242]
                %358 = vst [vmem:[%s250 + $0x1a8] sm:%s242] %v357
                %v359 = vld [vmem:[%s249 + $0x360] sm:%s242]
                %360 = vst [vmem:[%s250 + $0x1b0] sm:%s242] %v359
                %v361 = vld [vmem:[%s249 + $0x370] sm:%s242]
                %362 = vst [vmem:[%s250 + $0x1b8] sm:%s242] %v361
                %v363 = vld [vmem:[%s249 + $0x380] sm:%s242]
                %364 = vst [vmem:[%s250 + $0x1c0] sm:%s242] %v363
                %v365 = vld [vmem:[%s249 + $0x390] sm:%s242]
                %366 = vst [vmem:[%s250 + $0x1c8] sm:%s242] %v365
                %v367 = vld [vmem:[%s249 + $0x3a0] sm:%s242]
                %368 = vst [vmem:[%s250 + $0x1d0] sm:%s242] %v367
                %v369 = vld [vmem:[%s249 + $0x3b0] sm:%s242]
                %370 = vst [vmem:[%s250 + $0x1d8] sm:%s242] %v369
                %v371 = vld [vmem:[%s249 + $0x3c0] sm:%s242]
                %372 = vst [vmem:[%s250 + $0x1e0] sm:%s242] %v371
                %v373 = vld [vmem:[%s249 + $0x3d0] sm:%s242]
                %374 = vst [vmem:[%s250 + $0x1e8] sm:%s242] %v373
                %v375 = vld [vmem:[%s249 + $0x3e0] sm:%s242]
                %376 = vst [vmem:[%s250 + $0x1f0] sm:%s242] %v375
                %v377 = vld [vmem:[%s249 + $0x3f0] sm:%s242]
                %378 = vst [vmem:[%s250 + $0x1f8] sm:%s242] %v377
              $region60: #{gnn_mix_forward.10} parent=54 // loop_footer
                %s248 = sadd.s32 1, %s244
              $region61: #{gnn_mix_forward.10} parent=54 // loop_footer_branch
                %243 = sbr.rel target = $region57
              $region62: #{gnn_mix_forward.10} parent=54 // loop_exit
                _
            $region55: #{gnn_mix_forward.10} parent=46 // pred_fallthru
              _
          $region47: #{gnn_mix_forward.10} parent=42 // pred_fallthru
            _
          %519 = vnop
        $region43: #{gnn_mix_forward.10} parent=15 // pred_fallthru
          _
      $region16: #{gnn_mix_forward.10} parent=5 // pred_fallthru
        _
      %p520 = scmp.le.s32.totalorder 1, %s8
      %p521 = scmp.lt.s32.totalorder %s8, 5
      %p522 = pnand %p520, %p521
      %p523 = pneg %p522
      // Predicated region
      $region78: #{gnn_mix_forward.10} parent=5 // pred_check
        _
      $region79: #{gnn_mix_forward.10} parent=5 // pred_check_branch
        %525 = sbr.rel (%p522) target = $region81
      $region80: #{gnn_mix_forward.10} parent=5 // pred_region
        %s526 = ssub.s32 %s8, 1
        %s527 = sand.u32 %s42, 1
        %s528 = sand.u32 %s42, 1
        %s529 = smul.addr %s528, 256
        %s530 = scalar_lea.vmem [#allocation3], %s529
        // Predicated region
        $region82: #{gnn_mix_forward.10} parent=80 // pred_check
          %p531 = pneg %p55
        $region83: #{gnn_mix_forward.10} parent=80 // pred_check_branch
          %533 = sbr.rel (%p531) target = $region85
        $region84: #{gnn_mix_forward.10} parent=80 // pred_region
          _
        $region85: #{gnn_mix_forward.10} parent=80 // pred_fallthru
          _
        %s534 = sand.u32 %s70, 1
        %s535 = sand.u32 %s70, 1
        %s536 = smul.addr %s535, 512
        %s537 = scalar_lea.vmem [#allocation4], %s536
        // Predicated region
        $region86: #{gnn_mix_forward.10} parent=80 // pred_check
          %p538 = pneg %p83
        $region87: #{gnn_mix_forward.10} parent=80 // pred_check_branch
          %540 = sbr.rel (%p538) target = $region89
        $region88: #{gnn_mix_forward.10} parent=80 // pred_region
          _
        $region89: #{gnn_mix_forward.10} parent=80 // pred_fallthru
          _
        %s541 = sand.u32 %s42, 1
        %s542 = sand.u32 %s42, 1
        %s543 = smul.addr %s542, 256
        %s544 = scalar_lea.vmem [#allocation3], %s543
        %p545 = pneg %p55
        %p546 = pneg %p52
        %s547 = sand.u32 %s70, 1
        %s548 = sand.u32 %s70, 1
        %s549 = smul.addr %s548, 512
        %s550 = scalar_lea.vmem [#allocation4], %s549
        %p551 = pneg %p83
        %p552 = pneg %p80
        %p553 = pneg %p111
        %p554 = pneg %p108
        %s555 = sand.u32 %s98, 1
        %s556 = sand.u32 %s98, 1
        %s557 = smul.addr %s556, 128
        %s558 = scalar_lea.vmem [#allocation5], %s557
        %s559 = smul.u32 16, %s18
        %s560 = smul.u32 4, %s20
        %s561 = smul.u32 64, %s20
        %s562 = smul.u32 2, %s19
        %s563 = smul.u32 16, %s18
        %s564 = smul.u32 2, %s19
        %p565 = scmp.eq.s32.totalorder %s20, 0
        // Predicated region
        $region90: #{gnn_mix_forward.10} parent=80 // pred_check
          %p566 = pneg %p565
        $region91: #{gnn_mix_forward.10} parent=80 // pred_check_branch
          %568 = sbr.rel (%p566) target = $region93
        $region92: #{gnn_mix_forward.10} parent=80 // pred_region
          %569 = vst [vmem:[#allocation2] sm:$0xff] 0.0
          %570 = vst [vmem:[#allocation2 + $0x8] sm:$0xff] 0.0
          %571 = vst [vmem:[#allocation2 + $0x10] sm:$0xff] 0.0
          %572 = vst [vmem:[#allocation2 + $0x18] sm:$0xff] 0.0
          %573 = vst [vmem:[#allocation2 + $0x20] sm:$0xff] 0.0
          %574 = vst [vmem:[#allocation2 + $0x28] sm:$0xff] 0.0
          %575 = vst [vmem:[#allocation2 + $0x30] sm:$0xff] 0.0
          %576 = vst [vmem:[#allocation2 + $0x38] sm:$0xff] 0.0
          %577 = vst [vmem:[#allocation2 + $0x40] sm:$0xff] 0.0
          %578 = vst [vmem:[#allocation2 + $0x48] sm:$0xff] 0.0
          %579 = vst [vmem:[#allocation2 + $0x50] sm:$0xff] 0.0
          %580 = vst [vmem:[#allocation2 + $0x58] sm:$0xff] 0.0
          %581 = vst [vmem:[#allocation2 + $0x60] sm:$0xff] 0.0
          %582 = vst [vmem:[#allocation2 + $0x68] sm:$0xff] 0.0
          %583 = vst [vmem:[#allocation2 + $0x70] sm:$0xff] 0.0
          %584 = vst [vmem:[#allocation2 + $0x78] sm:$0xff] 0.0
          %585 = vst [vmem:[#allocation2 + $0x80] sm:$0xff] 0.0
          %586 = vst [vmem:[#allocation2 + $0x88] sm:$0xff] 0.0
          %587 = vst [vmem:[#allocation2 + $0x90] sm:$0xff] 0.0
          %588 = vst [vmem:[#allocation2 + $0x98] sm:$0xff] 0.0
          %589 = vst [vmem:[#allocation2 + $0xa0] sm:$0xff] 0.0
          %590 = vst [vmem:[#allocation2 + $0xa8] sm:$0xff] 0.0
          %591 = vst [vmem:[#allocation2 + $0xb0] sm:$0xff] 0.0
          %592 = vst [vmem:[#allocation2 + $0xb8] sm:$0xff] 0.0
          %593 = vst [vmem:[#allocation2 + $0xc0] sm:$0xff] 0.0
          %594 = vst [vmem:[#allocation2 + $0xc8] sm:$0xff] 0.0
          %595 = vst [vmem:[#allocation2 + $0xd0] sm:$0xff] 0.0
          %596 = vst [vmem:[#allocation2 + $0xd8] sm:$0xff] 0.0
          %597 = vst [vmem:[#allocation2 + $0xe0] sm:$0xff] 0.0
          %598 = vst [vmem:[#allocation2 + $0xe8] sm:$0xff] 0.0
          %599 = vst [vmem:[#allocation2 + $0xf0] sm:$0xff] 0.0
          %600 = vst [vmem:[#allocation2 + $0xf8] sm:$0xff] 0.0
        $region93: #{gnn_mix_forward.10} parent=80 // pred_fallthru
          _
        %v601 = vld [vmem:[#allocation2] sm:$0xff]
        %v602 = vld [vmem:[#allocation2 + $0x8] sm:$0xff]
        %v603 = vld [vmem:[#allocation2 + $0x10] sm:$0xff]
        %v604 = vld [vmem:[#allocation2 + $0x18] sm:$0xff]
        %v605 = vld [vmem:[#allocation2 + $0x20] sm:$0xff]
        %v606 = vld [vmem:[#allocation2 + $0x28] sm:$0xff]
        %v607 = vld [vmem:[#allocation2 + $0x30] sm:$0xff]
        %v608 = vld [vmem:[#allocation2 + $0x38] sm:$0xff]
        %v609 = vld [vmem:[#allocation2 + $0x40] sm:$0xff]
        %v610 = vld [vmem:[#allocation2 + $0x48] sm:$0xff]
        %v611 = vld [vmem:[#allocation2 + $0x50] sm:$0xff]
        %v612 = vld [vmem:[#allocation2 + $0x58] sm:$0xff]
        %v613 = vld [vmem:[#allocation2 + $0x60] sm:$0xff]
        %v614 = vld [vmem:[#allocation2 + $0x68] sm:$0xff]
        %v615 = vld [vmem:[#allocation2 + $0x70] sm:$0xff]
        %v616 = vld [vmem:[#allocation2 + $0x78] sm:$0xff]
        %v617 = vld [vmem:[#allocation2 + $0x80] sm:$0xff]
        %v618 = vld [vmem:[#allocation2 + $0x88] sm:$0xff]
        %v619 = vld [vmem:[#allocation2 + $0x90] sm:$0xff]
        %v620 = vld [vmem:[#allocation2 + $0x98] sm:$0xff]
        %v621 = vld [vmem:[#allocation2 + $0xa0] sm:$0xff]
        %v622 = vld [vmem:[#allocation2 + $0xa8] sm:$0xff]
        %v623 = vld [vmem:[#allocation2 + $0xb0] sm:$0xff]
        %v624 = vld [vmem:[#allocation2 + $0xb8] sm:$0xff]
        %v625 = vld [vmem:[#allocation2 + $0xc0] sm:$0xff]
        %v626 = vld [vmem:[#allocation2 + $0xc8] sm:$0xff]
        %v627 = vld [vmem:[#allocation2 + $0xd0] sm:$0xff]
        %v628 = vld [vmem:[#allocation2 + $0xd8] sm:$0xff]
        %v629 = vld [vmem:[#allocation2 + $0xe0] sm:$0xff]
        %v630 = vld [vmem:[#allocation2 + $0xe8] sm:$0xff]
        %v631 = vld [vmem:[#allocation2 + $0xf0] sm:$0xff]
        %v632 = vld [vmem:[#allocation2 + $0xf8] sm:$0xff]
        %v633 = vld [vmem:[%s530] sm:$0xff]
        %v634 = vld [vmem:[%s530 + $0x8] sm:$0xff]
        %v635 = vld [vmem:[%s530 + $0x10] sm:$0xff]
        %v636 = vld [vmem:[%s530 + $0x18] sm:$0xff]
        %v637 = vld [vmem:[%s530 + $0x20] sm:$0xff]
        %v638 = vld [vmem:[%s530 + $0x28] sm:$0xff]
        %v639 = vld [vmem:[%s530 + $0x30] sm:$0xff]
        %v640 = vld [vmem:[%s530 + $0x38] sm:$0xff]
        %v641 = vld [vmem:[%s530 + $0x40] sm:$0xff]
        %v642 = vld [vmem:[%s530 + $0x48] sm:$0xff]
        %v643 = vld [vmem:[%s530 + $0x50] sm:$0xff]
        %v644 = vld [vmem:[%s530 + $0x58] sm:$0xff]
        %v645 = vld [vmem:[%s530 + $0x60] sm:$0xff]
        %v646 = vld [vmem:[%s530 + $0x68] sm:$0xff]
        %v647 = vld [vmem:[%s530 + $0x70] sm:$0xff]
        %v648 = vld [vmem:[%s530 + $0x78] sm:$0xff]
        %v649 = vld [vmem:[%s530 + $0x80] sm:$0xff]
        %v650 = vld [vmem:[%s530 + $0x88] sm:$0xff]
        %v651 = vld [vmem:[%s530 + $0x90] sm:$0xff]
        %v652 = vld [vmem:[%s530 + $0x98] sm:$0xff]
        %v653 = vld [vmem:[%s530 + $0xa0] sm:$0xff]
        %v654 = vld [vmem:[%s530 + $0xa8] sm:$0xff]
        %v655 = vld [vmem:[%s530 + $0xb0] sm:$0xff]
        %v656 = vld [vmem:[%s530 + $0xb8] sm:$0xff]
        %v657 = vld [vmem:[%s530 + $0xc0] sm:$0xff]
        %v658 = vld [vmem:[%s530 + $0xc8] sm:$0xff]
        %v659 = vld [vmem:[%s530 + $0xd0] sm:$0xff]
        %v660 = vld [vmem:[%s530 + $0xd8] sm:$0xff]
        %v661 = vld [vmem:[%s530 + $0xe0] sm:$0xff]
        %v662 = vld [vmem:[%s530 + $0xe8] sm:$0xff]
        %v663 = vld [vmem:[%s530 + $0xf0] sm:$0xff]
        %v664 = vld [vmem:[%s530 + $0xf8] sm:$0xff]
        %v665 = vld [vmem:[%s537] sm:$0xff]
        %v666 = vld [vmem:[%s537 + $0x8] sm:$0xff]
        %v667 = vld [vmem:[%s537 + $0x10] sm:$0xff]
        %v668 = vld [vmem:[%s537 + $0x18] sm:$0xff]
        %v669 = vld [vmem:[%s537 + $0x20] sm:$0xff]
        %v670 = vld [vmem:[%s537 + $0x28] sm:$0xff]
        %v671 = vld [vmem:[%s537 + $0x30] sm:$0xff]
        %v672 = vld [vmem:[%s537 + $0x38] sm:$0xff]
        %v673 = vld [vmem:[%s537 + $0x40] sm:$0xff]
        %v674 = vld [vmem:[%s537 + $0x48] sm:$0xff]
        %v675 = vld [vmem:[%s537 + $0x50] sm:$0xff]
        %v676 = vld [vmem:[%s537 + $0x58] sm:$0xff]
        %v677 = vld [vmem:[%s537 + $0x60] sm:$0xff]
        %v678 = vld [vmem:[%s537 + $0x68] sm:$0xff]
        %v679 = vld [vmem:[%s537 + $0x70] sm:$0xff]
        %v680 = vld [vmem:[%s537 + $0x78] sm:$0xff]
        %v681 = vld [vmem:[%s537 + $0x80] sm:$0xff]
        %v682 = vld [vmem:[%s537 + $0x88] sm:$0xff]
        %v683 = vld [vmem:[%s537 + $0x90] sm:$0xff]
        %v684 = vld [vmem:[%s537 + $0x98] sm:$0xff]
        %v685 = vld [vmem:[%s537 + $0xa0] sm:$0xff]
        %v686 = vld [vmem:[%s537 + $0xa8] sm:$0xff]
        %v687 = vld [vmem:[%s537 + $0xb0] sm:$0xff]
        %v688 = vld [vmem:[%s537 + $0xb8] sm:$0xff]
        %v689 = vld [vmem:[%s537 + $0xc0] sm:$0xff]
        %v690 = vld [vmem:[%s537 + $0xc8] sm:$0xff]
        %v691 = vld [vmem:[%s537 + $0xd0] sm:$0xff]
        %v692 = vld [vmem:[%s537 + $0xd8] sm:$0xff]
        %v693 = vld [vmem:[%s537 + $0xe0] sm:$0xff]
        %v694 = vld [vmem:[%s537 + $0xe8] sm:$0xff]
        %v695 = vld [vmem:[%s537 + $0xf0] sm:$0xff]
        %v696 = vld [vmem:[%s537 + $0xf8] sm:$0xff]
        %v697 = vld [vmem:[%s537 + $0x100] sm:$0xff]
        %v698 = vld [vmem:[%s537 + $0x108] sm:$0xff]
        %v699 = vld [vmem:[%s537 + $0x110] sm:$0xff]
        %v700 = vld [vmem:[%s537 + $0x118] sm:$0xff]
        %v701 = vld [vmem:[%s537 + $0x120] sm:$0xff]
        %v702 = vld [vmem:[%s537 + $0x128] sm:$0xff]
        %v703 = vld [vmem:[%s537 + $0x130] sm:$0xff]
        %v704 = vld [vmem:[%s537 + $0x138] sm:$0xff]
        %v705 = vld [vmem:[%s537 + $0x140] sm:$0xff]
        %v706 = vld [vmem:[%s537 + $0x148] sm:$0xff]
        %v707 = vld [vmem:[%s537 + $0x150] sm:$0xff]
        %v708 = vld [vmem:[%s537 + $0x158] sm:$0xff]
        %v709 = vld [vmem:[%s537 + $0x160] sm:$0xff]
        %v710 = vld [vmem:[%s537 + $0x168] sm:$0xff]
        %v711 = vld [vmem:[%s537 + $0x170] sm:$0xff]
        %v712 = vld [vmem:[%s537 + $0x178] sm:$0xff]
        %v713 = vld [vmem:[%s537 + $0x180] sm:$0xff]
        %v714 = vld [vmem:[%s537 + $0x188] sm:$0xff]
        %v715 = vld [vmem:[%s537 + $0x190] sm:$0xff]
        %v716 = vld [vmem:[%s537 + $0x198] sm:$0xff]
        %v717 = vld [vmem:[%s537 + $0x1a0] sm:$0xff]
        %v718 = vld [vmem:[%s537 + $0x1a8] sm:$0xff]
        %v719 = vld [vmem:[%s537 + $0x1b0] sm:$0xff]
        %v720 = vld [vmem:[%s537 + $0x1b8] sm:$0xff]
        %v721 = vld [vmem:[%s537 + $0x1c0] sm:$0xff]
        %v722 = vld [vmem:[%s537 + $0x1c8] sm:$0xff]
        %v723 = vld [vmem:[%s537 + $0x1d0] sm:$0xff]
        %v724 = vld [vmem:[%s537 + $0x1d8] sm:$0xff]
        %v725 = vld [vmem:[%s537 + $0x1e0] sm:$0xff]
        %v726 = vld [vmem:[%s537 + $0x1e8] sm:$0xff]
        %v727 = vld [vmem:[%s537 + $0x1f0] sm:$0xff]
        %v728 = vld [vmem:[%s537 + $0x1f8] sm:$0xff]
        %v761 = vunpack.c.l.b16 %v633
        %v762 = vunpack.c.h.b16 %v633
        %v763 = vunpack.c.l.b16 %v634
        %v764 = vunpack.c.h.b16 %v634
        %v765 = vunpack.c.l.b16 %v635
        %v766 = vunpack.c.h.b16 %v635
        %v767 = vunpack.c.l.b16 %v636
        %v768 = vunpack.c.h.b16 %v636
        %v769 = vunpack.c.l.b16 %v637
        %v770 = vunpack.c.h.b16 %v637
        %v771 = vunpack.c.l.b16 %v638
        %v772 = vunpack.c.h.b16 %v638
        %v773 = vunpack.c.l.b16 %v639
        %v774 = vunpack.c.h.b16 %v639
        %v775 = vunpack.c.l.b16 %v640
        %v776 = vunpack.c.h.b16 %v640
        %v777 = vunpack.c.l.b16 %v641
        %v778 = vunpack.c.h.b16 %v641
        %v779 = vunpack.c.l.b16 %v642
        %v780 = vunpack.c.h.b16 %v642
        %v781 = vunpack.c.l.b16 %v643
        %v782 = vunpack.c.h.b16 %v643
        %v783 = vunpack.c.l.b16 %v644
        %v784 = vunpack.c.h.b16 %v644
        %v785 = vunpack.c.l.b16 %v645
        %v786 = vunpack.c.h.b16 %v645
        %v787 = vunpack.c.l.b16 %v646
        %v788 = vunpack.c.h.b16 %v646
        %v789 = vunpack.c.l.b16 %v647
        %v790 = vunpack.c.h.b16 %v647
        %v791 = vunpack.c.l.b16 %v648
        %v792 = vunpack.c.h.b16 %v648
        %v793 = vunpack.c.l.b16 %v649
        %v794 = vunpack.c.h.b16 %v649
        %v795 = vunpack.c.l.b16 %v650
        %v796 = vunpack.c.h.b16 %v650
        %v797 = vunpack.c.l.b16 %v651
        %v798 = vunpack.c.h.b16 %v651
        %v799 = vunpack.c.l.b16 %v652
        %v800 = vunpack.c.h.b16 %v652
        %v801 = vunpack.c.l.b16 %v653
        %v802 = vunpack.c.h.b16 %v653
        %v803 = vunpack.c.l.b16 %v654
        %v804 = vunpack.c.h.b16 %v654
        %v805 = vunpack.c.l.b16 %v655
        %v806 = vunpack.c.h.b16 %v655
        %v807 = vunpack.c.l.b16 %v656
        %v808 = vunpack.c.h.b16 %v656
        %v809 = vunpack.c.l.b16 %v657
        %v810 = vunpack.c.h.b16 %v657
        %v811 = vunpack.c.l.b16 %v658
        %v812 = vunpack.c.h.b16 %v658
        %v813 = vunpack.c.l.b16 %v659
        %v814 = vunpack.c.h.b16 %v659
        %v815 = vunpack.c.l.b16 %v660
        %v816 = vunpack.c.h.b16 %v660
        %v817 = vunpack.c.l.b16 %v661
        %v818 = vunpack.c.h.b16 %v661
        %v819 = vunpack.c.l.b16 %v662
        %v820 = vunpack.c.h.b16 %v662
        %v821 = vunpack.c.l.b16 %v663
        %v822 = vunpack.c.h.b16 %v663
        %v823 = vunpack.c.l.b16 %v664
        %v824 = vunpack.c.h.b16 %v664
        %v825 = vpack.c.b16 %v765, %v761
        %v826 = vpack.c.b16 %v766, %v762
        %v827 = vpack.c.b16 %v767, %v763
        %v828 = vpack.c.b16 %v768, %v764
        %v829 = vpack.c.b16 %v773, %v769
        %v830 = vpack.c.b16 %v774, %v770
        %v831 = vpack.c.b16 %v775, %v771
        %v832 = vpack.c.b16 %v776, %v772
        %v833 = vpack.c.b16 %v781, %v777
        %v834 = vpack.c.b16 %v782, %v778
        %v835 = vpack.c.b16 %v783, %v779
        %v836 = vpack.c.b16 %v784, %v780
        %v837 = vpack.c.b16 %v789, %v785
        %v838 = vpack.c.b16 %v790, %v786
        %v839 = vpack.c.b16 %v791, %v787
        %v840 = vpack.c.b16 %v792, %v788
        %v841 = vpack.c.b16 %v797, %v793
        %v842 = vpack.c.b16 %v798, %v794
        %v843 = vpack.c.b16 %v799, %v795
        %v844 = vpack.c.b16 %v800, %v796
        %v845 = vpack.c.b16 %v805, %v801
        %v846 = vpack.c.b16 %v806, %v802
        %v847 = vpack.c.b16 %v807, %v803
        %v848 = vpack.c.b16 %v808, %v804
        %v849 = vpack.c.b16 %v813, %v809
        %v850 = vpack.c.b16 %v814, %v810
        %v851 = vpack.c.b16 %v815, %v811
        %v852 = vpack.c.b16 %v816, %v812
        %v853 = vpack.c.b16 %v821, %v817
        %v854 = vpack.c.b16 %v822, %v818
        %v855 = vpack.c.b16 %v823, %v819
        %v856 = vpack.c.b16 %v824, %v820
        %v953 = vunpack.c.l.b16 %v665
        %v954 = vunpack.c.h.b16 %v665
        %v955 = vunpack.c.l.b16 %v666
        %v956 = vunpack.c.h.b16 %v666
        %v957 = vunpack.c.l.b16 %v667
        %v958 = vunpack.c.h.b16 %v667
        %v959 = vunpack.c.l.b16 %v668
        %v960 = vunpack.c.h.b16 %v668
        %v961 = vunpack.c.l.b16 %v669
        %v962 = vunpack.c.h.b16 %v669
        %v963 = vunpack.c.l.b16 %v670
        %v964 = vunpack.c.h.b16 %v670
        %v965 = vunpack.c.l.b16 %v671
        %v966 = vunpack.c.h.b16 %v671
        %v967 = vunpack.c.l.b16 %v672
        %v968 = vunpack.c.h.b16 %v672
        %v969 = vunpack.c.l.b16 %v673
        %v970 = vunpack.c.h.b16 %v673
        %v971 = vunpack.c.l.b16 %v674
        %v972 = vunpack.c.h.b16 %v674
        %v973 = vunpack.c.l.b16 %v675
        %v974 = vunpack.c.h.b16 %v675
        %v975 = vunpack.c.l.b16 %v676
        %v976 = vunpack.c.h.b16 %v676
        %v977 = vunpack.c.l.b16 %v677
        %v978 = vunpack.c.h.b16 %v677
        %v979 = vunpack.c.l.b16 %v678
        %v980 = vunpack.c.h.b16 %v678
        %v981 = vunpack.c.l.b16 %v679
        %v982 = vunpack.c.h.b16 %v679
        %v983 = vunpack.c.l.b16 %v680
        %v984 = vunpack.c.h.b16 %v680
        %v985 = vunpack.c.l.b16 %v681
        %v986 = vunpack.c.h.b16 %v681
        %v987 = vunpack.c.l.b16 %v682
        %v988 = vunpack.c.h.b16 %v682
        %v989 = vunpack.c.l.b16 %v683
        %v990 = vunpack.c.h.b16 %v683
        %v991 = vunpack.c.l.b16 %v684
        %v992 = vunpack.c.h.b16 %v684
        %v993 = vunpack.c.l.b16 %v685
        %v994 = vunpack.c.h.b16 %v685
        %v995 = vunpack.c.l.b16 %v686
        %v996 = vunpack.c.h.b16 %v686
        %v997 = vunpack.c.l.b16 %v687
        %v998 = vunpack.c.h.b16 %v687
        %v999 = vunpack.c.l.b16 %v688
        %v1000 = vunpack.c.h.b16 %v688
        %v1001 = vunpack.c.l.b16 %v689
        %v1002 = vunpack.c.h.b16 %v689
        %v1003 = vunpack.c.l.b16 %v690
        %v1004 = vunpack.c.h.b16 %v690
        %v1005 = vunpack.c.l.b16 %v691
        %v1006 = vunpack.c.h.b16 %v691
        %v1007 = vunpack.c.l.b16 %v692
        %v1008 = vunpack.c.h.b16 %v692
        %v1009 = vunpack.c.l.b16 %v693
        %v1010 = vunpack.c.h.b16 %v693
        %v1011 = vunpack.c.l.b16 %v694
        %v1012 = vunpack.c.h.b16 %v694
        %v1013 = vunpack.c.l.b16 %v695
        %v1014 = vunpack.c.h.b16 %v695
        %v1015 = vunpack.c.l.b16 %v696
        %v1016 = vunpack.c.h.b16 %v696
        %v1017 = vunpack.c.l.b16 %v697
        %v1018 = vunpack.c.h.b16 %v697
        %v1019 = vunpack.c.l.b16 %v698
        %v1020 = vunpack.c.h.b16 %v698
        %v1021 = vunpack.c.l.b16 %v699
        %v1022 = vunpack.c.h.b16 %v699
        %v1023 = vunpack.c.l.b16 %v700
        %v1024 = vunpack.c.h.b16 %v700
        %v1025 = vunpack.c.l.b16 %v701
        %v1026 = vunpack.c.h.b16 %v701
        %v1027 = vunpack.c.l.b16 %v702
        %v1028 = vunpack.c.h.b16 %v702
        %v1029 = vunpack.c.l.b16 %v703
        %v1030 = vunpack.c.h.b16 %v703
        %v1031 = vunpack.c.l.b16 %v704
        %v1032 = vunpack.c.h.b16 %v704
        %v1033 = vunpack.c.l.b16 %v705
        %v1034 = vunpack.c.h.b16 %v705
        %v1035 = vunpack.c.l.b16 %v706
        %v1036 = vunpack.c.h.b16 %v706
        %v1037 = vunpack.c.l.b16 %v707
        %v1038 = vunpack.c.h.b16 %v707
        %v1039 = vunpack.c.l.b16 %v708
        %v1040 = vunpack.c.h.b16 %v708
        %v1041 = vunpack.c.l.b16 %v709
        %v1042 = vunpack.c.h.b16 %v709
        %v1043 = vunpack.c.l.b16 %v710
        %v1044 = vunpack.c.h.b16 %v710
        %v1045 = vunpack.c.l.b16 %v711
        %v1046 = vunpack.c.h.b16 %v711
        %v1047 = vunpack.c.l.b16 %v712
        %v1048 = vunpack.c.h.b16 %v712
        %v1049 = vunpack.c.l.b16 %v713
        %v1050 = vunpack.c.h.b16 %v713
        %v1051 = vunpack.c.l.b16 %v714
        %v1052 = vunpack.c.h.b16 %v714
        %v1053 = vunpack.c.l.b16 %v715
        %v1054 = vunpack.c.h.b16 %v715
        %v1055 = vunpack.c.l.b16 %v716
        %v1056 = vunpack.c.h.b16 %v716
        %v1057 = vunpack.c.l.b16 %v717
        %v1058 = vunpack.c.h.b16 %v717
        %v1059 = vunpack.c.l.b16 %v718
        %v1060 = vunpack.c.h.b16 %v718
        %v1061 = vunpack.c.l.b16 %v719
        %v1062 = vunpack.c.h.b16 %v719
        %v1063 = vunpack.c.l.b16 %v720
        %v1064 = vunpack.c.h.b16 %v720
        %v1065 = vunpack.c.l.b16 %v721
        %v1066 = vunpack.c.h.b16 %v721
        %v1067 = vunpack.c.l.b16 %v722
        %v1068 = vunpack.c.h.b16 %v722
        %v1069 = vunpack.c.l.b16 %v723
        %v1070 = vunpack.c.h.b16 %v723
        %v1071 = vunpack.c.l.b16 %v724
        %v1072 = vunpack.c.h.b16 %v724
        %v1073 = vunpack.c.l.b16 %v725
        %v1074 = vunpack.c.h.b16 %v725
        %v1075 = vunpack.c.l.b16 %v726
        %v1076 = vunpack.c.h.b16 %v726
        %v1077 = vunpack.c.l.b16 %v727
        %v1078 = vunpack.c.h.b16 %v727
        %v1079 = vunpack.c.l.b16 %v728
        %v1080 = vunpack.c.h.b16 %v728
        %v1081 = vpack.c.b16 %v955, %v953
        %v1082 = vpack.c.b16 %v956, %v954
        %v1083 = vpack.c.b16 %v959, %v957
        %v1084 = vpack.c.b16 %v960, %v958
        %v1085 = vpack.c.b16 %v963, %v961
        %v1086 = vpack.c.b16 %v964, %v962
        %v1087 = vpack.c.b16 %v967, %v965
        %v1088 = vpack.c.b16 %v968, %v966
        %v1089 = vpack.c.b16 %v971, %v969
        %v1090 = vpack.c.b16 %v972, %v970
        %v1091 = vpack.c.b16 %v975, %v973
        %v1092 = vpack.c.b16 %v976, %v974
        %v1093 = vpack.c.b16 %v979, %v977
        %v1094 = vpack.c.b16 %v980, %v978
        %v1095 = vpack.c.b16 %v983, %v981
        %v1096 = vpack.c.b16 %v984, %v982
        %v1097 = vpack.c.b16 %v987, %v985
        %v1098 = vpack.c.b16 %v988, %v986
        %v1099 = vpack.c.b16 %v991, %v989
        %v1100 = vpack.c.b16 %v992, %v990
        %v1101 = vpack.c.b16 %v995, %v993
        %v1102 = vpack.c.b16 %v996, %v994
        %v1103 = vpack.c.b16 %v999, %v997
        %v1104 = vpack.c.b16 %v1000, %v998
        %v1105 = vpack.c.b16 %v1003, %v1001
        %v1106 = vpack.c.b16 %v1004, %v1002
        %v1107 = vpack.c.b16 %v1007, %v1005
        %v1108 = vpack.c.b16 %v1008, %v1006
        %v1109 = vpack.c.b16 %v1011, %v1009
        %v1110 = vpack.c.b16 %v1012, %v1010
        %v1111 = vpack.c.b16 %v1015, %v1013
        %v1112 = vpack.c.b16 %v1016, %v1014
        %v1113 = vpack.c.b16 %v1019, %v1017
        %v1114 = vpack.c.b16 %v1020, %v1018
        %v1115 = vpack.c.b16 %v1023, %v1021
        %v1116 = vpack.c.b16 %v1024, %v1022
        %v1117 = vpack.c.b16 %v1027, %v1025
        %v1118 = vpack.c.b16 %v1028, %v1026
        %v1119 = vpack.c.b16 %v1031, %v1029
        %v1120 = vpack.c.b16 %v1032, %v1030
        %v1121 = vpack.c.b16 %v1035, %v1033
        %v1122 = vpack.c.b16 %v1036, %v1034
        %v1123 = vpack.c.b16 %v1039, %v1037
        %v1124 = vpack.c.b16 %v1040, %v1038
        %v1125 = vpack.c.b16 %v1043, %v1041
        %v1126 = vpack.c.b16 %v1044, %v1042
        %v1127 = vpack.c.b16 %v1047, %v1045
        %v1128 = vpack.c.b16 %v1048, %v1046
        %v1129 = vpack.c.b16 %v1051, %v1049
        %v1130 = vpack.c.b16 %v1052, %v1050
        %v1131 = vpack.c.b16 %v1055, %v1053
        %v1132 = vpack.c.b16 %v1056, %v1054
        %v1133 = vpack.c.b16 %v1059, %v1057
        %v1134 = vpack.c.b16 %v1060, %v1058
        %v1135 = vpack.c.b16 %v1063, %v1061
        %v1136 = vpack.c.b16 %v1064, %v1062
        %v1137 = vpack.c.b16 %v1067, %v1065
        %v1138 = vpack.c.b16 %v1068, %v1066
        %v1139 = vpack.c.b16 %v1071, %v1069
        %v1140 = vpack.c.b16 %v1072, %v1070
        %v1141 = vpack.c.b16 %v1075, %v1073
        %v1142 = vpack.c.b16 %v1076, %v1074
        %v1143 = vpack.c.b16 %v1079, %v1077
        %v1144 = vpack.c.b16 %v1080, %v1078
        %1209 = vmatpush.bf16.msra.mxu0 %v1095
        %1210 = vmatpush.bf16.msra.mxu0 %v1093
        %1211 = vmatpush.bf16.msra.mxu0 %v1091
        %1212 = vmatpush.bf16.msra.mxu0 %v1089
        %1213 = vmatpush.bf16.msra.mxu0 %v1087
        %1214 = vmatpush.bf16.msra.mxu0 %v1085
        %1215 = vmatpush.bf16.msra.mxu0 %v1083
        %1216 = vmatpush.bf16.msra.mxu0 %v1081
        %1217 = vmatmul.bf16.gmra.mxu0 %v825
        %v1218 = vpop.f32.mrf.mxu0
        %v1219 = vadd.f32 0.0, %v1218
        %v1220 = vpop.f32.mrf.mxu0
        %v1221 = vadd.f32 0.0, %v1220
        %1222 = vmatmul.bf16.gmra.mxu0 %v829
        %v1223 = vpop.f32.mrf.mxu0
        %v1224 = vadd.f32 0.0, %v1223
        %v1225 = vpop.f32.mrf.mxu0
        %v1226 = vadd.f32 0.0, %v1225
        %1227 = vmatmul.bf16.gmra.mxu0 %v833
        %v1228 = vpop.f32.mrf.mxu0
        %v1229 = vadd.f32 0.0, %v1228
        %v1230 = vpop.f32.mrf.mxu0
        %v1231 = vadd.f32 0.0, %v1230
        %1232 = vmatmul.bf16.gmra.mxu0 %v837
        %v1233 = vpop.f32.mrf.mxu0
        %v1234 = vadd.f32 0.0, %v1233
        %v1235 = vpop.f32.mrf.mxu0
        %v1236 = vadd.f32 0.0, %v1235
        %1237 = vmatmul.bf16.gmra.mxu0 %v841
        %v1238 = vpop.f32.mrf.mxu0
        %v1239 = vadd.f32 0.0, %v1238
        %v1240 = vpop.f32.mrf.mxu0
        %v1241 = vadd.f32 0.0, %v1240
        %1242 = vmatmul.bf16.gmra.mxu0 %v845
        %v1243 = vpop.f32.mrf.mxu0
        %v1244 = vadd.f32 0.0, %v1243
        %v1245 = vpop.f32.mrf.mxu0
        %v1246 = vadd.f32 0.0, %v1245
        %1247 = vmatmul.bf16.gmra.mxu0 %v849
        %v1248 = vpop.f32.mrf.mxu0
        %v1249 = vadd.f32 0.0, %v1248
        %v1250 = vpop.f32.mrf.mxu0
        %v1251 = vadd.f32 0.0, %v1250
        %1252 = vmatmul.bf16.gmra.mxu0 %v853
        %v1253 = vpop.f32.mrf.mxu0
        %v1254 = vadd.f32 0.0, %v1253
        %v1255 = vpop.f32.mrf.mxu0
        %v1256 = vadd.f32 0.0, %v1255
        %1257 = vdwg.mxu0
        %1258 = vmatpush.bf16.msra.mxu0 %v1111
        %1259 = vmatpush.bf16.msra.mxu0 %v1109
        %1260 = vmatpush.bf16.msra.mxu0 %v1107
        %1261 = vmatpush.bf16.msra.mxu0 %v1105
        %1262 = vmatpush.bf16.msra.mxu0 %v1103
        %1263 = vmatpush.bf16.msra.mxu0 %v1101
        %1264 = vmatpush.bf16.msra.mxu0 %v1099
        %1265 = vmatpush.bf16.msra.mxu0 %v1097
        %1266 = vmatmul.bf16.gmra.mxu0 %v826
        %v1267 = vpop.f32.mrf.mxu0
        %v1268 = vadd.f32 %v1219, %v1267
        %v1269 = vpop.f32.mrf.mxu0
        %v1270 = vadd.f32 %v1221, %v1269
        %1271 = vmatmul.bf16.gmra.mxu0 %v830
        %v1272 = vpop.f32.mrf.mxu0
        %v1273 = vadd.f32 %v1224, %v1272
        %v1274 = vpop.f32.mrf.mxu0
        %v1275 = vadd.f32 %v1226, %v1274
        %1276 = vmatmul.bf16.gmra.mxu0 %v834
        %v1277 = vpop.f32.mrf.mxu0
        %v1278 = vadd.f32 %v1229, %v1277
        %v1279 = vpop.f32.mrf.mxu0
        %v1280 = vadd.f32 %v1231, %v1279
        %1281 = vmatmul.bf16.gmra.mxu0 %v838
        %v1282 = vpop.f32.mrf.mxu0
        %v1283 = vadd.f32 %v1234, %v1282
        %v1284 = vpop.f32.mrf.mxu0
        %v1285 = vadd.f32 %v1236, %v1284
        %1286 = vmatmul.bf16.gmra.mxu0 %v842
        %v1287 = vpop.f32.mrf.mxu0
        %v1288 = vadd.f32 %v1239, %v1287
        %v1289 = vpop.f32.mrf.mxu0
        %v1290 = vadd.f32 %v1241, %v1289
        %1291 = vmatmul.bf16.gmra.mxu0 %v846
        %v1292 = vpop.f32.mrf.mxu0
        %v1293 = vadd.f32 %v1244, %v1292
        %v1294 = vpop.f32.mrf.mxu0
        %v1295 = vadd.f32 %v1246, %v1294
        %1296 = vmatmul.bf16.gmra.mxu0 %v850
        %v1297 = vpop.f32.mrf.mxu0
        %v1298 = vadd.f32 %v1249, %v1297
        %v1299 = vpop.f32.mrf.mxu0
        %v1300 = vadd.f32 %v1251, %v1299
        %1301 = vmatmul.bf16.gmra.mxu0 %v854
        %v1302 = vpop.f32.mrf.mxu0
        %v1303 = vadd.f32 %v1254, %v1302
        %v1304 = vpop.f32.mrf.mxu0
        %v1305 = vadd.f32 %v1256, %v1304
        %1306 = vdwg.mxu0
        %1307 = vmatpush.bf16.msra.mxu0 %v1127
        %1308 = vmatpush.bf16.msra.mxu0 %v1125
        %1309 = vmatpush.bf16.msra.mxu0 %v1123
        %1310 = vmatpush.bf16.msra.mxu0 %v1121
        %1311 = vmatpush.bf16.msra.mxu0 %v1119
        %1312 = vmatpush.bf16.msra.mxu0 %v1117
        %1313 = vmatpush.bf16.msra.mxu0 %v1115
        %1314 = vmatpush.bf16.msra.mxu0 %v1113
        %1315 = vmatmul.bf16.gmra.mxu0 %v827
        %v1316 = vpop.f32.mrf.mxu0
        %v1317 = vadd.f32 %v1268, %v1316
        %v1318 = vpop.f32.mrf.mxu0
        %v1319 = vadd.f32 %v1270, %v1318
        %1320 = vmatmul.bf16.gmra.mxu0 %v831
        %v1321 = vpop.f32.mrf.mxu0
        %v1322 = vadd.f32 %v1273, %v1321
        %v1323 = vpop.f32.mrf.mxu0
        %v1324 = vadd.f32 %v1275, %v1323
        %1325 = vmatmul.bf16.gmra.mxu0 %v835
        %v1326 = vpop.f32.mrf.mxu0
        %v1327 = vadd.f32 %v1278, %v1326
        %v1328 = vpop.f32.mrf.mxu0
        %v1329 = vadd.f32 %v1280, %v1328
        %1330 = vmatmul.bf16.gmra.mxu0 %v839
        %v1331 = vpop.f32.mrf.mxu0
        %v1332 = vadd.f32 %v1283, %v1331
        %v1333 = vpop.f32.mrf.mxu0
        %v1334 = vadd.f32 %v1285, %v1333
        %1335 = vmatmul.bf16.gmra.mxu0 %v843
        %v1336 = vpop.f32.mrf.mxu0
        %v1337 = vadd.f32 %v1288, %v1336
        %v1338 = vpop.f32.mrf.mxu0
        %v1339 = vadd.f32 %v1290, %v1338
        %1340 = vmatmul.bf16.gmra.mxu0 %v847
        %v1341 = vpop.f32.mrf.mxu0
        %v1342 = vadd.f32 %v1293, %v1341
        %v1343 = vpop.f32.mrf.mxu0
        %v1344 = vadd.f32 %v1295, %v1343
        %1345 = vmatmul.bf16.gmra.mxu0 %v851
        %v1346 = vpop.f32.mrf.mxu0
        %v1347 = vadd.f32 %v1298, %v1346
        %v1348 = vpop.f32.mrf.mxu0
        %v1349 = vadd.f32 %v1300, %v1348
        %1350 = vmatmul.bf16.gmra.mxu0 %v855
        %v1351 = vpop.f32.mrf.mxu0
        %v1352 = vadd.f32 %v1303, %v1351
        %v1353 = vpop.f32.mrf.mxu0
        %v1354 = vadd.f32 %v1305, %v1353
        %1355 = vdwg.mxu0
        %1356 = vmatpush.bf16.msra.mxu0 %v1143
        %1357 = vmatpush.bf16.msra.mxu0 %v1141
        %1358 = vmatpush.bf16.msra.mxu0 %v1139
        %1359 = vmatpush.bf16.msra.mxu0 %v1137
        %1360 = vmatpush.bf16.msra.mxu0 %v1135
        %1361 = vmatpush.bf16.msra.mxu0 %v1133
        %1362 = vmatpush.bf16.msra.mxu0 %v1131
        %1363 = vmatpush.bf16.msra.mxu0 %v1129
        %1364 = vmatmul.bf16.gmra.mxu0 %v828
        %v1365 = vpop.f32.mrf.mxu0
        %v1366 = vadd.f32 %v1317, %v1365
        %v1367 = vpop.f32.mrf.mxu0
        %v1368 = vadd.f32 %v1319, %v1367
        %1369 = vmatmul.bf16.gmra.mxu0 %v832
        %v1370 = vpop.f32.mrf.mxu0
        %v1371 = vadd.f32 %v1322, %v1370
        %v1372 = vpop.f32.mrf.mxu0
        %v1373 = vadd.f32 %v1324, %v1372
        %1374 = vmatmul.bf16.gmra.mxu0 %v836
        %v1375 = vpop.f32.mrf.mxu0
        %v1376 = vadd.f32 %v1327, %v1375
        %v1377 = vpop.f32.mrf.mxu0
        %v1378 = vadd.f32 %v1329, %v1377
        %1379 = vmatmul.bf16.gmra.mxu0 %v840
        %v1380 = vpop.f32.mrf.mxu0
        %v1381 = vadd.f32 %v1332, %v1380
        %v1382 = vpop.f32.mrf.mxu0
        %v1383 = vadd.f32 %v1334, %v1382
        %1384 = vmatmul.bf16.gmra.mxu0 %v844
        %v1385 = vpop.f32.mrf.mxu0
        %v1386 = vadd.f32 %v1337, %v1385
        %v1387 = vpop.f32.mrf.mxu0
        %v1388 = vadd.f32 %v1339, %v1387
        %1389 = vmatmul.bf16.gmra.mxu0 %v848
        %v1390 = vpop.f32.mrf.mxu0
        %v1391 = vadd.f32 %v1342, %v1390
        %v1392 = vpop.f32.mrf.mxu0
        %v1393 = vadd.f32 %v1344, %v1392
        %1394 = vmatmul.bf16.gmra.mxu0 %v852
        %v1395 = vpop.f32.mrf.mxu0
        %v1396 = vadd.f32 %v1347, %v1395
        %v1397 = vpop.f32.mrf.mxu0
        %v1398 = vadd.f32 %v1349, %v1397
        %1399 = vmatmul.bf16.gmra.mxu0 %v856
        %v1400 = vpop.f32.mrf.mxu0
        %v1401 = vadd.f32 %v1352, %v1400
        %v1402 = vpop.f32.mrf.mxu0
        %v1403 = vadd.f32 %v1354, %v1402
        %1404 = vdwg.mxu0
        %1405 = vmatpush.bf16.msra.mxu0 %v1096
        %1406 = vmatpush.bf16.msra.mxu0 %v1094
        %1407 = vmatpush.bf16.msra.mxu0 %v1092
        %1408 = vmatpush.bf16.msra.mxu0 %v1090
        %1409 = vmatpush.bf16.msra.mxu0 %v1088
        %1410 = vmatpush.bf16.msra.mxu0 %v1086
        %1411 = vmatpush.bf16.msra.mxu0 %v1084
        %1412 = vmatpush.bf16.msra.mxu0 %v1082
        %1413 = vmatmul.bf16.gmra.mxu0 %v825
        %v1414 = vpop.f32.mrf.mxu0
        %v1415 = vadd.f32 0.0, %v1414
        %v1416 = vpop.f32.mrf.mxu0
        %v1417 = vadd.f32 0.0, %v1416
        %1418 = vmatmul.bf16.gmra.mxu0 %v829
        %v1419 = vpop.f32.mrf.mxu0
        %v1420 = vadd.f32 0.0, %v1419
        %v1421 = vpop.f32.mrf.mxu0
        %v1422 = vadd.f32 0.0, %v1421
        %1423 = vmatmul.bf16.gmra.mxu0 %v833
        %v1424 = vpop.f32.mrf.mxu0
        %v1425 = vadd.f32 0.0, %v1424
        %v1426 = vpop.f32.mrf.mxu0
        %v1427 = vadd.f32 0.0, %v1426
        %1428 = vmatmul.bf16.gmra.mxu0 %v837
        %v1429 = vpop.f32.mrf.mxu0
        %v1430 = vadd.f32 0.0, %v1429
        %v1431 = vpop.f32.mrf.mxu0
        %v1432 = vadd.f32 0.0, %v1431
        %1433 = vmatmul.bf16.gmra.mxu0 %v841
        %v1434 = vpop.f32.mrf.mxu0
        %v1435 = vadd.f32 0.0, %v1434
        %v1436 = vpop.f32.mrf.mxu0
        %v1437 = vadd.f32 0.0, %v1436
        %1438 = vmatmul.bf16.gmra.mxu0 %v845
        %v1439 = vpop.f32.mrf.mxu0
        %v1440 = vadd.f32 0.0, %v1439
        %v1441 = vpop.f32.mrf.mxu0
        %v1442 = vadd.f32 0.0, %v1441
        %1443 = vmatmul.bf16.gmra.mxu0 %v849
        %v1444 = vpop.f32.mrf.mxu0
        %v1445 = vadd.f32 0.0, %v1444
        %v1446 = vpop.f32.mrf.mxu0
        %v1447 = vadd.f32 0.0, %v1446
        %1448 = vmatmul.bf16.gmra.mxu0 %v853
        %v1449 = vpop.f32.mrf.mxu0
        %v1450 = vadd.f32 0.0, %v1449
        %v1451 = vpop.f32.mrf.mxu0
        %v1452 = vadd.f32 0.0, %v1451
        %1453 = vdwg.mxu0
        %1454 = vmatpush.bf16.msra.mxu0 %v1112
        %1455 = vmatpush.bf16.msra.mxu0 %v1110
        %1456 = vmatpush.bf16.msra.mxu0 %v1108
        %1457 = vmatpush.bf16.msra.mxu0 %v1106
        %1458 = vmatpush.bf16.msra.mxu0 %v1104
        %1459 = vmatpush.bf16.msra.mxu0 %v1102
        %1460 = vmatpush.bf16.msra.mxu0 %v1100
        %1461 = vmatpush.bf16.msra.mxu0 %v1098
        %1462 = vmatmul.bf16.gmra.mxu0 %v826
        %v1463 = vpop.f32.mrf.mxu0
        %v1464 = vadd.f32 %v1415, %v1463
        %v1465 = vpop.f32.mrf.mxu0
        %v1466 = vadd.f32 %v1417, %v1465
        %1467 = vmatmul.bf16.gmra.mxu0 %v830
        %v1468 = vpop.f32.mrf.mxu0
        %v1469 = vadd.f32 %v1420, %v1468
        %v1470 = vpop.f32.mrf.mxu0
        %v1471 = vadd.f32 %v1422, %v1470
        %1472 = vmatmul.bf16.gmra.mxu0 %v834
        %v1473 = vpop.f32.mrf.mxu0
        %v1474 = vadd.f32 %v1425, %v1473
        %v1475 = vpop.f32.mrf.mxu0
        %v1476 = vadd.f32 %v1427, %v1475
        %1477 = vmatmul.bf16.gmra.mxu0 %v838
        %v1478 = vpop.f32.mrf.mxu0
        %v1479 = vadd.f32 %v1430, %v1478
        %v1480 = vpop.f32.mrf.mxu0
        %v1481 = vadd.f32 %v1432, %v1480
        %1482 = vmatmul.bf16.gmra.mxu0 %v842
        %v1483 = vpop.f32.mrf.mxu0
        %v1484 = vadd.f32 %v1435, %v1483
        %v1485 = vpop.f32.mrf.mxu0
        %v1486 = vadd.f32 %v1437, %v1485
        %1487 = vmatmul.bf16.gmra.mxu0 %v846
        %v1488 = vpop.f32.mrf.mxu0
        %v1489 = vadd.f32 %v1440, %v1488
        %v1490 = vpop.f32.mrf.mxu0
        %v1491 = vadd.f32 %v1442, %v1490
        %1492 = vmatmul.bf16.gmra.mxu0 %v850
        %v1493 = vpop.f32.mrf.mxu0
        %v1494 = vadd.f32 %v1445, %v1493
        %v1495 = vpop.f32.mrf.mxu0
        %v1496 = vadd.f32 %v1447, %v1495
        %1497 = vmatmul.bf16.gmra.mxu0 %v854
        %v1498 = vpop.f32.mrf.mxu0
        %v1499 = vadd.f32 %v1450, %v1498
        %v1500 = vpop.f32.mrf.mxu0
        %v1501 = vadd.f32 %v1452, %v1500
        %1502 = vdwg.mxu0
        %1503 = vmatpush.bf16.msra.mxu0 %v1128
        %1504 = vmatpush.bf16.msra.mxu0 %v1126
        %1505 = vmatpush.bf16.msra.mxu0 %v1124
        %1506 = vmatpush.bf16.msra.mxu0 %v1122
        %1507 = vmatpush.bf16.msra.mxu0 %v1120
        %1508 = vmatpush.bf16.msra.mxu0 %v1118
        %1509 = vmatpush.bf16.msra.mxu0 %v1116
        %1510 = vmatpush.bf16.msra.mxu0 %v1114
        %1511 = vmatmul.bf16.gmra.mxu0 %v827
        %v1512 = vpop.f32.mrf.mxu0
        %v1513 = vadd.f32 %v1464, %v1512
        %v1514 = vpop.f32.mrf.mxu0
        %v1515 = vadd.f32 %v1466, %v1514
        %1516 = vmatmul.bf16.gmra.mxu0 %v831
        %v1517 = vpop.f32.mrf.mxu0
        %v1518 = vadd.f32 %v1469, %v1517
        %v1519 = vpop.f32.mrf.mxu0
        %v1520 = vadd.f32 %v1471, %v1519
        %1521 = vmatmul.bf16.gmra.mxu0 %v835
        %v1522 = vpop.f32.mrf.mxu0
        %v1523 = vadd.f32 %v1474, %v1522
        %v1524 = vpop.f32.mrf.mxu0
        %v1525 = vadd.f32 %v1476, %v1524
        %1526 = vmatmul.bf16.gmra.mxu0 %v839
        %v1527 = vpop.f32.mrf.mxu0
        %v1528 = vadd.f32 %v1479, %v1527
        %v1529 = vpop.f32.mrf.mxu0
        %v1530 = vadd.f32 %v1481, %v1529
        %1531 = vmatmul.bf16.gmra.mxu0 %v843
        %v1532 = vpop.f32.mrf.mxu0
        %v1533 = vadd.f32 %v1484, %v1532
        %v1534 = vpop.f32.mrf.mxu0
        %v1535 = vadd.f32 %v1486, %v1534
        %1536 = vmatmul.bf16.gmra.mxu0 %v847
        %v1537 = vpop.f32.mrf.mxu0
        %v1538 = vadd.f32 %v1489, %v1537
        %v1539 = vpop.f32.mrf.mxu0
        %v1540 = vadd.f32 %v1491, %v1539
        %1541 = vmatmul.bf16.gmra.mxu0 %v851
        %v1542 = vpop.f32.mrf.mxu0
        %v1543 = vadd.f32 %v1494, %v1542
        %v1544 = vpop.f32.mrf.mxu0
        %v1545 = vadd.f32 %v1496, %v1544
        %1546 = vmatmul.bf16.gmra.mxu0 %v855
        %v1547 = vpop.f32.mrf.mxu0
        %v1548 = vadd.f32 %v1499, %v1547
        %v1549 = vpop.f32.mrf.mxu0
        %v1550 = vadd.f32 %v1501, %v1549
        %1551 = vdwg.mxu0
        %1552 = vmatpush.bf16.msra.mxu0 %v1144
        %1553 = vmatpush.bf16.msra.mxu0 %v1142
        %1554 = vmatpush.bf16.msra.mxu0 %v1140
        %1555 = vmatpush.bf16.msra.mxu0 %v1138
        %1556 = vmatpush.bf16.msra.mxu0 %v1136
        %1557 = vmatpush.bf16.msra.mxu0 %v1134
        %1558 = vmatpush.bf16.msra.mxu0 %v1132
        %1559 = vmatpush.bf16.msra.mxu0 %v1130
        %1560 = vmatmul.bf16.gmra.mxu0 %v828
        %v1561 = vpop.f32.mrf.mxu0
        %v1562 = vadd.f32 %v1513, %v1561
        %v1563 = vpop.f32.mrf.mxu0
        %v1564 = vadd.f32 %v1515, %v1563
        %1565 = vmatmul.bf16.gmra.mxu0 %v832
        %v1566 = vpop.f32.mrf.mxu0
        %v1567 = vadd.f32 %v1518, %v1566
        %v1568 = vpop.f32.mrf.mxu0
        %v1569 = vadd.f32 %v1520, %v1568
        %1570 = vmatmul.bf16.gmra.mxu0 %v836
        %v1571 = vpop.f32.mrf.mxu0
        %v1572 = vadd.f32 %v1523, %v1571
        %v1573 = vpop.f32.mrf.mxu0
        %v1574 = vadd.f32 %v1525, %v1573
        %1575 = vmatmul.bf16.gmra.mxu0 %v840
        %v1576 = vpop.f32.mrf.mxu0
        %v1577 = vadd.f32 %v1528, %v1576
        %v1578 = vpop.f32.mrf.mxu0
        %v1579 = vadd.f32 %v1530, %v1578
        %1580 = vmatmul.bf16.gmra.mxu0 %v844
        %v1581 = vpop.f32.mrf.mxu0
        %v1582 = vadd.f32 %v1533, %v1581
        %v1583 = vpop.f32.mrf.mxu0
        %v1584 = vadd.f32 %v1535, %v1583
        %1585 = vmatmul.bf16.gmra.mxu0 %v848
        %v1586 = vpop.f32.mrf.mxu0
        %v1587 = vadd.f32 %v1538, %v1586
        %v1588 = vpop.f32.mrf.mxu0
        %v1589 = vadd.f32 %v1540, %v1588
        %1590 = vmatmul.bf16.gmra.mxu0 %v852
        %v1591 = vpop.f32.mrf.mxu0
        %v1592 = vadd.f32 %v1543, %v1591
        %v1593 = vpop.f32.mrf.mxu0
        %v1594 = vadd.f32 %v1545, %v1593
        %1595 = vmatmul.bf16.gmra.mxu0 %v856
        %v1596 = vpop.f32.mrf.mxu0
        %v1597 = vadd.f32 %v1548, %v1596
        %v1598 = vpop.f32.mrf.mxu0
        %v1599 = vadd.f32 %v1550, %v1598
        %1600 = vdwg.mxu0
        %v1601 = vadd.f32 %v601, %v1366
        %v1602 = vadd.f32 %v602, %v1562
        %v1603 = vadd.f32 %v603, %v1368
        %v1604 = vadd.f32 %v604, %v1564
        %v1605 = vadd.f32 %v605, %v1371
        %v1606 = vadd.f32 %v606, %v1567
        %v1607 = vadd.f32 %v607, %v1373
        %v1608 = vadd.f32 %v608, %v1569
        %v1609 = vadd.f32 %v609, %v1376
        %v1610 = vadd.f32 %v610, %v1572
        %v1611 = vadd.f32 %v611, %v1378
        %v1612 = vadd.f32 %v612, %v1574
        %v1613 = vadd.f32 %v613, %v1381
        %v1614 = vadd.f32 %v614, %v1577
        %v1615 = vadd.f32 %v615, %v1383
        %v1616 = vadd.f32 %v616, %v1579
        %v1617 = vadd.f32 %v617, %v1386
        %v1618 = vadd.f32 %v618, %v1582
        %v1619 = vadd.f32 %v619, %v1388
        %v1620 = vadd.f32 %v620, %v1584
        %v1621 = vadd.f32 %v621, %v1391
        %v1622 = vadd.f32 %v622, %v1587
        %v1623 = vadd.f32 %v623, %v1393
        %v1624 = vadd.f32 %v624, %v1589
        %v1625 = vadd.f32 %v625, %v1396
        %v1626 = vadd.f32 %v626, %v1592
        %v1627 = vadd.f32 %v627, %v1398
        %v1628 = vadd.f32 %v628, %v1594
        %v1629 = vadd.f32 %v629, %v1401
        %v1630 = vadd.f32 %v630, %v1597
        %v1631 = vadd.f32 %v631, %v1403
        %v1632 = vadd.f32 %v632, %v1599
        %1633 = vst [vmem:[#allocation2] sm:$0xff] %v1601
        %1634 = vst [vmem:[#allocation2 + $0x8] sm:$0xff] %v1602
        %1635 = vst [vmem:[#allocation2 + $0x10] sm:$0xff] %v1603
        %1636 = vst [vmem:[#allocation2 + $0x18] sm:$0xff] %v1604
        %1637 = vst [vmem:[#allocation2 + $0x20] sm:$0xff] %v1605
        %1638 = vst [vmem:[#allocation2 + $0x28] sm:$0xff] %v1606
        %1639 = vst [vmem:[#allocation2 + $0x30] sm:$0xff] %v1607
        %1640 = vst [vmem:[#allocation2 + $0x38] sm:$0xff] %v1608
        %1641 = vst [vmem:[#allocation2 + $0x40] sm:$0xff] %v1609
        %1642 = vst [vmem:[#allocation2 + $0x48] sm:$0xff] %v1610
        %1643 = vst [vmem:[#allocation2 + $0x50] sm:$0xff] %v1611
        %1644 = vst [vmem:[#allocation2 + $0x58] sm:$0xff] %v1612
        %1645 = vst [vmem:[#allocation2 + $0x60] sm:$0xff] %v1613
        %1646 = vst [vmem:[#allocation2 + $0x68] sm:$0xff] %v1614
        %1647 = vst [vmem:[#allocation2 + $0x70] sm:$0xff] %v1615
        %1648 = vst [vmem:[#allocation2 + $0x78] sm:$0xff] %v1616
        %1649 = vst [vmem:[#allocation2 + $0x80] sm:$0xff] %v1617
        %1650 = vst [vmem:[#allocation2 + $0x88] sm:$0xff] %v1618
        %1651 = vst [vmem:[#allocation2 + $0x90] sm:$0xff] %v1619
        %1652 = vst [vmem:[#allocation2 + $0x98] sm:$0xff] %v1620
        %1653 = vst [vmem:[#allocation2 + $0xa0] sm:$0xff] %v1621
        %1654 = vst [vmem:[#allocation2 + $0xa8] sm:$0xff] %v1622
        %1655 = vst [vmem:[#allocation2 + $0xb0] sm:$0xff] %v1623
        %1656 = vst [vmem:[#allocation2 + $0xb8] sm:$0xff] %v1624
        %1657 = vst [vmem:[#allocation2 + $0xc0] sm:$0xff] %v1625
        %1658 = vst [vmem:[#allocation2 + $0xc8] sm:$0xff] %v1626
        %1659 = vst [vmem:[#allocation2 + $0xd0] sm:$0xff] %v1627
        %1660 = vst [vmem:[#allocation2 + $0xd8] sm:$0xff] %v1628
        %1661 = vst [vmem:[#allocation2 + $0xe0] sm:$0xff] %v1629
        %1662 = vst [vmem:[#allocation2 + $0xe8] sm:$0xff] %v1630
        %1663 = vst [vmem:[#allocation2 + $0xf0] sm:$0xff] %v1631
        %1664 = vst [vmem:[#allocation2 + $0xf8] sm:$0xff] %v1632
        %p1665 = scmp.eq.s32.totalorder %s20, 1
        // Predicated region
        $region94: #{gnn_mix_forward.10} parent=80 // pred_check
          %p1666 = pneg %p1665
        $region95: #{gnn_mix_forward.10} parent=80 // pred_check_branch
          %1668 = sbr.rel (%p1666) target = $region97
        $region96: #{gnn_mix_forward.10} parent=80 // pred_region
          %v1669 = vld [vmem:[#allocation2] sm:$0xff]
          %v1670 = vld [vmem:[#allocation2 + $0x8] sm:$0xff]
          %v1671 = vld [vmem:[#allocation2 + $0x10] sm:$0xff]
          %v1672 = vld [vmem:[#allocation2 + $0x18] sm:$0xff]
          %v1673 = vld [vmem:[#allocation2 + $0x20] sm:$0xff]
          %v1674 = vld [vmem:[#allocation2 + $0x28] sm:$0xff]
          %v1675 = vld [vmem:[#allocation2 + $0x30] sm:$0xff]
          %v1676 = vld [vmem:[#allocation2 + $0x38] sm:$0xff]
          %v1677 = vld [vmem:[#allocation2 + $0x40] sm:$0xff]
          %v1678 = vld [vmem:[#allocation2 + $0x48] sm:$0xff]
          %v1679 = vld [vmem:[#allocation2 + $0x50] sm:$0xff]
          %v1680 = vld [vmem:[#allocation2 + $0x58] sm:$0xff]
          %v1681 = vld [vmem:[#allocation2 + $0x60] sm:$0xff]
          %v1682 = vld [vmem:[#allocation2 + $0x68] sm:$0xff]
          %v1683 = vld [vmem:[#allocation2 + $0x70] sm:$0xff]
          %v1684 = vld [vmem:[#allocation2 + $0x78] sm:$0xff]
          %v1685 = vld [vmem:[#allocation2 + $0x80] sm:$0xff]
          %v1686 = vld [vmem:[#allocation2 + $0x88] sm:$0xff]
          %v1687 = vld [vmem:[#allocation2 + $0x90] sm:$0xff]
          %v1688 = vld [vmem:[#allocation2 + $0x98] sm:$0xff]
          %v1689 = vld [vmem:[#allocation2 + $0xa0] sm:$0xff]
          %v1690 = vld [vmem:[#allocation2 + $0xa8] sm:$0xff]
          %v1691 = vld [vmem:[#allocation2 + $0xb0] sm:$0xff]
          %v1692 = vld [vmem:[#allocation2 + $0xb8] sm:$0xff]
          %v1693 = vld [vmem:[#allocation2 + $0xc0] sm:$0xff]
          %v1694 = vld [vmem:[#allocation2 + $0xc8] sm:$0xff]
          %v1695 = vld [vmem:[#allocation2 + $0xd0] sm:$0xff]
          %v1696 = vld [vmem:[#allocation2 + $0xd8] sm:$0xff]
          %v1697 = vld [vmem:[#allocation2 + $0xe0] sm:$0xff]
          %v1698 = vld [vmem:[#allocation2 + $0xe8] sm:$0xff]
          %v1699 = vld [vmem:[#allocation2 + $0xf0] sm:$0xff]
          %v1700 = vld [vmem:[#allocation2 + $0xf8] sm:$0xff]
          %v1701 = vpack.c.bf16 %v1670, %v1669
          %v1702 = vpack.c.bf16 %v1672, %v1671
          %v1703 = vpack.c.bf16 %v1674, %v1673
          %v1704 = vpack.c.bf16 %v1676, %v1675
          %v1705 = vpack.c.bf16 %v1678, %v1677
          %v1706 = vpack.c.bf16 %v1680, %v1679
          %v1707 = vpack.c.bf16 %v1682, %v1681
          %v1708 = vpack.c.bf16 %v1684, %v1683
          %v1709 = vpack.c.bf16 %v1686, %v1685
          %v1710 = vpack.c.bf16 %v1688, %v1687
          %v1711 = vpack.c.bf16 %v1690, %v1689
          %v1712 = vpack.c.bf16 %v1692, %v1691
          %v1713 = vpack.c.bf16 %v1694, %v1693
          %v1714 = vpack.c.bf16 %v1696, %v1695
          %v1715 = vpack.c.bf16 %v1698, %v1697
          %v1716 = vpack.c.bf16 %v1700, %v1699
          %1717 = vst [vmem:[%s558] sm:$0xff] %v1701
          %1718 = vst [vmem:[%s558 + $0x8] sm:$0xff] %v1702
          %1719 = vst [vmem:[%s558 + $0x10] sm:$0xff] %v1703
          %1720 = vst [vmem:[%s558 + $0x18] sm:$0xff] %v1704
          %1721 = vst [vmem:[%s558 + $0x20] sm:$0xff] %v1705
          %1722 = vst [vmem:[%s558 + $0x28] sm:$0xff] %v1706
          %1723 = vst [vmem:[%s558 + $0x30] sm:$0xff] %v1707
          %1724 = vst [vmem:[%s558 + $0x38] sm:$0xff] %v1708
          %1725 = vst [vmem:[%s558 + $0x40] sm:$0xff] %v1709
          %1726 = vst [vmem:[%s558 + $0x48] sm:$0xff] %v1710
          %1727 = vst [vmem:[%s558 + $0x50] sm:$0xff] %v1711
          %1728 = vst [vmem:[%s558 + $0x58] sm:$0xff] %v1712
          %1729 = vst [vmem:[%s558 + $0x60] sm:$0xff] %v1713
          %1730 = vst [vmem:[%s558 + $0x68] sm:$0xff] %v1714
          %1731 = vst [vmem:[%s558 + $0x70] sm:$0xff] %v1715
          %1732 = vst [vmem:[%s558 + $0x78] sm:$0xff] %v1716
        $region97: #{gnn_mix_forward.10} parent=80 // pred_fallthru
          _
        %s1733 = sand.u32 %s98, 1
        %s1734 = sand.u32 %s98, 1
        %s1735 = smul.addr %s1734, 128
        %s1736 = scalar_lea.vmem [#allocation5], %s1735
        // Predicated region
        $region98: #{gnn_mix_forward.10} parent=80 // pred_check
          %p1737 = pneg %p108
        $region99: #{gnn_mix_forward.10} parent=80 // pred_check_branch
          %1739 = sbr.rel (%p1737) target = $region101
        $region100: #{gnn_mix_forward.10} parent=80 // pred_region
          %s1740 = smul.u32 16, %s18
          %s1741 = smul.u32 2, %s19
          %s1742 = smul.addr %s1740, 4
          %s1743 = sadd.s32 %s1741, %s1742
          %s1744 = smul.addr %s1743, 4
          %s1745 = scalar_lea.vmem %s2, %s1744
          // Predicated region
          $region102: #{gnn_mix_forward.10} parent=100 // pred_check
            _
          $region103: #{gnn_mix_forward.10} parent=100 // pred_check_branch
            %1747 = sbr.rel (0) target = $region105
          $region104: #{gnn_mix_forward.10} parent=100 // pred_region
            // Predicated region
            $region106: #{gnn_mix_forward.10} parent=104 // pred_check
              _
            $region107: #{gnn_mix_forward.10} parent=104 // pred_check_branch
              %1749 = sbr.rel (0) target = $region109
            $region108: #{gnn_mix_forward.10} parent=104 // pred_region
              // Predicated region
              $region121: #{gnn_mix_forward.10} parent=108 // pred_check
                _
              $region122: #{gnn_mix_forward.10} parent=108 // pred_check_branch
                %1795 = sbr.rel (0) target = $region124
              $region123: #{gnn_mix_forward.10} parent=108 // pred_region
                loop: start=0, step=1, limit=1
                $region125: #{gnn_mix_forward.10} parent=123 // loop_pre_header
                  _
                $region126: #{gnn_mix_forward.10} parent=123 // loop_header
                  %s1797 = sphi 0, %s1801
                  %p1798 = scmp.ge.s32.totalorder %s1797, 1
                  %s1802 = sphi %s1736, %s1736
                  %s1803 = sphi %s1745, %s1745
                $region127: #{gnn_mix_forward.10} parent=123 // loop_header_branch
                  %1800 = sbr.rel (%p1798) target = $region131
                $region128: #{gnn_mix_forward.10} parent=123 // loop_body
                  %v1804 = vld [vmem:[%s1802] sm:$0xff]
                  %1805 = vst [vmem:[%s1803] sm:$0xff] %v1804
                  %v1806 = vld [vmem:[%s1802 + $0x8] sm:$0xff]
                  %1807 = vst [vmem:[%s1803 + $0x10] sm:$0xff] %v1806
                  %v1808 = vld [vmem:[%s1802 + $0x10] sm:$0xff]
                  %1809 = vst [vmem:[%s1803 + $0x20] sm:$0xff] %v1808
                  %v1810 = vld [vmem:[%s1802 + $0x18] sm:$0xff]
                  %1811 = vst [vmem:[%s1803 + $0x30] sm:$0xff] %v1810
                  %v1812 = vld [vmem:[%s1802 + $0x20] sm:$0xff]
                  %1813 = vst [vmem:[%s1803 + $0x40] sm:$0xff] %v1812
                  %v1814 = vld [vmem:[%s1802 + $0x28] sm:$0xff]
                  %1815 = vst [vmem:[%s1803 + $0x50] sm:$0xff] %v1814
                  %v1816 = vld [vmem:[%s1802 + $0x30] sm:$0xff]
                  %1817 = vst [vmem:[%s1803 + $0x60] sm:$0xff] %v1816
                  %v1818 = vld [vmem:[%s1802 + $0x38] sm:$0xff]
                  %1819 = vst [vmem:[%s1803 + $0x70] sm:$0xff] %v1818
                  %v1820 = vld [vmem:[%s1802 + $0x40] sm:$0xff]
                  %1821 = vst [vmem:[%s1803 + $0x80] sm:$0xff] %v1820
                  %v1822 = vld [vmem:[%s1802 + $0x48] sm:$0xff]
                  %1823 = vst [vmem:[%s1803 + $0x90] sm:$0xff] %v1822
                  %v1824 = vld [vmem:[%s1802 + $0x50] sm:$0xff]
                  %1825 = vst [vmem:[%s1803 + $0xa0] sm:$0xff] %v1824
                  %v1826 = vld [vmem:[%s1802 + $0x58] sm:$0xff]
                  %1827 = vst [vmem:[%s1803 + $0xb0] sm:$0xff] %v1826
                  %v1828 = vld [vmem:[%s1802 + $0x60] sm:$0xff]
                  %1829 = vst [vmem:[%s1803 + $0xc0] sm:$0xff] %v1828
                  %v1830 = vld [vmem:[%s1802 + $0x68] sm:$0xff]
                  %1831 = vst [vmem:[%s1803 + $0xd0] sm:$0xff] %v1830
                  %v1832 = vld [vmem:[%s1802 + $0x70] sm:$0xff]
                  %1833 = vst [vmem:[%s1803 + $0xe0] sm:$0xff] %v1832
                  %v1834 = vld [vmem:[%s1802 + $0x78] sm:$0xff]
                  %1835 = vst [vmem:[%s1803 + $0xf0] sm:$0xff] %v1834
                $region129: #{gnn_mix_forward.10} parent=123 // loop_footer
                  %s1801 = sadd.s32 1, %s1797
                $region130: #{gnn_mix_forward.10} parent=123 // loop_footer_branch
                  %1796 = sbr.rel target = $region126
                $region131: #{gnn_mix_forward.10} parent=123 // loop_exit
                  _
              $region124: #{gnn_mix_forward.10} parent=108 // pred_fallthru
                _
              // Predicated region
              $region132: #{gnn_mix_forward.10} parent=108 // pred_check
                _
              $region133: #{gnn_mix_forward.10} parent=108 // pred_check_branch
                %1837 = sbr.rel target = $region135
              $region134: #{gnn_mix_forward.10} parent=108 // pred_region
                _
              $region135: #{gnn_mix_forward.10} parent=108 // pred_fallthru
                _
            $region109: #{gnn_mix_forward.10} parent=104 // pred_fallthru
              _
            // Predicated region
            $region110: #{gnn_mix_forward.10} parent=104 // pred_check
              _
            $region111: #{gnn_mix_forward.10} parent=104 // pred_check_branch
              %1751 = sbr.rel target = $region113
            $region112: #{gnn_mix_forward.10} parent=104 // pred_region
              %s1753 = ssub.s32 256, 1
              loop: start=0, step=1, limit=1
              $region114: #{gnn_mix_forward.10} parent=112 // loop_pre_header
                _
              $region115: #{gnn_mix_forward.10} parent=112 // loop_header
                %s1755 = sphi 0, %s1759
                %p1756 = scmp.ge.s32.totalorder %s1755, 1
                %s1760 = sphi %s1736, %s1736
                %s1761 = sphi %s1745, %s1745
              $region116: #{gnn_mix_forward.10} parent=112 // loop_header_branch
                %1758 = sbr.rel (%p1756) target = $region120
              $region117: #{gnn_mix_forward.10} parent=112 // loop_body
                %v1762 = vld [vmem:[%s1760] sm:%s1753]
                %1763 = vst [vmem:[%s1761] sm:%s1753] %v1762
                %v1764 = vld [vmem:[%s1760 + $0x8] sm:%s1753]
                %1765 = vst [vmem:[%s1761 + $0x10] sm:%s1753] %v1764
                %v1766 = vld [vmem:[%s1760 + $0x10] sm:%s1753]
                %1767 = vst [vmem:[%s1761 + $0x20] sm:%s1753] %v1766
                %v1768 = vld [vmem:[%s1760 + $0x18] sm:%s1753]
                %1769 = vst [vmem:[%s1761 + $0x30] sm:%s1753] %v1768
                %v1770 = vld [vmem:[%s1760 + $0x20] sm:%s1753]
                %1771 = vst [vmem:[%s1761 + $0x40] sm:%s1753] %v1770
                %v1772 = vld [vmem:[%s1760 + $0x28] sm:%s1753]
                %1773 = vst [vmem:[%s1761 + $0x50] sm:%s1753] %v1772
                %v1774 = vld [vmem:[%s1760 + $0x30] sm:%s1753]
                %1775 = vst [vmem:[%s1761 + $0x60] sm:%s1753] %v1774
                %v1776 = vld [vmem:[%s1760 + $0x38] sm:%s1753]
                %1777 = vst [vmem:[%s1761 + $0x70] sm:%s1753] %v1776
                %v1778 = vld [vmem:[%s1760 + $0x40] sm:%s1753]
                %1779 = vst [vmem:[%s1761 + $0x80] sm:%s1753] %v1778
                %v1780 = vld [vmem:[%s1760 + $0x48] sm:%s1753]
                %1781 = vst [vmem:[%s1761 + $0x90] sm:%s1753] %v1780
                %v1782 = vld [vmem:[%s1760 + $0x50] sm:%s1753]
                %1783 = vst [vmem:[%s1761 + $0xa0] sm:%s1753] %v1782
                %v1784 = vld [vmem:[%s1760 + $0x58] sm:%s1753]
                %1785 = vst [vmem:[%s1761 + $0xb0] sm:%s1753] %v1784
                %v1786 = vld [vmem:[%s1760 + $0x60] sm:%s1753]
                %1787 = vst [vmem:[%s1761 + $0xc0] sm:%s1753] %v1786
                %v1788 = vld [vmem:[%s1760 + $0x68] sm:%s1753]
                %1789 = vst [vmem:[%s1761 + $0xd0] sm:%s1753] %v1788
                %v1790 = vld [vmem:[%s1760 + $0x70] sm:%s1753]
                %1791 = vst [vmem:[%s1761 + $0xe0] sm:%s1753] %v1790
                %v1792 = vld [vmem:[%s1760 + $0x78] sm:%s1753]
                %1793 = vst [vmem:[%s1761 + $0xf0] sm:%s1753] %v1792
              $region118: #{gnn_mix_forward.10} parent=112 // loop_footer
                %s1759 = sadd.s32 1, %s1755
              $region119: #{gnn_mix_forward.10} parent=112 // loop_footer_branch
                %1754 = sbr.rel target = $region115
              $region120: #{gnn_mix_forward.10} parent=112 // loop_exit
                _
            $region113: #{gnn_mix_forward.10} parent=104 // pred_fallthru
              _
          $region105: #{gnn_mix_forward.10} parent=100 // pred_fallthru
            _
          %1838 = vnop
        $region101: #{gnn_mix_forward.10} parent=80 // pred_fallthru
          _
      $region81: #{gnn_mix_forward.10} parent=5 // pred_fallthru
        _
      %p1839 = scmp.le.s32.totalorder 2, %s8
      // Predicated region
      $region136: #{gnn_mix_forward.10} parent=5 // pred_check
        %p1840 = pneg %p1839
      $region137: #{gnn_mix_forward.10} parent=5 // pred_check_branch
        %1842 = sbr.rel (%p1840) target = $region139
      $region138: #{gnn_mix_forward.10} parent=5 // pred_region
        %s1843 = ssub.s32 %s8, 2
        // Predicated region
        $region140: #{gnn_mix_forward.10} parent=138 // pred_check
          %p1844 = pneg %p114
        $region141: #{gnn_mix_forward.10} parent=138 // pred_check_branch
          %1846 = sbr.rel (%p1844) target = $region143
        $region142: #{gnn_mix_forward.10} parent=138 // pred_region
          %s1847 = sand.u32 %s99, 1
          %s1848 = sand.u32 %s99, 1
          %s1849 = smul.addr %s1848, 128
          %s1850 = scalar_lea.vmem [#allocation5], %s1849
        $region143: #{gnn_mix_forward.10} parent=138 // pred_fallthru
          _
      $region139: #{gnn_mix_forward.10} parent=5 // pred_fallthru
        _
    $region6: #{gnn_mix_forward.10} parent=1 // loop_footer
      %s12 = sadd.s32 1, %s8
    $region7: #{gnn_mix_forward.10} parent=1 // loop_footer_branch
      %7 = sbr.rel target = $region3
    $region8: #{gnn_mix_forward.10} parent=1 // loop_exit
      _

// kernel: gnn_mix_forward.11
$region0: #{gnn_mix_forward.11}
  #allocation0 [shape = 'u32[]', space=smem, size = 0x4, offset = 0x4, fixed_abs, tag = 'smem constant byte address 0x4 - core index']
  #allocation1 [shape = 'u32[72,128]{1,0:T(1,128)}', space=vmem, size = 0x9000, scoped, tag = 'internal scratch']
  #allocation2 [shape = 'f32[128,256]{1,0:T(8,128)}', space=vmem, size = 0x20000, scoped, tag = 'scratch operand']
  %s0 = inlined_call_operand.vmem [shape: bf16[128,128], index: 0, kind: input, shape index: {}]
  %s1 = inlined_call_operand.vmem [shape: bf16[128,512], index: 1, kind: input, shape index: {}]
  %s2 = inlined_call_operand.vmem [shape: bf16[128,512], index: 2, kind: output, shape index: {}]
  %s3 = sld [smem:[#allocation0]]
  $region121: #{gnn_mix_forward.11} parent=0
    _
  %s5 = ssub.s32 1, %s3
  %s6 = scalar_select 0, %s5, %s3
  $region1: #{gnn_mix_forward.11} parent=0
    #allocation3 [shape = 'u8[131072]{0}', space=vmem, size = 0x20000, scoped, tag = 'input window, operand 1']
    #allocation4 [shape = 'u8[131072]{0}', space=vmem, size = 0x20000, scoped, tag = 'output window, operand 0']
    loop: start=0, step=1, limit=4
    $region2: #{gnn_mix_forward.11} parent=1 // loop_pre_header
      _
    $region3: #{gnn_mix_forward.11} parent=1 // loop_header
      %s8 = sphi 0, %s12
      %p9 = scmp.ge.s32.totalorder %s8, 4
      %s15 = sphi 0, %s34
      %s16 = sphi 0, %s30
      %s17 = sphi 0, %s26
      %s18 = sphi 0, %s15
      %s19 = sphi 0, %s16
      %s20 = sphi 0, %s17
      %s21 = sphi 0, %s18
      %s22 = sphi 0, %s19
      %s23 = sphi 0, %s20
      %s39 = sphi 0, %s41
      %s42 = sphi 0, %s39
      %s43 = sphi 0, %s42
      %s59 = sphi 0, %s43
      %s67 = sphi 0, %s69
      %s70 = sphi 0, %s67
      %s71 = sphi 0, %s70
      %s87 = sphi 0, %s71
      %s95 = sphi 0, %s97
      %s98 = sphi 0, %s95
      %s99 = sphi 0, %s98
      %s115 = sphi 0, %s99
    $region4: #{gnn_mix_forward.11} parent=1 // loop_header_branch
      %11 = sbr.rel (%p9) target = $region8
    $region5: #{gnn_mix_forward.11} parent=1 // loop_body
      %s13 = ssub.s32 %s8, 1
      %s14 = ssub.s32 %s8, 2
      %s24 = sadd.s32 1, %s17
      %p25 = scmp.ge.s32.totalorder %s24, 1
      %s26 = scalar_select %p25, 0, %s24
      %s27 = sadd.s32 1, %s16
      %s28 = scalar_select %p25, %s27, %s16
      %p29 = scmp.ge.s32.totalorder %s28, 2
      %s30 = scalar_select %p29, 0, %s28
      %s31 = sadd.s32 1, %s15
      %s32 = scalar_select %p29, %s31, %s15
      %p33 = scmp.ge.s32.totalorder %s32, 1
      %s34 = scalar_select %p33, 0, %s32
      %s35 = ssub.s32 %s15, %s34
      %s36 = ssub.s32 %s17, %s26
      %s37 = sor.u32 %s35, %s36
      %p38 = scmp.eq.s32.totalorder %s37, 0
      %s40 = sadd.s32 %s39, 1
      %s41 = scalar_select %p38, %s39, %s40
      %p44 = pneg %p38
      %p45 = scmp.eq.s32.totalorder %s8, 1
      %p46 = por %p44, %p45
      %p47 = scmp.ne.s32.totalorder %s39, %s42
      %p48 = scmp.eq.s32.totalorder %s8, 0
      %p49 = por %p47, %p48
      %p50 = scmp.ne.s32.totalorder %s39, %s42
      %p51 = scmp.eq.s32.totalorder %s13, 1
      %p52 = por %p50, %p51
      %p53 = scmp.ne.s32.totalorder %s42, %s43
      %p54 = scmp.eq.s32.totalorder %s13, 0
      %p55 = por %p53, %p54
      %p56 = scmp.ne.s32.totalorder %s42, %s43
      %p57 = scmp.eq.s32.totalorder %s14, 1
      %p58 = por %p56, %p57
      %p60 = scmp.ne.s32.totalorder %s43, %s59
      %p61 = scmp.eq.s32.totalorder %s14, 0
      %p62 = por %p60, %p61
      %s63 = ssub.s32 %s17, %s26
      %s64 = ssub.s32 %s16, %s30
      %s65 = sor.u32 %s63, %s64
      %p66 = scmp.eq.s32.totalorder %s65, 0
      %s68 = sadd.s32 %s67, 1
      %s69 = scalar_select %p66, %s67, %s68
      %p72 = pneg %p66
      %p73 = scmp.eq.s32.totalorder %s8, 1
      %p74 = por %p72, %p73
      %p75 = scmp.ne.s32.totalorder %s67, %s70
      %p76 = scmp.eq.s32.totalorder %s8, 0
      %p77 = por %p75, %p76
      %p78 = scmp.ne.s32.totalorder %s67, %s70
      %p79 = scmp.eq.s32.totalorder %s13, 1
      %p80 = por %p78, %p79
      %p81 = scmp.ne.s32.totalorder %s70, %s71
      %p82 = scmp.eq.s32.totalorder %s13, 0
      %p83 = por %p81, %p82
      %p84 = scmp.ne.s32.totalorder %s70, %s71
      %p85 = scmp.eq.s32.totalorder %s14, 1
      %p86 = por %p84, %p85
      %p88 = scmp.ne.s32.totalorder %s71, %s87
      %p89 = scmp.eq.s32.totalorder %s14, 0
      %p90 = por %p88, %p89
      %s91 = ssub.s32 %s15, %s34
      %s92 = ssub.s32 %s16, %s30
      %s93 = sor.u32 %s91, %s92
      %p94 = scmp.eq.s32.totalorder %s93, 0
      %s96 = sadd.s32 %s95, 1
      %s97 = scalar_select %p94, %s95, %s96
      %p100 = pneg %p94
      %p101 = scmp.eq.s32.totalorder %s8, 1
      %p102 = por %p100, %p101
      %p103 = scmp.ne.s32.totalorder %s95, %s98
      %p104 = scmp.eq.s32.totalorder %s8, 0
      %p105 = por %p103, %p104
      %p106 = scmp.ne.s32.totalorder %s95, %s98
      %p107 = scmp.eq.s32.totalorder %s13, 1
      %p108 = por %p106, %p107
      %p109 = scmp.ne.s32.totalorder %s98, %s99
      %p110 = scmp.eq.s32.totalorder %s13, 0
      %p111 = por %p109, %p110
      %p112 = scmp.ne.s32.totalorder %s98, %s99
      %p113 = scmp.eq.s32.totalorder %s14, 1
      %p114 = por %p112, %p113
      %p116 = scmp.ne.s32.totalorder %s99, %s115
      %p117 = scmp.eq.s32.totalorder %s14, 0
      %p118 = por %p116, %p117
      %p119 = scmp.le.s32.totalorder 1, %s8
      %p120 = scmp.lt.s32.totalorder %s8, 3
      %p121 = pnand %p119, %p120
      %p122 = pneg %p121
      // Predicated region
      $region9: #{gnn_mix_forward.11} parent=5 // pred_check
        _
      $region10: #{gnn_mix_forward.11} parent=5 // pred_check_branch
        %124 = sbr.rel (%p121) target = $region12
      $region11: #{gnn_mix_forward.11} parent=5 // pred_region
        %s125 = ssub.s32 %s8, 1
        // Predicated region
        $region13: #{gnn_mix_forward.11} parent=11 // pred_check
          %p126 = pneg %p55
        $region14: #{gnn_mix_forward.11} parent=11 // pred_check_branch
          %128 = sbr.rel (%p126) target = $region16
        $region15: #{gnn_mix_forward.11} parent=11 // pred_region
          %s129 = smul.u32 16, %s18
          %p130 = scmp.lt.s32.totalorder %s129, 15
          %s131 = scalar_select %p130, %s129, 15
          %p132 = scmp.lt.s32.totalorder %s20, 0
          %s133 = scalar_select %p132, %s20, 0
          %s134 = sadd.s32 %s133, %s131
          %s135 = smul.addr %s134, 4
          %s136 = scalar_lea.vmem %s0, %s135
          %s137 = smul.u32 16, %s18
        $region16: #{gnn_mix_forward.11} parent=11 // pred_fallthru
          _
      $region12: #{gnn_mix_forward.11} parent=5 // pred_fallthru
        _
      %p138 = scmp.lt.s32.totalorder %s8, 2
      // Predicated region
      $region17: #{gnn_mix_forward.11} parent=5 // pred_check
        %p139 = pneg %p138
      $region18: #{gnn_mix_forward.11} parent=5 // pred_check_branch
        %141 = sbr.rel (%p139) target = $region20
      $region19: #{gnn_mix_forward.11} parent=5 // pred_region
        // Predicated region
        $region21: #{gnn_mix_forward.11} parent=19 // pred_check
          %p142 = pneg %p77
        $region22: #{gnn_mix_forward.11} parent=19 // pred_check_branch
          %144 = sbr.rel (%p142) target = $region24
        $region23: #{gnn_mix_forward.11} parent=19 // pred_region
          %s145 = sand.u32 %s67, 1
          %s146 = sand.u32 %s67, 1
          %s147 = smul.addr %s146, 128
          %s148 = scalar_lea.vmem [#allocation3], %s147
          %s149 = smul.u32 16, %s17
          %s150 = smul.u32 2, %s16
          %s151 = smul.addr %s149, 4
          %s152 = sadd.s32 %s150, %s151
          %s153 = smul.addr %s152, 4
          %s154 = scalar_lea.vmem %s1, %s153
          // Predicated region
          $region25: #{gnn_mix_forward.11} parent=23 // pred_check
            _
          $region26: #{gnn_mix_forward.11} parent=23 // pred_check_branch
            %156 = sbr.rel (0) target = $region28
          $region27: #{gnn_mix_forward.11} parent=23 // pred_region
            // Predicated region
            $region29: #{gnn_mix_forward.11} parent=27 // pred_check
              _
            $region30: #{gnn_mix_forward.11} parent=27 // pred_check_branch
              %158 = sbr.rel (0) target = $region32
            $region31: #{gnn_mix_forward.11} parent=27 // pred_region
              // Predicated region
              $region44: #{gnn_mix_forward.11} parent=31 // pred_check
                _
              $region45: #{gnn_mix_forward.11} parent=31 // pred_check_branch
                %204 = sbr.rel (0) target = $region47
              $region46: #{gnn_mix_forward.11} parent=31 // pred_region
                loop: start=0, step=1, limit=1
                $region48: #{gnn_mix_forward.11} parent=46 // loop_pre_header
                  _
                $region49: #{gnn_mix_forward.11} parent=46 // loop_header
                  %s206 = sphi 0, %s210
                  %p207 = scmp.ge.s32.totalorder %s206, 1
                  %s211 = sphi %s154, %s154
                  %s212 = sphi %s148, %s148
                $region50: #{gnn_mix_forward.11} parent=46 // loop_header_branch
                  %209 = sbr.rel (%p207) target = $region54
                $region51: #{gnn_mix_forward.11} parent=46 // loop_body
                  %v213 = vld [vmem:[%s211] sm:$0xff]
                  %214 = vst [vmem:[%s212] sm:$0xff] %v213
                  %v215 = vld [vmem:[%s211 + $0x10] sm:$0xff]
                  %216 = vst [vmem:[%s212 + $0x8] sm:$0xff] %v215
                  %v217 = vld [vmem:[%s211 + $0x20] sm:$0xff]
                  %218 = vst [vmem:[%s212 + $0x10] sm:$0xff] %v217
                  %v219 = vld [vmem:[%s211 + $0x30] sm:$0xff]
                  %220 = vst [vmem:[%s212 + $0x18] sm:$0xff] %v219
                  %v221 = vld [vmem:[%s211 + $0x40] sm:$0xff]
                  %222 = vst [vmem:[%s212 + $0x20] sm:$0xff] %v221
                  %v223 = vld [vmem:[%s211 + $0x50] sm:$0xff]
                  %224 = vst [vmem:[%s212 + $0x28] sm:$0xff] %v223
                  %v225 = vld [vmem:[%s211 + $0x60] sm:$0xff]
                  %226 = vst [vmem:[%s212 + $0x30] sm:$0xff] %v225
                  %v227 = vld [vmem:[%s211 + $0x70] sm:$0xff]
                  %228 = vst [vmem:[%s212 + $0x38] sm:$0xff] %v227
                  %v229 = vld [vmem:[%s211 + $0x80] sm:$0xff]
                  %230 = vst [vmem:[%s212 + $0x40] sm:$0xff] %v229
                  %v231 = vld [vmem:[%s211 + $0x90] sm:$0xff]
                  %232 = vst [vmem:[%s212 + $0x48] sm:$0xff] %v231
                  %v233 = vld [vmem:[%s211 + $0xa0] sm:$0xff]
                  %234 = vst [vmem:[%s212 + $0x50] sm:$0xff] %v233
                  %v235 = vld [vmem:[%s211 + $0xb0] sm:$0xff]
                  %236 = vst [vmem:[%s212 + $0x58] sm:$0xff] %v235
                  %v237 = vld [vmem:[%s211 + $0xc0] sm:$0xff]
                  %238 = vst [vmem:[%s212 + $0x60] sm:$0xff] %v237
                  %v239 = vld [vmem:[%s211 + $0xd0] sm:$0xff]
                  %240 = vst [vmem:[%s212 + $0x68] sm:$0xff] %v239
                  %v241 = vld [vmem:[%s211 + $0xe0] sm:$0xff]
                  %242 = vst [vmem:[%s212 + $0x70] sm:$0xff] %v241
                  %v243 = vld [vmem:[%s211 + $0xf0] sm:$0xff]
                  %244 = vst [vmem:[%s212 + $0x78] sm:$0xff] %v243
                $region52: #{gnn_mix_forward.11} parent=46 // loop_footer
                  %s210 = sadd.s32 1, %s206
                $region53: #{gnn_mix_forward.11} parent=46 // loop_footer_branch
                  %205 = sbr.rel target = $region49
                $region54: #{gnn_mix_forward.11} parent=46 // loop_exit
                  _
              $region47: #{gnn_mix_forward.11} parent=31 // pred_fallthru
                _
              // Predicated region
              $region55: #{gnn_mix_forward.11} parent=31 // pred_check
                _
              $region56: #{gnn_mix_forward.11} parent=31 // pred_check_branch
                %246 = sbr.rel target = $region58
              $region57: #{gnn_mix_forward.11} parent=31 // pred_region
                _
              $region58: #{gnn_mix_forward.11} parent=31 // pred_fallthru
                _
            $region32: #{gnn_mix_forward.11} parent=27 // pred_fallthru
              _
            // Predicated region
            $region33: #{gnn_mix_forward.11} parent=27 // pred_check
              _
            $region34: #{gnn_mix_forward.11} parent=27 // pred_check_branch
              %160 = sbr.rel target = $region36
            $region35: #{gnn_mix_forward.11} parent=27 // pred_region
              %s162 = ssub.s32 256, 1
              loop: start=0, step=1, limit=1
              $region37: #{gnn_mix_forward.11} parent=35 // loop_pre_header
                _
              $region38: #{gnn_mix_forward.11} parent=35 // loop_header
                %s164 = sphi 0, %s168
                %p165 = scmp.ge.s32.totalorder %s164, 1
                %s169 = sphi %s154, %s154
                %s170 = sphi %s148, %s148
              $region39: #{gnn_mix_forward.11} parent=35 // loop_header_branch
                %167 = sbr.rel (%p165) target = $region43
              $region40: #{gnn_mix_forward.11} parent=35 // loop_body
                %v171 = vld [vmem:[%s169] sm:%s162]
                %172 = vst [vmem:[%s170] sm:%s162] %v171
                %v173 = vld [vmem:[%s169 + $0x10] sm:%s162]
                %174 = vst [vmem:[%s170 + $0x8] sm:%s162] %v173
                %v175 = vld [vmem:[%s169 + $0x20] sm:%s162]
                %176 = vst [vmem:[%s170 + $0x10] sm:%s162] %v175
                %v177 = vld [vmem:[%s169 + $0x30] sm:%s162]
                %178 = vst [vmem:[%s170 + $0x18] sm:%s162] %v177
                %v179 = vld [vmem:[%s169 + $0x40] sm:%s162]
                %180 = vst [vmem:[%s170 + $0x20] sm:%s162] %v179
                %v181 = vld [vmem:[%s169 + $0x50] sm:%s162]
                %182 = vst [vmem:[%s170 + $0x28] sm:%s162] %v181
                %v183 = vld [vmem:[%s169 + $0x60] sm:%s162]
                %184 = vst [vmem:[%s170 + $0x30] sm:%s162] %v183
                %v185 = vld [vmem:[%s169 + $0x70] sm:%s162]
                %186 = vst [vmem:[%s170 + $0x38] sm:%s162] %v185
                %v187 = vld [vmem:[%s169 + $0x80] sm:%s162]
                %188 = vst [vmem:[%s170 + $0x40] sm:%s162] %v187
                %v189 = vld [vmem:[%s169 + $0x90] sm:%s162]
                %190 = vst [vmem:[%s170 + $0x48] sm:%s162] %v189
                %v191 = vld [vmem:[%s169 + $0xa0] sm:%s162]
                %192 = vst [vmem:[%s170 + $0x50] sm:%s162] %v191
                %v193 = vld [vmem:[%s169 + $0xb0] sm:%s162]
                %194 = vst [vmem:[%s170 + $0x58] sm:%s162] %v193
                %v195 = vld [vmem:[%s169 + $0xc0] sm:%s162]
                %196 = vst [vmem:[%s170 + $0x60] sm:%s162] %v195
                %v197 = vld [vmem:[%s169 + $0xd0] sm:%s162]
                %198 = vst [vmem:[%s170 + $0x68] sm:%s162] %v197
                %v199 = vld [vmem:[%s169 + $0xe0] sm:%s162]
                %200 = vst [vmem:[%s170 + $0x70] sm:%s162] %v199
                %v201 = vld [vmem:[%s169 + $0xf0] sm:%s162]
                %202 = vst [vmem:[%s170 + $0x78] sm:%s162] %v201
              $region41: #{gnn_mix_forward.11} parent=35 // loop_footer
                %s168 = sadd.s32 1, %s164
              $region42: #{gnn_mix_forward.11} parent=35 // loop_footer_branch
                %163 = sbr.rel target = $region38
              $region43: #{gnn_mix_forward.11} parent=35 // loop_exit
                _
            $region36: #{gnn_mix_forward.11} parent=27 // pred_fallthru
              _
          $region28: #{gnn_mix_forward.11} parent=23 // pred_fallthru
            _
          %247 = vnop
        $region24: #{gnn_mix_forward.11} parent=19 // pred_fallthru
          _
      $region20: #{gnn_mix_forward.11} parent=5 // pred_fallthru
        _
      %p248 = scmp.le.s32.totalorder 1, %s8
      %p249 = scmp.lt.s32.totalorder %s8, 3
      %p250 = pnand %p248, %p249
      %p251 = pneg %p250
      // Predicated region
      $region59: #{gnn_mix_forward.11} parent=5 // pred_check
        _
      $region60: #{gnn_mix_forward.11} parent=5 // pred_check_branch
        %253 = sbr.rel (%p250) target = $region62
      $region61: #{gnn_mix_forward.11} parent=5 // pred_region
        %s254 = ssub.s32 %s8, 1
        %s255 = sand.u32 %s70, 1
        %s256 = sand.u32 %s70, 1
        %s257 = smul.addr %s256, 128
        %s258 = scalar_lea.vmem [#allocation3], %s257
        // Predicated region
        $region63: #{gnn_mix_forward.11} parent=61 // pred_check
          %p259 = pneg %p83
        $region64: #{gnn_mix_forward.11} parent=61 // pred_check_branch
          %261 = sbr.rel (%p259) target = $region66
        $region65: #{gnn_mix_forward.11} parent=61 // pred_region
          _
        $region66: #{gnn_mix_forward.11} parent=61 // pred_fallthru
          _
        %s262 = smul.u32 16, %s18
        %p263 = scmp.lt.s32.totalorder %s262, 15
        %s264 = scalar_select %p263, %s262, 15
        %p265 = scmp.lt.s32.totalorder %s20, 0
        %s266 = scalar_select %p265, %s20, 0
        %s267 = sadd.s32 %s266, %s264
        %s268 = smul.addr %s267, 4
        %s269 = scalar_lea.vmem %s0, %s268
        %p270 = pneg %p55
        %p271 = pneg %p52
        %s272 = sand.u32 %s70, 1
        %s273 = sand.u32 %s70, 1
        %s274 = smul.addr %s273, 128
        %s275 = scalar_lea.vmem [#allocation3], %s274
        %p276 = pneg %p83
        %p277 = pneg %p80
        %p278 = pneg %p111
        %p279 = pneg %p108
        %s280 = sand.u32 %s98, 1
        %s281 = sand.u32 %s98, 1
        %s282 = smul.addr %s281, 128
        %s283 = scalar_lea.vmem [#allocation4], %s282
        %s284 = smul.u32 16, %s18
        %p285 = scmp.lt.s32.totalorder %s284, 15
        %s286 = scalar_select %p285, %s284, 15
        %p287 = scmp.lt.s32.totalorder %s20, 0
        %s288 = scalar_select %p287, %s20, 0
        %s289 = sadd.s32 %s288, %s286
        %s290 = smul.addr %s289, 4
        %s291 = scalar_lea.vmem %s0, %s290
        %s292 = smul.u32 16, %s18
        %s293 = smul.u32 16, %s20
        %s294 = smul.u32 2, %s19
        %s295 = smul.u32 16, %s18
        %s296 = smul.u32 2, %s19
        %p297 = scmp.eq.s32.totalorder %s20, 0
        // Predicated region
        $region67: #{gnn_mix_forward.11} parent=61 // pred_check
          %p298 = pneg %p297
        $region68: #{gnn_mix_forward.11} parent=61 // pred_check_branch
          %300 = sbr.rel (%p298) target = $region70
        $region69: #{gnn_mix_forward.11} parent=61 // pred_region
          %301 = vst [vmem:[#allocation2] sm:$0xff] 0.0
          %302 = vst [vmem:[#allocation2 + $0x8] sm:$0xff] 0.0
          %303 = vst [vmem:[#allocation2 + $0x10] sm:$0xff] 0.0
          %304 = vst [vmem:[#allocation2 + $0x18] sm:$0xff] 0.0
          %305 = vst [vmem:[#allocation2 + $0x20] sm:$0xff] 0.0
          %306 = vst [vmem:[#allocation2 + $0x28] sm:$0xff] 0.0
          %307 = vst [vmem:[#allocation2 + $0x30] sm:$0xff] 0.0
          %308 = vst [vmem:[#allocation2 + $0x38] sm:$0xff] 0.0
          %309 = vst [vmem:[#allocation2 + $0x40] sm:$0xff] 0.0
          %310 = vst [vmem:[#allocation2 + $0x48] sm:$0xff] 0.0
          %311 = vst [vmem:[#allocation2 + $0x50] sm:$0xff] 0.0
          %312 = vst [vmem:[#allocation2 + $0x58] sm:$0xff] 0.0
          %313 = vst [vmem:[#allocation2 + $0x60] sm:$0xff] 0.0
          %314 = vst [vmem:[#allocation2 + $0x68] sm:$0xff] 0.0
          %315 = vst [vmem:[#allocation2 + $0x70] sm:$0xff] 0.0
          %316 = vst [vmem:[#allocation2 + $0x78] sm:$0xff] 0.0
          %317 = vst [vmem:[#allocation2 + $0x80] sm:$0xff] 0.0
          %318 = vst [vmem:[#allocation2 + $0x88] sm:$0xff] 0.0
          %319 = vst [vmem:[#allocation2 + $0x90] sm:$0xff] 0.0
          %320 = vst [vmem:[#allocation2 + $0x98] sm:$0xff] 0.0
          %321 = vst [vmem:[#allocation2 + $0xa0] sm:$0xff] 0.0
          %322 = vst [vmem:[#allocation2 + $0xa8] sm:$0xff] 0.0
          %323 = vst [vmem:[#allocation2 + $0xb0] sm:$0xff] 0.0
          %324 = vst [vmem:[#allocation2 + $0xb8] sm:$0xff] 0.0
          %325 = vst [vmem:[#allocation2 + $0xc0] sm:$0xff] 0.0
          %326 = vst [vmem:[#allocation2 + $0xc8] sm:$0xff] 0.0
          %327 = vst [vmem:[#allocation2 + $0xd0] sm:$0xff] 0.0
          %328 = vst [vmem:[#allocation2 + $0xd8] sm:$0xff] 0.0
          %329 = vst [vmem:[#allocation2 + $0xe0] sm:$0xff] 0.0
          %330 = vst [vmem:[#allocation2 + $0xe8] sm:$0xff] 0.0
          %331 = vst [vmem:[#allocation2 + $0xf0] sm:$0xff] 0.0
          %332 = vst [vmem:[#allocation2 + $0xf8] sm:$0xff] 0.0
        $region70: #{gnn_mix_forward.11} parent=61 // pred_fallthru
          _
        %v333 = vld [vmem:[#allocation2] sm:$0xff]
        %v334 = vld [vmem:[#allocation2 + $0x8] sm:$0xff]
        %v335 = vld [vmem:[#allocation2 + $0x10] sm:$0xff]
        %v336 = vld [vmem:[#allocation2 + $0x18] sm:$0xff]
        %v337 = vld [vmem:[#allocation2 + $0x20] sm:$0xff]
        %v338 = vld [vmem:[#allocation2 + $0x28] sm:$0xff]
        %v339 = vld [vmem:[#allocation2 + $0x30] sm:$0xff]
        %v340 = vld [vmem:[#allocation2 + $0x38] sm:$0xff]
        %v341 = vld [vmem:[#allocation2 + $0x40] sm:$0xff]
        %v342 = vld [vmem:[#allocation2 + $0x48] sm:$0xff]
        %v343 = vld [vmem:[#allocation2 + $0x50] sm:$0xff]
        %v344 = vld [vmem:[#allocation2 + $0x58] sm:$0xff]
        %v345 = vld [vmem:[#allocation2 + $0x60] sm:$0xff]
        %v346 = vld [vmem:[#allocation2 + $0x68] sm:$0xff]
        %v347 = vld [vmem:[#allocation2 + $0x70] sm:$0xff]
        %v348 = vld [vmem:[#allocation2 + $0x78] sm:$0xff]
        %v349 = vld [vmem:[#allocation2 + $0x80] sm:$0xff]
        %v350 = vld [vmem:[#allocation2 + $0x88] sm:$0xff]
        %v351 = vld [vmem:[#allocation2 + $0x90] sm:$0xff]
        %v352 = vld [vmem:[#allocation2 + $0x98] sm:$0xff]
        %v353 = vld [vmem:[#allocation2 + $0xa0] sm:$0xff]
        %v354 = vld [vmem:[#allocation2 + $0xa8] sm:$0xff]
        %v355 = vld [vmem:[#allocation2 + $0xb0] sm:$0xff]
        %v356 = vld [vmem:[#allocation2 + $0xb8] sm:$0xff]
        %v357 = vld [vmem:[#allocation2 + $0xc0] sm:$0xff]
        %v358 = vld [vmem:[#allocation2 + $0xc8] sm:$0xff]
        %v359 = vld [vmem:[#allocation2 + $0xd0] sm:$0xff]
        %v360 = vld [vmem:[#allocation2 + $0xd8] sm:$0xff]
        %v361 = vld [vmem:[#allocation2 + $0xe0] sm:$0xff]
        %v362 = vld [vmem:[#allocation2 + $0xe8] sm:$0xff]
        %v363 = vld [vmem:[#allocation2 + $0xf0] sm:$0xff]
        %v364 = vld [vmem:[#allocation2 + $0xf8] sm:$0xff]
        %v365 = vld [vmem:[%s291] sm:$0xf]
        %v366 = vld [vmem:[%s291 + $0x4] sm:$0xf]
        %v367 = vld [vmem:[%s291 + $0x8] sm:$0xf]
        %v368 = vld [vmem:[%s291 + $0xc] sm:$0xf]
        %v369 = vld [vmem:[%s291 + $0x10] sm:$0xf]
        %v370 = vld [vmem:[%s291 + $0x14] sm:$0xf]
        %v371 = vld [vmem:[%s291 + $0x18] sm:$0xf]
        %v372 = vld [vmem:[%s291 + $0x1c] sm:$0xf]
        %v373 = vld [vmem:[%s291 + $0x20] sm:$0xf]
        %v374 = vld [vmem:[%s291 + $0x24] sm:$0xf]
        %v375 = vld [vmem:[%s291 + $0x28] sm:$0xf]
        %v376 = vld [vmem:[%s291 + $0x2c] sm:$0xf]
        %v377 = vld [vmem:[%s291 + $0x30] sm:$0xf]
        %v378 = vld [vmem:[%s291 + $0x34] sm:$0xf]
        %v379 = vld [vmem:[%s291 + $0x38] sm:$0xf]
        %v380 = vld [vmem:[%s291 + $0x3c] sm:$0xf]
        %v381 = vld [vmem:[%s258] sm:$0xff]
        %v382 = vld [vmem:[%s258 + $0x8] sm:$0xff]
        %v383 = vld [vmem:[%s258 + $0x10] sm:$0xff]
        %v384 = vld [vmem:[%s258 + $0x18] sm:$0xff]
        %v385 = vld [vmem:[%s258 + $0x20] sm:$0xff]
        %v386 = vld [vmem:[%s258 + $0x28] sm:$0xff]
        %v387 = vld [vmem:[%s258 + $0x30] sm:$0xff]
        %v388 = vld [vmem:[%s258 + $0x38] sm:$0xff]
        %v389 = vld [vmem:[%s258 + $0x40] sm:$0xff]
        %v390 = vld [vmem:[%s258 + $0x48] sm:$0xff]
        %v391 = vld [vmem:[%s258 + $0x50] sm:$0xff]
        %v392 = vld [vmem:[%s258 + $0x58] sm:$0xff]
        %v393 = vld [vmem:[%s258 + $0x60] sm:$0xff]
        %v394 = vld [vmem:[%s258 + $0x68] sm:$0xff]
        %v395 = vld [vmem:[%s258 + $0x70] sm:$0xff]
        %v396 = vld [vmem:[%s258 + $0x78] sm:$0xff]
        %v413 = vunpack.c.l.b16 %v365
        %v414 = vunpack.c.l.b16 %v366
        %v415 = vunpack.c.l.b16 %v367
        %v416 = vunpack.c.l.b16 %v368
        %v417 = vunpack.c.l.b16 %v369
        %v418 = vunpack.c.l.b16 %v370
        %v419 = vunpack.c.l.b16 %v371
        %v420 = vunpack.c.l.b16 %v372
        %v421 = vunpack.c.l.b16 %v373
        %v422 = vunpack.c.l.b16 %v374
        %v423 = vunpack.c.l.b16 %v375
        %v424 = vunpack.c.l.b16 %v376
        %v425 = vunpack.c.l.b16 %v377
        %v426 = vunpack.c.l.b16 %v378
        %v427 = vunpack.c.l.b16 %v379
        %v428 = vunpack.c.l.b16 %v380
        %v429 = vpack.c.b16 %v414, %v413
        %v430 = vpack.c.b16 %v416, %v415
        %v431 = vpack.c.b16 %v418, %v417
        %v432 = vpack.c.b16 %v420, %v419
        %v433 = vpack.c.b16 %v422, %v421
        %v434 = vpack.c.b16 %v424, %v423
        %v435 = vpack.c.b16 %v426, %v425
        %v436 = vpack.c.b16 %v428, %v427
        %v461 = vunpack.c.l.b16 %v381
        %v462 = vunpack.c.h.b16 %v381
        %v463 = vunpack.c.l.b16 %v382
        %v464 = vunpack.c.h.b16 %v382
        %v465 = vunpack.c.l.b16 %v383
        %v466 = vunpack.c.h.b16 %v383
        %v467 = vunpack.c.l.b16 %v384
        %v468 = vunpack.c.h.b16 %v384
        %v469 = vunpack.c.l.b16 %v385
        %v470 = vunpack.c.h.b16 %v385
        %v471 = vunpack.c.l.b16 %v386
        %v472 = vunpack.c.h.b16 %v386
        %v473 = vunpack.c.l.b16 %v387
        %v474 = vunpack.c.h.b16 %v387
        %v475 = vunpack.c.l.b16 %v388
        %v476 = vunpack.c.h.b16 %v388
        %v477 = vunpack.c.l.b16 %v389
        %v478 = vunpack.c.h.b16 %v389
        %v479 = vunpack.c.l.b16 %v390
        %v480 = vunpack.c.h.b16 %v390
        %v481 = vunpack.c.l.b16 %v391
        %v482 = vunpack.c.h.b16 %v391
        %v483 = vunpack.c.l.b16 %v392
        %v484 = vunpack.c.h.b16 %v392
        %v485 = vunpack.c.l.b16 %v393
        %v486 = vunpack.c.h.b16 %v393
        %v487 = vunpack.c.l.b16 %v394
        %v488 = vunpack.c.h.b16 %v394
        %v489 = vunpack.c.l.b16 %v395
        %v490 = vunpack.c.h.b16 %v395
        %v491 = vunpack.c.l.b16 %v396
        %v492 = vunpack.c.h.b16 %v396
        %v493 = vpack.c.b16 %v463, %v461
        %v494 = vpack.c.b16 %v464, %v462
        %v495 = vpack.c.b16 %v467, %v465
        %v496 = vpack.c.b16 %v468, %v466
        %v497 = vpack.c.b16 %v471, %v469
        %v498 = vpack.c.b16 %v472, %v470
        %v499 = vpack.c.b16 %v475, %v473
        %v500 = vpack.c.b16 %v476, %v474
        %v501 = vpack.c.b16 %v479, %v477
        %v502 = vpack.c.b16 %v480, %v478
        %v503 = vpack.c.b16 %v483, %v481
        %v504 = vpack.c.b16 %v484, %v482
        %v505 = vpack.c.b16 %v487, %v485
        %v506 = vpack.c.b16 %v488, %v486
        %v507 = vpack.c.b16 %v491, %v489
        %v508 = vpack.c.b16 %v492, %v490
        %525 = vmatpush.bf16.msra.mxu0 %v507
        %526 = vmatpush.bf16.msra.mxu0 %v505
        %527 = vmatpush.bf16.msra.mxu0 %v503
        %528 = vmatpush.bf16.msra.mxu0 %v501
        %529 = vmatpush.bf16.msra.mxu0 %v499
        %530 = vmatpush.bf16.msra.mxu0 %v497
        %531 = vmatpush.bf16.msra.mxu0 %v495
        %532 = vmatpush.bf16.msra.mxu0 %v493
        %533 = vmatmul.bf16.gmra.mxu0 %v429
        %v534 = vpop.f32.mrf.mxu0
        %v535 = vadd.f32 0.0, %v534
        %v536 = vpop.f32.mrf.mxu0
        %v537 = vadd.f32 0.0, %v536
        %538 = vmatmul.bf16.gmra.mxu0 %v430
        %v539 = vpop.f32.mrf.mxu0
        %v540 = vadd.f32 0.0, %v539
        %v541 = vpop.f32.mrf.mxu0
        %v542 = vadd.f32 0.0, %v541
        %543 = vmatmul.bf16.gmra.mxu0 %v431
        %v544 = vpop.f32.mrf.mxu0
        %v545 = vadd.f32 0.0, %v544
        %v546 = vpop.f32.mrf.mxu0
        %v547 = vadd.f32 0.0, %v546
        %548 = vmatmul.bf16.gmra.mxu0 %v432
        %v549 = vpop.f32.mrf.mxu0
        %v550 = vadd.f32 0.0, %v549
        %v551 = vpop.f32.mrf.mxu0
        %v552 = vadd.f32 0.0, %v551
        %553 = vmatmul.bf16.gmra.mxu0 %v433
        %v554 = vpop.f32.mrf.mxu0
        %v555 = vadd.f32 0.0, %v554
        %v556 = vpop.f32.mrf.mxu0
        %v557 = vadd.f32 0.0, %v556
        %558 = vmatmul.bf16.gmra.mxu0 %v434
        %v559 = vpop.f32.mrf.mxu0
        %v560 = vadd.f32 0.0, %v559
        %v561 = vpop.f32.mrf.mxu0
        %v562 = vadd.f32 0.0, %v561
        %563 = vmatmul.bf16.gmra.mxu0 %v435
        %v564 = vpop.f32.mrf.mxu0
        %v565 = vadd.f32 0.0, %v564
        %v566 = vpop.f32.mrf.mxu0
        %v567 = vadd.f32 0.0, %v566
        %568 = vmatmul.bf16.gmra.mxu0 %v436
        %v569 = vpop.f32.mrf.mxu0
        %v570 = vadd.f32 0.0, %v569
        %v571 = vpop.f32.mrf.mxu0
        %v572 = vadd.f32 0.0, %v571
        %573 = vdwg.mxu0
        %574 = vmatpush.bf16.msra.mxu0 %v508
        %575 = vmatpush.bf16.msra.mxu0 %v506
        %576 = vmatpush.bf16.msra.mxu0 %v504
        %577 = vmatpush.bf16.msra.mxu0 %v502
        %578 = vmatpush.bf16.msra.mxu0 %v500
        %579 = vmatpush.bf16.msra.mxu0 %v498
        %580 = vmatpush.bf16.msra.mxu0 %v496
        %581 = vmatpush.bf16.msra.mxu0 %v494
        %582 = vmatmul.bf16.gmra.mxu0 %v429
        %v583 = vpop.f32.mrf.mxu0
        %v584 = vadd.f32 0.0, %v583
        %v585 = vpop.f32.mrf.mxu0
        %v586 = vadd.f32 0.0, %v585
        %587 = vmatmul.bf16.gmra.mxu0 %v430
        %v588 = vpop.f32.mrf.mxu0
        %v589 = vadd.f32 0.0, %v588
        %v590 = vpop.f32.mrf.mxu0
        %v591 = vadd.f32 0.0, %v590
        %592 = vmatmul.bf16.gmra.mxu0 %v431
        %v593 = vpop.f32.mrf.mxu0
        %v594 = vadd.f32 0.0, %v593
        %v595 = vpop.f32.mrf.mxu0
        %v596 = vadd.f32 0.0, %v595
        %597 = vmatmul.bf16.gmra.mxu0 %v432
        %v598 = vpop.f32.mrf.mxu0
        %v599 = vadd.f32 0.0, %v598
        %v600 = vpop.f32.mrf.mxu0
        %v601 = vadd.f32 0.0, %v600
        %602 = vmatmul.bf16.gmra.mxu0 %v433
        %v603 = vpop.f32.mrf.mxu0
        %v604 = vadd.f32 0.0, %v603
        %v605 = vpop.f32.mrf.mxu0
        %v606 = vadd.f32 0.0, %v605
        %607 = vmatmul.bf16.gmra.mxu0 %v434
        %v608 = vpop.f32.mrf.mxu0
        %v609 = vadd.f32 0.0, %v608
        %v610 = vpop.f32.mrf.mxu0
        %v611 = vadd.f32 0.0, %v610
        %612 = vmatmul.bf16.gmra.mxu0 %v435
        %v613 = vpop.f32.mrf.mxu0
        %v614 = vadd.f32 0.0, %v613
        %v615 = vpop.f32.mrf.mxu0
        %v616 = vadd.f32 0.0, %v615
        %617 = vmatmul.bf16.gmra.mxu0 %v436
        %v618 = vpop.f32.mrf.mxu0
        %v619 = vadd.f32 0.0, %v618
        %v620 = vpop.f32.mrf.mxu0
        %v621 = vadd.f32 0.0, %v620
        %622 = vdwg.mxu0
        %v623 = vadd.f32 %v333, %v535
        %v624 = vadd.f32 %v334, %v584
        %v625 = vadd.f32 %v335, %v537
        %v626 = vadd.f32 %v336, %v586
        %v627 = vadd.f32 %v337, %v540
        %v628 = vadd.f32 %v338, %v589
        %v629 = vadd.f32 %v339, %v542
        %v630 = vadd.f32 %v340, %v591
        %v631 = vadd.f32 %v341, %v545
        %v632 = vadd.f32 %v342, %v594
        %v633 = vadd.f32 %v343, %v547
        %v634 = vadd.f32 %v344, %v596
        %v635 = vadd.f32 %v345, %v550
        %v636 = vadd.f32 %v346, %v599
        %v637 = vadd.f32 %v347, %v552
        %v638 = vadd.f32 %v348, %v601
        %v639 = vadd.f32 %v349, %v555
        %v640 = vadd.f32 %v350, %v604
        %v641 = vadd.f32 %v351, %v557
        %v642 = vadd.f32 %v352, %v606
        %v643 = vadd.f32 %v353, %v560
        %v644 = vadd.f32 %v354, %v609
        %v645 = vadd.f32 %v355, %v562
        %v646 = vadd.f32 %v356, %v611
        %v647 = vadd.f32 %v357, %v565
        %v648 = vadd.f32 %v358, %v614
        %v649 = vadd.f32 %v359, %v567
        %v650 = vadd.f32 %v360, %v616
        %v651 = vadd.f32 %v361, %v570
        %v652 = vadd.f32 %v362, %v619
        %v653 = vadd.f32 %v363, %v572
        %v654 = vadd.f32 %v364, %v621
        %655 = vst [vmem:[#allocation2] sm:$0xff] %v623
        %656 = vst [vmem:[#allocation2 + $0x8] sm:$0xff] %v624
        %657 = vst [vmem:[#allocation2 + $0x10] sm:$0xff] %v625
        %658 = vst [vmem:[#allocation2 + $0x18] sm:$0xff] %v626
        %659 = vst [vmem:[#allocation2 + $0x20] sm:$0xff] %v627
        %660 = vst [vmem:[#allocation2 + $0x28] sm:$0xff] %v628
        %661 = vst [vmem:[#allocation2 + $0x30] sm:$0xff] %v629
        %662 = vst [vmem:[#allocation2 + $0x38] sm:$0xff] %v630
        %663 = vst [vmem:[#allocation2 + $0x40] sm:$0xff] %v631
        %664 = vst [vmem:[#allocation2 + $0x48] sm:$0xff] %v632
        %665 = vst [vmem:[#allocation2 + $0x50] sm:$0xff] %v633
        %666 = vst [vmem:[#allocation2 + $0x58] sm:$0xff] %v634
        %667 = vst [vmem:[#allocation2 + $0x60] sm:$0xff] %v635
        %668 = vst [vmem:[#allocation2 + $0x68] sm:$0xff] %v636
        %669 = vst [vmem:[#allocation2 + $0x70] sm:$0xff] %v637
        %670 = vst [vmem:[#allocation2 + $0x78] sm:$0xff] %v638
        %671 = vst [vmem:[#allocation2 + $0x80] sm:$0xff] %v639
        %672 = vst [vmem:[#allocation2 + $0x88] sm:$0xff] %v640
        %673 = vst [vmem:[#allocation2 + $0x90] sm:$0xff] %v641
        %674 = vst [vmem:[#allocation2 + $0x98] sm:$0xff] %v642
        %675 = vst [vmem:[#allocation2 + $0xa0] sm:$0xff] %v643
        %676 = vst [vmem:[#allocation2 + $0xa8] sm:$0xff] %v644
        %677 = vst [vmem:[#allocation2 + $0xb0] sm:$0xff] %v645
        %678 = vst [vmem:[#allocation2 + $0xb8] sm:$0xff] %v646
        %679 = vst [vmem:[#allocation2 + $0xc0] sm:$0xff] %v647
        %680 = vst [vmem:[#allocation2 + $0xc8] sm:$0xff] %v648
        %681 = vst [vmem:[#allocation2 + $0xd0] sm:$0xff] %v649
        %682 = vst [vmem:[#allocation2 + $0xd8] sm:$0xff] %v650
        %683 = vst [vmem:[#allocation2 + $0xe0] sm:$0xff] %v651
        %684 = vst [vmem:[#allocation2 + $0xe8] sm:$0xff] %v652
        %685 = vst [vmem:[#allocation2 + $0xf0] sm:$0xff] %v653
        %686 = vst [vmem:[#allocation2 + $0xf8] sm:$0xff] %v654
        // Predicated region
        $region71: #{gnn_mix_forward.11} parent=61 // pred_check
          %p687 = pneg %p297
        $region72: #{gnn_mix_forward.11} parent=61 // pred_check_branch
          %689 = sbr.rel (%p687) target = $region74
        $region73: #{gnn_mix_forward.11} parent=61 // pred_region
          %v690 = vld [vmem:[#allocation2] sm:$0xff]
          %v691 = vld [vmem:[#allocation2 + $0x8] sm:$0xff]
          %v692 = vld [vmem:[#allocation2 + $0x10] sm:$0xff]
          %v693 = vld [vmem:[#allocation2 + $0x18] sm:$0xff]
          %v694 = vld [vmem:[#allocation2 + $0x20] sm:$0xff]
          %v695 = vld [vmem:[#allocation2 + $0x28] sm:$0xff]
          %v696 = vld [vmem:[#allocation2 + $0x30] sm:$0xff]
          %v697 = vld [vmem:[#allocation2 + $0x38] sm:$0xff]
          %v698 = vld [vmem:[#allocation2 + $0x40] sm:$0xff]
          %v699 = vld [vmem:[#allocation2 + $0x48] sm:$0xff]
          %v700 = vld [vmem:[#allocation2 + $0x50] sm:$0xff]
          %v701 = vld [vmem:[#allocation2 + $0x58] sm:$0xff]
          %v702 = vld [vmem:[#allocation2 + $0x60] sm:$0xff]
          %v703 = vld [vmem:[#allocation2 + $0x68] sm:$0xff]
          %v704 = vld [vmem:[#allocation2 + $0x70] sm:$0xff]
          %v705 = vld [vmem:[#allocation2 + $0x78] sm:$0xff]
          %v706 = vld [vmem:[#allocation2 + $0x80] sm:$0xff]
          %v707 = vld [vmem:[#allocation2 + $0x88] sm:$0xff]
          %v708 = vld [vmem:[#allocation2 + $0x90] sm:$0xff]
          %v709 = vld [vmem:[#allocation2 + $0x98] sm:$0xff]
          %v710 = vld [vmem:[#allocation2 + $0xa0] sm:$0xff]
          %v711 = vld [vmem:[#allocation2 + $0xa8] sm:$0xff]
          %v712 = vld [vmem:[#allocation2 + $0xb0] sm:$0xff]
          %v713 = vld [vmem:[#allocation2 + $0xb8] sm:$0xff]
          %v714 = vld [vmem:[#allocation2 + $0xc0] sm:$0xff]
          %v715 = vld [vmem:[#allocation2 + $0xc8] sm:$0xff]
          %v716 = vld [vmem:[#allocation2 + $0xd0] sm:$0xff]
          %v717 = vld [vmem:[#allocation2 + $0xd8] sm:$0xff]
          %v718 = vld [vmem:[#allocation2 + $0xe0] sm:$0xff]
          %v719 = vld [vmem:[#allocation2 + $0xe8] sm:$0xff]
          %v720 = vld [vmem:[#allocation2 + $0xf0] sm:$0xff]
          %v721 = vld [vmem:[#allocation2 + $0xf8] sm:$0xff]
          %v722 = vmax.f32 %v690, 0.0
          %v723 = vmax.f32 %v691, 0.0
          %v724 = vmax.f32 %v692, 0.0
          %v725 = vmax.f32 %v693, 0.0
          %v726 = vmax.f32 %v694, 0.0
          %v727 = vmax.f32 %v695, 0.0
          %v728 = vmax.f32 %v696, 0.0
          %v729 = vmax.f32 %v697, 0.0
          %v730 = vmax.f32 %v698, 0.0
          %v731 = vmax.f32 %v699, 0.0
          %v732 = vmax.f32 %v700, 0.0
          %v733 = vmax.f32 %v701, 0.0
          %v734 = vmax.f32 %v702, 0.0
          %v735 = vmax.f32 %v703, 0.0
          %v736 = vmax.f32 %v704, 0.0
          %v737 = vmax.f32 %v705, 0.0
          %v738 = vmax.f32 %v706, 0.0
          %v739 = vmax.f32 %v707, 0.0
          %v740 = vmax.f32 %v708, 0.0
          %v741 = vmax.f32 %v709, 0.0
          %v742 = vmax.f32 %v710, 0.0
          %v743 = vmax.f32 %v711, 0.0
          %v744 = vmax.f32 %v712, 0.0
          %v745 = vmax.f32 %v713, 0.0
          %v746 = vmax.f32 %v714, 0.0
          %v747 = vmax.f32 %v715, 0.0
          %v748 = vmax.f32 %v716, 0.0
          %v749 = vmax.f32 %v717, 0.0
          %v750 = vmax.f32 %v718, 0.0
          %v751 = vmax.f32 %v719, 0.0
          %v752 = vmax.f32 %v720, 0.0
          %v753 = vmax.f32 %v721, 0.0
          %v754 = vpack.c.bf16 %v723, %v722
          %v755 = vpack.c.bf16 %v725, %v724
          %v756 = vpack.c.bf16 %v727, %v726
          %v757 = vpack.c.bf16 %v729, %v728
          %v758 = vpack.c.bf16 %v731, %v730
          %v759 = vpack.c.bf16 %v733, %v732
          %v760 = vpack.c.bf16 %v735, %v734
          %v761 = vpack.c.bf16 %v737, %v736
          %v762 = vpack.c.bf16 %v739, %v738
          %v763 = vpack.c.bf16 %v741, %v740
          %v764 = vpack.c.bf16 %v743, %v742
          %v765 = vpack.c.bf16 %v745, %v744
          %v766 = vpack.c.bf16 %v747, %v746
          %v767 = vpack.c.bf16 %v749, %v748
          %v768 = vpack.c.bf16 %v751, %v750
          %v769 = vpack.c.bf16 %v753, %v752
          %770 = vst [vmem:[%s283] sm:$0xff] %v754
          %771 = vst [vmem:[%s283 + $0x8] sm:$0xff] %v755
          %772 = vst [vmem:[%s283 + $0x10] sm:$0xff] %v756
          %773 = vst [vmem:[%s283 + $0x18] sm:$0xff] %v757
          %774 = vst [vmem:[%s283 + $0x20] sm:$0xff] %v758
          %775 = vst [vmem:[%s283 + $0x28] sm:$0xff] %v759
          %776 = vst [vmem:[%s283 + $0x30] sm:$0xff] %v760
          %777 = vst [vmem:[%s283 + $0x38] sm:$0xff] %v761
          %778 = vst [vmem:[%s283 + $0x40] sm:$0xff] %v762
          %779 = vst [vmem:[%s283 + $0x48] sm:$0xff] %v763
          %780 = vst [vmem:[%s283 + $0x50] sm:$0xff] %v764
          %781 = vst [vmem:[%s283 + $0x58] sm:$0xff] %v765
          %782 = vst [vmem:[%s283 + $0x60] sm:$0xff] %v766
          %783 = vst [vmem:[%s283 + $0x68] sm:$0xff] %v767
          %784 = vst [vmem:[%s283 + $0x70] sm:$0xff] %v768
          %785 = vst [vmem:[%s283 + $0x78] sm:$0xff] %v769
        $region74: #{gnn_mix_forward.11} parent=61 // pred_fallthru
          _
        %s786 = sand.u32 %s98, 1
        %s787 = sand.u32 %s98, 1
        %s788 = smul.addr %s787, 128
        %s789 = scalar_lea.vmem [#allocation4], %s788
        // Predicated region
        $region75: #{gnn_mix_forward.11} parent=61 // pred_check
          %p790 = pneg %p108
        $region76: #{gnn_mix_forward.11} parent=61 // pred_check_branch
          %792 = sbr.rel (%p790) target = $region78
        $region77: #{gnn_mix_forward.11} parent=61 // pred_region
          %s793 = smul.u32 16, %s18
          %s794 = smul.u32 2, %s19
          %s795 = smul.addr %s793, 4
          %s796 = sadd.s32 %s794, %s795
          %s797 = smul.addr %s796, 4
          %s798 = scalar_lea.vmem %s2, %s797
          // Predicated region
          $region79: #{gnn_mix_forward.11} parent=77 // pred_check
            _
          $region80: #{gnn_mix_forward.11} parent=77 // pred_check_branch
            %800 = sbr.rel (0) target = $region82
          $region81: #{gnn_mix_forward.11} parent=77 // pred_region
            // Predicated region
            $region83: #{gnn_mix_forward.11} parent=81 // pred_check
              _
            $region84: #{gnn_mix_forward.11} parent=81 // pred_check_branch
              %802 = sbr.rel (0) target = $region86
            $region85: #{gnn_mix_forward.11} parent=81 // pred_region
              // Predicated region
              $region98: #{gnn_mix_forward.11} parent=85 // pred_check
                _
              $region99: #{gnn_mix_forward.11} parent=85 // pred_check_branch
                %848 = sbr.rel (0) target = $region101
              $region100: #{gnn_mix_forward.11} parent=85 // pred_region
                loop: start=0, step=1, limit=1
                $region102: #{gnn_mix_forward.11} parent=100 // loop_pre_header
                  _
                $region103: #{gnn_mix_forward.11} parent=100 // loop_header
                  %s850 = sphi 0, %s854
                  %p851 = scmp.ge.s32.totalorder %s850, 1
                  %s855 = sphi %s789, %s789
                  %s856 = sphi %s798, %s798
                $region104: #{gnn_mix_forward.11} parent=100 // loop_header_branch
                  %853 = sbr.rel (%p851) target = $region108
                $region105: #{gnn_mix_forward.11} parent=100 // loop_body
                  %v857 = vld [vmem:[%s855] sm:$0xff]
                  %858 = vst [vmem:[%s856] sm:$0xff] %v857
                  %v859 = vld [vmem:[%s855 + $0x8] sm:$0xff]
                  %860 = vst [vmem:[%s856 + $0x10] sm:$0xff] %v859
                  %v861 = vld [vmem:[%s855 + $0x10] sm:$0xff]
                  %862 = vst [vmem:[%s856 + $0x20] sm:$0xff] %v861
                  %v863 = vld [vmem:[%s855 + $0x18] sm:$0xff]
                  %864 = vst [vmem:[%s856 + $0x30] sm:$0xff] %v863
                  %v865 = vld [vmem:[%s855 + $0x20] sm:$0xff]
                  %866 = vst [vmem:[%s856 + $0x40] sm:$0xff] %v865
                  %v867 = vld [vmem:[%s855 + $0x28] sm:$0xff]
                  %868 = vst [vmem:[%s856 + $0x50] sm:$0xff] %v867
                  %v869 = vld [vmem:[%s855 + $0x30] sm:$0xff]
                  %870 = vst [vmem:[%s856 + $0x60] sm:$0xff] %v869
                  %v871 = vld [vmem:[%s855 + $0x38] sm:$0xff]
                  %872 = vst [vmem:[%s856 + $0x70] sm:$0xff] %v871
                  %v873 = vld [vmem:[%s855 + $0x40] sm:$0xff]
                  %874 = vst [vmem:[%s856 + $0x80] sm:$0xff] %v873
                  %v875 = vld [vmem:[%s855 + $0x48] sm:$0xff]
                  %876 = vst [vmem:[%s856 + $0x90] sm:$0xff] %v875
                  %v877 = vld [vmem:[%s855 + $0x50] sm:$0xff]
                  %878 = vst [vmem:[%s856 + $0xa0] sm:$0xff] %v877
                  %v879 = vld [vmem:[%s855 + $0x58] sm:$0xff]
                  %880 = vst [vmem:[%s856 + $0xb0] sm:$0xff] %v879
                  %v881 = vld [vmem:[%s855 + $0x60] sm:$0xff]
                  %882 = vst [vmem:[%s856 + $0xc0] sm:$0xff] %v881
                  %v883 = vld [vmem:[%s855 + $0x68] sm:$0xff]
                  %884 = vst [vmem:[%s856 + $0xd0] sm:$0xff] %v883
                  %v885 = vld [vmem:[%s855 + $0x70] sm:$0xff]
                  %886 = vst [vmem:[%s856 + $0xe0] sm:$0xff] %v885
                  %v887 = vld [vmem:[%s855 + $0x78] sm:$0xff]
                  %888 = vst [vmem:[%s856 + $0xf0] sm:$0xff] %v887
                $region106: #{gnn_mix_forward.11} parent=100 // loop_footer
                  %s854 = sadd.s32 1, %s850
                $region107: #{gnn_mix_forward.11} parent=100 // loop_footer_branch
                  %849 = sbr.rel target = $region103
                $region108: #{gnn_mix_forward.11} parent=100 // loop_exit
                  _
              $region101: #{gnn_mix_forward.11} parent=85 // pred_fallthru
                _
              // Predicated region
              $region109: #{gnn_mix_forward.11} parent=85 // pred_check
                _
              $region110: #{gnn_mix_forward.11} parent=85 // pred_check_branch
                %890 = sbr.rel target = $region112
              $region111: #{gnn_mix_forward.11} parent=85 // pred_region
                _
              $region112: #{gnn_mix_forward.11} parent=85 // pred_fallthru
                _
            $region86: #{gnn_mix_forward.11} parent=81 // pred_fallthru
              _
            // Predicated region
            $region87: #{gnn_mix_forward.11} parent=81 // pred_check
              _
            $region88: #{gnn_mix_forward.11} parent=81 // pred_check_branch
              %804 = sbr.rel target = $region90
            $region89: #{gnn_mix_forward.11} parent=81 // pred_region
              %s806 = ssub.s32 256, 1
              loop: start=0, step=1, limit=1
              $region91: #{gnn_mix_forward.11} parent=89 // loop_pre_header
                _
              $region92: #{gnn_mix_forward.11} parent=89 // loop_header
                %s808 = sphi 0, %s812
                %p809 = scmp.ge.s32.totalorder %s808, 1
                %s813 = sphi %s789, %s789
                %s814 = sphi %s798, %s798
              $region93: #{gnn_mix_forward.11} parent=89 // loop_header_branch
                %811 = sbr.rel (%p809) target = $region97
              $region94: #{gnn_mix_forward.11} parent=89 // loop_body
                %v815 = vld [vmem:[%s813] sm:%s806]
                %816 = vst [vmem:[%s814] sm:%s806] %v815
                %v817 = vld [vmem:[%s813 + $0x8] sm:%s806]
                %818 = vst [vmem:[%s814 + $0x10] sm:%s806] %v817
                %v819 = vld [vmem:[%s813 + $0x10] sm:%s806]
                %820 = vst [vmem:[%s814 + $0x20] sm:%s806] %v819
                %v821 = vld [vmem:[%s813 + $0x18] sm:%s806]
                %822 = vst [vmem:[%s814 + $0x30] sm:%s806] %v821
                %v823 = vld [vmem:[%s813 + $0x20] sm:%s806]
                %824 = vst [vmem:[%s814 + $0x40] sm:%s806] %v823
                %v825 = vld [vmem:[%s813 + $0x28] sm:%s806]
                %826 = vst [vmem:[%s814 + $0x50] sm:%s806] %v825
                %v827 = vld [vmem:[%s813 + $0x30] sm:%s806]
                %828 = vst [vmem:[%s814 + $0x60] sm:%s806] %v827
                %v829 = vld [vmem:[%s813 + $0x38] sm:%s806]
                %830 = vst [vmem:[%s814 + $0x70] sm:%s806] %v829
                %v831 = vld [vmem:[%s813 + $0x40] sm:%s806]
                %832 = vst [vmem:[%s814 + $0x80] sm:%s806] %v831
                %v833 = vld [vmem:[%s813 + $0x48] sm:%s806]
                %834 = vst [vmem:[%s814 + $0x90] sm:%s806] %v833
                %v835 = vld [vmem:[%s813 + $0x50] sm:%s806]
                %836 = vst [vmem:[%s814 + $0xa0] sm:%s806] %v835
                %v837 = vld [vmem:[%s813 + $0x58] sm:%s806]
                %838 = vst [vmem:[%s814 + $0xb0] sm:%s806] %v837
                %v839 = vld [vmem:[%s813 + $0x60] sm:%s806]
                %840 = vst [vmem:[%s814 + $0xc0] sm:%s806] %v839
                %v841 = vld [vmem:[%s813 + $0x68] sm:%s806]
                %842 = vst [vmem:[%s814 + $0xd0] sm:%s806] %v841
                %v843 = vld [vmem:[%s813 + $0x70] sm:%s806]
                %844 = vst [vmem:[%s814 + $0xe0] sm:%s806] %v843
                %v845 = vld [vmem:[%s813 + $0x78] sm:%s806]
                %846 = vst [vmem:[%s814 + $0xf0] sm:%s806] %v845
              $region95: #{gnn_mix_forward.11} parent=89 // loop_footer
                %s812 = sadd.s32 1, %s808
              $region96: #{gnn_mix_forward.11} parent=89 // loop_footer_branch
                %807 = sbr.rel target = $region92
              $region97: #{gnn_mix_forward.11} parent=89 // loop_exit
                _
            $region90: #{gnn_mix_forward.11} parent=81 // pred_fallthru
              _
          $region82: #{gnn_mix_forward.11} parent=77 // pred_fallthru
            _
          %891 = vnop
        $region78: #{gnn_mix_forward.11} parent=61 // pred_fallthru
          _
      $region62: #{gnn_mix_forward.11} parent=5 // pred_fallthru
        _
      %p892 = scmp.le.s32.totalorder 2, %s8
      // Predicated region
      $region113: #{gnn_mix_forward.11} parent=5 // pred_check
        %p893 = pneg %p892
      $region114: #{gnn_mix_forward.11} parent=5 // pred_check_branch
        %895 = sbr.rel (%p893) target = $region116
      $region115: #{gnn_mix_forward.11} parent=5 // pred_region
        %s896 = ssub.s32 %s8, 2
        // Predicated region
        $region117: #{gnn_mix_forward.11} parent=115 // pred_check
          %p897 = pneg %p114
        $region118: #{gnn_mix_forward.11} parent=115 // pred_check_branch
          %899 = sbr.rel (%p897) target = $region120
        $region119: #{gnn_mix_forward.11} parent=115 // pred_region
          %s900 = sand.u32 %s99, 1
          %s901 = sand.u32 %s99, 1
          %s902 = smul.addr %s901, 128
          %s903 = scalar_lea.vmem [#allocation4], %s902
        $region120: #{gnn_mix_forward.11} parent=115 // pred_fallthru
          _
      $region116: #{gnn_mix_forward.11} parent=5 // pred_fallthru
        _
    $region6: #{gnn_mix_forward.11} parent=1 // loop_footer
      %s12 = sadd.s32 1, %s8
    $region7: #{gnn_mix_forward.11} parent=1 // loop_footer_branch
      %7 = sbr.rel target = $region3
    $region8: #{gnn_mix_forward.11} parent=1 // loop_exit
      _

// kernel: gnn_mix_forward.13
$region0: #{gnn_mix_forward.13}
  #allocation0 [shape = 'u32[]', space=smem, size = 0x4, offset = 0x4, fixed_abs, tag = 'smem constant byte address 0x4 - core index']
  #allocation1 [shape = 'u32[72,128]{1,0:T(1,128)}', space=vmem, size = 0x9000, scoped, tag = 'internal scratch']
  #allocation2 [shape = 'f32[128,128]{1,0:T(8,128)}', space=vmem, size = 0x10000, scoped, tag = 'scratch operand']
  %s0 = inlined_call_operand.vmem [shape: bf16[128,128], index: 0, kind: input, shape index: {}]
  %s1 = inlined_call_operand.vmem [shape: bf16[128,128], index: 1, kind: input, shape index: {}]
  %s2 = inlined_call_operand.vmem [shape: bf16[128,128], index: 2, kind: output, shape index: {}]
  %s3 = sld [smem:[#allocation0]]
  $region26: #{gnn_mix_forward.13} parent=0
    _
  %s5 = ssub.s32 1, %s3
  %s6 = scalar_select 0, %s5, %s3
  // Predicated region
  $region2: #{gnn_mix_forward.13} parent=0 // pred_check
    _
  $region3: #{gnn_mix_forward.13} parent=0 // pred_check_branch
    %8 = sbr.rel (0) target = $region5
  $region4: #{gnn_mix_forward.13} parent=0 // pred_region
    _
  $region5: #{gnn_mix_forward.13} parent=0 // pred_fallthru
    _
  // Predicated region
  $region6: #{gnn_mix_forward.13} parent=0 // pred_check
    _
  $region7: #{gnn_mix_forward.13} parent=0 // pred_check_branch
    %10 = sbr.rel (0) target = $region9
  $region8: #{gnn_mix_forward.13} parent=0 // pred_region
    _
  $region9: #{gnn_mix_forward.13} parent=0 // pred_fallthru
    _
  %p11 = scmp.eq.s32.totalorder 0, 0
  // Predicated region
  $region10: #{gnn_mix_forward.13} parent=0 // pred_check
    %p12 = pneg %p11
  $region11: #{gnn_mix_forward.13} parent=0 // pred_check_branch
    %14 = sbr.rel (%p12) target = $region13
  $region12: #{gnn_mix_forward.13} parent=0 // pred_region
    %15 = vst [vmem:[#allocation2] sm:$0xff] 0.0
    %16 = vst [vmem:[#allocation2 + $0x8] sm:$0xff] 0.0
    %17 = vst [vmem:[#allocation2 + $0x10] sm:$0xff] 0.0
    %18 = vst [vmem:[#allocation2 + $0x18] sm:$0xff] 0.0
    %19 = vst [vmem:[#allocation2 + $0x20] sm:$0xff] 0.0
    %20 = vst [vmem:[#allocation2 + $0x28] sm:$0xff] 0.0
    %21 = vst [vmem:[#allocation2 + $0x30] sm:$0xff] 0.0
    %22 = vst [vmem:[#allocation2 + $0x38] sm:$0xff] 0.0
    %23 = vst [vmem:[#allocation2 + $0x40] sm:$0xff] 0.0
    %24 = vst [vmem:[#allocation2 + $0x48] sm:$0xff] 0.0
    %25 = vst [vmem:[#allocation2 + $0x50] sm:$0xff] 0.0
    %26 = vst [vmem:[#allocation2 + $0x58] sm:$0xff] 0.0
    %27 = vst [vmem:[#allocation2 + $0x60] sm:$0xff] 0.0
    %28 = vst [vmem:[#allocation2 + $0x68] sm:$0xff] 0.0
    %29 = vst [vmem:[#allocation2 + $0x70] sm:$0xff] 0.0
    %30 = vst [vmem:[#allocation2 + $0x78] sm:$0xff] 0.0
  $region13: #{gnn_mix_forward.13} parent=0 // pred_fallthru
    _
  %v31 = vld [vmem:[#allocation2] sm:$0xff]
  %v32 = vld [vmem:[#allocation2 + $0x8] sm:$0xff]
  %v33 = vld [vmem:[#allocation2 + $0x10] sm:$0xff]
  %v34 = vld [vmem:[#allocation2 + $0x18] sm:$0xff]
  %v35 = vld [vmem:[#allocation2 + $0x20] sm:$0xff]
  %v36 = vld [vmem:[#allocation2 + $0x28] sm:$0xff]
  %v37 = vld [vmem:[#allocation2 + $0x30] sm:$0xff]
  %v38 = vld [vmem:[#allocation2 + $0x38] sm:$0xff]
  %v39 = vld [vmem:[#allocation2 + $0x40] sm:$0xff]
  %v40 = vld [vmem:[#allocation2 + $0x48] sm:$0xff]
  %v41 = vld [vmem:[#allocation2 + $0x50] sm:$0xff]
  %v42 = vld [vmem:[#allocation2 + $0x58] sm:$0xff]
  %v43 = vld [vmem:[#allocation2 + $0x60] sm:$0xff]
  %v44 = vld [vmem:[#allocation2 + $0x68] sm:$0xff]
  %v45 = vld [vmem:[#allocation2 + $0x70] sm:$0xff]
  %v46 = vld [vmem:[#allocation2 + $0x78] sm:$0xff]
  %v47 = vld [vmem:[%s0] sm:$0xf]
  %v48 = vld [vmem:[%s0 + $0x4] sm:$0xf]
  %v49 = vld [vmem:[%s0 + $0x8] sm:$0xf]
  %v50 = vld [vmem:[%s0 + $0xc] sm:$0xf]
  %v51 = vld [vmem:[%s0 + $0x10] sm:$0xf]
  %v52 = vld [vmem:[%s0 + $0x14] sm:$0xf]
  %v53 = vld [vmem:[%s0 + $0x18] sm:$0xf]
  %v54 = vld [vmem:[%s0 + $0x1c] sm:$0xf]
  %v55 = vld [vmem:[%s0 + $0x20] sm:$0xf]
  %v56 = vld [vmem:[%s0 + $0x24] sm:$0xf]
  %v57 = vld [vmem:[%s0 + $0x28] sm:$0xf]
  %v58 = vld [vmem:[%s0 + $0x2c] sm:$0xf]
  %v59 = vld [vmem:[%s0 + $0x30] sm:$0xf]
  %v60 = vld [vmem:[%s0 + $0x34] sm:$0xf]
  %v61 = vld [vmem:[%s0 + $0x38] sm:$0xf]
  %v62 = vld [vmem:[%s0 + $0x3c] sm:$0xf]
  %v63 = vld [vmem:[%s1] sm:$0xf]
  %v64 = vld [vmem:[%s1 + $0x4] sm:$0xf]
  %v65 = vld [vmem:[%s1 + $0x8] sm:$0xf]
  %v66 = vld [vmem:[%s1 + $0xc] sm:$0xf]
  %v67 = vld [vmem:[%s1 + $0x10] sm:$0xf]
  %v68 = vld [vmem:[%s1 + $0x14] sm:$0xf]
  %v69 = vld [vmem:[%s1 + $0x18] sm:$0xf]
  %v70 = vld [vmem:[%s1 + $0x1c] sm:$0xf]
  %v71 = vld [vmem:[%s1 + $0x20] sm:$0xf]
  %v72 = vld [vmem:[%s1 + $0x24] sm:$0xf]
  %v73 = vld [vmem:[%s1 + $0x28] sm:$0xf]
  %v74 = vld [vmem:[%s1 + $0x2c] sm:$0xf]
  %v75 = vld [vmem:[%s1 + $0x30] sm:$0xf]
  %v76 = vld [vmem:[%s1 + $0x34] sm:$0xf]
  %v77 = vld [vmem:[%s1 + $0x38] sm:$0xf]
  %v78 = vld [vmem:[%s1 + $0x3c] sm:$0xf]
  %v95 = vunpack.c.l.b16 %v47
  %v96 = vunpack.c.l.b16 %v48
  %v97 = vunpack.c.l.b16 %v49
  %v98 = vunpack.c.l.b16 %v50
  %v99 = vunpack.c.l.b16 %v51
  %v100 = vunpack.c.l.b16 %v52
  %v101 = vunpack.c.l.b16 %v53
  %v102 = vunpack.c.l.b16 %v54
  %v103 = vunpack.c.l.b16 %v55
  %v104 = vunpack.c.l.b16 %v56
  %v105 = vunpack.c.l.b16 %v57
  %v106 = vunpack.c.l.b16 %v58
  %v107 = vunpack.c.l.b16 %v59
  %v108 = vunpack.c.l.b16 %v60
  %v109 = vunpack.c.l.b16 %v61
  %v110 = vunpack.c.l.b16 %v62
  %v111 = vpack.c.b16 %v96, %v95
  %v112 = vpack.c.b16 %v98, %v97
  %v113 = vpack.c.b16 %v100, %v99
  %v114 = vpack.c.b16 %v102, %v101
  %v115 = vpack.c.b16 %v104, %v103
  %v116 = vpack.c.b16 %v106, %v105
  %v117 = vpack.c.b16 %v108, %v107
  %v118 = vpack.c.b16 %v110, %v109
  %v143 = vunpack.c.l.b16 %v63
  %v144 = vunpack.c.l.b16 %v64
  %v145 = vunpack.c.l.b16 %v65
  %v146 = vunpack.c.l.b16 %v66
  %v147 = vunpack.c.l.b16 %v67
  %v148 = vunpack.c.l.b16 %v68
  %v149 = vunpack.c.l.b16 %v69
  %v150 = vunpack.c.l.b16 %v70
  %v151 = vunpack.c.l.b16 %v71
  %v152 = vunpack.c.l.b16 %v72
  %v153 = vunpack.c.l.b16 %v73
  %v154 = vunpack.c.l.b16 %v74
  %v155 = vunpack.c.l.b16 %v75
  %v156 = vunpack.c.l.b16 %v76
  %v157 = vunpack.c.l.b16 %v77
  %v158 = vunpack.c.l.b16 %v78
  %v159 = vpack.c.b16 %v144, %v143
  %v160 = vpack.c.b16 %v146, %v145
  %v161 = vpack.c.b16 %v148, %v147
  %v162 = vpack.c.b16 %v150, %v149
  %v163 = vpack.c.b16 %v152, %v151
  %v164 = vpack.c.b16 %v154, %v153
  %v165 = vpack.c.b16 %v156, %v155
  %v166 = vpack.c.b16 %v158, %v157
  %175 = vmatpush.bf16.msra.mxu0 %v166
  %176 = vmatpush.bf16.msra.mxu0 %v165
  %177 = vmatpush.bf16.msra.mxu0 %v164
  %178 = vmatpush.bf16.msra.mxu0 %v163
  %179 = vmatpush.bf16.msra.mxu0 %v162
  %180 = vmatpush.bf16.msra.mxu0 %v161
  %181 = vmatpush.bf16.msra.mxu0 %v160
  %182 = vmatpush.bf16.msra.mxu0 %v159
  %183 = vmatmul.bf16.gmra.mxu0 %v111
  %v184 = vpop.f32.mrf.mxu0
  %v185 = vadd.f32 0.0, %v184
  %v186 = vpop.f32.mrf.mxu0
  %v187 = vadd.f32 0.0, %v186
  %188 = vmatmul.bf16.gmra.mxu0 %v112
  %v189 = vpop.f32.mrf.mxu0
  %v190 = vadd.f32 0.0, %v189
  %v191 = vpop.f32.mrf.mxu0
  %v192 = vadd.f32 0.0, %v191
  %193 = vmatmul.bf16.gmra.mxu0 %v113
  %v194 = vpop.f32.mrf.mxu0
  %v195 = vadd.f32 0.0, %v194
  %v196 = vpop.f32.mrf.mxu0
  %v197 = vadd.f32 0.0, %v196
  %198 = vmatmul.bf16.gmra.mxu0 %v114
  %v199 = vpop.f32.mrf.mxu0
  %v200 = vadd.f32 0.0, %v199
  %v201 = vpop.f32.mrf.mxu0
  %v202 = vadd.f32 0.0, %v201
  %203 = vmatmul.bf16.gmra.mxu0 %v115
  %v204 = vpop.f32.mrf.mxu0
  %v205 = vadd.f32 0.0, %v204
  %v206 = vpop.f32.mrf.mxu0
  %v207 = vadd.f32 0.0, %v206
  %208 = vmatmul.bf16.gmra.mxu0 %v116
  %v209 = vpop.f32.mrf.mxu0
  %v210 = vadd.f32 0.0, %v209
  %v211 = vpop.f32.mrf.mxu0
  %v212 = vadd.f32 0.0, %v211
  %213 = vmatmul.bf16.gmra.mxu0 %v117
  %v214 = vpop.f32.mrf.mxu0
  %v215 = vadd.f32 0.0, %v214
  %v216 = vpop.f32.mrf.mxu0
  %v217 = vadd.f32 0.0, %v216
  %218 = vmatmul.bf16.gmra.mxu0 %v118
  %v219 = vpop.f32.mrf.mxu0
  %v220 = vadd.f32 0.0, %v219
  %v221 = vpop.f32.mrf.mxu0
  %v222 = vadd.f32 0.0, %v221
  %223 = vdwg.mxu0
  %v224 = vadd.f32 %v31, %v185
  %v225 = vadd.f32 %v32, %v187
  %v226 = vadd.f32 %v33, %v190
  %v227 = vadd.f32 %v34, %v192
  %v228 = vadd.f32 %v35, %v195
  %v229 = vadd.f32 %v36, %v197
  %v230 = vadd.f32 %v37, %v200
  %v231 = vadd.f32 %v38, %v202
  %v232 = vadd.f32 %v39, %v205
  %v233 = vadd.f32 %v40, %v207
  %v234 = vadd.f32 %v41, %v210
  %v235 = vadd.f32 %v42, %v212
  %v236 = vadd.f32 %v43, %v215
  %v237 = vadd.f32 %v44, %v217
  %v238 = vadd.f32 %v45, %v220
  %v239 = vadd.f32 %v46, %v222
  %240 = vst [vmem:[#allocation2] sm:$0xff] %v224
  %241 = vst [vmem:[#allocation2 + $0x8] sm:$0xff] %v225
  %242 = vst [vmem:[#allocation2 + $0x10] sm:$0xff] %v226
  %243 = vst [vmem:[#allocation2 + $0x18] sm:$0xff] %v227
  %244 = vst [vmem:[#allocation2 + $0x20] sm:$0xff] %v228
  %245 = vst [vmem:[#allocation2 + $0x28] sm:$0xff] %v229
  %246 = vst [vmem:[#allocation2 + $0x30] sm:$0xff] %v230
  %247 = vst [vmem:[#allocation2 + $0x38] sm:$0xff] %v231
  %248 = vst [vmem:[#allocation2 + $0x40] sm:$0xff] %v232
  %249 = vst [vmem:[#allocation2 + $0x48] sm:$0xff] %v233
  %250 = vst [vmem:[#allocation2 + $0x50] sm:$0xff] %v234
  %251 = vst [vmem:[#allocation2 + $0x58] sm:$0xff] %v235
  %252 = vst [vmem:[#allocation2 + $0x60] sm:$0xff] %v236
  %253 = vst [vmem:[#allocation2 + $0x68] sm:$0xff] %v237
  %254 = vst [vmem:[#allocation2 + $0x70] sm:$0xff] %v238
  %255 = vst [vmem:[#allocation2 + $0x78] sm:$0xff] %v239
  // Predicated region
  $region14: #{gnn_mix_forward.13} parent=0 // pred_check
    %p256 = pneg %p11
  $region15: #{gnn_mix_forward.13} parent=0 // pred_check_branch
    %258 = sbr.rel (%p256) target = $region17
  $region16: #{gnn_mix_forward.13} parent=0 // pred_region
    %v259 = vld [vmem:[#allocation2] sm:$0xff]
    %v260 = vld [vmem:[#allocation2 + $0x8] sm:$0xff]
    %v261 = vld [vmem:[#allocation2 + $0x10] sm:$0xff]
    %v262 = vld [vmem:[#allocation2 + $0x18] sm:$0xff]
    %v263 = vld [vmem:[#allocation2 + $0x20] sm:$0xff]
    %v264 = vld [vmem:[#allocation2 + $0x28] sm:$0xff]
    %v265 = vld [vmem:[#allocation2 + $0x30] sm:$0xff]
    %v266 = vld [vmem:[#allocation2 + $0x38] sm:$0xff]
    %v267 = vld [vmem:[#allocation2 + $0x40] sm:$0xff]
    %v268 = vld [vmem:[#allocation2 + $0x48] sm:$0xff]
    %v269 = vld [vmem:[#allocation2 + $0x50] sm:$0xff]
    %v270 = vld [vmem:[#allocation2 + $0x58] sm:$0xff]
    %v271 = vld [vmem:[#allocation2 + $0x60] sm:$0xff]
    %v272 = vld [vmem:[#allocation2 + $0x68] sm:$0xff]
    %v273 = vld [vmem:[#allocation2 + $0x70] sm:$0xff]
    %v274 = vld [vmem:[#allocation2 + $0x78] sm:$0xff]
    %v275 = vmax.f32 %v259, 0.0
    %v276 = vmax.f32 %v260, 0.0
    %v277 = vmax.f32 %v261, 0.0
    %v278 = vmax.f32 %v262, 0.0
    %v279 = vmax.f32 %v263, 0.0
    %v280 = vmax.f32 %v264, 0.0
    %v281 = vmax.f32 %v265, 0.0
    %v282 = vmax.f32 %v266, 0.0
    %v283 = vmax.f32 %v267, 0.0
    %v284 = vmax.f32 %v268, 0.0
    %v285 = vmax.f32 %v269, 0.0
    %v286 = vmax.f32 %v270, 0.0
    %v287 = vmax.f32 %v271, 0.0
    %v288 = vmax.f32 %v272, 0.0
    %v289 = vmax.f32 %v273, 0.0
    %v290 = vmax.f32 %v274, 0.0
    %v291 = vpack.c.bf16 %v275, %v275
    %v292 = vpack.c.bf16 %v276, %v276
    %v293 = vpack.c.bf16 %v277, %v277
    %v294 = vpack.c.bf16 %v278, %v278
    %v295 = vpack.c.bf16 %v279, %v279
    %v296 = vpack.c.bf16 %v280, %v280
    %v297 = vpack.c.bf16 %v281, %v281
    %v298 = vpack.c.bf16 %v282, %v282
    %v299 = vpack.c.bf16 %v283, %v283
    %v300 = vpack.c.bf16 %v284, %v284
    %v301 = vpack.c.bf16 %v285, %v285
    %v302 = vpack.c.bf16 %v286, %v286
    %v303 = vpack.c.bf16 %v287, %v287
    %v304 = vpack.c.bf16 %v288, %v288
    %v305 = vpack.c.bf16 %v289, %v289
    %v306 = vpack.c.bf16 %v290, %v290
    %307 = vst [vmem:[%s2] sm:$0xf] %v291
    %308 = vst [vmem:[%s2 + $0x4] sm:$0xf] %v292
    %309 = vst [vmem:[%s2 + $0x8] sm:$0xf] %v293
    %310 = vst [vmem:[%s2 + $0xc] sm:$0xf] %v294
    %311 = vst [vmem:[%s2 + $0x10] sm:$0xf] %v295
    %312 = vst [vmem:[%s2 + $0x14] sm:$0xf] %v296
    %313 = vst [vmem:[%s2 + $0x18] sm:$0xf] %v297
    %314 = vst [vmem:[%s2 + $0x1c] sm:$0xf] %v298
    %315 = vst [vmem:[%s2 + $0x20] sm:$0xf] %v299
    %316 = vst [vmem:[%s2 + $0x24] sm:$0xf] %v300
    %317 = vst [vmem:[%s2 + $0x28] sm:$0xf] %v301
    %318 = vst [vmem:[%s2 + $0x2c] sm:$0xf] %v302
    %319 = vst [vmem:[%s2 + $0x30] sm:$0xf] %v303
    %320 = vst [vmem:[%s2 + $0x34] sm:$0xf] %v304
    %321 = vst [vmem:[%s2 + $0x38] sm:$0xf] %v305
    %322 = vst [vmem:[%s2 + $0x3c] sm:$0xf] %v306
  $region17: #{gnn_mix_forward.13} parent=0 // pred_fallthru
    _
  // Predicated region
  $region18: #{gnn_mix_forward.13} parent=0 // pred_check
    _
  $region19: #{gnn_mix_forward.13} parent=0 // pred_check_branch
    %324 = sbr.rel (0) target = $region21
  $region20: #{gnn_mix_forward.13} parent=0 // pred_region
    _
  $region21: #{gnn_mix_forward.13} parent=0 // pred_fallthru
    _
  // Predicated region
  $region22: #{gnn_mix_forward.13} parent=0 // pred_check
    _
  $region23: #{gnn_mix_forward.13} parent=0 // pred_check_branch
    %326 = sbr.rel (0) target = $region25
  $region24: #{gnn_mix_forward.13} parent=0 // pred_region
    _
  $region25: #{gnn_mix_forward.13} parent=0 // pred_fallthru
    _

// kernel: gnn_mix_forward.12
$region0: #{gnn_mix_forward.12}
  #allocation0 [shape = 'u32[]', space=smem, size = 0x4, offset = 0x4, fixed_abs, tag = 'smem constant byte address 0x4 - core index']
  #allocation1 [shape = 'u32[72,128]{1,0:T(1,128)}', space=vmem, size = 0x9000, scoped, tag = 'internal scratch']
  #allocation2 [shape = 'f32[128,128]{1,0:T(8,128)}', space=vmem, size = 0x10000, scoped, tag = 'scratch operand']
  %s0 = inlined_call_operand.vmem [shape: bf16[128,512], index: 0, kind: input, shape index: {}]
  %s1 = inlined_call_operand.vmem [shape: bf16[512,128], index: 1, kind: input, shape index: {}]
  %s2 = inlined_call_operand.vmem [shape: bf16[128,128], index: 2, kind: output, shape index: {}]
  %s3 = sld [smem:[#allocation0]]
  $region26: #{gnn_mix_forward.12} parent=0
    _
  %s5 = ssub.s32 1, %s3
  %s6 = scalar_select 0, %s5, %s3
  // Predicated region
  $region2: #{gnn_mix_forward.12} parent=0 // pred_check
    _
  $region3: #{gnn_mix_forward.12} parent=0 // pred_check_branch
    %8 = sbr.rel (0) target = $region5
  $region4: #{gnn_mix_forward.12} parent=0 // pred_region
    _
  $region5: #{gnn_mix_forward.12} parent=0 // pred_fallthru
    _
  // Predicated region
  $region6: #{gnn_mix_forward.12} parent=0 // pred_check
    _
  $region7: #{gnn_mix_forward.12} parent=0 // pred_check_branch
    %10 = sbr.rel (0) target = $region9
  $region8: #{gnn_mix_forward.12} parent=0 // pred_region
    _
  $region9: #{gnn_mix_forward.12} parent=0 // pred_fallthru
    _
  %p11 = scmp.eq.s32.totalorder 0, 0
  // Predicated region
  $region10: #{gnn_mix_forward.12} parent=0 // pred_check
    %p12 = pneg %p11
  $region11: #{gnn_mix_forward.12} parent=0 // pred_check_branch
    %14 = sbr.rel (%p12) target = $region13
  $region12: #{gnn_mix_forward.12} parent=0 // pred_region
    %15 = vst [vmem:[#allocation2] sm:$0xff] 0.0
    %16 = vst [vmem:[#allocation2 + $0x8] sm:$0xff] 0.0
    %17 = vst [vmem:[#allocation2 + $0x10] sm:$0xff] 0.0
    %18 = vst [vmem:[#allocation2 + $0x18] sm:$0xff] 0.0
    %19 = vst [vmem:[#allocation2 + $0x20] sm:$0xff] 0.0
    %20 = vst [vmem:[#allocation2 + $0x28] sm:$0xff] 0.0
    %21 = vst [vmem:[#allocation2 + $0x30] sm:$0xff] 0.0
    %22 = vst [vmem:[#allocation2 + $0x38] sm:$0xff] 0.0
    %23 = vst [vmem:[#allocation2 + $0x40] sm:$0xff] 0.0
    %24 = vst [vmem:[#allocation2 + $0x48] sm:$0xff] 0.0
    %25 = vst [vmem:[#allocation2 + $0x50] sm:$0xff] 0.0
    %26 = vst [vmem:[#allocation2 + $0x58] sm:$0xff] 0.0
    %27 = vst [vmem:[#allocation2 + $0x60] sm:$0xff] 0.0
    %28 = vst [vmem:[#allocation2 + $0x68] sm:$0xff] 0.0
    %29 = vst [vmem:[#allocation2 + $0x70] sm:$0xff] 0.0
    %30 = vst [vmem:[#allocation2 + $0x78] sm:$0xff] 0.0
  $region13: #{gnn_mix_forward.12} parent=0 // pred_fallthru
    _
  %v31 = vld [vmem:[#allocation2] sm:$0xff]
  %v32 = vld [vmem:[#allocation2 + $0x8] sm:$0xff]
  %v33 = vld [vmem:[#allocation2 + $0x10] sm:$0xff]
  %v34 = vld [vmem:[#allocation2 + $0x18] sm:$0xff]
  %v35 = vld [vmem:[#allocation2 + $0x20] sm:$0xff]
  %v36 = vld [vmem:[#allocation2 + $0x28] sm:$0xff]
  %v37 = vld [vmem:[#allocation2 + $0x30] sm:$0xff]
  %v38 = vld [vmem:[#allocation2 + $0x38] sm:$0xff]
  %v39 = vld [vmem:[#allocation2 + $0x40] sm:$0xff]
  %v40 = vld [vmem:[#allocation2 + $0x48] sm:$0xff]
  %v41 = vld [vmem:[#allocation2 + $0x50] sm:$0xff]
  %v42 = vld [vmem:[#allocation2 + $0x58] sm:$0xff]
  %v43 = vld [vmem:[#allocation2 + $0x60] sm:$0xff]
  %v44 = vld [vmem:[#allocation2 + $0x68] sm:$0xff]
  %v45 = vld [vmem:[#allocation2 + $0x70] sm:$0xff]
  %v46 = vld [vmem:[#allocation2 + $0x78] sm:$0xff]
  %v47 = vld [vmem:[%s0] sm:$0xff]
  %v48 = vld [vmem:[%s0 + $0x8] sm:$0xff]
  %v49 = vld [vmem:[%s0 + $0x10] sm:$0xff]
  %v50 = vld [vmem:[%s0 + $0x18] sm:$0xff]
  %v51 = vld [vmem:[%s0 + $0x20] sm:$0xff]
  %v52 = vld [vmem:[%s0 + $0x28] sm:$0xff]
  %v53 = vld [vmem:[%s0 + $0x30] sm:$0xff]
  %v54 = vld [vmem:[%s0 + $0x38] sm:$0xff]
  %v55 = vld [vmem:[%s0 + $0x40] sm:$0xff]
  %v56 = vld [vmem:[%s0 + $0x48] sm:$0xff]
  %v57 = vld [vmem:[%s0 + $0x50] sm:$0xff]
  %v58 = vld [vmem:[%s0 + $0x58] sm:$0xff]
  %v59 = vld [vmem:[%s0 + $0x60] sm:$0xff]
  %v60 = vld [vmem:[%s0 + $0x68] sm:$0xff]
  %v61 = vld [vmem:[%s0 + $0x70] sm:$0xff]
  %v62 = vld [vmem:[%s0 + $0x78] sm:$0xff]
  %v63 = vld [vmem:[%s0 + $0x80] sm:$0xff]
  %v64 = vld [vmem:[%s0 + $0x88] sm:$0xff]
  %v65 = vld [vmem:[%s0 + $0x90] sm:$0xff]
  %v66 = vld [vmem:[%s0 + $0x98] sm:$0xff]
  %v67 = vld [vmem:[%s0 + $0xa0] sm:$0xff]
  %v68 = vld [vmem:[%s0 + $0xa8] sm:$0xff]
  %v69 = vld [vmem:[%s0 + $0xb0] sm:$0xff]
  %v70 = vld [vmem:[%s0 + $0xb8] sm:$0xff]
  %v71 = vld [vmem:[%s0 + $0xc0] sm:$0xff]
  %v72 = vld [vmem:[%s0 + $0xc8] sm:$0xff]
  %v73 = vld [vmem:[%s0 + $0xd0] sm:$0xff]
  %v74 = vld [vmem:[%s0 + $0xd8] sm:$0xff]
  %v75 = vld [vmem:[%s0 + $0xe0] sm:$0xff]
  %v76 = vld [vmem:[%s0 + $0xe8] sm:$0xff]
  %v77 = vld [vmem:[%s0 + $0xf0] sm:$0xff]
  %v78 = vld [vmem:[%s0 + $0xf8] sm:$0xff]
  %v79 = vld [vmem:[%s1] sm:$0xf]
  %v80 = vld [vmem:[%s1 + $0x4] sm:$0xf]
  %v81 = vld [vmem:[%s1 + $0x8] sm:$0xf]
  %v82 = vld [vmem:[%s1 + $0xc] sm:$0xf]
  %v83 = vld [vmem:[%s1 + $0x10] sm:$0xf]
  %v84 = vld [vmem:[%s1 + $0x14] sm:$0xf]
  %v85 = vld [vmem:[%s1 + $0x18] sm:$0xf]
  %v86 = vld [vmem:[%s1 + $0x1c] sm:$0xf]
  %v87 = vld [vmem:[%s1 + $0x20] sm:$0xf]
  %v88 = vld [vmem:[%s1 + $0x24] sm:$0xf]
  %v89 = vld [vmem:[%s1 + $0x28] sm:$0xf]
  %v90 = vld [vmem:[%s1 + $0x2c] sm:$0xf]
  %v91 = vld [vmem:[%s1 + $0x30] sm:$0xf]
  %v92 = vld [vmem:[%s1 + $0x34] sm:$0xf]
  %v93 = vld [vmem:[%s1 + $0x38] sm:$0xf]
  %v94 = vld [vmem:[%s1 + $0x3c] sm:$0xf]
  %v95 = vld [vmem:[%s1 + $0x40] sm:$0xf]
  %v96 = vld [vmem:[%s1 + $0x44] sm:$0xf]
  %v97 = vld [vmem:[%s1 + $0x48] sm:$0xf]
  %v98 = vld [vmem:[%s1 + $0x4c] sm:$0xf]
  %v99 = vld [vmem:[%s1 + $0x50] sm:$0xf]
  %v100 = vld [vmem:[%s1 + $0x54] sm:$0xf]
  %v101 = vld [vmem:[%s1 + $0x58] sm:$0xf]
  %v102 = vld [vmem:[%s1 + $0x5c] sm:$0xf]
  %v103 = vld [vmem:[%s1 + $0x60] sm:$0xf]
  %v104 = vld [vmem:[%s1 + $0x64] sm:$0xf]
  %v105 = vld [vmem:[%s1 + $0x68] sm:$0xf]
  %v106 = vld [vmem:[%s1 + $0x6c] sm:$0xf]
  %v107 = vld [vmem:[%s1 + $0x70] sm:$0xf]
  %v108 = vld [vmem:[%s1 + $0x74] sm:$0xf]
  %v109 = vld [vmem:[%s1 + $0x78] sm:$0xf]
  %v110 = vld [vmem:[%s1 + $0x7c] sm:$0xf]
  %v111 = vld [vmem:[%s1 + $0x80] sm:$0xf]
  %v112 = vld [vmem:[%s1 + $0x84] sm:$0xf]
  %v113 = vld [vmem:[%s1 + $0x88] sm:$0xf]
  %v114 = vld [vmem:[%s1 + $0x8c] sm:$0xf]
  %v115 = vld [vmem:[%s1 + $0x90] sm:$0xf]
  %v116 = vld [vmem:[%s1 + $0x94] sm:$0xf]
  %v117 = vld [vmem:[%s1 + $0x98] sm:$0xf]
  %v118 = vld [vmem:[%s1 + $0x9c] sm:$0xf]
  %v119 = vld [vmem:[%s1 + $0xa0] sm:$0xf]
  %v120 = vld [vmem:[%s1 + $0xa4] sm:$0xf]
  %v121 = vld [vmem:[%s1 + $0xa8] sm:$0xf]
  %v122 = vld [vmem:[%s1 + $0xac] sm:$0xf]
  %v123 = vld [vmem:[%s1 + $0xb0] sm:$0xf]
  %v124 = vld [vmem:[%s1 + $0xb4] sm:$0xf]
  %v125 = vld [vmem:[%s1 + $0xb8] sm:$0xf]
  %v126 = vld [vmem:[%s1 + $0xbc] sm:$0xf]
  %v127 = vld [vmem:[%s1 + $0xc0] sm:$0xf]
  %v128 = vld [vmem:[%s1 + $0xc4] sm:$0xf]
  %v129 = vld [vmem:[%s1 + $0xc8] sm:$0xf]
  %v130 = vld [vmem:[%s1 + $0xcc] sm:$0xf]
  %v131 = vld [vmem:[%s1 + $0xd0] sm:$0xf]
  %v132 = vld [vmem:[%s1 + $0xd4] sm:$0xf]
  %v133 = vld [vmem:[%s1 + $0xd8] sm:$0xf]
  %v134 = vld [vmem:[%s1 + $0xdc] sm:$0xf]
  %v135 = vld [vmem:[%s1 + $0xe0] sm:$0xf]
  %v136 = vld [vmem:[%s1 + $0xe4] sm:$0xf]
  %v137 = vld [vmem:[%s1 + $0xe8] sm:$0xf]
  %v138 = vld [vmem:[%s1 + $0xec] sm:$0xf]
  %v139 = vld [vmem:[%s1 + $0xf0] sm:$0xf]
  %v140 = vld [vmem:[%s1 + $0xf4] sm:$0xf]
  %v141 = vld [vmem:[%s1 + $0xf8] sm:$0xf]
  %v142 = vld [vmem:[%s1 + $0xfc] sm:$0xf]
  %v175 = vunpack.c.l.b16 %v47
  %v176 = vunpack.c.h.b16 %v47
  %v177 = vunpack.c.l.b16 %v48
  %v178 = vunpack.c.h.b16 %v48
  %v179 = vunpack.c.l.b16 %v49
  %v180 = vunpack.c.h.b16 %v49
  %v181 = vunpack.c.l.b16 %v50
  %v182 = vunpack.c.h.b16 %v50
  %v183 = vunpack.c.l.b16 %v51
  %v184 = vunpack.c.h.b16 %v51
  %v185 = vunpack.c.l.b16 %v52
  %v186 = vunpack.c.h.b16 %v52
  %v187 = vunpack.c.l.b16 %v53
  %v188 = vunpack.c.h.b16 %v53
  %v189 = vunpack.c.l.b16 %v54
  %v190 = vunpack.c.h.b16 %v54
  %v191 = vunpack.c.l.b16 %v55
  %v192 = vunpack.c.h.b16 %v55
  %v193 = vunpack.c.l.b16 %v56
  %v194 = vunpack.c.h.b16 %v56
  %v195 = vunpack.c.l.b16 %v57
  %v196 = vunpack.c.h.b16 %v57
  %v197 = vunpack.c.l.b16 %v58
  %v198 = vunpack.c.h.b16 %v58
  %v199 = vunpack.c.l.b16 %v59
  %v200 = vunpack.c.h.b16 %v59
  %v201 = vunpack.c.l.b16 %v60
  %v202 = vunpack.c.h.b16 %v60
  %v203 = vunpack.c.l.b16 %v61
  %v204 = vunpack.c.h.b16 %v61
  %v205 = vunpack.c.l.b16 %v62
  %v206 = vunpack.c.h.b16 %v62
  %v207 = vunpack.c.l.b16 %v63
  %v208 = vunpack.c.h.b16 %v63
  %v209 = vunpack.c.l.b16 %v64
  %v210 = vunpack.c.h.b16 %v64
  %v211 = vunpack.c.l.b16 %v65
  %v212 = vunpack.c.h.b16 %v65
  %v213 = vunpack.c.l.b16 %v66
  %v214 = vunpack.c.h.b16 %v66
  %v215 = vunpack.c.l.b16 %v67
  %v216 = vunpack.c.h.b16 %v67
  %v217 = vunpack.c.l.b16 %v68
  %v218 = vunpack.c.h.b16 %v68
  %v219 = vunpack.c.l.b16 %v69
  %v220 = vunpack.c.h.b16 %v69
  %v221 = vunpack.c.l.b16 %v70
  %v222 = vunpack.c.h.b16 %v70
  %v223 = vunpack.c.l.b16 %v71
  %v224 = vunpack.c.h.b16 %v71
  %v225 = vunpack.c.l.b16 %v72
  %v226 = vunpack.c.h.b16 %v72
  %v227 = vunpack.c.l.b16 %v73
  %v228 = vunpack.c.h.b16 %v73
  %v229 = vunpack.c.l.b16 %v74
  %v230 = vunpack.c.h.b16 %v74
  %v231 = vunpack.c.l.b16 %v75
  %v232 = vunpack.c.h.b16 %v75
  %v233 = vunpack.c.l.b16 %v76
  %v234 = vunpack.c.h.b16 %v76
  %v235 = vunpack.c.l.b16 %v77
  %v236 = vunpack.c.h.b16 %v77
  %v237 = vunpack.c.l.b16 %v78
  %v238 = vunpack.c.h.b16 %v78
  %v239 = vpack.c.b16 %v179, %v175
  %v240 = vpack.c.b16 %v180, %v176
  %v241 = vpack.c.b16 %v181, %v177
  %v242 = vpack.c.b16 %v182, %v178
  %v243 = vpack.c.b16 %v187, %v183
  %v244 = vpack.c.b16 %v188, %v184
  %v245 = vpack.c.b16 %v189, %v185
  %v246 = vpack.c.b16 %v190, %v186
  %v247 = vpack.c.b16 %v195, %v191
  %v248 = vpack.c.b16 %v196, %v192
  %v249 = vpack.c.b16 %v197, %v193
  %v250 = vpack.c.b16 %v198, %v194
  %v251 = vpack.c.b16 %v203, %v199
  %v252 = vpack.c.b16 %v204, %v200
  %v253 = vpack.c.b16 %v205, %v201
  %v254 = vpack.c.b16 %v206, %v202
  %v255 = vpack.c.b16 %v211, %v207
  %v256 = vpack.c.b16 %v212, %v208
  %v257 = vpack.c.b16 %v213, %v209
  %v258 = vpack.c.b16 %v214, %v210
  %v259 = vpack.c.b16 %v219, %v215
  %v260 = vpack.c.b16 %v220, %v216
  %v261 = vpack.c.b16 %v221, %v217
  %v262 = vpack.c.b16 %v222, %v218
  %v263 = vpack.c.b16 %v227, %v223
  %v264 = vpack.c.b16 %v228, %v224
  %v265 = vpack.c.b16 %v229, %v225
  %v266 = vpack.c.b16 %v230, %v226
  %v267 = vpack.c.b16 %v235, %v231
  %v268 = vpack.c.b16 %v236, %v232
  %v269 = vpack.c.b16 %v237, %v233
  %v270 = vpack.c.b16 %v238, %v234
  %v367 = vunpack.c.l.b16 %v79
  %v368 = vunpack.c.l.b16 %v80
  %v369 = vunpack.c.l.b16 %v81
  %v370 = vunpack.c.l.b16 %v82
  %v371 = vunpack.c.l.b16 %v83
  %v372 = vunpack.c.l.b16 %v84
  %v373 = vunpack.c.l.b16 %v85
  %v374 = vunpack.c.l.b16 %v86
  %v375 = vunpack.c.l.b16 %v87
  %v376 = vunpack.c.l.b16 %v88
  %v377 = vunpack.c.l.b16 %v89
  %v378 = vunpack.c.l.b16 %v90
  %v379 = vunpack.c.l.b16 %v91
  %v380 = vunpack.c.l.b16 %v92
  %v381 = vunpack.c.l.b16 %v93
  %v382 = vunpack.c.l.b16 %v94
  %v383 = vunpack.c.l.b16 %v95
  %v384 = vunpack.c.l.b16 %v96
  %v385 = vunpack.c.l.b16 %v97
  %v386 = vunpack.c.l.b16 %v98
  %v387 = vunpack.c.l.b16 %v99
  %v388 = vunpack.c.l.b16 %v100
  %v389 = vunpack.c.l.b16 %v101
  %v390 = vunpack.c.l.b16 %v102
  %v391 = vunpack.c.l.b16 %v103
  %v392 = vunpack.c.l.b16 %v104
  %v393 = vunpack.c.l.b16 %v105
  %v394 = vunpack.c.l.b16 %v106
  %v395 = vunpack.c.l.b16 %v107
  %v396 = vunpack.c.l.b16 %v108
  %v397 = vunpack.c.l.b16 %v109
  %v398 = vunpack.c.l.b16 %v110
  %v399 = vunpack.c.l.b16 %v111
  %v400 = vunpack.c.l.b16 %v112
  %v401 = vunpack.c.l.b16 %v113
  %v402 = vunpack.c.l.b16 %v114
  %v403 = vunpack.c.l.b16 %v115
  %v404 = vunpack.c.l.b16 %v116
  %v405 = vunpack.c.l.b16 %v117
  %v406 = vunpack.c.l.b16 %v118
  %v407 = vunpack.c.l.b16 %v119
  %v408 = vunpack.c.l.b16 %v120
  %v409 = vunpack.c.l.b16 %v121
  %v410 = vunpack.c.l.b16 %v122
  %v411 = vunpack.c.l.b16 %v123
  %v412 = vunpack.c.l.b16 %v124
  %v413 = vunpack.c.l.b16 %v125
  %v414 = vunpack.c.l.b16 %v126
  %v415 = vunpack.c.l.b16 %v127
  %v416 = vunpack.c.l.b16 %v128
  %v417 = vunpack.c.l.b16 %v129
  %v418 = vunpack.c.l.b16 %v130
  %v419 = vunpack.c.l.b16 %v131
  %v420 = vunpack.c.l.b16 %v132
  %v421 = vunpack.c.l.b16 %v133
  %v422 = vunpack.c.l.b16 %v134
  %v423 = vunpack.c.l.b16 %v135
  %v424 = vunpack.c.l.b16 %v136
  %v425 = vunpack.c.l.b16 %v137
  %v426 = vunpack.c.l.b16 %v138
  %v427 = vunpack.c.l.b16 %v139
  %v428 = vunpack.c.l.b16 %v140
  %v429 = vunpack.c.l.b16 %v141
  %v430 = vunpack.c.l.b16 %v142
  %v431 = vpack.c.b16 %v368, %v367
  %v432 = vpack.c.b16 %v370, %v369
  %v433 = vpack.c.b16 %v372, %v371
  %v434 = vpack.c.b16 %v374, %v373
  %v435 = vpack.c.b16 %v376, %v375
  %v436 = vpack.c.b16 %v378, %v377
  %v437 = vpack.c.b16 %v380, %v379
  %v438 = vpack.c.b16 %v382, %v381
  %v439 = vpack.c.b16 %v384, %v383
  %v440 = vpack.c.b16 %v386, %v385
  %v441 = vpack.c.b16 %v388, %v387
  %v442 = vpack.c.b16 %v390, %v389
  %v443 = vpack.c.b16 %v392, %v391
  %v444 = vpack.c.b16 %v394, %v393
  %v445 = vpack.c.b16 %v396, %v395
  %v446 = vpack.c.b16 %v398, %v397
  %v447 = vpack.c.b16 %v400, %v399
  %v448 = vpack.c.b16 %v402, %v401
  %v449 = vpack.c.b16 %v404, %v403
  %v450 = vpack.c.b16 %v406, %v405
  %v451 = vpack.c.b16 %v408, %v407
  %v452 = vpack.c.b16 %v410, %v409
  %v453 = vpack.c.b16 %v412, %v411
  %v454 = vpack.c.b16 %v414, %v413
  %v455 = vpack.c.b16 %v416, %v415
  %v456 = vpack.c.b16 %v418, %v417
  %v457 = vpack.c.b16 %v420, %v419
  %v458 = vpack.c.b16 %v422, %v421
  %v459 = vpack.c.b16 %v424, %v423
  %v460 = vpack.c.b16 %v426, %v425
  %v461 = vpack.c.b16 %v428, %v427
  %v462 = vpack.c.b16 %v430, %v429
  %495 = vmatpush.bf16.msra.mxu0 %v438
  %496 = vmatpush.bf16.msra.mxu0 %v437
  %497 = vmatpush.bf16.msra.mxu0 %v436
  %498 = vmatpush.bf16.msra.mxu0 %v435
  %499 = vmatpush.bf16.msra.mxu0 %v434
  %500 = vmatpush.bf16.msra.mxu0 %v433
  %501 = vmatpush.bf16.msra.mxu0 %v432
  %502 = vmatpush.bf16.msra.mxu0 %v431
  %503 = vmatmul.bf16.gmra.mxu0 %v239
  %v504 = vpop.f32.mrf.mxu0
  %v505 = vadd.f32 0.0, %v504
  %v506 = vpop.f32.mrf.mxu0
  %v507 = vadd.f32 0.0, %v506
  %508 = vmatmul.bf16.gmra.mxu0 %v243
  %v509 = vpop.f32.mrf.mxu0
  %v510 = vadd.f32 0.0, %v509
  %v511 = vpop.f32.mrf.mxu0
  %v512 = vadd.f32 0.0, %v511
  %513 = vmatmul.bf16.gmra.mxu0 %v247
  %v514 = vpop.f32.mrf.mxu0
  %v515 = vadd.f32 0.0, %v514
  %v516 = vpop.f32.mrf.mxu0
  %v517 = vadd.f32 0.0, %v516
  %518 = vmatmul.bf16.gmra.mxu0 %v251
  %v519 = vpop.f32.mrf.mxu0
  %v520 = vadd.f32 0.0, %v519
  %v521 = vpop.f32.mrf.mxu0
  %v522 = vadd.f32 0.0, %v521
  %523 = vmatmul.bf16.gmra.mxu0 %v255
  %v524 = vpop.f32.mrf.mxu0
  %v525 = vadd.f32 0.0, %v524
  %v526 = vpop.f32.mrf.mxu0
  %v527 = vadd.f32 0.0, %v526
  %528 = vmatmul.bf16.gmra.mxu0 %v259
  %v529 = vpop.f32.mrf.mxu0
  %v530 = vadd.f32 0.0, %v529
  %v531 = vpop.f32.mrf.mxu0
  %v532 = vadd.f32 0.0, %v531
  %533 = vmatmul.bf16.gmra.mxu0 %v263
  %v534 = vpop.f32.mrf.mxu0
  %v535 = vadd.f32 0.0, %v534
  %v536 = vpop.f32.mrf.mxu0
  %v537 = vadd.f32 0.0, %v536
  %538 = vmatmul.bf16.gmra.mxu0 %v267
  %v539 = vpop.f32.mrf.mxu0
  %v540 = vadd.f32 0.0, %v539
  %v541 = vpop.f32.mrf.mxu0
  %v542 = vadd.f32 0.0, %v541
  %543 = vdwg.mxu0
  %544 = vmatpush.bf16.msra.mxu0 %v446
  %545 = vmatpush.bf16.msra.mxu0 %v445
  %546 = vmatpush.bf16.msra.mxu0 %v444
  %547 = vmatpush.bf16.msra.mxu0 %v443
  %548 = vmatpush.bf16.msra.mxu0 %v442
  %549 = vmatpush.bf16.msra.mxu0 %v441
  %550 = vmatpush.bf16.msra.mxu0 %v440
  %551 = vmatpush.bf16.msra.mxu0 %v439
  %552 = vmatmul.bf16.gmra.mxu0 %v240
  %v553 = vpop.f32.mrf.mxu0
  %v554 = vadd.f32 %v505, %v553
  %v555 = vpop.f32.mrf.mxu0
  %v556 = vadd.f32 %v507, %v555
  %557 = vmatmul.bf16.gmra.mxu0 %v244
  %v558 = vpop.f32.mrf.mxu0
  %v559 = vadd.f32 %v510, %v558
  %v560 = vpop.f32.mrf.mxu0
  %v561 = vadd.f32 %v512, %v560
  %562 = vmatmul.bf16.gmra.mxu0 %v248
  %v563 = vpop.f32.mrf.mxu0
  %v564 = vadd.f32 %v515, %v563
  %v565 = vpop.f32.mrf.mxu0
  %v566 = vadd.f32 %v517, %v565
  %567 = vmatmul.bf16.gmra.mxu0 %v252
  %v568 = vpop.f32.mrf.mxu0
  %v569 = vadd.f32 %v520, %v568
  %v570 = vpop.f32.mrf.mxu0
  %v571 = vadd.f32 %v522, %v570
  %572 = vmatmul.bf16.gmra.mxu0 %v256
  %v573 = vpop.f32.mrf.mxu0
  %v574 = vadd.f32 %v525, %v573
  %v575 = vpop.f32.mrf.mxu0
  %v576 = vadd.f32 %v527, %v575
  %577 = vmatmul.bf16.gmra.mxu0 %v260
  %v578 = vpop.f32.mrf.mxu0
  %v579 = vadd.f32 %v530, %v578
  %v580 = vpop.f32.mrf.mxu0
  %v581 = vadd.f32 %v532, %v580
  %582 = vmatmul.bf16.gmra.mxu0 %v264
  %v583 = vpop.f32.mrf.mxu0
  %v584 = vadd.f32 %v535, %v583
  %v585 = vpop.f32.mrf.mxu0
  %v586 = vadd.f32 %v537, %v585
  %587 = vmatmul.bf16.gmra.mxu0 %v268
  %v588 = vpop.f32.mrf.mxu0
  %v589 = vadd.f32 %v540, %v588
  %v590 = vpop.f32.mrf.mxu0
  %v591 = vadd.f32 %v542, %v590
  %592 = vdwg.mxu0
  %593 = vmatpush.bf16.msra.mxu0 %v454
  %594 = vmatpush.bf16.msra.mxu0 %v453
  %595 = vmatpush.bf16.msra.mxu0 %v452
  %596 = vmatpush.bf16.msra.mxu0 %v451
  %597 = vmatpush.bf16.msra.mxu0 %v450
  %598 = vmatpush.bf16.msra.mxu0 %v449
  %599 = vmatpush.bf16.msra.mxu0 %v448
  %600 = vmatpush.bf16.msra.mxu0 %v447
  %601 = vmatmul.bf16.gmra.mxu0 %v241
  %v602 = vpop.f32.mrf.mxu0
  %v603 = vadd.f32 %v554, %v602
  %v604 = vpop.f32.mrf.mxu0
  %v605 = vadd.f32 %v556, %v604
  %606 = vmatmul.bf16.gmra.mxu0 %v245
  %v607 = vpop.f32.mrf.mxu0
  %v608 = vadd.f32 %v559, %v607
  %v609 = vpop.f32.mrf.mxu0
  %v610 = vadd.f32 %v561, %v609
  %611 = vmatmul.bf16.gmra.mxu0 %v249
  %v612 = vpop.f32.mrf.mxu0
  %v613 = vadd.f32 %v564, %v612
  %v614 = vpop.f32.mrf.mxu0
  %v615 = vadd.f32 %v566, %v614
  %616 = vmatmul.bf16.gmra.mxu0 %v253
  %v617 = vpop.f32.mrf.mxu0
  %v618 = vadd.f32 %v569, %v617
  %v619 = vpop.f32.mrf.mxu0
  %v620 = vadd.f32 %v571, %v619
  %621 = vmatmul.bf16.gmra.mxu0 %v257
  %v622 = vpop.f32.mrf.mxu0
  %v623 = vadd.f32 %v574, %v622
  %v624 = vpop.f32.mrf.mxu0
  %v625 = vadd.f32 %v576, %v624
  %626 = vmatmul.bf16.gmra.mxu0 %v261
  %v627 = vpop.f32.mrf.mxu0
  %v628 = vadd.f32 %v579, %v627
  %v629 = vpop.f32.mrf.mxu0
  %v630 = vadd.f32 %v581, %v629
  %631 = vmatmul.bf16.gmra.mxu0 %v265
  %v632 = vpop.f32.mrf.mxu0
  %v633 = vadd.f32 %v584, %v632
  %v634 = vpop.f32.mrf.mxu0
  %v635 = vadd.f32 %v586, %v634
  %636 = vmatmul.bf16.gmra.mxu0 %v269
  %v637 = vpop.f32.mrf.mxu0
  %v638 = vadd.f32 %v589, %v637
  %v639 = vpop.f32.mrf.mxu0
  %v640 = vadd.f32 %v591, %v639
  %641 = vdwg.mxu0
  %642 = vmatpush.bf16.msra.mxu0 %v462
  %643 = vmatpush.bf16.msra.mxu0 %v461
  %644 = vmatpush.bf16.msra.mxu0 %v460
  %645 = vmatpush.bf16.msra.mxu0 %v459
  %646 = vmatpush.bf16.msra.mxu0 %v458
  %647 = vmatpush.bf16.msra.mxu0 %v457
  %648 = vmatpush.bf16.msra.mxu0 %v456
  %649 = vmatpush.bf16.msra.mxu0 %v455
  %650 = vmatmul.bf16.gmra.mxu0 %v242
  %v651 = vpop.f32.mrf.mxu0
  %v652 = vadd.f32 %v603, %v651
  %v653 = vpop.f32.mrf.mxu0
  %v654 = vadd.f32 %v605, %v653
  %655 = vmatmul.bf16.gmra.mxu0 %v246
  %v656 = vpop.f32.mrf.mxu0
  %v657 = vadd.f32 %v608, %v656
  %v658 = vpop.f32.mrf.mxu0
  %v659 = vadd.f32 %v610, %v658
  %660 = vmatmul.bf16.gmra.mxu0 %v250
  %v661 = vpop.f32.mrf.mxu0
  %v662 = vadd.f32 %v613, %v661
  %v663 = vpop.f32.mrf.mxu0
  %v664 = vadd.f32 %v615, %v663
  %665 = vmatmul.bf16.gmra.mxu0 %v254
  %v666 = vpop.f32.mrf.mxu0
  %v667 = vadd.f32 %v618, %v666
  %v668 = vpop.f32.mrf.mxu0
  %v669 = vadd.f32 %v620, %v668
  %670 = vmatmul.bf16.gmra.mxu0 %v258
  %v671 = vpop.f32.mrf.mxu0
  %v672 = vadd.f32 %v623, %v671
  %v673 = vpop.f32.mrf.mxu0
  %v674 = vadd.f32 %v625, %v673
  %675 = vmatmul.bf16.gmra.mxu0 %v262
  %v676 = vpop.f32.mrf.mxu0
  %v677 = vadd.f32 %v628, %v676
  %v678 = vpop.f32.mrf.mxu0
  %v679 = vadd.f32 %v630, %v678
  %680 = vmatmul.bf16.gmra.mxu0 %v266
  %v681 = vpop.f32.mrf.mxu0
  %v682 = vadd.f32 %v633, %v681
  %v683 = vpop.f32.mrf.mxu0
  %v684 = vadd.f32 %v635, %v683
  %685 = vmatmul.bf16.gmra.mxu0 %v270
  %v686 = vpop.f32.mrf.mxu0
  %v687 = vadd.f32 %v638, %v686
  %v688 = vpop.f32.mrf.mxu0
  %v689 = vadd.f32 %v640, %v688
  %690 = vdwg.mxu0
  %v691 = vadd.f32 %v31, %v652
  %v692 = vadd.f32 %v32, %v654
  %v693 = vadd.f32 %v33, %v657
  %v694 = vadd.f32 %v34, %v659
  %v695 = vadd.f32 %v35, %v662
  %v696 = vadd.f32 %v36, %v664
  %v697 = vadd.f32 %v37, %v667
  %v698 = vadd.f32 %v38, %v669
  %v699 = vadd.f32 %v39, %v672
  %v700 = vadd.f32 %v40, %v674
  %v701 = vadd.f32 %v41, %v677
  %v702 = vadd.f32 %v42, %v679
  %v703 = vadd.f32 %v43, %v682
  %v704 = vadd.f32 %v44, %v684
  %v705 = vadd.f32 %v45, %v687
  %v706 = vadd.f32 %v46, %v689
  %707 = vst [vmem:[#allocation2] sm:$0xff] %v691
  %708 = vst [vmem:[#allocation2 + $0x8] sm:$0xff] %v692
  %709 = vst [vmem:[#allocation2 + $0x10] sm:$0xff] %v693
  %710 = vst [vmem:[#allocation2 + $0x18] sm:$0xff] %v694
  %711 = vst [vmem:[#allocation2 + $0x20] sm:$0xff] %v695
  %712 = vst [vmem:[#allocation2 + $0x28] sm:$0xff] %v696
  %713 = vst [vmem:[#allocation2 + $0x30] sm:$0xff] %v697
  %714 = vst [vmem:[#allocation2 + $0x38] sm:$0xff] %v698
  %715 = vst [vmem:[#allocation2 + $0x40] sm:$0xff] %v699
  %716 = vst [vmem:[#allocation2 + $0x48] sm:$0xff] %v700
  %717 = vst [vmem:[#allocation2 + $0x50] sm:$0xff] %v701
  %718 = vst [vmem:[#allocation2 + $0x58] sm:$0xff] %v702
  %719 = vst [vmem:[#allocation2 + $0x60] sm:$0xff] %v703
  %720 = vst [vmem:[#allocation2 + $0x68] sm:$0xff] %v704
  %721 = vst [vmem:[#allocation2 + $0x70] sm:$0xff] %v705
  %722 = vst [vmem:[#allocation2 + $0x78] sm:$0xff] %v706
  // Predicated region
  $region14: #{gnn_mix_forward.12} parent=0 // pred_check
    %p723 = pneg %p11
  $region15: #{gnn_mix_forward.12} parent=0 // pred_check_branch
    %725 = sbr.rel (%p723) target = $region17
  $region16: #{gnn_mix_forward.12} parent=0 // pred_region
    %v726 = vld [vmem:[#allocation2] sm:$0xff]
    %v727 = vld [vmem:[#allocation2 + $0x8] sm:$0xff]
    %v728 = vld [vmem:[#allocation2 + $0x10] sm:$0xff]
    %v729 = vld [vmem:[#allocation2 + $0x18] sm:$0xff]
    %v730 = vld [vmem:[#allocation2 + $0x20] sm:$0xff]
    %v731 = vld [vmem:[#allocation2 + $0x28] sm:$0xff]
    %v732 = vld [vmem:[#allocation2 + $0x30] sm:$0xff]
    %v733 = vld [vmem:[#allocation2 + $0x38] sm:$0xff]
    %v734 = vld [vmem:[#allocation2 + $0x40] sm:$0xff]
    %v735 = vld [vmem:[#allocation2 + $0x48] sm:$0xff]
    %v736 = vld [vmem:[#allocation2 + $0x50] sm:$0xff]
    %v737 = vld [vmem:[#allocation2 + $0x58] sm:$0xff]
    %v738 = vld [vmem:[#allocation2 + $0x60] sm:$0xff]
    %v739 = vld [vmem:[#allocation2 + $0x68] sm:$0xff]
    %v740 = vld [vmem:[#allocation2 + $0x70] sm:$0xff]
    %v741 = vld [vmem:[#allocation2 + $0x78] sm:$0xff]
    %v742 = vpack.c.bf16 %v726, %v726
    %v743 = vpack.c.bf16 %v727, %v727
    %v744 = vpack.c.bf16 %v728, %v728
    %v745 = vpack.c.bf16 %v729, %v729
    %v746 = vpack.c.bf16 %v730, %v730
    %v747 = vpack.c.bf16 %v731, %v731
    %v748 = vpack.c.bf16 %v732, %v732
    %v749 = vpack.c.bf16 %v733, %v733
    %v750 = vpack.c.bf16 %v734, %v734
    %v751 = vpack.c.bf16 %v735, %v735
    %v752 = vpack.c.bf16 %v736, %v736
    %v753 = vpack.c.bf16 %v737, %v737
    %v754 = vpack.c.bf16 %v738, %v738
    %v755 = vpack.c.bf16 %v739, %v739
    %v756 = vpack.c.bf16 %v740, %v740
    %v757 = vpack.c.bf16 %v741, %v741
    %758 = vst [vmem:[%s2] sm:$0xf] %v742
    %759 = vst [vmem:[%s2 + $0x4] sm:$0xf] %v743
    %760 = vst [vmem:[%s2 + $0x8] sm:$0xf] %v744
    %761 = vst [vmem:[%s2 + $0xc] sm:$0xf] %v745
    %762 = vst [vmem:[%s2 + $0x10] sm:$0xf] %v746
    %763 = vst [vmem:[%s2 + $0x14] sm:$0xf] %v747
    %764 = vst [vmem:[%s2 + $0x18] sm:$0xf] %v748
    %765 = vst [vmem:[%s2 + $0x1c] sm:$0xf] %v749
    %766 = vst [vmem:[%s2 + $0x20] sm:$0xf] %v750
    %767 = vst [vmem:[%s2 + $0x24] sm:$0xf] %v751
    %768 = vst [vmem:[%s2 + $0x28] sm:$0xf] %v752
    %769 = vst [vmem:[%s2 + $0x2c] sm:$0xf] %v753
    %770 = vst [vmem:[%s2 + $0x30] sm:$0xf] %v754
    %771 = vst [vmem:[%s2 + $0x34] sm:$0xf] %v755
    %772 = vst [vmem:[%s2 + $0x38] sm:$0xf] %v756
    %773 = vst [vmem:[%s2 + $0x3c] sm:$0xf] %v757
  $region17: #{gnn_mix_forward.12} parent=0 // pred_fallthru
    _
  // Predicated region
  $region18: #{gnn_mix_forward.12} parent=0 // pred_check
    _
  $region19: #{gnn_mix_forward.12} parent=0 // pred_check_branch
    %775 = sbr.rel (0) target = $region21
  $region20: #{gnn_mix_forward.12} parent=0 // pred_region
    _
  $region21: #{gnn_mix_forward.12} parent=0 // pred_fallthru
    _
  // Predicated region
  $region22: #{gnn_mix_forward.12} parent=0 // pred_check
    _
  $region23: #{gnn_mix_forward.12} parent=0 // pred_check_branch
    %777 = sbr.rel (0) target = $region25
  $region24: #{gnn_mix_forward.12} parent=0 // pred_region
    _
  $region25: #{gnn_mix_forward.12} parent=0 // pred_fallthru
    _

// kernel: gnn_mix_forward.14
$region0: #{gnn_mix_forward.14}
  #allocation0 [shape = 'u32[]', space=smem, size = 0x4, offset = 0x4, fixed_abs, tag = 'smem constant byte address 0x4 - core index']
  #allocation1 [shape = 'u32[72,128]{1,0:T(1,128)}', space=vmem, size = 0x9000, scoped, tag = 'internal scratch']
  #allocation2 [shape = 'f32[128,128]{1,0:T(8,128)}', space=vmem, size = 0x10000, scoped, tag = 'scratch operand']
  %s0 = inlined_call_operand.vmem [shape: bf16[128,128], index: 0, kind: input, shape index: {}]
  %s1 = inlined_call_operand.vmem [shape: bf16[128,128], index: 1, kind: input, shape index: {}]
  %s2 = inlined_call_operand.vmem [shape: bf16[128,128], index: 2, kind: output, shape index: {}]
  %s3 = sld [smem:[#allocation0]]
  $region26: #{gnn_mix_forward.14} parent=0
    _
  %s5 = ssub.s32 1, %s3
  %s6 = scalar_select 0, %s5, %s3
  // Predicated region
  $region2: #{gnn_mix_forward.14} parent=0 // pred_check
    _
  $region3: #{gnn_mix_forward.14} parent=0 // pred_check_branch
    %8 = sbr.rel (0) target = $region5
  $region4: #{gnn_mix_forward.14} parent=0 // pred_region
    _
  $region5: #{gnn_mix_forward.14} parent=0 // pred_fallthru
    _
  // Predicated region
  $region6: #{gnn_mix_forward.14} parent=0 // pred_check
    _
  $region7: #{gnn_mix_forward.14} parent=0 // pred_check_branch
    %10 = sbr.rel (0) target = $region9
  $region8: #{gnn_mix_forward.14} parent=0 // pred_region
    _
  $region9: #{gnn_mix_forward.14} parent=0 // pred_fallthru
    _
  %p11 = scmp.eq.s32.totalorder 0, 0
  // Predicated region
  $region10: #{gnn_mix_forward.14} parent=0 // pred_check
    %p12 = pneg %p11
  $region11: #{gnn_mix_forward.14} parent=0 // pred_check_branch
    %14 = sbr.rel (%p12) target = $region13
  $region12: #{gnn_mix_forward.14} parent=0 // pred_region
    %15 = vst [vmem:[#allocation2] sm:$0xff] 0.0
    %16 = vst [vmem:[#allocation2 + $0x8] sm:$0xff] 0.0
    %17 = vst [vmem:[#allocation2 + $0x10] sm:$0xff] 0.0
    %18 = vst [vmem:[#allocation2 + $0x18] sm:$0xff] 0.0
    %19 = vst [vmem:[#allocation2 + $0x20] sm:$0xff] 0.0
    %20 = vst [vmem:[#allocation2 + $0x28] sm:$0xff] 0.0
    %21 = vst [vmem:[#allocation2 + $0x30] sm:$0xff] 0.0
    %22 = vst [vmem:[#allocation2 + $0x38] sm:$0xff] 0.0
    %23 = vst [vmem:[#allocation2 + $0x40] sm:$0xff] 0.0
    %24 = vst [vmem:[#allocation2 + $0x48] sm:$0xff] 0.0
    %25 = vst [vmem:[#allocation2 + $0x50] sm:$0xff] 0.0
    %26 = vst [vmem:[#allocation2 + $0x58] sm:$0xff] 0.0
    %27 = vst [vmem:[#allocation2 + $0x60] sm:$0xff] 0.0
    %28 = vst [vmem:[#allocation2 + $0x68] sm:$0xff] 0.0
    %29 = vst [vmem:[#allocation2 + $0x70] sm:$0xff] 0.0
    %30 = vst [vmem:[#allocation2 + $0x78] sm:$0xff] 0.0
  $region13: #{gnn_mix_forward.14} parent=0 // pred_fallthru
    _
  %v31 = vld [vmem:[#allocation2] sm:$0xff]
  %v32 = vld [vmem:[#allocation2 + $0x8] sm:$0xff]
  %v33 = vld [vmem:[#allocation2 + $0x10] sm:$0xff]
  %v34 = vld [vmem:[#allocation2 + $0x18] sm:$0xff]
  %v35 = vld [vmem:[#allocation2 + $0x20] sm:$0xff]
  %v36 = vld [vmem:[#allocation2 + $0x28] sm:$0xff]
  %v37 = vld [vmem:[#allocation2 + $0x30] sm:$0xff]
  %v38 = vld [vmem:[#allocation2 + $0x38] sm:$0xff]
  %v39 = vld [vmem:[#allocation2 + $0x40] sm:$0xff]
  %v40 = vld [vmem:[#allocation2 + $0x48] sm:$0xff]
  %v41 = vld [vmem:[#allocation2 + $0x50] sm:$0xff]
  %v42 = vld [vmem:[#allocation2 + $0x58] sm:$0xff]
  %v43 = vld [vmem:[#allocation2 + $0x60] sm:$0xff]
  %v44 = vld [vmem:[#allocation2 + $0x68] sm:$0xff]
  %v45 = vld [vmem:[#allocation2 + $0x70] sm:$0xff]
  %v46 = vld [vmem:[#allocation2 + $0x78] sm:$0xff]
  %v47 = vld [vmem:[%s0] sm:$0xf]
  %v48 = vld [vmem:[%s0 + $0x4] sm:$0xf]
  %v49 = vld [vmem:[%s0 + $0x8] sm:$0xf]
  %v50 = vld [vmem:[%s0 + $0xc] sm:$0xf]
  %v51 = vld [vmem:[%s0 + $0x10] sm:$0xf]
  %v52 = vld [vmem:[%s0 + $0x14] sm:$0xf]
  %v53 = vld [vmem:[%s0 + $0x18] sm:$0xf]
  %v54 = vld [vmem:[%s0 + $0x1c] sm:$0xf]
  %v55 = vld [vmem:[%s0 + $0x20] sm:$0xf]
  %v56 = vld [vmem:[%s0 + $0x24] sm:$0xf]
  %v57 = vld [vmem:[%s0 + $0x28] sm:$0xf]
  %v58 = vld [vmem:[%s0 + $0x2c] sm:$0xf]
  %v59 = vld [vmem:[%s0 + $0x30] sm:$0xf]
  %v60 = vld [vmem:[%s0 + $0x34] sm:$0xf]
  %v61 = vld [vmem:[%s0 + $0x38] sm:$0xf]
  %v62 = vld [vmem:[%s0 + $0x3c] sm:$0xf]
  %v63 = vld [vmem:[%s1] sm:$0xf]
  %v64 = vld [vmem:[%s1 + $0x4] sm:$0xf]
  %v65 = vld [vmem:[%s1 + $0x8] sm:$0xf]
  %v66 = vld [vmem:[%s1 + $0xc] sm:$0xf]
  %v67 = vld [vmem:[%s1 + $0x10] sm:$0xf]
  %v68 = vld [vmem:[%s1 + $0x14] sm:$0xf]
  %v69 = vld [vmem:[%s1 + $0x18] sm:$0xf]
  %v70 = vld [vmem:[%s1 + $0x1c] sm:$0xf]
  %v71 = vld [vmem:[%s1 + $0x20] sm:$0xf]
  %v72 = vld [vmem:[%s1 + $0x24] sm:$0xf]
  %v73 = vld [vmem:[%s1 + $0x28] sm:$0xf]
  %v74 = vld [vmem:[%s1 + $0x2c] sm:$0xf]
  %v75 = vld [vmem:[%s1 + $0x30] sm:$0xf]
  %v76 = vld [vmem:[%s1 + $0x34] sm:$0xf]
  %v77 = vld [vmem:[%s1 + $0x38] sm:$0xf]
  %v78 = vld [vmem:[%s1 + $0x3c] sm:$0xf]
  %v95 = vunpack.c.l.b16 %v47
  %v96 = vunpack.c.l.b16 %v48
  %v97 = vunpack.c.l.b16 %v49
  %v98 = vunpack.c.l.b16 %v50
  %v99 = vunpack.c.l.b16 %v51
  %v100 = vunpack.c.l.b16 %v52
  %v101 = vunpack.c.l.b16 %v53
  %v102 = vunpack.c.l.b16 %v54
  %v103 = vunpack.c.l.b16 %v55
  %v104 = vunpack.c.l.b16 %v56
  %v105 = vunpack.c.l.b16 %v57
  %v106 = vunpack.c.l.b16 %v58
  %v107 = vunpack.c.l.b16 %v59
  %v108 = vunpack.c.l.b16 %v60
  %v109 = vunpack.c.l.b16 %v61
  %v110 = vunpack.c.l.b16 %v62
  %v111 = vpack.c.b16 %v96, %v95
  %v112 = vpack.c.b16 %v98, %v97
  %v113 = vpack.c.b16 %v100, %v99
  %v114 = vpack.c.b16 %v102, %v101
  %v115 = vpack.c.b16 %v104, %v103
  %v116 = vpack.c.b16 %v106, %v105
  %v117 = vpack.c.b16 %v108, %v107
  %v118 = vpack.c.b16 %v110, %v109
  %v143 = vunpack.c.l.b16 %v63
  %v144 = vunpack.c.l.b16 %v64
  %v145 = vunpack.c.l.b16 %v65
  %v146 = vunpack.c.l.b16 %v66
  %v147 = vunpack.c.l.b16 %v67
  %v148 = vunpack.c.l.b16 %v68
  %v149 = vunpack.c.l.b16 %v69
  %v150 = vunpack.c.l.b16 %v70
  %v151 = vunpack.c.l.b16 %v71
  %v152 = vunpack.c.l.b16 %v72
  %v153 = vunpack.c.l.b16 %v73
  %v154 = vunpack.c.l.b16 %v74
  %v155 = vunpack.c.l.b16 %v75
  %v156 = vunpack.c.l.b16 %v76
  %v157 = vunpack.c.l.b16 %v77
  %v158 = vunpack.c.l.b16 %v78
  %v159 = vpack.c.b16 %v144, %v143
  %v160 = vpack.c.b16 %v146, %v145
  %v161 = vpack.c.b16 %v148, %v147
  %v162 = vpack.c.b16 %v150, %v149
  %v163 = vpack.c.b16 %v152, %v151
  %v164 = vpack.c.b16 %v154, %v153
  %v165 = vpack.c.b16 %v156, %v155
  %v166 = vpack.c.b16 %v158, %v157
  %175 = vmatpush.bf16.msra.mxu0 %v166
  %176 = vmatpush.bf16.msra.mxu0 %v165
  %177 = vmatpush.bf16.msra.mxu0 %v164
  %178 = vmatpush.bf16.msra.mxu0 %v163
  %179 = vmatpush.bf16.msra.mxu0 %v162
  %180 = vmatpush.bf16.msra.mxu0 %v161
  %181 = vmatpush.bf16.msra.mxu0 %v160
  %182 = vmatpush.bf16.msra.mxu0 %v159
  %183 = vmatmul.bf16.gmra.mxu0 %v111
  %v184 = vpop.f32.mrf.mxu0
  %v185 = vadd.f32 0.0, %v184
  %v186 = vpop.f32.mrf.mxu0
  %v187 = vadd.f32 0.0, %v186
  %188 = vmatmul.bf16.gmra.mxu0 %v112
  %v189 = vpop.f32.mrf.mxu0
  %v190 = vadd.f32 0.0, %v189
  %v191 = vpop.f32.mrf.mxu0
  %v192 = vadd.f32 0.0, %v191
  %193 = vmatmul.bf16.gmra.mxu0 %v113
  %v194 = vpop.f32.mrf.mxu0
  %v195 = vadd.f32 0.0, %v194
  %v196 = vpop.f32.mrf.mxu0
  %v197 = vadd.f32 0.0, %v196
  %198 = vmatmul.bf16.gmra.mxu0 %v114
  %v199 = vpop.f32.mrf.mxu0
  %v200 = vadd.f32 0.0, %v199
  %v201 = vpop.f32.mrf.mxu0
  %v202 = vadd.f32 0.0, %v201
  %203 = vmatmul.bf16.gmra.mxu0 %v115
  %v204 = vpop.f32.mrf.mxu0
  %v205 = vadd.f32 0.0, %v204
  %v206 = vpop.f32.mrf.mxu0
  %v207 = vadd.f32 0.0, %v206
  %208 = vmatmul.bf16.gmra.mxu0 %v116
  %v209 = vpop.f32.mrf.mxu0
  %v210 = vadd.f32 0.0, %v209
  %v211 = vpop.f32.mrf.mxu0
  %v212 = vadd.f32 0.0, %v211
  %213 = vmatmul.bf16.gmra.mxu0 %v117
  %v214 = vpop.f32.mrf.mxu0
  %v215 = vadd.f32 0.0, %v214
  %v216 = vpop.f32.mrf.mxu0
  %v217 = vadd.f32 0.0, %v216
  %218 = vmatmul.bf16.gmra.mxu0 %v118
  %v219 = vpop.f32.mrf.mxu0
  %v220 = vadd.f32 0.0, %v219
  %v221 = vpop.f32.mrf.mxu0
  %v222 = vadd.f32 0.0, %v221
  %223 = vdwg.mxu0
  %v224 = vadd.f32 %v31, %v185
  %v225 = vadd.f32 %v32, %v187
  %v226 = vadd.f32 %v33, %v190
  %v227 = vadd.f32 %v34, %v192
  %v228 = vadd.f32 %v35, %v195
  %v229 = vadd.f32 %v36, %v197
  %v230 = vadd.f32 %v37, %v200
  %v231 = vadd.f32 %v38, %v202
  %v232 = vadd.f32 %v39, %v205
  %v233 = vadd.f32 %v40, %v207
  %v234 = vadd.f32 %v41, %v210
  %v235 = vadd.f32 %v42, %v212
  %v236 = vadd.f32 %v43, %v215
  %v237 = vadd.f32 %v44, %v217
  %v238 = vadd.f32 %v45, %v220
  %v239 = vadd.f32 %v46, %v222
  %240 = vst [vmem:[#allocation2] sm:$0xff] %v224
  %241 = vst [vmem:[#allocation2 + $0x8] sm:$0xff] %v225
  %242 = vst [vmem:[#allocation2 + $0x10] sm:$0xff] %v226
  %243 = vst [vmem:[#allocation2 + $0x18] sm:$0xff] %v227
  %244 = vst [vmem:[#allocation2 + $0x20] sm:$0xff] %v228
  %245 = vst [vmem:[#allocation2 + $0x28] sm:$0xff] %v229
  %246 = vst [vmem:[#allocation2 + $0x30] sm:$0xff] %v230
  %247 = vst [vmem:[#allocation2 + $0x38] sm:$0xff] %v231
  %248 = vst [vmem:[#allocation2 + $0x40] sm:$0xff] %v232
  %249 = vst [vmem:[#allocation2 + $0x48] sm:$0xff] %v233
  %250 = vst [vmem:[#allocation2 + $0x50] sm:$0xff] %v234
  %251 = vst [vmem:[#allocation2 + $0x58] sm:$0xff] %v235
  %252 = vst [vmem:[#allocation2 + $0x60] sm:$0xff] %v236
  %253 = vst [vmem:[#allocation2 + $0x68] sm:$0xff] %v237
  %254 = vst [vmem:[#allocation2 + $0x70] sm:$0xff] %v238
  %255 = vst [vmem:[#allocation2 + $0x78] sm:$0xff] %v239
  // Predicated region
  $region14: #{gnn_mix_forward.14} parent=0 // pred_check
    %p256 = pneg %p11
  $region15: #{gnn_mix_forward.14} parent=0 // pred_check_branch
    %258 = sbr.rel (%p256) target = $region17
  $region16: #{gnn_mix_forward.14} parent=0 // pred_region
    %v259 = vld [vmem:[#allocation2] sm:$0xff]
    %v260 = vld [vmem:[#allocation2 + $0x8] sm:$0xff]
    %v261 = vld [vmem:[#allocation2 + $0x10] sm:$0xff]
    %v262 = vld [vmem:[#allocation2 + $0x18] sm:$0xff]
    %v263 = vld [vmem:[#allocation2 + $0x20] sm:$0xff]
    %v264 = vld [vmem:[#allocation2 + $0x28] sm:$0xff]
    %v265 = vld [vmem:[#allocation2 + $0x30] sm:$0xff]
    %v266 = vld [vmem:[#allocation2 + $0x38] sm:$0xff]
    %v267 = vld [vmem:[#allocation2 + $0x40] sm:$0xff]
    %v268 = vld [vmem:[#allocation2 + $0x48] sm:$0xff]
    %v269 = vld [vmem:[#allocation2 + $0x50] sm:$0xff]
    %v270 = vld [vmem:[#allocation2 + $0x58] sm:$0xff]
    %v271 = vld [vmem:[#allocation2 + $0x60] sm:$0xff]
    %v272 = vld [vmem:[#allocation2 + $0x68] sm:$0xff]
    %v273 = vld [vmem:[#allocation2 + $0x70] sm:$0xff]
    %v274 = vld [vmem:[#allocation2 + $0x78] sm:$0xff]
    %v275 = vpack.c.bf16 %v259, %v259
    %v276 = vpack.c.bf16 %v260, %v260
    %v277 = vpack.c.bf16 %v261, %v261
    %v278 = vpack.c.bf16 %v262, %v262
    %v279 = vpack.c.bf16 %v263, %v263
    %v280 = vpack.c.bf16 %v264, %v264
    %v281 = vpack.c.bf16 %v265, %v265
    %v282 = vpack.c.bf16 %v266, %v266
    %v283 = vpack.c.bf16 %v267, %v267
    %v284 = vpack.c.bf16 %v268, %v268
    %v285 = vpack.c.bf16 %v269, %v269
    %v286 = vpack.c.bf16 %v270, %v270
    %v287 = vpack.c.bf16 %v271, %v271
    %v288 = vpack.c.bf16 %v272, %v272
    %v289 = vpack.c.bf16 %v273, %v273
    %v290 = vpack.c.bf16 %v274, %v274
    %291 = vst [vmem:[%s2] sm:$0xf] %v275
    %292 = vst [vmem:[%s2 + $0x4] sm:$0xf] %v276
    %293 = vst [vmem:[%s2 + $0x8] sm:$0xf] %v277
    %294 = vst [vmem:[%s2 + $0xc] sm:$0xf] %v278
    %295 = vst [vmem:[%s2 + $0x10] sm:$0xf] %v279
    %296 = vst [vmem:[%s2 + $0x14] sm:$0xf] %v280
    %297 = vst [vmem:[%s2 + $0x18] sm:$0xf] %v281
    %298 = vst [vmem:[%s2 + $0x1c] sm:$0xf] %v282
    %299 = vst [vmem:[%s2 + $0x20] sm:$0xf] %v283
    %300 = vst [vmem:[%s2 + $0x24] sm:$0xf] %v284
    %301 = vst [vmem:[%s2 + $0x28] sm:$0xf] %v285
    %302 = vst [vmem:[%s2 + $0x2c] sm:$0xf] %v286
    %303 = vst [vmem:[%s2 + $0x30] sm:$0xf] %v287
    %304 = vst [vmem:[%s2 + $0x34] sm:$0xf] %v288
    %305 = vst [vmem:[%s2 + $0x38] sm:$0xf] %v289
    %306 = vst [vmem:[%s2 + $0x3c] sm:$0xf] %v290
  $region17: #{gnn_mix_forward.14} parent=0 // pred_fallthru
    _
  // Predicated region
  $region18: #{gnn_mix_forward.14} parent=0 // pred_check
    _
  $region19: #{gnn_mix_forward.14} parent=0 // pred_check_branch
    %308 = sbr.rel (0) target = $region21
  $region20: #{gnn_mix_forward.14} parent=0 // pred_region
    _
  $region21: #{gnn_mix_forward.14} parent=0 // pred_fallthru
    _
  // Predicated region
  $region22: #{gnn_mix_forward.14} parent=0 // pred_check
    _
  $region23: #{gnn_mix_forward.14} parent=0 // pred_check_branch
    %310 = sbr.rel (0) target = $region25
  $region24: #{gnn_mix_forward.14} parent=0 // pred_region
    _
  $region25: #{gnn_mix_forward.14} parent=0 // pred_fallthru
    _

// kernel: gnn_mix_forward.15
$region0: #{gnn_mix_forward.15}
  #allocation0 [shape = 'u32[]', space=smem, size = 0x4, offset = 0x4, fixed_abs, tag = 'smem constant byte address 0x4 - core index']
  #allocation1 [shape = 'u32[72,128]{1,0:T(1,128)}', space=vmem, size = 0x9000, scoped, tag = 'internal scratch']
  #allocation2 [shape = 'f32[128,128]{1,0:T(8,128)}', space=vmem, size = 0x10000, scoped, tag = 'scratch operand']
  %s0 = inlined_call_operand.vmem [shape: bf16[128,128], index: 0, kind: input, shape index: {}]
  %s1 = inlined_call_operand.vmem [shape: bf16[128,128], index: 1, kind: input, shape index: {}]
  %s2 = inlined_call_operand.vmem [shape: f32[128,128], index: 2, kind: output, shape index: {}]
  %s3 = sld [smem:[#allocation0]]
  $region26: #{gnn_mix_forward.15} parent=0
    _
  %s5 = ssub.s32 1, %s3
  %s6 = scalar_select 0, %s5, %s3
  // Predicated region
  $region2: #{gnn_mix_forward.15} parent=0 // pred_check
    _
  $region3: #{gnn_mix_forward.15} parent=0 // pred_check_branch
    %8 = sbr.rel (0) target = $region5
  $region4: #{gnn_mix_forward.15} parent=0 // pred_region
    _
  $region5: #{gnn_mix_forward.15} parent=0 // pred_fallthru
    _
  // Predicated region
  $region6: #{gnn_mix_forward.15} parent=0 // pred_check
    _
  $region7: #{gnn_mix_forward.15} parent=0 // pred_check_branch
    %10 = sbr.rel (0) target = $region9
  $region8: #{gnn_mix_forward.15} parent=0 // pred_region
    _
  $region9: #{gnn_mix_forward.15} parent=0 // pred_fallthru
    _
  %p11 = scmp.eq.s32.totalorder 0, 0
  // Predicated region
  $region10: #{gnn_mix_forward.15} parent=0 // pred_check
    %p12 = pneg %p11
  $region11: #{gnn_mix_forward.15} parent=0 // pred_check_branch
    %14 = sbr.rel (%p12) target = $region13
  $region12: #{gnn_mix_forward.15} parent=0 // pred_region
    %15 = vst [vmem:[#allocation2] sm:$0xff] 0.0
    %16 = vst [vmem:[#allocation2 + $0x8] sm:$0xff] 0.0
    %17 = vst [vmem:[#allocation2 + $0x10] sm:$0xff] 0.0
    %18 = vst [vmem:[#allocation2 + $0x18] sm:$0xff] 0.0
    %19 = vst [vmem:[#allocation2 + $0x20] sm:$0xff] 0.0
    %20 = vst [vmem:[#allocation2 + $0x28] sm:$0xff] 0.0
    %21 = vst [vmem:[#allocation2 + $0x30] sm:$0xff] 0.0
    %22 = vst [vmem:[#allocation2 + $0x38] sm:$0xff] 0.0
    %23 = vst [vmem:[#allocation2 + $0x40] sm:$0xff] 0.0
    %24 = vst [vmem:[#allocation2 + $0x48] sm:$0xff] 0.0
    %25 = vst [vmem:[#allocation2 + $0x50] sm:$0xff] 0.0
    %26 = vst [vmem:[#allocation2 + $0x58] sm:$0xff] 0.0
    %27 = vst [vmem:[#allocation2 + $0x60] sm:$0xff] 0.0
    %28 = vst [vmem:[#allocation2 + $0x68] sm:$0xff] 0.0
    %29 = vst [vmem:[#allocation2 + $0x70] sm:$0xff] 0.0
    %30 = vst [vmem:[#allocation2 + $0x78] sm:$0xff] 0.0
  $region13: #{gnn_mix_forward.15} parent=0 // pred_fallthru
    _
  %v31 = vld [vmem:[#allocation2] sm:$0xff]
  %v32 = vld [vmem:[#allocation2 + $0x8] sm:$0xff]
  %v33 = vld [vmem:[#allocation2 + $0x10] sm:$0xff]
  %v34 = vld [vmem:[#allocation2 + $0x18] sm:$0xff]
  %v35 = vld [vmem:[#allocation2 + $0x20] sm:$0xff]
  %v36 = vld [vmem:[#allocation2 + $0x28] sm:$0xff]
  %v37 = vld [vmem:[#allocation2 + $0x30] sm:$0xff]
  %v38 = vld [vmem:[#allocation2 + $0x38] sm:$0xff]
  %v39 = vld [vmem:[#allocation2 + $0x40] sm:$0xff]
  %v40 = vld [vmem:[#allocation2 + $0x48] sm:$0xff]
  %v41 = vld [vmem:[#allocation2 + $0x50] sm:$0xff]
  %v42 = vld [vmem:[#allocation2 + $0x58] sm:$0xff]
  %v43 = vld [vmem:[#allocation2 + $0x60] sm:$0xff]
  %v44 = vld [vmem:[#allocation2 + $0x68] sm:$0xff]
  %v45 = vld [vmem:[#allocation2 + $0x70] sm:$0xff]
  %v46 = vld [vmem:[#allocation2 + $0x78] sm:$0xff]
  %v47 = vld [vmem:[%s0] sm:$0xf]
  %v48 = vld [vmem:[%s0 + $0x4] sm:$0xf]
  %v49 = vld [vmem:[%s0 + $0x8] sm:$0xf]
  %v50 = vld [vmem:[%s0 + $0xc] sm:$0xf]
  %v51 = vld [vmem:[%s0 + $0x10] sm:$0xf]
  %v52 = vld [vmem:[%s0 + $0x14] sm:$0xf]
  %v53 = vld [vmem:[%s0 + $0x18] sm:$0xf]
  %v54 = vld [vmem:[%s0 + $0x1c] sm:$0xf]
  %v55 = vld [vmem:[%s0 + $0x20] sm:$0xf]
  %v56 = vld [vmem:[%s0 + $0x24] sm:$0xf]
  %v57 = vld [vmem:[%s0 + $0x28] sm:$0xf]
  %v58 = vld [vmem:[%s0 + $0x2c] sm:$0xf]
  %v59 = vld [vmem:[%s0 + $0x30] sm:$0xf]
  %v60 = vld [vmem:[%s0 + $0x34] sm:$0xf]
  %v61 = vld [vmem:[%s0 + $0x38] sm:$0xf]
  %v62 = vld [vmem:[%s0 + $0x3c] sm:$0xf]
  %v63 = vld [vmem:[%s1] sm:$0xf]
  %v64 = vld [vmem:[%s1 + $0x4] sm:$0xf]
  %v65 = vld [vmem:[%s1 + $0x8] sm:$0xf]
  %v66 = vld [vmem:[%s1 + $0xc] sm:$0xf]
  %v67 = vld [vmem:[%s1 + $0x10] sm:$0xf]
  %v68 = vld [vmem:[%s1 + $0x14] sm:$0xf]
  %v69 = vld [vmem:[%s1 + $0x18] sm:$0xf]
  %v70 = vld [vmem:[%s1 + $0x1c] sm:$0xf]
  %v71 = vld [vmem:[%s1 + $0x20] sm:$0xf]
  %v72 = vld [vmem:[%s1 + $0x24] sm:$0xf]
  %v73 = vld [vmem:[%s1 + $0x28] sm:$0xf]
  %v74 = vld [vmem:[%s1 + $0x2c] sm:$0xf]
  %v75 = vld [vmem:[%s1 + $0x30] sm:$0xf]
  %v76 = vld [vmem:[%s1 + $0x34] sm:$0xf]
  %v77 = vld [vmem:[%s1 + $0x38] sm:$0xf]
  %v78 = vld [vmem:[%s1 + $0x3c] sm:$0xf]
  %v95 = vunpack.c.l.b16 %v47
  %v96 = vunpack.c.l.b16 %v48
  %v97 = vunpack.c.l.b16 %v49
  %v98 = vunpack.c.l.b16 %v50
  %v99 = vunpack.c.l.b16 %v51
  %v100 = vunpack.c.l.b16 %v52
  %v101 = vunpack.c.l.b16 %v53
  %v102 = vunpack.c.l.b16 %v54
  %v103 = vunpack.c.l.b16 %v55
  %v104 = vunpack.c.l.b16 %v56
  %v105 = vunpack.c.l.b16 %v57
  %v106 = vunpack.c.l.b16 %v58
  %v107 = vunpack.c.l.b16 %v59
  %v108 = vunpack.c.l.b16 %v60
  %v109 = vunpack.c.l.b16 %v61
  %v110 = vunpack.c.l.b16 %v62
  %v111 = vpack.c.b16 %v96, %v95
  %v112 = vpack.c.b16 %v98, %v97
  %v113 = vpack.c.b16 %v100, %v99
  %v114 = vpack.c.b16 %v102, %v101
  %v115 = vpack.c.b16 %v104, %v103
  %v116 = vpack.c.b16 %v106, %v105
  %v117 = vpack.c.b16 %v108, %v107
  %v118 = vpack.c.b16 %v110, %v109
  %v143 = vunpack.c.l.b16 %v63
  %v144 = vunpack.c.l.b16 %v64
  %v145 = vunpack.c.l.b16 %v65
  %v146 = vunpack.c.l.b16 %v66
  %v147 = vunpack.c.l.b16 %v67
  %v148 = vunpack.c.l.b16 %v68
  %v149 = vunpack.c.l.b16 %v69
  %v150 = vunpack.c.l.b16 %v70
  %v151 = vunpack.c.l.b16 %v71
  %v152 = vunpack.c.l.b16 %v72
  %v153 = vunpack.c.l.b16 %v73
  %v154 = vunpack.c.l.b16 %v74
  %v155 = vunpack.c.l.b16 %v75
  %v156 = vunpack.c.l.b16 %v76
  %v157 = vunpack.c.l.b16 %v77
  %v158 = vunpack.c.l.b16 %v78
  %v159 = vpack.c.b16 %v144, %v143
  %v160 = vpack.c.b16 %v146, %v145
  %v161 = vpack.c.b16 %v148, %v147
  %v162 = vpack.c.b16 %v150, %v149
  %v163 = vpack.c.b16 %v152, %v151
  %v164 = vpack.c.b16 %v154, %v153
  %v165 = vpack.c.b16 %v156, %v155
  %v166 = vpack.c.b16 %v158, %v157
  %175 = vmatpush.bf16.msra.mxu0 %v166
  %176 = vmatpush.bf16.msra.mxu0 %v165
  %177 = vmatpush.bf16.msra.mxu0 %v164
  %178 = vmatpush.bf16.msra.mxu0 %v163
  %179 = vmatpush.bf16.msra.mxu0 %v162
  %180 = vmatpush.bf16.msra.mxu0 %v161
  %181 = vmatpush.bf16.msra.mxu0 %v160
  %182 = vmatpush.bf16.msra.mxu0 %v159
  %183 = vmatmul.bf16.gmra.mxu0 %v111
  %v184 = vpop.f32.mrf.mxu0
  %v185 = vadd.f32 0.0, %v184
  %v186 = vpop.f32.mrf.mxu0
  %v187 = vadd.f32 0.0, %v186
  %188 = vmatmul.bf16.gmra.mxu0 %v112
  %v189 = vpop.f32.mrf.mxu0
  %v190 = vadd.f32 0.0, %v189
  %v191 = vpop.f32.mrf.mxu0
  %v192 = vadd.f32 0.0, %v191
  %193 = vmatmul.bf16.gmra.mxu0 %v113
  %v194 = vpop.f32.mrf.mxu0
  %v195 = vadd.f32 0.0, %v194
  %v196 = vpop.f32.mrf.mxu0
  %v197 = vadd.f32 0.0, %v196
  %198 = vmatmul.bf16.gmra.mxu0 %v114
  %v199 = vpop.f32.mrf.mxu0
  %v200 = vadd.f32 0.0, %v199
  %v201 = vpop.f32.mrf.mxu0
  %v202 = vadd.f32 0.0, %v201
  %203 = vmatmul.bf16.gmra.mxu0 %v115
  %v204 = vpop.f32.mrf.mxu0
  %v205 = vadd.f32 0.0, %v204
  %v206 = vpop.f32.mrf.mxu0
  %v207 = vadd.f32 0.0, %v206
  %208 = vmatmul.bf16.gmra.mxu0 %v116
  %v209 = vpop.f32.mrf.mxu0
  %v210 = vadd.f32 0.0, %v209
  %v211 = vpop.f32.mrf.mxu0
  %v212 = vadd.f32 0.0, %v211
  %213 = vmatmul.bf16.gmra.mxu0 %v117
  %v214 = vpop.f32.mrf.mxu0
  %v215 = vadd.f32 0.0, %v214
  %v216 = vpop.f32.mrf.mxu0
  %v217 = vadd.f32 0.0, %v216
  %218 = vmatmul.bf16.gmra.mxu0 %v118
  %v219 = vpop.f32.mrf.mxu0
  %v220 = vadd.f32 0.0, %v219
  %v221 = vpop.f32.mrf.mxu0
  %v222 = vadd.f32 0.0, %v221
  %223 = vdwg.mxu0
  %v224 = vadd.f32 %v31, %v185
  %v225 = vadd.f32 %v32, %v187
  %v226 = vadd.f32 %v33, %v190
  %v227 = vadd.f32 %v34, %v192
  %v228 = vadd.f32 %v35, %v195
  %v229 = vadd.f32 %v36, %v197
  %v230 = vadd.f32 %v37, %v200
  %v231 = vadd.f32 %v38, %v202
  %v232 = vadd.f32 %v39, %v205
  %v233 = vadd.f32 %v40, %v207
  %v234 = vadd.f32 %v41, %v210
  %v235 = vadd.f32 %v42, %v212
  %v236 = vadd.f32 %v43, %v215
  %v237 = vadd.f32 %v44, %v217
  %v238 = vadd.f32 %v45, %v220
  %v239 = vadd.f32 %v46, %v222
  %240 = vst [vmem:[#allocation2] sm:$0xff] %v224
  %241 = vst [vmem:[#allocation2 + $0x8] sm:$0xff] %v225
  %242 = vst [vmem:[#allocation2 + $0x10] sm:$0xff] %v226
  %243 = vst [vmem:[#allocation2 + $0x18] sm:$0xff] %v227
  %244 = vst [vmem:[#allocation2 + $0x20] sm:$0xff] %v228
  %245 = vst [vmem:[#allocation2 + $0x28] sm:$0xff] %v229
  %246 = vst [vmem:[#allocation2 + $0x30] sm:$0xff] %v230
  %247 = vst [vmem:[#allocation2 + $0x38] sm:$0xff] %v231
  %248 = vst [vmem:[#allocation2 + $0x40] sm:$0xff] %v232
  %249 = vst [vmem:[#allocation2 + $0x48] sm:$0xff] %v233
  %250 = vst [vmem:[#allocation2 + $0x50] sm:$0xff] %v234
  %251 = vst [vmem:[#allocation2 + $0x58] sm:$0xff] %v235
  %252 = vst [vmem:[#allocation2 + $0x60] sm:$0xff] %v236
  %253 = vst [vmem:[#allocation2 + $0x68] sm:$0xff] %v237
  %254 = vst [vmem:[#allocation2 + $0x70] sm:$0xff] %v238
  %255 = vst [vmem:[#allocation2 + $0x78] sm:$0xff] %v239
  // Predicated region
  $region14: #{gnn_mix_forward.15} parent=0 // pred_check
    %p256 = pneg %p11
  $region15: #{gnn_mix_forward.15} parent=0 // pred_check_branch
    %258 = sbr.rel (%p256) target = $region17
  $region16: #{gnn_mix_forward.15} parent=0 // pred_region
    %v259 = vld [vmem:[#allocation2] sm:$0xff]
    %v260 = vld [vmem:[#allocation2 + $0x8] sm:$0xff]
    %v261 = vld [vmem:[#allocation2 + $0x10] sm:$0xff]
    %v262 = vld [vmem:[#allocation2 + $0x18] sm:$0xff]
    %v263 = vld [vmem:[#allocation2 + $0x20] sm:$0xff]
    %v264 = vld [vmem:[#allocation2 + $0x28] sm:$0xff]
    %v265 = vld [vmem:[#allocation2 + $0x30] sm:$0xff]
    %v266 = vld [vmem:[#allocation2 + $0x38] sm:$0xff]
    %v267 = vld [vmem:[#allocation2 + $0x40] sm:$0xff]
    %v268 = vld [vmem:[#allocation2 + $0x48] sm:$0xff]
    %v269 = vld [vmem:[#allocation2 + $0x50] sm:$0xff]
    %v270 = vld [vmem:[#allocation2 + $0x58] sm:$0xff]
    %v271 = vld [vmem:[#allocation2 + $0x60] sm:$0xff]
    %v272 = vld [vmem:[#allocation2 + $0x68] sm:$0xff]
    %v273 = vld [vmem:[#allocation2 + $0x70] sm:$0xff]
    %v274 = vld [vmem:[#allocation2 + $0x78] sm:$0xff]
    %275 = vst [vmem:[%s2] sm:$0xff] %v259
    %276 = vst [vmem:[%s2 + $0x8] sm:$0xff] %v260
    %277 = vst [vmem:[%s2 + $0x10] sm:$0xff] %v261
    %278 = vst [vmem:[%s2 + $0x18] sm:$0xff] %v262
    %279 = vst [vmem:[%s2 + $0x20] sm:$0xff] %v263
    %280 = vst [vmem:[%s2 + $0x28] sm:$0xff] %v264
    %281 = vst [vmem:[%s2 + $0x30] sm:$0xff] %v265
    %282 = vst [vmem:[%s2 + $0x38] sm:$0xff] %v266
    %283 = vst [vmem:[%s2 + $0x40] sm:$0xff] %v267
    %284 = vst [vmem:[%s2 + $0x48] sm:$0xff] %v268
    %285 = vst [vmem:[%s2 + $0x50] sm:$0xff] %v269
    %286 = vst [vmem:[%s2 + $0x58] sm:$0xff] %v270
    %287 = vst [vmem:[%s2 + $0x60] sm:$0xff] %v271
    %288 = vst [vmem:[%s2 + $0x68] sm:$0xff] %v272
    %289 = vst [vmem:[%s2 + $0x70] sm:$0xff] %v273
    %290 = vst [vmem:[%s2 + $0x78] sm:$0xff] %v274
  $region17: #{gnn_mix_forward.15} parent=0 // pred_fallthru
    _
  // Predicated region
  $region18: #{gnn_mix_forward.15} parent=0 // pred_check
    _
  $region19: #{gnn_mix_forward.15} parent=0 // pred_check_branch
    %292 = sbr.rel (0) target = $region21
  $region20: #{gnn_mix_forward.15} parent=0 // pred_region
    _
  $region21: #{gnn_mix_forward.15} parent=0 // pred_fallthru
    _
  // Predicated region
  $region22: #{gnn_mix_forward.15} parent=0 // pred_check
    _
  $region23: #{gnn_mix_forward.15} parent=0 // pred_check_branch
    %294 = sbr.rel (0) target = $region25
  $region24: #{gnn_mix_forward.15} parent=0 // pred_region
    _
  $region25: #{gnn_mix_forward.15} parent=0 // pred_fallthru
    _

</llo_original>
